<compile_context>
chip_gen: v5e
topology: v5e:2x2
jax: 0.10.0
libtpu: 0.0.40
codegen_flags: <defaults>
</compile_context>

<pallas_src>
import jax
import jax.numpy as jnp
from jax import lax
from jax.experimental import pallas as pl
from jax.experimental.pallas import tpu as pltpu

# ----- module hyper-parameters / shapes ------------------------------------
KS = 3
PAD = 1
STRIDE = 1
N_PTS = KS * KS                  # 9 deformable sampling points per output pixel
INC = 4
OUTC = 8
B = 2
H = W = 16
HP, WP = H + 2 * PAD, W + 2 * PAD    # zero-padded spatial size (18, 18)
HPP = WPP = 24                       # padded to a multiple of 8 sublanes
S = HP * WP                          # flattened padded spatial (reference only)
NQ = H * W                           # output pixels per image (stride=1), lanes
NQT = B * NQ                         # batch folded into the lane dim (512)
K2C = KS * KS * INC                  # im2col row width for p_conv (36)
SROWS = 40                           # sample-scratch rows: 36 padded to 8n


# ----- Pallas kernel --------------------------------------------------------
def deform_conv2d_kernel(patches_ref, xmat_ref, pw_ref, w2_ref, out_ref, s_ref):
    # p_conv offsets (+ bias via the trailing ones row / bias column) for BOTH
    # images in one MXU matmul: (18, 37) @ (37, 512) -> (18, 512).
    off = jnp.dot(pw_ref[...], patches_ref[...],
                  preferred_element_type=jnp.float32)

    # sampling coordinates p = p_0 + p_n + offset, generated from iota.
    # lane index = b*NQ + i*W + j  (b folded into lanes).
    q_f = lax.broadcasted_iota(jnp.int32, (N_PTS, NQT), 1).astype(jnp.float32)
    n_f = lax.broadcasted_iota(jnp.int32, (N_PTS, NQT), 0).astype(jnp.float32)
    q_l = q_f - jnp.floor(q_f * (1.0 / NQ)) * NQ     # within-image pixel index
    row0 = jnp.floor(q_l * (1.0 / W))                # exact: W, NQ powers of 2
    col0 = q_l - row0 * W
    pn_x = jnp.where(n_f < 3.0, -1.0, jnp.where(n_f < 6.0, 0.0, 1.0))  # n//3 - 1
    pn_y = n_f - 3.0 * (pn_x + 1.0) - 1.0                              # n%3  - 1
    p_x = row0 + 1.0 + pn_x + off[:N_PTS, :]         # (N_PTS, 512) padded coords
    p_y = col0 + 1.0 + pn_y + off[N_PTS:, :]

    # shared sublane-index iota for the weighted one-hots (HPP == WPP == 24)
    iot = lax.broadcasted_iota(jnp.int32, (HPP, NQ), 0).astype(jnp.float32)

    # zero the 4 padding rows of the sample scratch once (their weight columns
    # are zero, but 0 * uninitialized-garbage could be NaN).
    s_ref[N_PTS * INC:, :] = jnp.zeros((SROWS - N_PTS * INC, NQT), jnp.float32)

    for b in range(B):                      # static: images live in lane halves
        for n in range(N_PTS):              # static unroll over the 9 taps
            # per-tap, per-image (1, 256) coordinate rows (128-aligned lane cut)
            px = p_x[n:n + 1, b * NQ:(b + 1) * NQ]
            py = p_y[n:n + 1, b * NQ:(b + 1) * NQ]
            # recompute floor/clip/bilinear weights per tap -> tiny live set
            fx, fy = jnp.floor(px), jnp.floor(py)
            lt_x = jnp.clip(fx, 0.0, HP - 1.0)
            rb_x = jnp.clip(fx + 1.0, 0.0, HP - 1.0)
            lt_y = jnp.clip(fy, 0.0, WP - 1.0)
            rb_y = jnp.clip(fy + 1.0, 0.0, WP - 1.0)
            pxc = jnp.clip(px, 0.0, HP - 1.0)
            pyc = jnp.clip(py, 0.0, WP - 1.0)
            wx_lt = 1.0 + lt_x - pxc
            wx_rb = 1.0 - rb_x + pxc
            wy_lt = 1.0 + lt_y - pyc
            wy_rb = 1.0 - rb_y + pyc

            # weighted one-hots: column (WPP, 256) and row (HPP, 256)
            cw = (jnp.where(iot == lt_y, wy_lt, 0.0)
                  + jnp.where(iot == rb_y, wy_rb, 0.0))
            rw = (jnp.where(iot == lt_x, wx_lt, 0.0)
                  + jnp.where(iot == rb_x, wx_rb, 0.0))

            # column gather+weight on the MXU: (96, 24) @ (24, 256) -> (96, 256)
            # (xmat re-loaded per tap: cheap vld, keeps it out of the live set)
            t = jnp.dot(xmat_ref[b], cw, preferred_element_type=jnp.float32)

            # batched row-weighted reduce over all INC channels at once
            samp = jnp.sum(t.reshape(INC, HPP, NQ) * rw[None, :, :], axis=1)

            # stash this tap's (INC, 256) samples for the final output matmul
            s_ref[n * INC:(n + 1) * INC, b * NQ:(b + 1) * NQ] = samp

    # ks-strided output conv: ONE MXU matmul (8, 40) @ (40, 512) -> (8, 512)
    res = jnp.dot(w2_ref[...], s_ref[...], preferred_element_type=jnp.float32)
    for b in range(B):
        out_ref[b] = res[:, b * NQ:(b + 1) * NQ]


# ----- wrapper (layout plumbing only: padding, im2col, weight re-layout) -----
def deform_conv2d(x_nchw, p_w, p_b, w_main):
    x_nhwc = jnp.transpose(x_nchw, (0, 2, 3, 1)).astype(jnp.float32)
    x_pad = jnp.pad(x_nhwc, ((0, 0), (PAD, PAD), (PAD, PAD), (0, 0)))  # (B,HP,WP,C)

    # im2col for p_conv, built directly in (K2C, B*NQ) lane-dense order, with a
    # trailing ones row so the bias rides the same matmul.
    patch_list = [x_pad[:, r:r + H, s:s + W, :] for r in range(KS) for s in range(KS)]
    patches = jnp.stack(patch_list, axis=0)                      # (9, B, H, W, INC)
    patches = jnp.transpose(patches, (0, 4, 1, 2, 3)).reshape(K2C, NQT)
    patches_aug = jnp.concatenate(
        [patches, jnp.ones((1, NQT), jnp.float32)], axis=0)      # (37, 512)

    # padded image, channel-major rows (c*HPP + r), spatial zero-padded 18 -> 24
    x_cm = jnp.transpose(x_pad, (0, 3, 1, 2))                    # (B, INC, HP, WP)
    x_cm = jnp.pad(x_cm, ((0, 0), (0, 0), (0, HPP - HP), (0, WPP - WP)))
    xmat = x_cm.reshape(B, INC * HPP, WPP)                       # (B, 96, 24)

    # p_conv weight with the bias folded in as the last column: (18, 37)
    pw_t = jnp.transpose(p_w, (0, 2, 3, 1)).reshape(2 * N_PTS, K2C).astype(jnp.float32)
    pw_aug = jnp.concatenate(
        [pw_t, p_b.reshape(2 * N_PTS, 1).astype(jnp.float32)], axis=1)

    # main conv weight, lane-dense (OUTC, 40): w2[o, n*INC + c] = W[o, c, n//3, n%3]
    w2 = jnp.transpose(w_main.reshape(OUTC, INC, N_PTS), (0, 2, 1))
    w2 = w2.reshape(OUTC, N_PTS * INC).astype(jnp.float32)
    w2 = jnp.pad(w2, ((0, 0), (0, SROWS - N_PTS * INC)))

    out = pl.pallas_call(
        deform_conv2d_kernel,
        out_shape=jax.ShapeDtypeStruct((B, OUTC, NQ), jnp.float32),
        grid_spec=pltpu.PrefetchScalarGridSpec(
            num_scalar_prefetch=0,
            grid=(1,),
            in_specs=[
                pl.BlockSpec((K2C + 1, NQT), lambda i: (0, 0)),
                pl.BlockSpec((B, INC * HPP, WPP), lambda i: (0, 0, 0)),
                pl.BlockSpec((2 * N_PTS, K2C + 1), lambda i: (0, 0)),
                pl.BlockSpec((OUTC, SROWS), lambda i: (0, 0)),
            ],
            out_specs=pl.BlockSpec((B, OUTC, NQ), lambda i: (0, 0, 0)),
            scratch_shapes=[pltpu.VMEM((SROWS, NQT), jnp.float32)],
        ),
        compiler_params=pltpu.CompilerParams(dimension_semantics=("arbitrary",)),
    )(patches_aug, xmat, pw_aug, w2)

    # (B, OUTC, NQ) is already NCHW with flattened spatial dims
    return out.reshape(B, OUTC, H, W)


# ----- pure-JAX reference (mirrors the PyTorch forward exactly) --------------
def ref_deform_conv2d(x, p_w, p_b, w_main):
    off = lax.conv_general_dilated(
        x, p_w, window_strides=(STRIDE, STRIDE), padding=((1, 1), (1, 1)),
        dimension_numbers=("NCHW", "OIHW", "NCHW"),
        precision=lax.Precision.HIGHEST) + p_b[None, :, None, None]
    xp = jnp.pad(x, ((0, 0), (0, 0), (PAD, PAD), (PAD, PAD)))
    h_out, w_out = off.shape[2], off.shape[3]
    pn_x = (jnp.arange(N_PTS) // KS - (KS - 1) // 2).astype(jnp.float32)
    pn_y = (jnp.arange(N_PTS) % KS - (KS - 1) // 2).astype(jnp.float32)
    p0_x = (jnp.arange(h_out) * STRIDE + 1).astype(jnp.float32)
    p0_y = (jnp.arange(w_out) * STRIDE + 1).astype(jnp.float32)
    p_x = p0_x[None, None, :, None] + pn_x[None, :, None, None] + off[:, :N_PTS]
    p_y = p0_y[None, None, None, :] + pn_y[None, :, None, None] + off[:, N_PTS:]
    fx, fy = jnp.floor(p_x), jnp.floor(p_y)
    lt_x = jnp.clip(fx, 0, HP - 1); lt_y = jnp.clip(fy, 0, WP - 1)
    rb_x = jnp.clip(fx + 1, 0, HP - 1); rb_y = jnp.clip(fy + 1, 0, WP - 1)
    pxc = jnp.clip(p_x, 0, HP - 1); pyc = jnp.clip(p_y, 0, WP - 1)
    g_lt = (1 + lt_x - pxc) * (1 + lt_y - pyc)
    g_rb = (1 - rb_x + pxc) * (1 - rb_y + pyc)
    g_lb = (1 + lt_x - pxc) * (1 - rb_y + pyc)
    g_rt = (1 - rb_x + pxc) * (1 + lt_y - pyc)
    xflat = xp.reshape(B, INC, S)

    def gather(ix, iy):
        idx = (ix.astype(jnp.int32) * WP + iy.astype(jnp.int32)).reshape(B, 1, -1)
        idx = jnp.broadcast_to(idx, (B, INC, idx.shape[-1]))
        return jnp.take_along_axis(xflat, idx, axis=2).reshape(B, INC, N_PTS, h_out, w_out)

    x_off = (g_lt[:, None] * gather(lt_x, lt_y) + g_rb[:, None] * gather(rb_x, rb_y)
             + g_lb[:, None] * gather(lt_x, rb_y) + g_rt[:, None] * gather(rb_x, lt_y))
    return jnp.einsum("ocn,bcnhw->bohw", w_main.reshape(OUTC, INC, N_PTS), x_off,
                      precision=lax.Precision.HIGHEST)


if __name__ == "__main__":
    key = jax.random.PRNGKey(0)
    k1, k2, k3, k4 = jax.random.split(key, 4)
    x = jax.random.normal(k1, (B, INC, H, W), dtype=jnp.float32)
    # Module __init__ sets p_conv.weight to 0; we use small random weights so
    # the in-kernel offset conv is actually exercised (bias ~ default init).
    p_w = 0.05 * jax.random.normal(k2, (2 * N_PTS, INC, KS, KS), dtype=jnp.float32)
    bound = 1.0 / (INC * KS * KS) ** 0.5
    p_b = jax.random.uniform(k3, (2 * N_PTS,), minval=-bound, maxval=bound,
                             dtype=jnp.float32)
    # self.conv is constructed with bias=None -> no bias
    w_main = jax.random.uniform(k4, (OUTC, INC, KS, KS), minval=-bound,
                                maxval=bound, dtype=jnp.float32)

    out = jax.block_until_ready(deform_conv2d(x, p_w, p_b, w_main))
    ref = jax.block_until_ready(ref_deform_conv2d(x, p_w, p_b, w_main))
    assert out.shape == (B, OUTC, H, W), out.shape
    max_err = float(jnp.max(jnp.abs(out - ref)))
    assert max_err < 5e-2, f"max abs error {max_err}"
    print("KERNEL_OK")
</pallas_src>

<mosaic_0001>
module attributes {stable_mosaic.version = 11 : i64} {
  func.func @deform_conv2d_kernel(%arg0: i32, %arg1: memref<37x512xf32, #tpu.memory_space<vmem>>, %arg2: memref<2x96x24xf32, #tpu.memory_space<vmem>>, %arg3: memref<18x37xf32, #tpu.memory_space<vmem>>, %arg4: memref<8x40xf32, #tpu.memory_space<vmem>>, %arg5: memref<2x8x256xf32, #tpu.memory_space<vmem>>, %arg6: memref<40x512xf32, #tpu.memory_space<vmem>>) attributes {dimension_semantics = [#tpu.dimension_semantics<arbitrary>], iteration_bounds = array<i64: 1>, scalar_prefetch = 0 : i64, scratch_operands = 1 : i64, tpu.core_type = #tpu.core_type<tc>, window_params = [{pipeline_mode = #tpu.pipeline_mode<synchronous>, transform_indices = @transform_0, window_bounds = array<i64: 37, 512>}, {pipeline_mode = #tpu.pipeline_mode<synchronous>, transform_indices = @transform_1, window_bounds = array<i64: 2, 96, 24>}, {pipeline_mode = #tpu.pipeline_mode<synchronous>, transform_indices = @transform_2, window_bounds = array<i64: 18, 37>}, {pipeline_mode = #tpu.pipeline_mode<synchronous>, transform_indices = @transform_3, window_bounds = array<i64: 8, 40>}, {pipeline_mode = #tpu.pipeline_mode<synchronous>, transform_indices = @transform_4, window_bounds = array<i64: 2, 8, 256>}]} {
    %c0 = arith.constant 0 : index
    %c0_0 = arith.constant 0 : index
    %0 = vector.load %arg3[%c0, %c0_0] : memref<18x37xf32, #tpu.memory_space<vmem>>, vector<18x37xf32>
    %c0_1 = arith.constant 0 : index
    %c0_2 = arith.constant 0 : index
    %1 = vector.load %arg1[%c0_1, %c0_2] : memref<37x512xf32, #tpu.memory_space<vmem>>, vector<37x512xf32>
    %cst = arith.constant dense<0.000000e+00> : vector<18x512xf32>
    %2 = tpu.matmul %0, %1, %cst {dimension_numbers = #tpu.dot_dimension_numbers<[1], [0], [0], [1], [0, 0, 1, 1], [], []>} : vector<18x37xf32>, vector<37x512xf32>, vector<18x512xf32> -> vector<18x512xf32>
    %3 = tpu.iota {dimensions = array<i32: 1>} : vector<9x512xi32>
    %4 = arith.sitofp %3 : vector<9x512xi32> to vector<9x512xf32>
    %5 = tpu.iota {dimensions = array<i32: 0>} : vector<9x512xi32>
    %6 = arith.sitofp %5 : vector<9x512xi32> to vector<9x512xf32>
    %cst_3 = arith.constant 3.906250e-03 : f32
    %7 = vector.broadcast %cst_3 : f32 to vector<9x512xf32>
    %8 = arith.mulf %4, %7 : vector<9x512xf32>
    %9 = math.floor %8 : vector<9x512xf32>
    %cst_4 = arith.constant 2.560000e+02 : f32
    %10 = vector.broadcast %cst_4 : f32 to vector<9x512xf32>
    %11 = arith.mulf %9, %10 : vector<9x512xf32>
    %12 = arith.subf %4, %11 : vector<9x512xf32>
    %cst_5 = arith.constant 6.250000e-02 : f32
    %13 = vector.broadcast %cst_5 : f32 to vector<9x512xf32>
    %14 = arith.mulf %12, %13 : vector<9x512xf32>
    %15 = math.floor %14 : vector<9x512xf32>
    %cst_6 = arith.constant 1.600000e+01 : f32
    %16 = vector.broadcast %cst_6 : f32 to vector<9x512xf32>
    %17 = arith.mulf %15, %16 : vector<9x512xf32>
    %18 = arith.subf %12, %17 : vector<9x512xf32>
    %cst_7 = arith.constant 3.000000e+00 : f32
    %19 = vector.broadcast %cst_7 : f32 to vector<9x512xf32>
    %20 = arith.cmpf olt, %6, %19 : vector<9x512xf32>
    %cst_8 = arith.constant 6.000000e+00 : f32
    %21 = vector.broadcast %cst_8 : f32 to vector<9x512xf32>
    %22 = arith.cmpf olt, %6, %21 : vector<9x512xf32>
    %cst_9 = arith.constant 0.000000e+00 : f32
    %cst_10 = arith.constant 1.000000e+00 : f32
    %23 = vector.broadcast %cst_9 : f32 to vector<9x512xf32>
    %24 = vector.broadcast %cst_10 : f32 to vector<9x512xf32>
    %25 = arith.select %22, %23, %24 : vector<9x512xi1>, vector<9x512xf32>
    %cst_11 = arith.constant -1.000000e+00 : f32
    %26 = vector.broadcast %cst_11 : f32 to vector<9x512xf32>
    %27 = arith.select %20, %26, %25 : vector<9x512xi1>, vector<9x512xf32>
    %cst_12 = arith.constant 1.000000e+00 : f32
    %28 = vector.broadcast %cst_12 : f32 to vector<9x512xf32>
    %29 = arith.addf %27, %28 : vector<9x512xf32>
    %cst_13 = arith.constant 3.000000e+00 : f32
    %30 = vector.broadcast %cst_13 : f32 to vector<9x512xf32>
    %31 = arith.mulf %30, %29 : vector<9x512xf32>
    %32 = arith.subf %6, %31 : vector<9x512xf32>
    %cst_14 = arith.constant 1.000000e+00 : f32
    %33 = vector.broadcast %cst_14 : f32 to vector<9x512xf32>
    %34 = arith.subf %32, %33 : vector<9x512xf32>
    %cst_15 = arith.constant 1.000000e+00 : f32
    %35 = vector.broadcast %cst_15 : f32 to vector<9x512xf32>
    %36 = arith.addf %15, %35 : vector<9x512xf32>
    %37 = arith.addf %36, %27 : vector<9x512xf32>
    %38 = vector.extract_strided_slice %2 {offsets = [0, 0], sizes = [9, 512], strides = [1, 1]} : vector<18x512xf32> to vector<9x512xf32>
    %39 = arith.addf %37, %38 : vector<9x512xf32>
    %cst_16 = arith.constant 1.000000e+00 : f32
    %40 = vector.broadcast %cst_16 : f32 to vector<9x512xf32>
    %41 = arith.addf %18, %40 : vector<9x512xf32>
    %42 = arith.addf %41, %34 : vector<9x512xf32>
    %43 = vector.extract_strided_slice %2 {offsets = [9, 0], sizes = [9, 512], strides = [1, 1]} : vector<18x512xf32> to vector<9x512xf32>
    %44 = arith.addf %42, %43 : vector<9x512xf32>
    %45 = tpu.iota {dimensions = array<i32: 0>} : vector<24x256xi32>
    %46 = arith.sitofp %45 : vector<24x256xi32> to vector<24x256xf32>
    %cst_17 = arith.constant 0.000000e+00 : f32
    %47 = vector.broadcast %cst_17 : f32 to vector<4x512xf32>
    %c36 = arith.constant 36 : index
    %c0_18 = arith.constant 0 : index
    %48 = vector.load %arg6[%c36, %c0_18] : memref<40x512xf32, #tpu.memory_space<vmem>>, vector<4x512xf32>
    tpu.vector_store %arg6[%c36, %c0_18], %47 {strides = array<i32>} : memref<40x512xf32, #tpu.memory_space<vmem>>, vector<4x512xf32>,
    %49 = vector.extract_strided_slice %39 {offsets = [0, 0], sizes = [1, 256], strides = [1, 1]} : vector<9x512xf32> to vector<1x256xf32>
    %50 = vector.extract_strided_slice %44 {offsets = [0, 0], sizes = [1, 256], strides = [1, 1]} : vector<9x512xf32> to vector<1x256xf32>
    %51 = math.floor %49 : vector<1x256xf32>
    %52 = math.floor %50 : vector<1x256xf32>
    %cst_19 = arith.constant 0.000000e+00 : f32
    %cst_20 = arith.constant 1.700000e+01 : f32
    %53 = vector.broadcast %cst_19 : f32 to vector<1x256xf32>
    %54 = arith.maximumf %53, %51 : vector<1x256xf32>
    %55 = vector.broadcast %cst_20 : f32 to vector<1x256xf32>
    %56 = arith.minimumf %55, %54 : vector<1x256xf32>
    %cst_21 = arith.constant 1.000000e+00 : f32
    %57 = vector.broadcast %cst_21 : f32 to vector<1x256xf32>
    %58 = arith.addf %51, %57 : vector<1x256xf32>
    %cst_22 = arith.constant 0.000000e+00 : f32
    %cst_23 = arith.constant 1.700000e+01 : f32
    %59 = vector.broadcast %cst_22 : f32 to vector<1x256xf32>
    %60 = arith.maximumf %59, %58 : vector<1x256xf32>
    %61 = vector.broadcast %cst_23 : f32 to vector<1x256xf32>
    %62 = arith.minimumf %61, %60 : vector<1x256xf32>
    %cst_24 = arith.constant 0.000000e+00 : f32
    %cst_25 = arith.constant 1.700000e+01 : f32
    %63 = vector.broadcast %cst_24 : f32 to vector<1x256xf32>
    %64 = arith.maximumf %63, %52 : vector<1x256xf32>
    %65 = vector.broadcast %cst_25 : f32 to vector<1x256xf32>
    %66 = arith.minimumf %65, %64 : vector<1x256xf32>
    %cst_26 = arith.constant 1.000000e+00 : f32
    %67 = vector.broadcast %cst_26 : f32 to vector<1x256xf32>
    %68 = arith.addf %52, %67 : vector<1x256xf32>
    %cst_27 = arith.constant 0.000000e+00 : f32
    %cst_28 = arith.constant 1.700000e+01 : f32
    %69 = vector.broadcast %cst_27 : f32 to vector<1x256xf32>
    %70 = arith.maximumf %69, %68 : vector<1x256xf32>
    %71 = vector.broadcast %cst_28 : f32 to vector<1x256xf32>
    %72 = arith.minimumf %71, %70 : vector<1x256xf32>
    %cst_29 = arith.constant 0.000000e+00 : f32
    %cst_30 = arith.constant 1.700000e+01 : f32
    %73 = vector.broadcast %cst_29 : f32 to vector<1x256xf32>
    %74 = arith.maximumf %73, %49 : vector<1x256xf32>
    %75 = vector.broadcast %cst_30 : f32 to vector<1x256xf32>
    %76 = arith.minimumf %75, %74 : vector<1x256xf32>
    %cst_31 = arith.constant 0.000000e+00 : f32
    %cst_32 = arith.constant 1.700000e+01 : f32
    %77 = vector.broadcast %cst_31 : f32 to vector<1x256xf32>
    %78 = arith.maximumf %77, %50 : vector<1x256xf32>
    %79 = vector.broadcast %cst_32 : f32 to vector<1x256xf32>
    %80 = arith.minimumf %79, %78 : vector<1x256xf32>
    %cst_33 = arith.constant 1.000000e+00 : f32
    %81 = vector.broadcast %cst_33 : f32 to vector<1x256xf32>
    %82 = arith.addf %81, %56 : vector<1x256xf32>
    %83 = arith.subf %82, %76 : vector<1x256xf32>
    %cst_34 = arith.constant 1.000000e+00 : f32
    %84 = vector.broadcast %cst_34 : f32 to vector<1x256xf32>
    %85 = arith.subf %84, %62 : vector<1x256xf32>
    %86 = arith.addf %85, %76 : vector<1x256xf32>
    %cst_35 = arith.constant 1.000000e+00 : f32
    %87 = vector.broadcast %cst_35 : f32 to vector<1x256xf32>
    %88 = arith.addf %87, %66 : vector<1x256xf32>
    %89 = arith.subf %88, %80 : vector<1x256xf32>
    %cst_36 = arith.constant 1.000000e+00 : f32
    %90 = vector.broadcast %cst_36 : f32 to vector<1x256xf32>
    %91 = arith.subf %90, %72 : vector<1x256xf32>
    %92 = arith.addf %91, %80 : vector<1x256xf32>
    %93 = vector.broadcast %66 : vector<1x256xf32> to vector<24x256xf32>
    %94 = arith.cmpf oeq, %46, %93 : vector<24x256xf32>
    %cst_37 = arith.constant 0.000000e+00 : f32
    %95 = vector.shape_cast %89 : vector<1x256xf32> to vector<1x256xf32>
    %96 = vector.broadcast %95 : vector<1x256xf32> to vector<24x256xf32>
    %97 = vector.broadcast %cst_37 : f32 to vector<24x256xf32>
    %98 = arith.select %94, %96, %97 : vector<24x256xi1>, vector<24x256xf32>
    %99 = vector.broadcast %72 : vector<1x256xf32> to vector<24x256xf32>
    %100 = arith.cmpf oeq, %46, %99 : vector<24x256xf32>
    %cst_38 = arith.constant 0.000000e+00 : f32
    %101 = vector.shape_cast %92 : vector<1x256xf32> to vector<1x256xf32>
    %102 = vector.broadcast %101 : vector<1x256xf32> to vector<24x256xf32>
    %103 = vector.broadcast %cst_38 : f32 to vector<24x256xf32>
    %104 = arith.select %100, %102, %103 : vector<24x256xi1>, vector<24x256xf32>
    %105 = arith.addf %98, %104 : vector<24x256xf32>
    %106 = vector.broadcast %56 : vector<1x256xf32> to vector<24x256xf32>
    %107 = arith.cmpf oeq, %46, %106 : vector<24x256xf32>
    %cst_39 = arith.constant 0.000000e+00 : f32
    %108 = vector.shape_cast %83 : vector<1x256xf32> to vector<1x256xf32>
    %109 = vector.broadcast %108 : vector<1x256xf32> to vector<24x256xf32>
    %110 = vector.broadcast %cst_39 : f32 to vector<24x256xf32>
    %111 = arith.select %107, %109, %110 : vector<24x256xi1>, vector<24x256xf32>
    %112 = vector.broadcast %62 : vector<1x256xf32> to vector<24x256xf32>
    %113 = arith.cmpf oeq, %46, %112 : vector<24x256xf32>
    %cst_40 = arith.constant 0.000000e+00 : f32
    %114 = vector.shape_cast %86 : vector<1x256xf32> to vector<1x256xf32>
    %115 = vector.broadcast %114 : vector<1x256xf32> to vector<24x256xf32>
    %116 = vector.broadcast %cst_40 : f32 to vector<24x256xf32>
    %117 = arith.select %113, %115, %116 : vector<24x256xi1>, vector<24x256xf32>
    %118 = arith.addf %111, %117 : vector<24x256xf32>
    %c0_41 = arith.constant 0 : index
    %c0_42 = arith.constant 0 : index
    %c0_43 = arith.constant 0 : index
    %119 = vector.load %arg2[%c0_41, %c0_42, %c0_43] : memref<2x96x24xf32, #tpu.memory_space<vmem>>, vector<1x96x24xf32>
    %120 = vector.shape_cast %119 : vector<1x96x24xf32> to vector<96x24xf32>
    %cst_44 = arith.constant dense<0.000000e+00> : vector<96x256xf32>
    %121 = tpu.matmul %120, %105, %cst_44 {dimension_numbers = #tpu.dot_dimension_numbers<[1], [0], [0], [1], [0, 0, 1, 1], [], []>} : vector<96x24xf32>, vector<24x256xf32>, vector<96x256xf32> -> vector<96x256xf32>
    %122 = vector.shape_cast %121 : vector<96x256xf32> to vector<4x24x256xf32>
    %123 = vector.shape_cast %118 : vector<24x256xf32> to vector<1x24x256xf32>
    %124 = vector.broadcast %123 : vector<1x24x256xf32> to vector<4x24x256xf32>
    %125 = arith.mulf %122, %124 : vector<4x24x256xf32>
    %cst_45 = arith.constant dense<0.000000e+00> : vector<4x256xf32>
    %126 = vector.multi_reduction <add>, %125, %cst_45 [1] : vector<4x24x256xf32> to vector<4x256xf32>
    %c0_46 = arith.constant 0 : index
    %c0_47 = arith.constant 0 : index
    %127 = vector.load %arg6[%c0_46, %c0_47] : memref<40x512xf32, #tpu.memory_space<vmem>>, vector<4x256xf32>
    tpu.vector_store %arg6[%c0_46, %c0_47], %126 {strides = array<i32>} : memref<40x512xf32, #tpu.memory_space<vmem>>, vector<4x256xf32>,
    %128 = vector.extract_strided_slice %39 {offsets = [1, 0], sizes = [1, 256], strides = [1, 1]} : vector<9x512xf32> to vector<1x256xf32>
    %129 = vector.extract_strided_slice %44 {offsets = [1, 0], sizes = [1, 256], strides = [1, 1]} : vector<9x512xf32> to vector<1x256xf32>
    %130 = math.floor %128 : vector<1x256xf32>
    %131 = math.floor %129 : vector<1x256xf32>
    %cst_48 = arith.constant 0.000000e+00 : f32
    %cst_49 = arith.constant 1.700000e+01 : f32
    %132 = vector.broadcast %cst_48 : f32 to vector<1x256xf32>
    %133 = arith.maximumf %132, %130 : vector<1x256xf32>
    %134 = vector.broadcast %cst_49 : f32 to vector<1x256xf32>
    %135 = arith.minimumf %134, %133 : vector<1x256xf32>
    %cst_50 = arith.constant 1.000000e+00 : f32
    %136 = vector.broadcast %cst_50 : f32 to vector<1x256xf32>
    %137 = arith.addf %130, %136 : vector<1x256xf32>
    %cst_51 = arith.constant 0.000000e+00 : f32
    %cst_52 = arith.constant 1.700000e+01 : f32
    %138 = vector.broadcast %cst_51 : f32 to vector<1x256xf32>
    %139 = arith.maximumf %138, %137 : vector<1x256xf32>
    %140 = vector.broadcast %cst_52 : f32 to vector<1x256xf32>
    %141 = arith.minimumf %140, %139 : vector<1x256xf32>
    %cst_53 = arith.constant 0.000000e+00 : f32
    %cst_54 = arith.constant 1.700000e+01 : f32
    %142 = vector.broadcast %cst_53 : f32 to vector<1x256xf32>
    %143 = arith.maximumf %142, %131 : vector<1x256xf32>
    %144 = vector.broadcast %cst_54 : f32 to vector<1x256xf32>
    %145 = arith.minimumf %144, %143 : vector<1x256xf32>
    %cst_55 = arith.constant 1.000000e+00 : f32
    %146 = vector.broadcast %cst_55 : f32 to vector<1x256xf32>
    %147 = arith.addf %131, %146 : vector<1x256xf32>
    %cst_56 = arith.constant 0.000000e+00 : f32
    %cst_57 = arith.constant 1.700000e+01 : f32
    %148 = vector.broadcast %cst_56 : f32 to vector<1x256xf32>
    %149 = arith.maximumf %148, %147 : vector<1x256xf32>
    %150 = vector.broadcast %cst_57 : f32 to vector<1x256xf32>
    %151 = arith.minimumf %150, %149 : vector<1x256xf32>
    %cst_58 = arith.constant 0.000000e+00 : f32
    %cst_59 = arith.constant 1.700000e+01 : f32
    %152 = vector.broadcast %cst_58 : f32 to vector<1x256xf32>
    %153 = arith.maximumf %152, %128 : vector<1x256xf32>
    %154 = vector.broadcast %cst_59 : f32 to vector<1x256xf32>
    %155 = arith.minimumf %154, %153 : vector<1x256xf32>
    %cst_60 = arith.constant 0.000000e+00 : f32
    %cst_61 = arith.constant 1.700000e+01 : f32
    %156 = vector.broadcast %cst_60 : f32 to vector<1x256xf32>
    %157 = arith.maximumf %156, %129 : vector<1x256xf32>
    %158 = vector.broadcast %cst_61 : f32 to vector<1x256xf32>
    %159 = arith.minimumf %158, %157 : vector<1x256xf32>
    %cst_62 = arith.constant 1.000000e+00 : f32
    %160 = vector.broadcast %cst_62 : f32 to vector<1x256xf32>
    %161 = arith.addf %160, %135 : vector<1x256xf32>
    %162 = arith.subf %161, %155 : vector<1x256xf32>
    %cst_63 = arith.constant 1.000000e+00 : f32
    %163 = vector.broadcast %cst_63 : f32 to vector<1x256xf32>
    %164 = arith.subf %163, %141 : vector<1x256xf32>
    %165 = arith.addf %164, %155 : vector<1x256xf32>
    %cst_64 = arith.constant 1.000000e+00 : f32
    %166 = vector.broadcast %cst_64 : f32 to vector<1x256xf32>
    %167 = arith.addf %166, %145 : vector<1x256xf32>
    %168 = arith.subf %167, %159 : vector<1x256xf32>
    %cst_65 = arith.constant 1.000000e+00 : f32
    %169 = vector.broadcast %cst_65 : f32 to vector<1x256xf32>
    %170 = arith.subf %169, %151 : vector<1x256xf32>
    %171 = arith.addf %170, %159 : vector<1x256xf32>
    %172 = vector.broadcast %145 : vector<1x256xf32> to vector<24x256xf32>
    %173 = arith.cmpf oeq, %46, %172 : vector<24x256xf32>
    %cst_66 = arith.constant 0.000000e+00 : f32
    %174 = vector.shape_cast %168 : vector<1x256xf32> to vector<1x256xf32>
    %175 = vector.broadcast %174 : vector<1x256xf32> to vector<24x256xf32>
    %176 = vector.broadcast %cst_66 : f32 to vector<24x256xf32>
    %177 = arith.select %173, %175, %176 : vector<24x256xi1>, vector<24x256xf32>
    %178 = vector.broadcast %151 : vector<1x256xf32> to vector<24x256xf32>
    %179 = arith.cmpf oeq, %46, %178 : vector<24x256xf32>
    %cst_67 = arith.constant 0.000000e+00 : f32
    %180 = vector.shape_cast %171 : vector<1x256xf32> to vector<1x256xf32>
    %181 = vector.broadcast %180 : vector<1x256xf32> to vector<24x256xf32>
    %182 = vector.broadcast %cst_67 : f32 to vector<24x256xf32>
    %183 = arith.select %179, %181, %182 : vector<24x256xi1>, vector<24x256xf32>
    %184 = arith.addf %177, %183 : vector<24x256xf32>
    %185 = vector.broadcast %135 : vector<1x256xf32> to vector<24x256xf32>
    %186 = arith.cmpf oeq, %46, %185 : vector<24x256xf32>
    %cst_68 = arith.constant 0.000000e+00 : f32
    %187 = vector.shape_cast %162 : vector<1x256xf32> to vector<1x256xf32>
    %188 = vector.broadcast %187 : vector<1x256xf32> to vector<24x256xf32>
    %189 = vector.broadcast %cst_68 : f32 to vector<24x256xf32>
    %190 = arith.select %186, %188, %189 : vector<24x256xi1>, vector<24x256xf32>
    %191 = vector.broadcast %141 : vector<1x256xf32> to vector<24x256xf32>
    %192 = arith.cmpf oeq, %46, %191 : vector<24x256xf32>
    %cst_69 = arith.constant 0.000000e+00 : f32
    %193 = vector.shape_cast %165 : vector<1x256xf32> to vector<1x256xf32>
    %194 = vector.broadcast %193 : vector<1x256xf32> to vector<24x256xf32>
    %195 = vector.broadcast %cst_69 : f32 to vector<24x256xf32>
    %196 = arith.select %192, %194, %195 : vector<24x256xi1>, vector<24x256xf32>
    %197 = arith.addf %190, %196 : vector<24x256xf32>
    %c0_70 = arith.constant 0 : index
    %c0_71 = arith.constant 0 : index
    %c0_72 = arith.constant 0 : index
    %198 = vector.load %arg2[%c0_70, %c0_71, %c0_72] : memref<2x96x24xf32, #tpu.memory_space<vmem>>, vector<1x96x24xf32>
    %199 = vector.shape_cast %198 : vector<1x96x24xf32> to vector<96x24xf32>
    %cst_73 = arith.constant dense<0.000000e+00> : vector<96x256xf32>
    %200 = tpu.matmul %199, %184, %cst_73 {dimension_numbers = #tpu.dot_dimension_numbers<[1], [0], [0], [1], [0, 0, 1, 1], [], []>} : vector<96x24xf32>, vector<24x256xf32>, vector<96x256xf32> -> vector<96x256xf32>
    %201 = vector.shape_cast %200 : vector<96x256xf32> to vector<4x24x256xf32>
    %202 = vector.shape_cast %197 : vector<24x256xf32> to vector<1x24x256xf32>
    %203 = vector.broadcast %202 : vector<1x24x256xf32> to vector<4x24x256xf32>
    %204 = arith.mulf %201, %203 : vector<4x24x256xf32>
    %cst_74 = arith.constant dense<0.000000e+00> : vector<4x256xf32>
    %205 = vector.multi_reduction <add>, %204, %cst_74 [1] : vector<4x24x256xf32> to vector<4x256xf32>
    %c4 = arith.constant 4 : index
    %c0_75 = arith.constant 0 : index
    %206 = vector.load %arg6[%c4, %c0_75] : memref<40x512xf32, #tpu.memory_space<vmem>>, vector<4x256xf32>
    tpu.vector_store %arg6[%c4, %c0_75], %205 {strides = array<i32>} : memref<40x512xf32, #tpu.memory_space<vmem>>, vector<4x256xf32>,
    %207 = vector.extract_strided_slice %39 {offsets = [2, 0], sizes = [1, 256], strides = [1, 1]} : vector<9x512xf32> to vector<1x256xf32>
    %208 = vector.extract_strided_slice %44 {offsets = [2, 0], sizes = [1, 256], strides = [1, 1]} : vector<9x512xf32> to vector<1x256xf32>
    %209 = math.floor %207 : vector<1x256xf32>
    %210 = math.floor %208 : vector<1x256xf32>
    %cst_76 = arith.constant 0.000000e+00 : f32
    %cst_77 = arith.constant 1.700000e+01 : f32
    %211 = vector.broadcast %cst_76 : f32 to vector<1x256xf32>
    %212 = arith.maximumf %211, %209 : vector<1x256xf32>
    %213 = vector.broadcast %cst_77 : f32 to vector<1x256xf32>
    %214 = arith.minimumf %213, %212 : vector<1x256xf32>
    %cst_78 = arith.constant 1.000000e+00 : f32
    %215 = vector.broadcast %cst_78 : f32 to vector<1x256xf32>
    %216 = arith.addf %209, %215 : vector<1x256xf32>
    %cst_79 = arith.constant 0.000000e+00 : f32
    %cst_80 = arith.constant 1.700000e+01 : f32
    %217 = vector.broadcast %cst_79 : f32 to vector<1x256xf32>
    %218 = arith.maximumf %217, %216 : vector<1x256xf32>
    %219 = vector.broadcast %cst_80 : f32 to vector<1x256xf32>
    %220 = arith.minimumf %219, %218 : vector<1x256xf32>
    %cst_81 = arith.constant 0.000000e+00 : f32
    %cst_82 = arith.constant 1.700000e+01 : f32
    %221 = vector.broadcast %cst_81 : f32 to vector<1x256xf32>
    %222 = arith.maximumf %221, %210 : vector<1x256xf32>
    %223 = vector.broadcast %cst_82 : f32 to vector<1x256xf32>
    %224 = arith.minimumf %223, %222 : vector<1x256xf32>
    %cst_83 = arith.constant 1.000000e+00 : f32
    %225 = vector.broadcast %cst_83 : f32 to vector<1x256xf32>
    %226 = arith.addf %210, %225 : vector<1x256xf32>
    %cst_84 = arith.constant 0.000000e+00 : f32
    %cst_85 = arith.constant 1.700000e+01 : f32
    %227 = vector.broadcast %cst_84 : f32 to vector<1x256xf32>
    %228 = arith.maximumf %227, %226 : vector<1x256xf32>
    %229 = vector.broadcast %cst_85 : f32 to vector<1x256xf32>
    %230 = arith.minimumf %229, %228 : vector<1x256xf32>
    %cst_86 = arith.constant 0.000000e+00 : f32
    %cst_87 = arith.constant 1.700000e+01 : f32
    %231 = vector.broadcast %cst_86 : f32 to vector<1x256xf32>
    %232 = arith.maximumf %231, %207 : vector<1x256xf32>
    %233 = vector.broadcast %cst_87 : f32 to vector<1x256xf32>
    %234 = arith.minimumf %233, %232 : vector<1x256xf32>
    %cst_88 = arith.constant 0.000000e+00 : f32
    %cst_89 = arith.constant 1.700000e+01 : f32
    %235 = vector.broadcast %cst_88 : f32 to vector<1x256xf32>
    %236 = arith.maximumf %235, %208 : vector<1x256xf32>
    %237 = vector.broadcast %cst_89 : f32 to vector<1x256xf32>
    %238 = arith.minimumf %237, %236 : vector<1x256xf32>
    %cst_90 = arith.constant 1.000000e+00 : f32
    %239 = vector.broadcast %cst_90 : f32 to vector<1x256xf32>
    %240 = arith.addf %239, %214 : vector<1x256xf32>
    %241 = arith.subf %240, %234 : vector<1x256xf32>
    %cst_91 = arith.constant 1.000000e+00 : f32
    %242 = vector.broadcast %cst_91 : f32 to vector<1x256xf32>
    %243 = arith.subf %242, %220 : vector<1x256xf32>
    %244 = arith.addf %243, %234 : vector<1x256xf32>
    %cst_92 = arith.constant 1.000000e+00 : f32
    %245 = vector.broadcast %cst_92 : f32 to vector<1x256xf32>
    %246 = arith.addf %245, %224 : vector<1x256xf32>
    %247 = arith.subf %246, %238 : vector<1x256xf32>
    %cst_93 = arith.constant 1.000000e+00 : f32
    %248 = vector.broadcast %cst_93 : f32 to vector<1x256xf32>
    %249 = arith.subf %248, %230 : vector<1x256xf32>
    %250 = arith.addf %249, %238 : vector<1x256xf32>
    %251 = vector.broadcast %224 : vector<1x256xf32> to vector<24x256xf32>
    %252 = arith.cmpf oeq, %46, %251 : vector<24x256xf32>
    %cst_94 = arith.constant 0.000000e+00 : f32
    %253 = vector.shape_cast %247 : vector<1x256xf32> to vector<1x256xf32>
    %254 = vector.broadcast %253 : vector<1x256xf32> to vector<24x256xf32>
    %255 = vector.broadcast %cst_94 : f32 to vector<24x256xf32>
    %256 = arith.select %252, %254, %255 : vector<24x256xi1>, vector<24x256xf32>
    %257 = vector.broadcast %230 : vector<1x256xf32> to vector<24x256xf32>
    %258 = arith.cmpf oeq, %46, %257 : vector<24x256xf32>
    %cst_95 = arith.constant 0.000000e+00 : f32
    %259 = vector.shape_cast %250 : vector<1x256xf32> to vector<1x256xf32>
    %260 = vector.broadcast %259 : vector<1x256xf32> to vector<24x256xf32>
    %261 = vector.broadcast %cst_95 : f32 to vector<24x256xf32>
    %262 = arith.select %258, %260, %261 : vector<24x256xi1>, vector<24x256xf32>
    %263 = arith.addf %256, %262 : vector<24x256xf32>
    %264 = vector.broadcast %214 : vector<1x256xf32> to vector<24x256xf32>
    %265 = arith.cmpf oeq, %46, %264 : vector<24x256xf32>
    %cst_96 = arith.constant 0.000000e+00 : f32
    %266 = vector.shape_cast %241 : vector<1x256xf32> to vector<1x256xf32>
    %267 = vector.broadcast %266 : vector<1x256xf32> to vector<24x256xf32>
    %268 = vector.broadcast %cst_96 : f32 to vector<24x256xf32>
    %269 = arith.select %265, %267, %268 : vector<24x256xi1>, vector<24x256xf32>
    %270 = vector.broadcast %220 : vector<1x256xf32> to vector<24x256xf32>
    %271 = arith.cmpf oeq, %46, %270 : vector<24x256xf32>
    %cst_97 = arith.constant 0.000000e+00 : f32
    %272 = vector.shape_cast %244 : vector<1x256xf32> to vector<1x256xf32>
    %273 = vector.broadcast %272 : vector<1x256xf32> to vector<24x256xf32>
    %274 = vector.broadcast %cst_97 : f32 to vector<24x256xf32>
    %275 = arith.select %271, %273, %274 : vector<24x256xi1>, vector<24x256xf32>
    %276 = arith.addf %269, %275 : vector<24x256xf32>
    %c0_98 = arith.constant 0 : index
    %c0_99 = arith.constant 0 : index
    %c0_100 = arith.constant 0 : index
    %277 = vector.load %arg2[%c0_98, %c0_99, %c0_100] : memref<2x96x24xf32, #tpu.memory_space<vmem>>, vector<1x96x24xf32>
    %278 = vector.shape_cast %277 : vector<1x96x24xf32> to vector<96x24xf32>
    %cst_101 = arith.constant dense<0.000000e+00> : vector<96x256xf32>
    %279 = tpu.matmul %278, %263, %cst_101 {dimension_numbers = #tpu.dot_dimension_numbers<[1], [0], [0], [1], [0, 0, 1, 1], [], []>} : vector<96x24xf32>, vector<24x256xf32>, vector<96x256xf32> -> vector<96x256xf32>
    %280 = vector.shape_cast %279 : vector<96x256xf32> to vector<4x24x256xf32>
    %281 = vector.shape_cast %276 : vector<24x256xf32> to vector<1x24x256xf32>
    %282 = vector.broadcast %281 : vector<1x24x256xf32> to vector<4x24x256xf32>
    %283 = arith.mulf %280, %282 : vector<4x24x256xf32>
    %cst_102 = arith.constant dense<0.000000e+00> : vector<4x256xf32>
    %284 = vector.multi_reduction <add>, %283, %cst_102 [1] : vector<4x24x256xf32> to vector<4x256xf32>
    %c8 = arith.constant 8 : index
    %c0_103 = arith.constant 0 : index
    %285 = vector.load %arg6[%c8, %c0_103] : memref<40x512xf32, #tpu.memory_space<vmem>>, vector<4x256xf32>
    tpu.vector_store %arg6[%c8, %c0_103], %284 {strides = array<i32>} : memref<40x512xf32, #tpu.memory_space<vmem>>, vector<4x256xf32>,
    %286 = vector.extract_strided_slice %39 {offsets = [3, 0], sizes = [1, 256], strides = [1, 1]} : vector<9x512xf32> to vector<1x256xf32>
    %287 = vector.extract_strided_slice %44 {offsets = [3, 0], sizes = [1, 256], strides = [1, 1]} : vector<9x512xf32> to vector<1x256xf32>
    %288 = math.floor %286 : vector<1x256xf32>
    %289 = math.floor %287 : vector<1x256xf32>
    %cst_104 = arith.constant 0.000000e+00 : f32
    %cst_105 = arith.constant 1.700000e+01 : f32
    %290 = vector.broadcast %cst_104 : f32 to vector<1x256xf32>
    %291 = arith.maximumf %290, %288 : vector<1x256xf32>
    %292 = vector.broadcast %cst_105 : f32 to vector<1x256xf32>
    %293 = arith.minimumf %292, %291 : vector<1x256xf32>
    %cst_106 = arith.constant 1.000000e+00 : f32
    %294 = vector.broadcast %cst_106 : f32 to vector<1x256xf32>
    %295 = arith.addf %288, %294 : vector<1x256xf32>
    %cst_107 = arith.constant 0.000000e+00 : f32
    %cst_108 = arith.constant 1.700000e+01 : f32
    %296 = vector.broadcast %cst_107 : f32 to vector<1x256xf32>
    %297 = arith.maximumf %296, %295 : vector<1x256xf32>
    %298 = vector.broadcast %cst_108 : f32 to vector<1x256xf32>
    %299 = arith.minimumf %298, %297 : vector<1x256xf32>
    %cst_109 = arith.constant 0.000000e+00 : f32
    %cst_110 = arith.constant 1.700000e+01 : f32
    %300 = vector.broadcast %cst_109 : f32 to vector<1x256xf32>
    %301 = arith.maximumf %300, %289 : vector<1x256xf32>
    %302 = vector.broadcast %cst_110 : f32 to vector<1x256xf32>
    %303 = arith.minimumf %302, %301 : vector<1x256xf32>
    %cst_111 = arith.constant 1.000000e+00 : f32
    %304 = vector.broadcast %cst_111 : f32 to vector<1x256xf32>
    %305 = arith.addf %289, %304 : vector<1x256xf32>
    %cst_112 = arith.constant 0.000000e+00 : f32
    %cst_113 = arith.constant 1.700000e+01 : f32
    %306 = vector.broadcast %cst_112 : f32 to vector<1x256xf32>
    %307 = arith.maximumf %306, %305 : vector<1x256xf32>
    %308 = vector.broadcast %cst_113 : f32 to vector<1x256xf32>
    %309 = arith.minimumf %308, %307 : vector<1x256xf32>
    %cst_114 = arith.constant 0.000000e+00 : f32
    %cst_115 = arith.constant 1.700000e+01 : f32
    %310 = vector.broadcast %cst_114 : f32 to vector<1x256xf32>
    %311 = arith.maximumf %310, %286 : vector<1x256xf32>
    %312 = vector.broadcast %cst_115 : f32 to vector<1x256xf32>
    %313 = arith.minimumf %312, %311 : vector<1x256xf32>
    %cst_116 = arith.constant 0.000000e+00 : f32
    %cst_117 = arith.constant 1.700000e+01 : f32
    %314 = vector.broadcast %cst_116 : f32 to vector<1x256xf32>
    %315 = arith.maximumf %314, %287 : vector<1x256xf32>
    %316 = vector.broadcast %cst_117 : f32 to vector<1x256xf32>
    %317 = arith.minimumf %316, %315 : vector<1x256xf32>
    %cst_118 = arith.constant 1.000000e+00 : f32
    %318 = vector.broadcast %cst_118 : f32 to vector<1x256xf32>
    %319 = arith.addf %318, %293 : vector<1x256xf32>
    %320 = arith.subf %319, %313 : vector<1x256xf32>
    %cst_119 = arith.constant 1.000000e+00 : f32
    %321 = vector.broadcast %cst_119 : f32 to vector<1x256xf32>
    %322 = arith.subf %321, %299 : vector<1x256xf32>
    %323 = arith.addf %322, %313 : vector<1x256xf32>
    %cst_120 = arith.constant 1.000000e+00 : f32
    %324 = vector.broadcast %cst_120 : f32 to vector<1x256xf32>
    %325 = arith.addf %324, %303 : vector<1x256xf32>
    %326 = arith.subf %325, %317 : vector<1x256xf32>
    %cst_121 = arith.constant 1.000000e+00 : f32
    %327 = vector.broadcast %cst_121 : f32 to vector<1x256xf32>
    %328 = arith.subf %327, %309 : vector<1x256xf32>
    %329 = arith.addf %328, %317 : vector<1x256xf32>
    %330 = vector.broadcast %303 : vector<1x256xf32> to vector<24x256xf32>
    %331 = arith.cmpf oeq, %46, %330 : vector<24x256xf32>
    %cst_122 = arith.constant 0.000000e+00 : f32
    %332 = vector.shape_cast %326 : vector<1x256xf32> to vector<1x256xf32>
    %333 = vector.broadcast %332 : vector<1x256xf32> to vector<24x256xf32>
    %334 = vector.broadcast %cst_122 : f32 to vector<24x256xf32>
    %335 = arith.select %331, %333, %334 : vector<24x256xi1>, vector<24x256xf32>
    %336 = vector.broadcast %309 : vector<1x256xf32> to vector<24x256xf32>
    %337 = arith.cmpf oeq, %46, %336 : vector<24x256xf32>
    %cst_123 = arith.constant 0.000000e+00 : f32
    %338 = vector.shape_cast %329 : vector<1x256xf32> to vector<1x256xf32>
    %339 = vector.broadcast %338 : vector<1x256xf32> to vector<24x256xf32>
    %340 = vector.broadcast %cst_123 : f32 to vector<24x256xf32>
    %341 = arith.select %337, %339, %340 : vector<24x256xi1>, vector<24x256xf32>
    %342 = arith.addf %335, %341 : vector<24x256xf32>
    %343 = vector.broadcast %293 : vector<1x256xf32> to vector<24x256xf32>
    %344 = arith.cmpf oeq, %46, %343 : vector<24x256xf32>
    %cst_124 = arith.constant 0.000000e+00 : f32
    %345 = vector.shape_cast %320 : vector<1x256xf32> to vector<1x256xf32>
    %346 = vector.broadcast %345 : vector<1x256xf32> to vector<24x256xf32>
    %347 = vector.broadcast %cst_124 : f32 to vector<24x256xf32>
    %348 = arith.select %344, %346, %347 : vector<24x256xi1>, vector<24x256xf32>
    %349 = vector.broadcast %299 : vector<1x256xf32> to vector<24x256xf32>
    %350 = arith.cmpf oeq, %46, %349 : vector<24x256xf32>
    %cst_125 = arith.constant 0.000000e+00 : f32
    %351 = vector.shape_cast %323 : vector<1x256xf32> to vector<1x256xf32>
    %352 = vector.broadcast %351 : vector<1x256xf32> to vector<24x256xf32>
    %353 = vector.broadcast %cst_125 : f32 to vector<24x256xf32>
    %354 = arith.select %350, %352, %353 : vector<24x256xi1>, vector<24x256xf32>
    %355 = arith.addf %348, %354 : vector<24x256xf32>
    %c0_126 = arith.constant 0 : index
    %c0_127 = arith.constant 0 : index
    %c0_128 = arith.constant 0 : index
    %356 = vector.load %arg2[%c0_126, %c0_127, %c0_128] : memref<2x96x24xf32, #tpu.memory_space<vmem>>, vector<1x96x24xf32>
    %357 = vector.shape_cast %356 : vector<1x96x24xf32> to vector<96x24xf32>
    %cst_129 = arith.constant dense<0.000000e+00> : vector<96x256xf32>
    %358 = tpu.matmul %357, %342, %cst_129 {dimension_numbers = #tpu.dot_dimension_numbers<[1], [0], [0], [1], [0, 0, 1, 1], [], []>} : vector<96x24xf32>, vector<24x256xf32>, vector<96x256xf32> -> vector<96x256xf32>
    %359 = vector.shape_cast %358 : vector<96x256xf32> to vector<4x24x256xf32>
    %360 = vector.shape_cast %355 : vector<24x256xf32> to vector<1x24x256xf32>
    %361 = vector.broadcast %360 : vector<1x24x256xf32> to vector<4x24x256xf32>
    %362 = arith.mulf %359, %361 : vector<4x24x256xf32>
    %cst_130 = arith.constant dense<0.000000e+00> : vector<4x256xf32>
    %363 = vector.multi_reduction <add>, %362, %cst_130 [1] : vector<4x24x256xf32> to vector<4x256xf32>
    %c12 = arith.constant 12 : index
    %c0_131 = arith.constant 0 : index
    %364 = vector.load %arg6[%c12, %c0_131] : memref<40x512xf32, #tpu.memory_space<vmem>>, vector<4x256xf32>
    tpu.vector_store %arg6[%c12, %c0_131], %363 {strides = array<i32>} : memref<40x512xf32, #tpu.memory_space<vmem>>, vector<4x256xf32>,
    %365 = vector.extract_strided_slice %39 {offsets = [4, 0], sizes = [1, 256], strides = [1, 1]} : vector<9x512xf32> to vector<1x256xf32>
    %366 = vector.extract_strided_slice %44 {offsets = [4, 0], sizes = [1, 256], strides = [1, 1]} : vector<9x512xf32> to vector<1x256xf32>
    %367 = math.floor %365 : vector<1x256xf32>
    %368 = math.floor %366 : vector<1x256xf32>
    %cst_132 = arith.constant 0.000000e+00 : f32
    %cst_133 = arith.constant 1.700000e+01 : f32
    %369 = vector.broadcast %cst_132 : f32 to vector<1x256xf32>
    %370 = arith.maximumf %369, %367 : vector<1x256xf32>
    %371 = vector.broadcast %cst_133 : f32 to vector<1x256xf32>
    %372 = arith.minimumf %371, %370 : vector<1x256xf32>
    %cst_134 = arith.constant 1.000000e+00 : f32
    %373 = vector.broadcast %cst_134 : f32 to vector<1x256xf32>
    %374 = arith.addf %367, %373 : vector<1x256xf32>
    %cst_135 = arith.constant 0.000000e+00 : f32
    %cst_136 = arith.constant 1.700000e+01 : f32
    %375 = vector.broadcast %cst_135 : f32 to vector<1x256xf32>
    %376 = arith.maximumf %375, %374 : vector<1x256xf32>
    %377 = vector.broadcast %cst_136 : f32 to vector<1x256xf32>
    %378 = arith.minimumf %377, %376 : vector<1x256xf32>
    %cst_137 = arith.constant 0.000000e+00 : f32
    %cst_138 = arith.constant 1.700000e+01 : f32
    %379 = vector.broadcast %cst_137 : f32 to vector<1x256xf32>
    %380 = arith.maximumf %379, %368 : vector<1x256xf32>
    %381 = vector.broadcast %cst_138 : f32 to vector<1x256xf32>
    %382 = arith.minimumf %381, %380 : vector<1x256xf32>
    %cst_139 = arith.constant 1.000000e+00 : f32
    %383 = vector.broadcast %cst_139 : f32 to vector<1x256xf32>
    %384 = arith.addf %368, %383 : vector<1x256xf32>
    %cst_140 = arith.constant 0.000000e+00 : f32
    %cst_141 = arith.constant 1.700000e+01 : f32
    %385 = vector.broadcast %cst_140 : f32 to vector<1x256xf32>
    %386 = arith.maximumf %385, %384 : vector<1x256xf32>
    %387 = vector.broadcast %cst_141 : f32 to vector<1x256xf32>
    %388 = arith.minimumf %387, %386 : vector<1x256xf32>
    %cst_142 = arith.constant 0.000000e+00 : f32
    %cst_143 = arith.constant 1.700000e+01 : f32
    %389 = vector.broadcast %cst_142 : f32 to vector<1x256xf32>
    %390 = arith.maximumf %389, %365 : vector<1x256xf32>
    %391 = vector.broadcast %cst_143 : f32 to vector<1x256xf32>
    %392 = arith.minimumf %391, %390 : vector<1x256xf32>
    %cst_144 = arith.constant 0.000000e+00 : f32
    %cst_145 = arith.constant 1.700000e+01 : f32
    %393 = vector.broadcast %cst_144 : f32 to vector<1x256xf32>
    %394 = arith.maximumf %393, %366 : vector<1x256xf32>
    %395 = vector.broadcast %cst_145 : f32 to vector<1x256xf32>
    %396 = arith.minimumf %395, %394 : vector<1x256xf32>
    %cst_146 = arith.constant 1.000000e+00 : f32
    %397 = vector.broadcast %cst_146 : f32 to vector<1x256xf32>
    %398 = arith.addf %397, %372 : vector<1x256xf32>
    %399 = arith.subf %398, %392 : vector<1x256xf32>
    %cst_147 = arith.constant 1.000000e+00 : f32
    %400 = vector.broadcast %cst_147 : f32 to vector<1x256xf32>
    %401 = arith.subf %400, %378 : vector<1x256xf32>
    %402 = arith.addf %401, %392 : vector<1x256xf32>
    %cst_148 = arith.constant 1.000000e+00 : f32
    %403 = vector.broadcast %cst_148 : f32 to vector<1x256xf32>
    %404 = arith.addf %403, %382 : vector<1x256xf32>
    %405 = arith.subf %404, %396 : vector<1x256xf32>
    %cst_149 = arith.constant 1.000000e+00 : f32
    %406 = vector.broadcast %cst_149 : f32 to vector<1x256xf32>
    %407 = arith.subf %406, %388 : vector<1x256xf32>
    %408 = arith.addf %407, %396 : vector<1x256xf32>
    %409 = vector.broadcast %382 : vector<1x256xf32> to vector<24x256xf32>
    %410 = arith.cmpf oeq, %46, %409 : vector<24x256xf32>
    %cst_150 = arith.constant 0.000000e+00 : f32
    %411 = vector.shape_cast %405 : vector<1x256xf32> to vector<1x256xf32>
    %412 = vector.broadcast %411 : vector<1x256xf32> to vector<24x256xf32>
    %413 = vector.broadcast %cst_150 : f32 to vector<24x256xf32>
    %414 = arith.select %410, %412, %413 : vector<24x256xi1>, vector<24x256xf32>
    %415 = vector.broadcast %388 : vector<1x256xf32> to vector<24x256xf32>
    %416 = arith.cmpf oeq, %46, %415 : vector<24x256xf32>
    %cst_151 = arith.constant 0.000000e+00 : f32
    %417 = vector.shape_cast %408 : vector<1x256xf32> to vector<1x256xf32>
    %418 = vector.broadcast %417 : vector<1x256xf32> to vector<24x256xf32>
    %419 = vector.broadcast %cst_151 : f32 to vector<24x256xf32>
    %420 = arith.select %416, %418, %419 : vector<24x256xi1>, vector<24x256xf32>
    %421 = arith.addf %414, %420 : vector<24x256xf32>
    %422 = vector.broadcast %372 : vector<1x256xf32> to vector<24x256xf32>
    %423 = arith.cmpf oeq, %46, %422 : vector<24x256xf32>
    %cst_152 = arith.constant 0.000000e+00 : f32
    %424 = vector.shape_cast %399 : vector<1x256xf32> to vector<1x256xf32>
    %425 = vector.broadcast %424 : vector<1x256xf32> to vector<24x256xf32>
    %426 = vector.broadcast %cst_152 : f32 to vector<24x256xf32>
    %427 = arith.select %423, %425, %426 : vector<24x256xi1>, vector<24x256xf32>
    %428 = vector.broadcast %378 : vector<1x256xf32> to vector<24x256xf32>
    %429 = arith.cmpf oeq, %46, %428 : vector<24x256xf32>
    %cst_153 = arith.constant 0.000000e+00 : f32
    %430 = vector.shape_cast %402 : vector<1x256xf32> to vector<1x256xf32>
    %431 = vector.broadcast %430 : vector<1x256xf32> to vector<24x256xf32>
    %432 = vector.broadcast %cst_153 : f32 to vector<24x256xf32>
    %433 = arith.select %429, %431, %432 : vector<24x256xi1>, vector<24x256xf32>
    %434 = arith.addf %427, %433 : vector<24x256xf32>
    %c0_154 = arith.constant 0 : index
    %c0_155 = arith.constant 0 : index
    %c0_156 = arith.constant 0 : index
    %435 = vector.load %arg2[%c0_154, %c0_155, %c0_156] : memref<2x96x24xf32, #tpu.memory_space<vmem>>, vector<1x96x24xf32>
    %436 = vector.shape_cast %435 : vector<1x96x24xf32> to vector<96x24xf32>
    %cst_157 = arith.constant dense<0.000000e+00> : vector<96x256xf32>
    %437 = tpu.matmul %436, %421, %cst_157 {dimension_numbers = #tpu.dot_dimension_numbers<[1], [0], [0], [1], [0, 0, 1, 1], [], []>} : vector<96x24xf32>, vector<24x256xf32>, vector<96x256xf32> -> vector<96x256xf32>
    %438 = vector.shape_cast %437 : vector<96x256xf32> to vector<4x24x256xf32>
    %439 = vector.shape_cast %434 : vector<24x256xf32> to vector<1x24x256xf32>
    %440 = vector.broadcast %439 : vector<1x24x256xf32> to vector<4x24x256xf32>
    %441 = arith.mulf %438, %440 : vector<4x24x256xf32>
    %cst_158 = arith.constant dense<0.000000e+00> : vector<4x256xf32>
    %442 = vector.multi_reduction <add>, %441, %cst_158 [1] : vector<4x24x256xf32> to vector<4x256xf32>
    %c16 = arith.constant 16 : index
    %c0_159 = arith.constant 0 : index
    %443 = vector.load %arg6[%c16, %c0_159] : memref<40x512xf32, #tpu.memory_space<vmem>>, vector<4x256xf32>
    tpu.vector_store %arg6[%c16, %c0_159], %442 {strides = array<i32>} : memref<40x512xf32, #tpu.memory_space<vmem>>, vector<4x256xf32>,
    %444 = vector.extract_strided_slice %39 {offsets = [5, 0], sizes = [1, 256], strides = [1, 1]} : vector<9x512xf32> to vector<1x256xf32>
    %445 = vector.extract_strided_slice %44 {offsets = [5, 0], sizes = [1, 256], strides = [1, 1]} : vector<9x512xf32> to vector<1x256xf32>
    %446 = math.floor %444 : vector<1x256xf32>
    %447 = math.floor %445 : vector<1x256xf32>
    %cst_160 = arith.constant 0.000000e+00 : f32
    %cst_161 = arith.constant 1.700000e+01 : f32
    %448 = vector.broadcast %cst_160 : f32 to vector<1x256xf32>
    %449 = arith.maximumf %448, %446 : vector<1x256xf32>
    %450 = vector.broadcast %cst_161 : f32 to vector<1x256xf32>
    %451 = arith.minimumf %450, %449 : vector<1x256xf32>
    %cst_162 = arith.constant 1.000000e+00 : f32
    %452 = vector.broadcast %cst_162 : f32 to vector<1x256xf32>
    %453 = arith.addf %446, %452 : vector<1x256xf32>
    %cst_163 = arith.constant 0.000000e+00 : f32
    %cst_164 = arith.constant 1.700000e+01 : f32
    %454 = vector.broadcast %cst_163 : f32 to vector<1x256xf32>
    %455 = arith.maximumf %454, %453 : vector<1x256xf32>
    %456 = vector.broadcast %cst_164 : f32 to vector<1x256xf32>
    %457 = arith.minimumf %456, %455 : vector<1x256xf32>
    %cst_165 = arith.constant 0.000000e+00 : f32
    %cst_166 = arith.constant 1.700000e+01 : f32
    %458 = vector.broadcast %cst_165 : f32 to vector<1x256xf32>
    %459 = arith.maximumf %458, %447 : vector<1x256xf32>
    %460 = vector.broadcast %cst_166 : f32 to vector<1x256xf32>
    %461 = arith.minimumf %460, %459 : vector<1x256xf32>
    %cst_167 = arith.constant 1.000000e+00 : f32
    %462 = vector.broadcast %cst_167 : f32 to vector<1x256xf32>
    %463 = arith.addf %447, %462 : vector<1x256xf32>
    %cst_168 = arith.constant 0.000000e+00 : f32
    %cst_169 = arith.constant 1.700000e+01 : f32
    %464 = vector.broadcast %cst_168 : f32 to vector<1x256xf32>
    %465 = arith.maximumf %464, %463 : vector<1x256xf32>
    %466 = vector.broadcast %cst_169 : f32 to vector<1x256xf32>
    %467 = arith.minimumf %466, %465 : vector<1x256xf32>
    %cst_170 = arith.constant 0.000000e+00 : f32
    %cst_171 = arith.constant 1.700000e+01 : f32
    %468 = vector.broadcast %cst_170 : f32 to vector<1x256xf32>
    %469 = arith.maximumf %468, %444 : vector<1x256xf32>
    %470 = vector.broadcast %cst_171 : f32 to vector<1x256xf32>
    %471 = arith.minimumf %470, %469 : vector<1x256xf32>
    %cst_172 = arith.constant 0.000000e+00 : f32
    %cst_173 = arith.constant 1.700000e+01 : f32
    %472 = vector.broadcast %cst_172 : f32 to vector<1x256xf32>
    %473 = arith.maximumf %472, %445 : vector<1x256xf32>
    %474 = vector.broadcast %cst_173 : f32 to vector<1x256xf32>
    %475 = arith.minimumf %474, %473 : vector<1x256xf32>
    %cst_174 = arith.constant 1.000000e+00 : f32
    %476 = vector.broadcast %cst_174 : f32 to vector<1x256xf32>
    %477 = arith.addf %476, %451 : vector<1x256xf32>
    %478 = arith.subf %477, %471 : vector<1x256xf32>
    %cst_175 = arith.constant 1.000000e+00 : f32
    %479 = vector.broadcast %cst_175 : f32 to vector<1x256xf32>
    %480 = arith.subf %479, %457 : vector<1x256xf32>
    %481 = arith.addf %480, %471 : vector<1x256xf32>
    %cst_176 = arith.constant 1.000000e+00 : f32
    %482 = vector.broadcast %cst_176 : f32 to vector<1x256xf32>
    %483 = arith.addf %482, %461 : vector<1x256xf32>
    %484 = arith.subf %483, %475 : vector<1x256xf32>
    %cst_177 = arith.constant 1.000000e+00 : f32
    %485 = vector.broadcast %cst_177 : f32 to vector<1x256xf32>
    %486 = arith.subf %485, %467 : vector<1x256xf32>
    %487 = arith.addf %486, %475 : vector<1x256xf32>
    %488 = vector.broadcast %461 : vector<1x256xf32> to vector<24x256xf32>
    %489 = arith.cmpf oeq, %46, %488 : vector<24x256xf32>
    %cst_178 = arith.constant 0.000000e+00 : f32
    %490 = vector.shape_cast %484 : vector<1x256xf32> to vector<1x256xf32>
    %491 = vector.broadcast %490 : vector<1x256xf32> to vector<24x256xf32>
    %492 = vector.broadcast %cst_178 : f32 to vector<24x256xf32>
    %493 = arith.select %489, %491, %492 : vector<24x256xi1>, vector<24x256xf32>
    %494 = vector.broadcast %467 : vector<1x256xf32> to vector<24x256xf32>
    %495 = arith.cmpf oeq, %46, %494 : vector<24x256xf32>
    %cst_179 = arith.constant 0.000000e+00 : f32
    %496 = vector.shape_cast %487 : vector<1x256xf32> to vector<1x256xf32>
    %497 = vector.broadcast %496 : vector<1x256xf32> to vector<24x256xf32>
    %498 = vector.broadcast %cst_179 : f32 to vector<24x256xf32>
    %499 = arith.select %495, %497, %498 : vector<24x256xi1>, vector<24x256xf32>
    %500 = arith.addf %493, %499 : vector<24x256xf32>
    %501 = vector.broadcast %451 : vector<1x256xf32> to vector<24x256xf32>
    %502 = arith.cmpf oeq, %46, %501 : vector<24x256xf32>
    %cst_180 = arith.constant 0.000000e+00 : f32
    %503 = vector.shape_cast %478 : vector<1x256xf32> to vector<1x256xf32>
    %504 = vector.broadcast %503 : vector<1x256xf32> to vector<24x256xf32>
    %505 = vector.broadcast %cst_180 : f32 to vector<24x256xf32>
    %506 = arith.select %502, %504, %505 : vector<24x256xi1>, vector<24x256xf32>
    %507 = vector.broadcast %457 : vector<1x256xf32> to vector<24x256xf32>
    %508 = arith.cmpf oeq, %46, %507 : vector<24x256xf32>
    %cst_181 = arith.constant 0.000000e+00 : f32
    %509 = vector.shape_cast %481 : vector<1x256xf32> to vector<1x256xf32>
    %510 = vector.broadcast %509 : vector<1x256xf32> to vector<24x256xf32>
    %511 = vector.broadcast %cst_181 : f32 to vector<24x256xf32>
    %512 = arith.select %508, %510, %511 : vector<24x256xi1>, vector<24x256xf32>
    %513 = arith.addf %506, %512 : vector<24x256xf32>
    %c0_182 = arith.constant 0 : index
    %c0_183 = arith.constant 0 : index
    %c0_184 = arith.constant 0 : index
    %514 = vector.load %arg2[%c0_182, %c0_183, %c0_184] : memref<2x96x24xf32, #tpu.memory_space<vmem>>, vector<1x96x24xf32>
    %515 = vector.shape_cast %514 : vector<1x96x24xf32> to vector<96x24xf32>
    %cst_185 = arith.constant dense<0.000000e+00> : vector<96x256xf32>
    %516 = tpu.matmul %515, %500, %cst_185 {dimension_numbers = #tpu.dot_dimension_numbers<[1], [0], [0], [1], [0, 0, 1, 1], [], []>} : vector<96x24xf32>, vector<24x256xf32>, vector<96x256xf32> -> vector<96x256xf32>
    %517 = vector.shape_cast %516 : vector<96x256xf32> to vector<4x24x256xf32>
    %518 = vector.shape_cast %513 : vector<24x256xf32> to vector<1x24x256xf32>
    %519 = vector.broadcast %518 : vector<1x24x256xf32> to vector<4x24x256xf32>
    %520 = arith.mulf %517, %519 : vector<4x24x256xf32>
    %cst_186 = arith.constant dense<0.000000e+00> : vector<4x256xf32>
    %521 = vector.multi_reduction <add>, %520, %cst_186 [1] : vector<4x24x256xf32> to vector<4x256xf32>
    %c20 = arith.constant 20 : index
    %c0_187 = arith.constant 0 : index
    %522 = vector.load %arg6[%c20, %c0_187] : memref<40x512xf32, #tpu.memory_space<vmem>>, vector<4x256xf32>
    tpu.vector_store %arg6[%c20, %c0_187], %521 {strides = array<i32>} : memref<40x512xf32, #tpu.memory_space<vmem>>, vector<4x256xf32>,
    %523 = vector.extract_strided_slice %39 {offsets = [6, 0], sizes = [1, 256], strides = [1, 1]} : vector<9x512xf32> to vector<1x256xf32>
    %524 = vector.extract_strided_slice %44 {offsets = [6, 0], sizes = [1, 256], strides = [1, 1]} : vector<9x512xf32> to vector<1x256xf32>
    %525 = math.floor %523 : vector<1x256xf32>
    %526 = math.floor %524 : vector<1x256xf32>
    %cst_188 = arith.constant 0.000000e+00 : f32
    %cst_189 = arith.constant 1.700000e+01 : f32
    %527 = vector.broadcast %cst_188 : f32 to vector<1x256xf32>
    %528 = arith.maximumf %527, %525 : vector<1x256xf32>
    %529 = vector.broadcast %cst_189 : f32 to vector<1x256xf32>
    %530 = arith.minimumf %529, %528 : vector<1x256xf32>
    %cst_190 = arith.constant 1.000000e+00 : f32
    %531 = vector.broadcast %cst_190 : f32 to vector<1x256xf32>
    %532 = arith.addf %525, %531 : vector<1x256xf32>
    %cst_191 = arith.constant 0.000000e+00 : f32
    %cst_192 = arith.constant 1.700000e+01 : f32
    %533 = vector.broadcast %cst_191 : f32 to vector<1x256xf32>
    %534 = arith.maximumf %533, %532 : vector<1x256xf32>
    %535 = vector.broadcast %cst_192 : f32 to vector<1x256xf32>
    %536 = arith.minimumf %535, %534 : vector<1x256xf32>
    %cst_193 = arith.constant 0.000000e+00 : f32
    %cst_194 = arith.constant 1.700000e+01 : f32
    %537 = vector.broadcast %cst_193 : f32 to vector<1x256xf32>
    %538 = arith.maximumf %537, %526 : vector<1x256xf32>
    %539 = vector.broadcast %cst_194 : f32 to vector<1x256xf32>
    %540 = arith.minimumf %539, %538 : vector<1x256xf32>
    %cst_195 = arith.constant 1.000000e+00 : f32
    %541 = vector.broadcast %cst_195 : f32 to vector<1x256xf32>
    %542 = arith.addf %526, %541 : vector<1x256xf32>
    %cst_196 = arith.constant 0.000000e+00 : f32
    %cst_197 = arith.constant 1.700000e+01 : f32
    %543 = vector.broadcast %cst_196 : f32 to vector<1x256xf32>
    %544 = arith.maximumf %543, %542 : vector<1x256xf32>
    %545 = vector.broadcast %cst_197 : f32 to vector<1x256xf32>
    %546 = arith.minimumf %545, %544 : vector<1x256xf32>
    %cst_198 = arith.constant 0.000000e+00 : f32
    %cst_199 = arith.constant 1.700000e+01 : f32
    %547 = vector.broadcast %cst_198 : f32 to vector<1x256xf32>
    %548 = arith.maximumf %547, %523 : vector<1x256xf32>
    %549 = vector.broadcast %cst_199 : f32 to vector<1x256xf32>
    %550 = arith.minimumf %549, %548 : vector<1x256xf32>
    %cst_200 = arith.constant 0.000000e+00 : f32
    %cst_201 = arith.constant 1.700000e+01 : f32
    %551 = vector.broadcast %cst_200 : f32 to vector<1x256xf32>
    %552 = arith.maximumf %551, %524 : vector<1x256xf32>
    %553 = vector.broadcast %cst_201 : f32 to vector<1x256xf32>
    %554 = arith.minimumf %553, %552 : vector<1x256xf32>
    %cst_202 = arith.constant 1.000000e+00 : f32
    %555 = vector.broadcast %cst_202 : f32 to vector<1x256xf32>
    %556 = arith.addf %555, %530 : vector<1x256xf32>
    %557 = arith.subf %556, %550 : vector<1x256xf32>
    %cst_203 = arith.constant 1.000000e+00 : f32
    %558 = vector.broadcast %cst_203 : f32 to vector<1x256xf32>
    %559 = arith.subf %558, %536 : vector<1x256xf32>
    %560 = arith.addf %559, %550 : vector<1x256xf32>
    %cst_204 = arith.constant 1.000000e+00 : f32
    %561 = vector.broadcast %cst_204 : f32 to vector<1x256xf32>
    %562 = arith.addf %561, %540 : vector<1x256xf32>
    %563 = arith.subf %562, %554 : vector<1x256xf32>
    %cst_205 = arith.constant 1.000000e+00 : f32
    %564 = vector.broadcast %cst_205 : f32 to vector<1x256xf32>
    %565 = arith.subf %564, %546 : vector<1x256xf32>
    %566 = arith.addf %565, %554 : vector<1x256xf32>
    %567 = vector.broadcast %540 : vector<1x256xf32> to vector<24x256xf32>
    %568 = arith.cmpf oeq, %46, %567 : vector<24x256xf32>
    %cst_206 = arith.constant 0.000000e+00 : f32
    %569 = vector.shape_cast %563 : vector<1x256xf32> to vector<1x256xf32>
    %570 = vector.broadcast %569 : vector<1x256xf32> to vector<24x256xf32>
    %571 = vector.broadcast %cst_206 : f32 to vector<24x256xf32>
    %572 = arith.select %568, %570, %571 : vector<24x256xi1>, vector<24x256xf32>
    %573 = vector.broadcast %546 : vector<1x256xf32> to vector<24x256xf32>
    %574 = arith.cmpf oeq, %46, %573 : vector<24x256xf32>
    %cst_207 = arith.constant 0.000000e+00 : f32
    %575 = vector.shape_cast %566 : vector<1x256xf32> to vector<1x256xf32>
    %576 = vector.broadcast %575 : vector<1x256xf32> to vector<24x256xf32>
    %577 = vector.broadcast %cst_207 : f32 to vector<24x256xf32>
    %578 = arith.select %574, %576, %577 : vector<24x256xi1>, vector<24x256xf32>
    %579 = arith.addf %572, %578 : vector<24x256xf32>
    %580 = vector.broadcast %530 : vector<1x256xf32> to vector<24x256xf32>
    %581 = arith.cmpf oeq, %46, %580 : vector<24x256xf32>
    %cst_208 = arith.constant 0.000000e+00 : f32
    %582 = vector.shape_cast %557 : vector<1x256xf32> to vector<1x256xf32>
    %583 = vector.broadcast %582 : vector<1x256xf32> to vector<24x256xf32>
    %584 = vector.broadcast %cst_208 : f32 to vector<24x256xf32>
    %585 = arith.select %581, %583, %584 : vector<24x256xi1>, vector<24x256xf32>
    %586 = vector.broadcast %536 : vector<1x256xf32> to vector<24x256xf32>
    %587 = arith.cmpf oeq, %46, %586 : vector<24x256xf32>
    %cst_209 = arith.constant 0.000000e+00 : f32
    %588 = vector.shape_cast %560 : vector<1x256xf32> to vector<1x256xf32>
    %589 = vector.broadcast %588 : vector<1x256xf32> to vector<24x256xf32>
    %590 = vector.broadcast %cst_209 : f32 to vector<24x256xf32>
    %591 = arith.select %587, %589, %590 : vector<24x256xi1>, vector<24x256xf32>
    %592 = arith.addf %585, %591 : vector<24x256xf32>
    %c0_210 = arith.constant 0 : index
    %c0_211 = arith.constant 0 : index
    %c0_212 = arith.constant 0 : index
    %593 = vector.load %arg2[%c0_210, %c0_211, %c0_212] : memref<2x96x24xf32, #tpu.memory_space<vmem>>, vector<1x96x24xf32>
    %594 = vector.shape_cast %593 : vector<1x96x24xf32> to vector<96x24xf32>
    %cst_213 = arith.constant dense<0.000000e+00> : vector<96x256xf32>
    %595 = tpu.matmul %594, %579, %cst_213 {dimension_numbers = #tpu.dot_dimension_numbers<[1], [0], [0], [1], [0, 0, 1, 1], [], []>} : vector<96x24xf32>, vector<24x256xf32>, vector<96x256xf32> -> vector<96x256xf32>
    %596 = vector.shape_cast %595 : vector<96x256xf32> to vector<4x24x256xf32>
    %597 = vector.shape_cast %592 : vector<24x256xf32> to vector<1x24x256xf32>
    %598 = vector.broadcast %597 : vector<1x24x256xf32> to vector<4x24x256xf32>
    %599 = arith.mulf %596, %598 : vector<4x24x256xf32>
    %cst_214 = arith.constant dense<0.000000e+00> : vector<4x256xf32>
    %600 = vector.multi_reduction <add>, %599, %cst_214 [1] : vector<4x24x256xf32> to vector<4x256xf32>
    %c24 = arith.constant 24 : index
    %c0_215 = arith.constant 0 : index
    %601 = vector.load %arg6[%c24, %c0_215] : memref<40x512xf32, #tpu.memory_space<vmem>>, vector<4x256xf32>
    tpu.vector_store %arg6[%c24, %c0_215], %600 {strides = array<i32>} : memref<40x512xf32, #tpu.memory_space<vmem>>, vector<4x256xf32>,
    %602 = vector.extract_strided_slice %39 {offsets = [7, 0], sizes = [1, 256], strides = [1, 1]} : vector<9x512xf32> to vector<1x256xf32>
    %603 = vector.extract_strided_slice %44 {offsets = [7, 0], sizes = [1, 256], strides = [1, 1]} : vector<9x512xf32> to vector<1x256xf32>
    %604 = math.floor %602 : vector<1x256xf32>
    %605 = math.floor %603 : vector<1x256xf32>
    %cst_216 = arith.constant 0.000000e+00 : f32
    %cst_217 = arith.constant 1.700000e+01 : f32
    %606 = vector.broadcast %cst_216 : f32 to vector<1x256xf32>
    %607 = arith.maximumf %606, %604 : vector<1x256xf32>
    %608 = vector.broadcast %cst_217 : f32 to vector<1x256xf32>
    %609 = arith.minimumf %608, %607 : vector<1x256xf32>
    %cst_218 = arith.constant 1.000000e+00 : f32
    %610 = vector.broadcast %cst_218 : f32 to vector<1x256xf32>
    %611 = arith.addf %604, %610 : vector<1x256xf32>
    %cst_219 = arith.constant 0.000000e+00 : f32
    %cst_220 = arith.constant 1.700000e+01 : f32
    %612 = vector.broadcast %cst_219 : f32 to vector<1x256xf32>
    %613 = arith.maximumf %612, %611 : vector<1x256xf32>
    %614 = vector.broadcast %cst_220 : f32 to vector<1x256xf32>
    %615 = arith.minimumf %614, %613 : vector<1x256xf32>
    %cst_221 = arith.constant 0.000000e+00 : f32
    %cst_222 = arith.constant 1.700000e+01 : f32
    %616 = vector.broadcast %cst_221 : f32 to vector<1x256xf32>
    %617 = arith.maximumf %616, %605 : vector<1x256xf32>
    %618 = vector.broadcast %cst_222 : f32 to vector<1x256xf32>
    %619 = arith.minimumf %618, %617 : vector<1x256xf32>
    %cst_223 = arith.constant 1.000000e+00 : f32
    %620 = vector.broadcast %cst_223 : f32 to vector<1x256xf32>
    %621 = arith.addf %605, %620 : vector<1x256xf32>
    %cst_224 = arith.constant 0.000000e+00 : f32
    %cst_225 = arith.constant 1.700000e+01 : f32
    %622 = vector.broadcast %cst_224 : f32 to vector<1x256xf32>
    %623 = arith.maximumf %622, %621 : vector<1x256xf32>
    %624 = vector.broadcast %cst_225 : f32 to vector<1x256xf32>
    %625 = arith.minimumf %624, %623 : vector<1x256xf32>
    %cst_226 = arith.constant 0.000000e+00 : f32
    %cst_227 = arith.constant 1.700000e+01 : f32
    %626 = vector.broadcast %cst_226 : f32 to vector<1x256xf32>
    %627 = arith.maximumf %626, %602 : vector<1x256xf32>
    %628 = vector.broadcast %cst_227 : f32 to vector<1x256xf32>
    %629 = arith.minimumf %628, %627 : vector<1x256xf32>
    %cst_228 = arith.constant 0.000000e+00 : f32
    %cst_229 = arith.constant 1.700000e+01 : f32
    %630 = vector.broadcast %cst_228 : f32 to vector<1x256xf32>
    %631 = arith.maximumf %630, %603 : vector<1x256xf32>
    %632 = vector.broadcast %cst_229 : f32 to vector<1x256xf32>
    %633 = arith.minimumf %632, %631 : vector<1x256xf32>
    %cst_230 = arith.constant 1.000000e+00 : f32
    %634 = vector.broadcast %cst_230 : f32 to vector<1x256xf32>
    %635 = arith.addf %634, %609 : vector<1x256xf32>
    %636 = arith.subf %635, %629 : vector<1x256xf32>
    %cst_231 = arith.constant 1.000000e+00 : f32
    %637 = vector.broadcast %cst_231 : f32 to vector<1x256xf32>
    %638 = arith.subf %637, %615 : vector<1x256xf32>
    %639 = arith.addf %638, %629 : vector<1x256xf32>
    %cst_232 = arith.constant 1.000000e+00 : f32
    %640 = vector.broadcast %cst_232 : f32 to vector<1x256xf32>
    %641 = arith.addf %640, %619 : vector<1x256xf32>
    %642 = arith.subf %641, %633 : vector<1x256xf32>
    %cst_233 = arith.constant 1.000000e+00 : f32
    %643 = vector.broadcast %cst_233 : f32 to vector<1x256xf32>
    %644 = arith.subf %643, %625 : vector<1x256xf32>
    %645 = arith.addf %644, %633 : vector<1x256xf32>
    %646 = vector.broadcast %619 : vector<1x256xf32> to vector<24x256xf32>
    %647 = arith.cmpf oeq, %46, %646 : vector<24x256xf32>
    %cst_234 = arith.constant 0.000000e+00 : f32
    %648 = vector.shape_cast %642 : vector<1x256xf32> to vector<1x256xf32>
    %649 = vector.broadcast %648 : vector<1x256xf32> to vector<24x256xf32>
    %650 = vector.broadcast %cst_234 : f32 to vector<24x256xf32>
    %651 = arith.select %647, %649, %650 : vector<24x256xi1>, vector<24x256xf32>
    %652 = vector.broadcast %625 : vector<1x256xf32> to vector<24x256xf32>
    %653 = arith.cmpf oeq, %46, %652 : vector<24x256xf32>
    %cst_235 = arith.constant 0.000000e+00 : f32
    %654 = vector.shape_cast %645 : vector<1x256xf32> to vector<1x256xf32>
    %655 = vector.broadcast %654 : vector<1x256xf32> to vector<24x256xf32>
    %656 = vector.broadcast %cst_235 : f32 to vector<24x256xf32>
    %657 = arith.select %653, %655, %656 : vector<24x256xi1>, vector<24x256xf32>
    %658 = arith.addf %651, %657 : vector<24x256xf32>
    %659 = vector.broadcast %609 : vector<1x256xf32> to vector<24x256xf32>
    %660 = arith.cmpf oeq, %46, %659 : vector<24x256xf32>
    %cst_236 = arith.constant 0.000000e+00 : f32
    %661 = vector.shape_cast %636 : vector<1x256xf32> to vector<1x256xf32>
    %662 = vector.broadcast %661 : vector<1x256xf32> to vector<24x256xf32>
    %663 = vector.broadcast %cst_236 : f32 to vector<24x256xf32>
    %664 = arith.select %660, %662, %663 : vector<24x256xi1>, vector<24x256xf32>
    %665 = vector.broadcast %615 : vector<1x256xf32> to vector<24x256xf32>
    %666 = arith.cmpf oeq, %46, %665 : vector<24x256xf32>
    %cst_237 = arith.constant 0.000000e+00 : f32
    %667 = vector.shape_cast %639 : vector<1x256xf32> to vector<1x256xf32>
    %668 = vector.broadcast %667 : vector<1x256xf32> to vector<24x256xf32>
    %669 = vector.broadcast %cst_237 : f32 to vector<24x256xf32>
    %670 = arith.select %666, %668, %669 : vector<24x256xi1>, vector<24x256xf32>
    %671 = arith.addf %664, %670 : vector<24x256xf32>
    %c0_238 = arith.constant 0 : index
    %c0_239 = arith.constant 0 : index
    %c0_240 = arith.constant 0 : index
    %672 = vector.load %arg2[%c0_238, %c0_239, %c0_240] : memref<2x96x24xf32, #tpu.memory_space<vmem>>, vector<1x96x24xf32>
    %673 = vector.shape_cast %672 : vector<1x96x24xf32> to vector<96x24xf32>
    %cst_241 = arith.constant dense<0.000000e+00> : vector<96x256xf32>
    %674 = tpu.matmul %673, %658, %cst_241 {dimension_numbers = #tpu.dot_dimension_numbers<[1], [0], [0], [1], [0, 0, 1, 1], [], []>} : vector<96x24xf32>, vector<24x256xf32>, vector<96x256xf32> -> vector<96x256xf32>
    %675 = vector.shape_cast %674 : vector<96x256xf32> to vector<4x24x256xf32>
    %676 = vector.shape_cast %671 : vector<24x256xf32> to vector<1x24x256xf32>
    %677 = vector.broadcast %676 : vector<1x24x256xf32> to vector<4x24x256xf32>
    %678 = arith.mulf %675, %677 : vector<4x24x256xf32>
    %cst_242 = arith.constant dense<0.000000e+00> : vector<4x256xf32>
    %679 = vector.multi_reduction <add>, %678, %cst_242 [1] : vector<4x24x256xf32> to vector<4x256xf32>
    %c28 = arith.constant 28 : index
    %c0_243 = arith.constant 0 : index
    %680 = vector.load %arg6[%c28, %c0_243] : memref<40x512xf32, #tpu.memory_space<vmem>>, vector<4x256xf32>
    tpu.vector_store %arg6[%c28, %c0_243], %679 {strides = array<i32>} : memref<40x512xf32, #tpu.memory_space<vmem>>, vector<4x256xf32>,
    %681 = vector.extract_strided_slice %39 {offsets = [8, 0], sizes = [1, 256], strides = [1, 1]} : vector<9x512xf32> to vector<1x256xf32>
    %682 = vector.extract_strided_slice %44 {offsets = [8, 0], sizes = [1, 256], strides = [1, 1]} : vector<9x512xf32> to vector<1x256xf32>
    %683 = math.floor %681 : vector<1x256xf32>
    %684 = math.floor %682 : vector<1x256xf32>
    %cst_244 = arith.constant 0.000000e+00 : f32
    %cst_245 = arith.constant 1.700000e+01 : f32
    %685 = vector.broadcast %cst_244 : f32 to vector<1x256xf32>
    %686 = arith.maximumf %685, %683 : vector<1x256xf32>
    %687 = vector.broadcast %cst_245 : f32 to vector<1x256xf32>
    %688 = arith.minimumf %687, %686 : vector<1x256xf32>
    %cst_246 = arith.constant 1.000000e+00 : f32
    %689 = vector.broadcast %cst_246 : f32 to vector<1x256xf32>
    %690 = arith.addf %683, %689 : vector<1x256xf32>
    %cst_247 = arith.constant 0.000000e+00 : f32
    %cst_248 = arith.constant 1.700000e+01 : f32
    %691 = vector.broadcast %cst_247 : f32 to vector<1x256xf32>
    %692 = arith.maximumf %691, %690 : vector<1x256xf32>
    %693 = vector.broadcast %cst_248 : f32 to vector<1x256xf32>
    %694 = arith.minimumf %693, %692 : vector<1x256xf32>
    %cst_249 = arith.constant 0.000000e+00 : f32
    %cst_250 = arith.constant 1.700000e+01 : f32
    %695 = vector.broadcast %cst_249 : f32 to vector<1x256xf32>
    %696 = arith.maximumf %695, %684 : vector<1x256xf32>
    %697 = vector.broadcast %cst_250 : f32 to vector<1x256xf32>
    %698 = arith.minimumf %697, %696 : vector<1x256xf32>
    %cst_251 = arith.constant 1.000000e+00 : f32
    %699 = vector.broadcast %cst_251 : f32 to vector<1x256xf32>
    %700 = arith.addf %684, %699 : vector<1x256xf32>
    %cst_252 = arith.constant 0.000000e+00 : f32
    %cst_253 = arith.constant 1.700000e+01 : f32
    %701 = vector.broadcast %cst_252 : f32 to vector<1x256xf32>
    %702 = arith.maximumf %701, %700 : vector<1x256xf32>
    %703 = vector.broadcast %cst_253 : f32 to vector<1x256xf32>
    %704 = arith.minimumf %703, %702 : vector<1x256xf32>
    %cst_254 = arith.constant 0.000000e+00 : f32
    %cst_255 = arith.constant 1.700000e+01 : f32
    %705 = vector.broadcast %cst_254 : f32 to vector<1x256xf32>
    %706 = arith.maximumf %705, %681 : vector<1x256xf32>
    %707 = vector.broadcast %cst_255 : f32 to vector<1x256xf32>
    %708 = arith.minimumf %707, %706 : vector<1x256xf32>
    %cst_256 = arith.constant 0.000000e+00 : f32
    %cst_257 = arith.constant 1.700000e+01 : f32
    %709 = vector.broadcast %cst_256 : f32 to vector<1x256xf32>
    %710 = arith.maximumf %709, %682 : vector<1x256xf32>
    %711 = vector.broadcast %cst_257 : f32 to vector<1x256xf32>
    %712 = arith.minimumf %711, %710 : vector<1x256xf32>
    %cst_258 = arith.constant 1.000000e+00 : f32
    %713 = vector.broadcast %cst_258 : f32 to vector<1x256xf32>
    %714 = arith.addf %713, %688 : vector<1x256xf32>
    %715 = arith.subf %714, %708 : vector<1x256xf32>
    %cst_259 = arith.constant 1.000000e+00 : f32
    %716 = vector.broadcast %cst_259 : f32 to vector<1x256xf32>
    %717 = arith.subf %716, %694 : vector<1x256xf32>
    %718 = arith.addf %717, %708 : vector<1x256xf32>
    %cst_260 = arith.constant 1.000000e+00 : f32
    %719 = vector.broadcast %cst_260 : f32 to vector<1x256xf32>
    %720 = arith.addf %719, %698 : vector<1x256xf32>
    %721 = arith.subf %720, %712 : vector<1x256xf32>
    %cst_261 = arith.constant 1.000000e+00 : f32
    %722 = vector.broadcast %cst_261 : f32 to vector<1x256xf32>
    %723 = arith.subf %722, %704 : vector<1x256xf32>
    %724 = arith.addf %723, %712 : vector<1x256xf32>
    %725 = vector.broadcast %698 : vector<1x256xf32> to vector<24x256xf32>
    %726 = arith.cmpf oeq, %46, %725 : vector<24x256xf32>
    %cst_262 = arith.constant 0.000000e+00 : f32
    %727 = vector.shape_cast %721 : vector<1x256xf32> to vector<1x256xf32>
    %728 = vector.broadcast %727 : vector<1x256xf32> to vector<24x256xf32>
    %729 = vector.broadcast %cst_262 : f32 to vector<24x256xf32>
    %730 = arith.select %726, %728, %729 : vector<24x256xi1>, vector<24x256xf32>
    %731 = vector.broadcast %704 : vector<1x256xf32> to vector<24x256xf32>
    %732 = arith.cmpf oeq, %46, %731 : vector<24x256xf32>
    %cst_263 = arith.constant 0.000000e+00 : f32
    %733 = vector.shape_cast %724 : vector<1x256xf32> to vector<1x256xf32>
    %734 = vector.broadcast %733 : vector<1x256xf32> to vector<24x256xf32>
    %735 = vector.broadcast %cst_263 : f32 to vector<24x256xf32>
    %736 = arith.select %732, %734, %735 : vector<24x256xi1>, vector<24x256xf32>
    %737 = arith.addf %730, %736 : vector<24x256xf32>
    %738 = vector.broadcast %688 : vector<1x256xf32> to vector<24x256xf32>
    %739 = arith.cmpf oeq, %46, %738 : vector<24x256xf32>
    %cst_264 = arith.constant 0.000000e+00 : f32
    %740 = vector.shape_cast %715 : vector<1x256xf32> to vector<1x256xf32>
    %741 = vector.broadcast %740 : vector<1x256xf32> to vector<24x256xf32>
    %742 = vector.broadcast %cst_264 : f32 to vector<24x256xf32>
    %743 = arith.select %739, %741, %742 : vector<24x256xi1>, vector<24x256xf32>
    %744 = vector.broadcast %694 : vector<1x256xf32> to vector<24x256xf32>
    %745 = arith.cmpf oeq, %46, %744 : vector<24x256xf32>
    %cst_265 = arith.constant 0.000000e+00 : f32
    %746 = vector.shape_cast %718 : vector<1x256xf32> to vector<1x256xf32>
    %747 = vector.broadcast %746 : vector<1x256xf32> to vector<24x256xf32>
    %748 = vector.broadcast %cst_265 : f32 to vector<24x256xf32>
    %749 = arith.select %745, %747, %748 : vector<24x256xi1>, vector<24x256xf32>
    %750 = arith.addf %743, %749 : vector<24x256xf32>
    %c0_266 = arith.constant 0 : index
    %c0_267 = arith.constant 0 : index
    %c0_268 = arith.constant 0 : index
    %751 = vector.load %arg2[%c0_266, %c0_267, %c0_268] : memref<2x96x24xf32, #tpu.memory_space<vmem>>, vector<1x96x24xf32>
    %752 = vector.shape_cast %751 : vector<1x96x24xf32> to vector<96x24xf32>
    %cst_269 = arith.constant dense<0.000000e+00> : vector<96x256xf32>
    %753 = tpu.matmul %752, %737, %cst_269 {dimension_numbers = #tpu.dot_dimension_numbers<[1], [0], [0], [1], [0, 0, 1, 1], [], []>} : vector<96x24xf32>, vector<24x256xf32>, vector<96x256xf32> -> vector<96x256xf32>
    %754 = vector.shape_cast %753 : vector<96x256xf32> to vector<4x24x256xf32>
    %755 = vector.shape_cast %750 : vector<24x256xf32> to vector<1x24x256xf32>
    %756 = vector.broadcast %755 : vector<1x24x256xf32> to vector<4x24x256xf32>
    %757 = arith.mulf %754, %756 : vector<4x24x256xf32>
    %cst_270 = arith.constant dense<0.000000e+00> : vector<4x256xf32>
    %758 = vector.multi_reduction <add>, %757, %cst_270 [1] : vector<4x24x256xf32> to vector<4x256xf32>
    %c32 = arith.constant 32 : index
    %c0_271 = arith.constant 0 : index
    %759 = vector.load %arg6[%c32, %c0_271] : memref<40x512xf32, #tpu.memory_space<vmem>>, vector<4x256xf32>
    tpu.vector_store %arg6[%c32, %c0_271], %758 {strides = array<i32>} : memref<40x512xf32, #tpu.memory_space<vmem>>, vector<4x256xf32>,
    %760 = vector.extract_strided_slice %39 {offsets = [0, 256], sizes = [1, 256], strides = [1, 1]} : vector<9x512xf32> to vector<1x256xf32>
    %761 = vector.extract_strided_slice %44 {offsets = [0, 256], sizes = [1, 256], strides = [1, 1]} : vector<9x512xf32> to vector<1x256xf32>
    %762 = math.floor %760 : vector<1x256xf32>
    %763 = math.floor %761 : vector<1x256xf32>
    %cst_272 = arith.constant 0.000000e+00 : f32
    %cst_273 = arith.constant 1.700000e+01 : f32
    %764 = vector.broadcast %cst_272 : f32 to vector<1x256xf32>
    %765 = arith.maximumf %764, %762 : vector<1x256xf32>
    %766 = vector.broadcast %cst_273 : f32 to vector<1x256xf32>
    %767 = arith.minimumf %766, %765 : vector<1x256xf32>
    %cst_274 = arith.constant 1.000000e+00 : f32
    %768 = vector.broadcast %cst_274 : f32 to vector<1x256xf32>
    %769 = arith.addf %762, %768 : vector<1x256xf32>
    %cst_275 = arith.constant 0.000000e+00 : f32
    %cst_276 = arith.constant 1.700000e+01 : f32
    %770 = vector.broadcast %cst_275 : f32 to vector<1x256xf32>
    %771 = arith.maximumf %770, %769 : vector<1x256xf32>
    %772 = vector.broadcast %cst_276 : f32 to vector<1x256xf32>
    %773 = arith.minimumf %772, %771 : vector<1x256xf32>
    %cst_277 = arith.constant 0.000000e+00 : f32
    %cst_278 = arith.constant 1.700000e+01 : f32
    %774 = vector.broadcast %cst_277 : f32 to vector<1x256xf32>
    %775 = arith.maximumf %774, %763 : vector<1x256xf32>
    %776 = vector.broadcast %cst_278 : f32 to vector<1x256xf32>
    %777 = arith.minimumf %776, %775 : vector<1x256xf32>
    %cst_279 = arith.constant 1.000000e+00 : f32
    %778 = vector.broadcast %cst_279 : f32 to vector<1x256xf32>
    %779 = arith.addf %763, %778 : vector<1x256xf32>
    %cst_280 = arith.constant 0.000000e+00 : f32
    %cst_281 = arith.constant 1.700000e+01 : f32
    %780 = vector.broadcast %cst_280 : f32 to vector<1x256xf32>
    %781 = arith.maximumf %780, %779 : vector<1x256xf32>
    %782 = vector.broadcast %cst_281 : f32 to vector<1x256xf32>
    %783 = arith.minimumf %782, %781 : vector<1x256xf32>
    %cst_282 = arith.constant 0.000000e+00 : f32
    %cst_283 = arith.constant 1.700000e+01 : f32
    %784 = vector.broadcast %cst_282 : f32 to vector<1x256xf32>
    %785 = arith.maximumf %784, %760 : vector<1x256xf32>
    %786 = vector.broadcast %cst_283 : f32 to vector<1x256xf32>
    %787 = arith.minimumf %786, %785 : vector<1x256xf32>
    %cst_284 = arith.constant 0.000000e+00 : f32
    %cst_285 = arith.constant 1.700000e+01 : f32
    %788 = vector.broadcast %cst_284 : f32 to vector<1x256xf32>
    %789 = arith.maximumf %788, %761 : vector<1x256xf32>
    %790 = vector.broadcast %cst_285 : f32 to vector<1x256xf32>
    %791 = arith.minimumf %790, %789 : vector<1x256xf32>
    %cst_286 = arith.constant 1.000000e+00 : f32
    %792 = vector.broadcast %cst_286 : f32 to vector<1x256xf32>
    %793 = arith.addf %792, %767 : vector<1x256xf32>
    %794 = arith.subf %793, %787 : vector<1x256xf32>
    %cst_287 = arith.constant 1.000000e+00 : f32
    %795 = vector.broadcast %cst_287 : f32 to vector<1x256xf32>
    %796 = arith.subf %795, %773 : vector<1x256xf32>
    %797 = arith.addf %796, %787 : vector<1x256xf32>
    %cst_288 = arith.constant 1.000000e+00 : f32
    %798 = vector.broadcast %cst_288 : f32 to vector<1x256xf32>
    %799 = arith.addf %798, %777 : vector<1x256xf32>
    %800 = arith.subf %799, %791 : vector<1x256xf32>
    %cst_289 = arith.constant 1.000000e+00 : f32
    %801 = vector.broadcast %cst_289 : f32 to vector<1x256xf32>
    %802 = arith.subf %801, %783 : vector<1x256xf32>
    %803 = arith.addf %802, %791 : vector<1x256xf32>
    %804 = vector.broadcast %777 : vector<1x256xf32> to vector<24x256xf32>
    %805 = arith.cmpf oeq, %46, %804 : vector<24x256xf32>
    %cst_290 = arith.constant 0.000000e+00 : f32
    %806 = vector.shape_cast %800 : vector<1x256xf32> to vector<1x256xf32>
    %807 = vector.broadcast %806 : vector<1x256xf32> to vector<24x256xf32>
    %808 = vector.broadcast %cst_290 : f32 to vector<24x256xf32>
    %809 = arith.select %805, %807, %808 : vector<24x256xi1>, vector<24x256xf32>
    %810 = vector.broadcast %783 : vector<1x256xf32> to vector<24x256xf32>
    %811 = arith.cmpf oeq, %46, %810 : vector<24x256xf32>
    %cst_291 = arith.constant 0.000000e+00 : f32
    %812 = vector.shape_cast %803 : vector<1x256xf32> to vector<1x256xf32>
    %813 = vector.broadcast %812 : vector<1x256xf32> to vector<24x256xf32>
    %814 = vector.broadcast %cst_291 : f32 to vector<24x256xf32>
    %815 = arith.select %811, %813, %814 : vector<24x256xi1>, vector<24x256xf32>
    %816 = arith.addf %809, %815 : vector<24x256xf32>
    %817 = vector.broadcast %767 : vector<1x256xf32> to vector<24x256xf32>
    %818 = arith.cmpf oeq, %46, %817 : vector<24x256xf32>
    %cst_292 = arith.constant 0.000000e+00 : f32
    %819 = vector.shape_cast %794 : vector<1x256xf32> to vector<1x256xf32>
    %820 = vector.broadcast %819 : vector<1x256xf32> to vector<24x256xf32>
    %821 = vector.broadcast %cst_292 : f32 to vector<24x256xf32>
    %822 = arith.select %818, %820, %821 : vector<24x256xi1>, vector<24x256xf32>
    %823 = vector.broadcast %773 : vector<1x256xf32> to vector<24x256xf32>
    %824 = arith.cmpf oeq, %46, %823 : vector<24x256xf32>
    %cst_293 = arith.constant 0.000000e+00 : f32
    %825 = vector.shape_cast %797 : vector<1x256xf32> to vector<1x256xf32>
    %826 = vector.broadcast %825 : vector<1x256xf32> to vector<24x256xf32>
    %827 = vector.broadcast %cst_293 : f32 to vector<24x256xf32>
    %828 = arith.select %824, %826, %827 : vector<24x256xi1>, vector<24x256xf32>
    %829 = arith.addf %822, %828 : vector<24x256xf32>
    %c1 = arith.constant 1 : index
    %c0_294 = arith.constant 0 : index
    %c0_295 = arith.constant 0 : index
    %830 = vector.load %arg2[%c1, %c0_294, %c0_295] : memref<2x96x24xf32, #tpu.memory_space<vmem>>, vector<1x96x24xf32>
    %831 = vector.shape_cast %830 : vector<1x96x24xf32> to vector<96x24xf32>
    %cst_296 = arith.constant dense<0.000000e+00> : vector<96x256xf32>
    %832 = tpu.matmul %831, %816, %cst_296 {dimension_numbers = #tpu.dot_dimension_numbers<[1], [0], [0], [1], [0, 0, 1, 1], [], []>} : vector<96x24xf32>, vector<24x256xf32>, vector<96x256xf32> -> vector<96x256xf32>
    %833 = vector.shape_cast %832 : vector<96x256xf32> to vector<4x24x256xf32>
    %834 = vector.shape_cast %829 : vector<24x256xf32> to vector<1x24x256xf32>
    %835 = vector.broadcast %834 : vector<1x24x256xf32> to vector<4x24x256xf32>
    %836 = arith.mulf %833, %835 : vector<4x24x256xf32>
    %cst_297 = arith.constant dense<0.000000e+00> : vector<4x256xf32>
    %837 = vector.multi_reduction <add>, %836, %cst_297 [1] : vector<4x24x256xf32> to vector<4x256xf32>
    %c0_298 = arith.constant 0 : index
    %c256 = arith.constant 256 : index
    %838 = vector.load %arg6[%c0_298, %c256] : memref<40x512xf32, #tpu.memory_space<vmem>>, vector<4x256xf32>
    tpu.vector_store %arg6[%c0_298, %c256], %837 {strides = array<i32>} : memref<40x512xf32, #tpu.memory_space<vmem>>, vector<4x256xf32>,
    %839 = vector.extract_strided_slice %39 {offsets = [1, 256], sizes = [1, 256], strides = [1, 1]} : vector<9x512xf32> to vector<1x256xf32>
    %840 = vector.extract_strided_slice %44 {offsets = [1, 256], sizes = [1, 256], strides = [1, 1]} : vector<9x512xf32> to vector<1x256xf32>
    %841 = math.floor %839 : vector<1x256xf32>
    %842 = math.floor %840 : vector<1x256xf32>
    %cst_299 = arith.constant 0.000000e+00 : f32
    %cst_300 = arith.constant 1.700000e+01 : f32
    %843 = vector.broadcast %cst_299 : f32 to vector<1x256xf32>
    %844 = arith.maximumf %843, %841 : vector<1x256xf32>
    %845 = vector.broadcast %cst_300 : f32 to vector<1x256xf32>
    %846 = arith.minimumf %845, %844 : vector<1x256xf32>
    %cst_301 = arith.constant 1.000000e+00 : f32
    %847 = vector.broadcast %cst_301 : f32 to vector<1x256xf32>
    %848 = arith.addf %841, %847 : vector<1x256xf32>
    %cst_302 = arith.constant 0.000000e+00 : f32
    %cst_303 = arith.constant 1.700000e+01 : f32
    %849 = vector.broadcast %cst_302 : f32 to vector<1x256xf32>
    %850 = arith.maximumf %849, %848 : vector<1x256xf32>
    %851 = vector.broadcast %cst_303 : f32 to vector<1x256xf32>
    %852 = arith.minimumf %851, %850 : vector<1x256xf32>
    %cst_304 = arith.constant 0.000000e+00 : f32
    %cst_305 = arith.constant 1.700000e+01 : f32
    %853 = vector.broadcast %cst_304 : f32 to vector<1x256xf32>
    %854 = arith.maximumf %853, %842 : vector<1x256xf32>
    %855 = vector.broadcast %cst_305 : f32 to vector<1x256xf32>
    %856 = arith.minimumf %855, %854 : vector<1x256xf32>
    %cst_306 = arith.constant 1.000000e+00 : f32
    %857 = vector.broadcast %cst_306 : f32 to vector<1x256xf32>
    %858 = arith.addf %842, %857 : vector<1x256xf32>
    %cst_307 = arith.constant 0.000000e+00 : f32
    %cst_308 = arith.constant 1.700000e+01 : f32
    %859 = vector.broadcast %cst_307 : f32 to vector<1x256xf32>
    %860 = arith.maximumf %859, %858 : vector<1x256xf32>
    %861 = vector.broadcast %cst_308 : f32 to vector<1x256xf32>
    %862 = arith.minimumf %861, %860 : vector<1x256xf32>
    %cst_309 = arith.constant 0.000000e+00 : f32
    %cst_310 = arith.constant 1.700000e+01 : f32
    %863 = vector.broadcast %cst_309 : f32 to vector<1x256xf32>
    %864 = arith.maximumf %863, %839 : vector<1x256xf32>
    %865 = vector.broadcast %cst_310 : f32 to vector<1x256xf32>
    %866 = arith.minimumf %865, %864 : vector<1x256xf32>
    %cst_311 = arith.constant 0.000000e+00 : f32
    %cst_312 = arith.constant 1.700000e+01 : f32
    %867 = vector.broadcast %cst_311 : f32 to vector<1x256xf32>
    %868 = arith.maximumf %867, %840 : vector<1x256xf32>
    %869 = vector.broadcast %cst_312 : f32 to vector<1x256xf32>
    %870 = arith.minimumf %869, %868 : vector<1x256xf32>
    %cst_313 = arith.constant 1.000000e+00 : f32
    %871 = vector.broadcast %cst_313 : f32 to vector<1x256xf32>
    %872 = arith.addf %871, %846 : vector<1x256xf32>
    %873 = arith.subf %872, %866 : vector<1x256xf32>
    %cst_314 = arith.constant 1.000000e+00 : f32
    %874 = vector.broadcast %cst_314 : f32 to vector<1x256xf32>
    %875 = arith.subf %874, %852 : vector<1x256xf32>
    %876 = arith.addf %875, %866 : vector<1x256xf32>
    %cst_315 = arith.constant 1.000000e+00 : f32
    %877 = vector.broadcast %cst_315 : f32 to vector<1x256xf32>
    %878 = arith.addf %877, %856 : vector<1x256xf32>
    %879 = arith.subf %878, %870 : vector<1x256xf32>
    %cst_316 = arith.constant 1.000000e+00 : f32
    %880 = vector.broadcast %cst_316 : f32 to vector<1x256xf32>
    %881 = arith.subf %880, %862 : vector<1x256xf32>
    %882 = arith.addf %881, %870 : vector<1x256xf32>
    %883 = vector.broadcast %856 : vector<1x256xf32> to vector<24x256xf32>
    %884 = arith.cmpf oeq, %46, %883 : vector<24x256xf32>
    %cst_317 = arith.constant 0.000000e+00 : f32
    %885 = vector.shape_cast %879 : vector<1x256xf32> to vector<1x256xf32>
    %886 = vector.broadcast %885 : vector<1x256xf32> to vector<24x256xf32>
    %887 = vector.broadcast %cst_317 : f32 to vector<24x256xf32>
    %888 = arith.select %884, %886, %887 : vector<24x256xi1>, vector<24x256xf32>
    %889 = vector.broadcast %862 : vector<1x256xf32> to vector<24x256xf32>
    %890 = arith.cmpf oeq, %46, %889 : vector<24x256xf32>
    %cst_318 = arith.constant 0.000000e+00 : f32
    %891 = vector.shape_cast %882 : vector<1x256xf32> to vector<1x256xf32>
    %892 = vector.broadcast %891 : vector<1x256xf32> to vector<24x256xf32>
    %893 = vector.broadcast %cst_318 : f32 to vector<24x256xf32>
    %894 = arith.select %890, %892, %893 : vector<24x256xi1>, vector<24x256xf32>
    %895 = arith.addf %888, %894 : vector<24x256xf32>
    %896 = vector.broadcast %846 : vector<1x256xf32> to vector<24x256xf32>
    %897 = arith.cmpf oeq, %46, %896 : vector<24x256xf32>
    %cst_319 = arith.constant 0.000000e+00 : f32
    %898 = vector.shape_cast %873 : vector<1x256xf32> to vector<1x256xf32>
    %899 = vector.broadcast %898 : vector<1x256xf32> to vector<24x256xf32>
    %900 = vector.broadcast %cst_319 : f32 to vector<24x256xf32>
    %901 = arith.select %897, %899, %900 : vector<24x256xi1>, vector<24x256xf32>
    %902 = vector.broadcast %852 : vector<1x256xf32> to vector<24x256xf32>
    %903 = arith.cmpf oeq, %46, %902 : vector<24x256xf32>
    %cst_320 = arith.constant 0.000000e+00 : f32
    %904 = vector.shape_cast %876 : vector<1x256xf32> to vector<1x256xf32>
    %905 = vector.broadcast %904 : vector<1x256xf32> to vector<24x256xf32>
    %906 = vector.broadcast %cst_320 : f32 to vector<24x256xf32>
    %907 = arith.select %903, %905, %906 : vector<24x256xi1>, vector<24x256xf32>
    %908 = arith.addf %901, %907 : vector<24x256xf32>
    %c1_321 = arith.constant 1 : index
    %c0_322 = arith.constant 0 : index
    %c0_323 = arith.constant 0 : index
    %909 = vector.load %arg2[%c1_321, %c0_322, %c0_323] : memref<2x96x24xf32, #tpu.memory_space<vmem>>, vector<1x96x24xf32>
    %910 = vector.shape_cast %909 : vector<1x96x24xf32> to vector<96x24xf32>
    %cst_324 = arith.constant dense<0.000000e+00> : vector<96x256xf32>
    %911 = tpu.matmul %910, %895, %cst_324 {dimension_numbers = #tpu.dot_dimension_numbers<[1], [0], [0], [1], [0, 0, 1, 1], [], []>} : vector<96x24xf32>, vector<24x256xf32>, vector<96x256xf32> -> vector<96x256xf32>
    %912 = vector.shape_cast %911 : vector<96x256xf32> to vector<4x24x256xf32>
    %913 = vector.shape_cast %908 : vector<24x256xf32> to vector<1x24x256xf32>
    %914 = vector.broadcast %913 : vector<1x24x256xf32> to vector<4x24x256xf32>
    %915 = arith.mulf %912, %914 : vector<4x24x256xf32>
    %cst_325 = arith.constant dense<0.000000e+00> : vector<4x256xf32>
    %916 = vector.multi_reduction <add>, %915, %cst_325 [1] : vector<4x24x256xf32> to vector<4x256xf32>
    %c4_326 = arith.constant 4 : index
    %c256_327 = arith.constant 256 : index
    %917 = vector.load %arg6[%c4_326, %c256_327] : memref<40x512xf32, #tpu.memory_space<vmem>>, vector<4x256xf32>
    tpu.vector_store %arg6[%c4_326, %c256_327], %916 {strides = array<i32>} : memref<40x512xf32, #tpu.memory_space<vmem>>, vector<4x256xf32>,
    %918 = vector.extract_strided_slice %39 {offsets = [2, 256], sizes = [1, 256], strides = [1, 1]} : vector<9x512xf32> to vector<1x256xf32>
    %919 = vector.extract_strided_slice %44 {offsets = [2, 256], sizes = [1, 256], strides = [1, 1]} : vector<9x512xf32> to vector<1x256xf32>
    %920 = math.floor %918 : vector<1x256xf32>
    %921 = math.floor %919 : vector<1x256xf32>
    %cst_328 = arith.constant 0.000000e+00 : f32
    %cst_329 = arith.constant 1.700000e+01 : f32
    %922 = vector.broadcast %cst_328 : f32 to vector<1x256xf32>
    %923 = arith.maximumf %922, %920 : vector<1x256xf32>
    %924 = vector.broadcast %cst_329 : f32 to vector<1x256xf32>
    %925 = arith.minimumf %924, %923 : vector<1x256xf32>
    %cst_330 = arith.constant 1.000000e+00 : f32
    %926 = vector.broadcast %cst_330 : f32 to vector<1x256xf32>
    %927 = arith.addf %920, %926 : vector<1x256xf32>
    %cst_331 = arith.constant 0.000000e+00 : f32
    %cst_332 = arith.constant 1.700000e+01 : f32
    %928 = vector.broadcast %cst_331 : f32 to vector<1x256xf32>
    %929 = arith.maximumf %928, %927 : vector<1x256xf32>
    %930 = vector.broadcast %cst_332 : f32 to vector<1x256xf32>
    %931 = arith.minimumf %930, %929 : vector<1x256xf32>
    %cst_333 = arith.constant 0.000000e+00 : f32
    %cst_334 = arith.constant 1.700000e+01 : f32
    %932 = vector.broadcast %cst_333 : f32 to vector<1x256xf32>
    %933 = arith.maximumf %932, %921 : vector<1x256xf32>
    %934 = vector.broadcast %cst_334 : f32 to vector<1x256xf32>
    %935 = arith.minimumf %934, %933 : vector<1x256xf32>
    %cst_335 = arith.constant 1.000000e+00 : f32
    %936 = vector.broadcast %cst_335 : f32 to vector<1x256xf32>
    %937 = arith.addf %921, %936 : vector<1x256xf32>
    %cst_336 = arith.constant 0.000000e+00 : f32
    %cst_337 = arith.constant 1.700000e+01 : f32
    %938 = vector.broadcast %cst_336 : f32 to vector<1x256xf32>
    %939 = arith.maximumf %938, %937 : vector<1x256xf32>
    %940 = vector.broadcast %cst_337 : f32 to vector<1x256xf32>
    %941 = arith.minimumf %940, %939 : vector<1x256xf32>
    %cst_338 = arith.constant 0.000000e+00 : f32
    %cst_339 = arith.constant 1.700000e+01 : f32
    %942 = vector.broadcast %cst_338 : f32 to vector<1x256xf32>
    %943 = arith.maximumf %942, %918 : vector<1x256xf32>
    %944 = vector.broadcast %cst_339 : f32 to vector<1x256xf32>
    %945 = arith.minimumf %944, %943 : vector<1x256xf32>
    %cst_340 = arith.constant 0.000000e+00 : f32
    %cst_341 = arith.constant 1.700000e+01 : f32
    %946 = vector.broadcast %cst_340 : f32 to vector<1x256xf32>
    %947 = arith.maximumf %946, %919 : vector<1x256xf32>
    %948 = vector.broadcast %cst_341 : f32 to vector<1x256xf32>
    %949 = arith.minimumf %948, %947 : vector<1x256xf32>
    %cst_342 = arith.constant 1.000000e+00 : f32
    %950 = vector.broadcast %cst_342 : f32 to vector<1x256xf32>
    %951 = arith.addf %950, %925 : vector<1x256xf32>
    %952 = arith.subf %951, %945 : vector<1x256xf32>
    %cst_343 = arith.constant 1.000000e+00 : f32
    %953 = vector.broadcast %cst_343 : f32 to vector<1x256xf32>
    %954 = arith.subf %953, %931 : vector<1x256xf32>
    %955 = arith.addf %954, %945 : vector<1x256xf32>
    %cst_344 = arith.constant 1.000000e+00 : f32
    %956 = vector.broadcast %cst_344 : f32 to vector<1x256xf32>
    %957 = arith.addf %956, %935 : vector<1x256xf32>
    %958 = arith.subf %957, %949 : vector<1x256xf32>
    %cst_345 = arith.constant 1.000000e+00 : f32
    %959 = vector.broadcast %cst_345 : f32 to vector<1x256xf32>
    %960 = arith.subf %959, %941 : vector<1x256xf32>
    %961 = arith.addf %960, %949 : vector<1x256xf32>
    %962 = vector.broadcast %935 : vector<1x256xf32> to vector<24x256xf32>
    %963 = arith.cmpf oeq, %46, %962 : vector<24x256xf32>
    %cst_346 = arith.constant 0.000000e+00 : f32
    %964 = vector.shape_cast %958 : vector<1x256xf32> to vector<1x256xf32>
    %965 = vector.broadcast %964 : vector<1x256xf32> to vector<24x256xf32>
    %966 = vector.broadcast %cst_346 : f32 to vector<24x256xf32>
    %967 = arith.select %963, %965, %966 : vector<24x256xi1>, vector<24x256xf32>
    %968 = vector.broadcast %941 : vector<1x256xf32> to vector<24x256xf32>
    %969 = arith.cmpf oeq, %46, %968 : vector<24x256xf32>
    %cst_347 = arith.constant 0.000000e+00 : f32
    %970 = vector.shape_cast %961 : vector<1x256xf32> to vector<1x256xf32>
    %971 = vector.broadcast %970 : vector<1x256xf32> to vector<24x256xf32>
    %972 = vector.broadcast %cst_347 : f32 to vector<24x256xf32>
    %973 = arith.select %969, %971, %972 : vector<24x256xi1>, vector<24x256xf32>
    %974 = arith.addf %967, %973 : vector<24x256xf32>
    %975 = vector.broadcast %925 : vector<1x256xf32> to vector<24x256xf32>
    %976 = arith.cmpf oeq, %46, %975 : vector<24x256xf32>
    %cst_348 = arith.constant 0.000000e+00 : f32
    %977 = vector.shape_cast %952 : vector<1x256xf32> to vector<1x256xf32>
    %978 = vector.broadcast %977 : vector<1x256xf32> to vector<24x256xf32>
    %979 = vector.broadcast %cst_348 : f32 to vector<24x256xf32>
    %980 = arith.select %976, %978, %979 : vector<24x256xi1>, vector<24x256xf32>
    %981 = vector.broadcast %931 : vector<1x256xf32> to vector<24x256xf32>
    %982 = arith.cmpf oeq, %46, %981 : vector<24x256xf32>
    %cst_349 = arith.constant 0.000000e+00 : f32
    %983 = vector.shape_cast %955 : vector<1x256xf32> to vector<1x256xf32>
    %984 = vector.broadcast %983 : vector<1x256xf32> to vector<24x256xf32>
    %985 = vector.broadcast %cst_349 : f32 to vector<24x256xf32>
    %986 = arith.select %982, %984, %985 : vector<24x256xi1>, vector<24x256xf32>
    %987 = arith.addf %980, %986 : vector<24x256xf32>
    %c1_350 = arith.constant 1 : index
    %c0_351 = arith.constant 0 : index
    %c0_352 = arith.constant 0 : index
    %988 = vector.load %arg2[%c1_350, %c0_351, %c0_352] : memref<2x96x24xf32, #tpu.memory_space<vmem>>, vector<1x96x24xf32>
    %989 = vector.shape_cast %988 : vector<1x96x24xf32> to vector<96x24xf32>
    %cst_353 = arith.constant dense<0.000000e+00> : vector<96x256xf32>
    %990 = tpu.matmul %989, %974, %cst_353 {dimension_numbers = #tpu.dot_dimension_numbers<[1], [0], [0], [1], [0, 0, 1, 1], [], []>} : vector<96x24xf32>, vector<24x256xf32>, vector<96x256xf32> -> vector<96x256xf32>
    %991 = vector.shape_cast %990 : vector<96x256xf32> to vector<4x24x256xf32>
    %992 = vector.shape_cast %987 : vector<24x256xf32> to vector<1x24x256xf32>
    %993 = vector.broadcast %992 : vector<1x24x256xf32> to vector<4x24x256xf32>
    %994 = arith.mulf %991, %993 : vector<4x24x256xf32>
    %cst_354 = arith.constant dense<0.000000e+00> : vector<4x256xf32>
    %995 = vector.multi_reduction <add>, %994, %cst_354 [1] : vector<4x24x256xf32> to vector<4x256xf32>
    %c8_355 = arith.constant 8 : index
    %c256_356 = arith.constant 256 : index
    %996 = vector.load %arg6[%c8_355, %c256_356] : memref<40x512xf32, #tpu.memory_space<vmem>>, vector<4x256xf32>
    tpu.vector_store %arg6[%c8_355, %c256_356], %995 {strides = array<i32>} : memref<40x512xf32, #tpu.memory_space<vmem>>, vector<4x256xf32>,
    %997 = vector.extract_strided_slice %39 {offsets = [3, 256], sizes = [1, 256], strides = [1, 1]} : vector<9x512xf32> to vector<1x256xf32>
    %998 = vector.extract_strided_slice %44 {offsets = [3, 256], sizes = [1, 256], strides = [1, 1]} : vector<9x512xf32> to vector<1x256xf32>
    %999 = math.floor %997 : vector<1x256xf32>
    %1000 = math.floor %998 : vector<1x256xf32>
    %cst_357 = arith.constant 0.000000e+00 : f32
    %cst_358 = arith.constant 1.700000e+01 : f32
    %1001 = vector.broadcast %cst_357 : f32 to vector<1x256xf32>
    %1002 = arith.maximumf %1001, %999 : vector<1x256xf32>
    %1003 = vector.broadcast %cst_358 : f32 to vector<1x256xf32>
    %1004 = arith.minimumf %1003, %1002 : vector<1x256xf32>
    %cst_359 = arith.constant 1.000000e+00 : f32
    %1005 = vector.broadcast %cst_359 : f32 to vector<1x256xf32>
    %1006 = arith.addf %999, %1005 : vector<1x256xf32>
    %cst_360 = arith.constant 0.000000e+00 : f32
    %cst_361 = arith.constant 1.700000e+01 : f32
    %1007 = vector.broadcast %cst_360 : f32 to vector<1x256xf32>
    %1008 = arith.maximumf %1007, %1006 : vector<1x256xf32>
    %1009 = vector.broadcast %cst_361 : f32 to vector<1x256xf32>
    %1010 = arith.minimumf %1009, %1008 : vector<1x256xf32>
    %cst_362 = arith.constant 0.000000e+00 : f32
    %cst_363 = arith.constant 1.700000e+01 : f32
    %1011 = vector.broadcast %cst_362 : f32 to vector<1x256xf32>
    %1012 = arith.maximumf %1011, %1000 : vector<1x256xf32>
    %1013 = vector.broadcast %cst_363 : f32 to vector<1x256xf32>
    %1014 = arith.minimumf %1013, %1012 : vector<1x256xf32>
    %cst_364 = arith.constant 1.000000e+00 : f32
    %1015 = vector.broadcast %cst_364 : f32 to vector<1x256xf32>
    %1016 = arith.addf %1000, %1015 : vector<1x256xf32>
    %cst_365 = arith.constant 0.000000e+00 : f32
    %cst_366 = arith.constant 1.700000e+01 : f32
    %1017 = vector.broadcast %cst_365 : f32 to vector<1x256xf32>
    %1018 = arith.maximumf %1017, %1016 : vector<1x256xf32>
    %1019 = vector.broadcast %cst_366 : f32 to vector<1x256xf32>
    %1020 = arith.minimumf %1019, %1018 : vector<1x256xf32>
    %cst_367 = arith.constant 0.000000e+00 : f32
    %cst_368 = arith.constant 1.700000e+01 : f32
    %1021 = vector.broadcast %cst_367 : f32 to vector<1x256xf32>
    %1022 = arith.maximumf %1021, %997 : vector<1x256xf32>
    %1023 = vector.broadcast %cst_368 : f32 to vector<1x256xf32>
    %1024 = arith.minimumf %1023, %1022 : vector<1x256xf32>
    %cst_369 = arith.constant 0.000000e+00 : f32
    %cst_370 = arith.constant 1.700000e+01 : f32
    %1025 = vector.broadcast %cst_369 : f32 to vector<1x256xf32>
    %1026 = arith.maximumf %1025, %998 : vector<1x256xf32>
    %1027 = vector.broadcast %cst_370 : f32 to vector<1x256xf32>
    %1028 = arith.minimumf %1027, %1026 : vector<1x256xf32>
    %cst_371 = arith.constant 1.000000e+00 : f32
    %1029 = vector.broadcast %cst_371 : f32 to vector<1x256xf32>
    %1030 = arith.addf %1029, %1004 : vector<1x256xf32>
    %1031 = arith.subf %1030, %1024 : vector<1x256xf32>
    %cst_372 = arith.constant 1.000000e+00 : f32
    %1032 = vector.broadcast %cst_372 : f32 to vector<1x256xf32>
    %1033 = arith.subf %1032, %1010 : vector<1x256xf32>
    %1034 = arith.addf %1033, %1024 : vector<1x256xf32>
    %cst_373 = arith.constant 1.000000e+00 : f32
    %1035 = vector.broadcast %cst_373 : f32 to vector<1x256xf32>
    %1036 = arith.addf %1035, %1014 : vector<1x256xf32>
    %1037 = arith.subf %1036, %1028 : vector<1x256xf32>
    %cst_374 = arith.constant 1.000000e+00 : f32
    %1038 = vector.broadcast %cst_374 : f32 to vector<1x256xf32>
    %1039 = arith.subf %1038, %1020 : vector<1x256xf32>
    %1040 = arith.addf %1039, %1028 : vector<1x256xf32>
    %1041 = vector.broadcast %1014 : vector<1x256xf32> to vector<24x256xf32>
    %1042 = arith.cmpf oeq, %46, %1041 : vector<24x256xf32>
    %cst_375 = arith.constant 0.000000e+00 : f32
    %1043 = vector.shape_cast %1037 : vector<1x256xf32> to vector<1x256xf32>
    %1044 = vector.broadcast %1043 : vector<1x256xf32> to vector<24x256xf32>
    %1045 = vector.broadcast %cst_375 : f32 to vector<24x256xf32>
    %1046 = arith.select %1042, %1044, %1045 : vector<24x256xi1>, vector<24x256xf32>
    %1047 = vector.broadcast %1020 : vector<1x256xf32> to vector<24x256xf32>
    %1048 = arith.cmpf oeq, %46, %1047 : vector<24x256xf32>
    %cst_376 = arith.constant 0.000000e+00 : f32
    %1049 = vector.shape_cast %1040 : vector<1x256xf32> to vector<1x256xf32>
    %1050 = vector.broadcast %1049 : vector<1x256xf32> to vector<24x256xf32>
    %1051 = vector.broadcast %cst_376 : f32 to vector<24x256xf32>
    %1052 = arith.select %1048, %1050, %1051 : vector<24x256xi1>, vector<24x256xf32>
    %1053 = arith.addf %1046, %1052 : vector<24x256xf32>
    %1054 = vector.broadcast %1004 : vector<1x256xf32> to vector<24x256xf32>
    %1055 = arith.cmpf oeq, %46, %1054 : vector<24x256xf32>
    %cst_377 = arith.constant 0.000000e+00 : f32
    %1056 = vector.shape_cast %1031 : vector<1x256xf32> to vector<1x256xf32>
    %1057 = vector.broadcast %1056 : vector<1x256xf32> to vector<24x256xf32>
    %1058 = vector.broadcast %cst_377 : f32 to vector<24x256xf32>
    %1059 = arith.select %1055, %1057, %1058 : vector<24x256xi1>, vector<24x256xf32>
    %1060 = vector.broadcast %1010 : vector<1x256xf32> to vector<24x256xf32>
    %1061 = arith.cmpf oeq, %46, %1060 : vector<24x256xf32>
    %cst_378 = arith.constant 0.000000e+00 : f32
    %1062 = vector.shape_cast %1034 : vector<1x256xf32> to vector<1x256xf32>
    %1063 = vector.broadcast %1062 : vector<1x256xf32> to vector<24x256xf32>
    %1064 = vector.broadcast %cst_378 : f32 to vector<24x256xf32>
    %1065 = arith.select %1061, %1063, %1064 : vector<24x256xi1>, vector<24x256xf32>
    %1066 = arith.addf %1059, %1065 : vector<24x256xf32>
    %c1_379 = arith.constant 1 : index
    %c0_380 = arith.constant 0 : index
    %c0_381 = arith.constant 0 : index
    %1067 = vector.load %arg2[%c1_379, %c0_380, %c0_381] : memref<2x96x24xf32, #tpu.memory_space<vmem>>, vector<1x96x24xf32>
    %1068 = vector.shape_cast %1067 : vector<1x96x24xf32> to vector<96x24xf32>
    %cst_382 = arith.constant dense<0.000000e+00> : vector<96x256xf32>
    %1069 = tpu.matmul %1068, %1053, %cst_382 {dimension_numbers = #tpu.dot_dimension_numbers<[1], [0], [0], [1], [0, 0, 1, 1], [], []>} : vector<96x24xf32>, vector<24x256xf32>, vector<96x256xf32> -> vector<96x256xf32>
    %1070 = vector.shape_cast %1069 : vector<96x256xf32> to vector<4x24x256xf32>
    %1071 = vector.shape_cast %1066 : vector<24x256xf32> to vector<1x24x256xf32>
    %1072 = vector.broadcast %1071 : vector<1x24x256xf32> to vector<4x24x256xf32>
    %1073 = arith.mulf %1070, %1072 : vector<4x24x256xf32>
    %cst_383 = arith.constant dense<0.000000e+00> : vector<4x256xf32>
    %1074 = vector.multi_reduction <add>, %1073, %cst_383 [1] : vector<4x24x256xf32> to vector<4x256xf32>
    %c12_384 = arith.constant 12 : index
    %c256_385 = arith.constant 256 : index
    %1075 = vector.load %arg6[%c12_384, %c256_385] : memref<40x512xf32, #tpu.memory_space<vmem>>, vector<4x256xf32>
    tpu.vector_store %arg6[%c12_384, %c256_385], %1074 {strides = array<i32>} : memref<40x512xf32, #tpu.memory_space<vmem>>, vector<4x256xf32>,
    %1076 = vector.extract_strided_slice %39 {offsets = [4, 256], sizes = [1, 256], strides = [1, 1]} : vector<9x512xf32> to vector<1x256xf32>
    %1077 = vector.extract_strided_slice %44 {offsets = [4, 256], sizes = [1, 256], strides = [1, 1]} : vector<9x512xf32> to vector<1x256xf32>
    %1078 = math.floor %1076 : vector<1x256xf32>
    %1079 = math.floor %1077 : vector<1x256xf32>
    %cst_386 = arith.constant 0.000000e+00 : f32
    %cst_387 = arith.constant 1.700000e+01 : f32
    %1080 = vector.broadcast %cst_386 : f32 to vector<1x256xf32>
    %1081 = arith.maximumf %1080, %1078 : vector<1x256xf32>
    %1082 = vector.broadcast %cst_387 : f32 to vector<1x256xf32>
    %1083 = arith.minimumf %1082, %1081 : vector<1x256xf32>
    %cst_388 = arith.constant 1.000000e+00 : f32
    %1084 = vector.broadcast %cst_388 : f32 to vector<1x256xf32>
    %1085 = arith.addf %1078, %1084 : vector<1x256xf32>
    %cst_389 = arith.constant 0.000000e+00 : f32
    %cst_390 = arith.constant 1.700000e+01 : f32
    %1086 = vector.broadcast %cst_389 : f32 to vector<1x256xf32>
    %1087 = arith.maximumf %1086, %1085 : vector<1x256xf32>
    %1088 = vector.broadcast %cst_390 : f32 to vector<1x256xf32>
    %1089 = arith.minimumf %1088, %1087 : vector<1x256xf32>
    %cst_391 = arith.constant 0.000000e+00 : f32
    %cst_392 = arith.constant 1.700000e+01 : f32
    %1090 = vector.broadcast %cst_391 : f32 to vector<1x256xf32>
    %1091 = arith.maximumf %1090, %1079 : vector<1x256xf32>
    %1092 = vector.broadcast %cst_392 : f32 to vector<1x256xf32>
    %1093 = arith.minimumf %1092, %1091 : vector<1x256xf32>
    %cst_393 = arith.constant 1.000000e+00 : f32
    %1094 = vector.broadcast %cst_393 : f32 to vector<1x256xf32>
    %1095 = arith.addf %1079, %1094 : vector<1x256xf32>
    %cst_394 = arith.constant 0.000000e+00 : f32
    %cst_395 = arith.constant 1.700000e+01 : f32
    %1096 = vector.broadcast %cst_394 : f32 to vector<1x256xf32>
    %1097 = arith.maximumf %1096, %1095 : vector<1x256xf32>
    %1098 = vector.broadcast %cst_395 : f32 to vector<1x256xf32>
    %1099 = arith.minimumf %1098, %1097 : vector<1x256xf32>
    %cst_396 = arith.constant 0.000000e+00 : f32
    %cst_397 = arith.constant 1.700000e+01 : f32
    %1100 = vector.broadcast %cst_396 : f32 to vector<1x256xf32>
    %1101 = arith.maximumf %1100, %1076 : vector<1x256xf32>
    %1102 = vector.broadcast %cst_397 : f32 to vector<1x256xf32>
    %1103 = arith.minimumf %1102, %1101 : vector<1x256xf32>
    %cst_398 = arith.constant 0.000000e+00 : f32
    %cst_399 = arith.constant 1.700000e+01 : f32
    %1104 = vector.broadcast %cst_398 : f32 to vector<1x256xf32>
    %1105 = arith.maximumf %1104, %1077 : vector<1x256xf32>
    %1106 = vector.broadcast %cst_399 : f32 to vector<1x256xf32>
    %1107 = arith.minimumf %1106, %1105 : vector<1x256xf32>
    %cst_400 = arith.constant 1.000000e+00 : f32
    %1108 = vector.broadcast %cst_400 : f32 to vector<1x256xf32>
    %1109 = arith.addf %1108, %1083 : vector<1x256xf32>
    %1110 = arith.subf %1109, %1103 : vector<1x256xf32>
    %cst_401 = arith.constant 1.000000e+00 : f32
    %1111 = vector.broadcast %cst_401 : f32 to vector<1x256xf32>
    %1112 = arith.subf %1111, %1089 : vector<1x256xf32>
    %1113 = arith.addf %1112, %1103 : vector<1x256xf32>
    %cst_402 = arith.constant 1.000000e+00 : f32
    %1114 = vector.broadcast %cst_402 : f32 to vector<1x256xf32>
    %1115 = arith.addf %1114, %1093 : vector<1x256xf32>
    %1116 = arith.subf %1115, %1107 : vector<1x256xf32>
    %cst_403 = arith.constant 1.000000e+00 : f32
    %1117 = vector.broadcast %cst_403 : f32 to vector<1x256xf32>
    %1118 = arith.subf %1117, %1099 : vector<1x256xf32>
    %1119 = arith.addf %1118, %1107 : vector<1x256xf32>
    %1120 = vector.broadcast %1093 : vector<1x256xf32> to vector<24x256xf32>
    %1121 = arith.cmpf oeq, %46, %1120 : vector<24x256xf32>
    %cst_404 = arith.constant 0.000000e+00 : f32
    %1122 = vector.shape_cast %1116 : vector<1x256xf32> to vector<1x256xf32>
    %1123 = vector.broadcast %1122 : vector<1x256xf32> to vector<24x256xf32>
    %1124 = vector.broadcast %cst_404 : f32 to vector<24x256xf32>
    %1125 = arith.select %1121, %1123, %1124 : vector<24x256xi1>, vector<24x256xf32>
    %1126 = vector.broadcast %1099 : vector<1x256xf32> to vector<24x256xf32>
    %1127 = arith.cmpf oeq, %46, %1126 : vector<24x256xf32>
    %cst_405 = arith.constant 0.000000e+00 : f32
    %1128 = vector.shape_cast %1119 : vector<1x256xf32> to vector<1x256xf32>
    %1129 = vector.broadcast %1128 : vector<1x256xf32> to vector<24x256xf32>
    %1130 = vector.broadcast %cst_405 : f32 to vector<24x256xf32>
    %1131 = arith.select %1127, %1129, %1130 : vector<24x256xi1>, vector<24x256xf32>
    %1132 = arith.addf %1125, %1131 : vector<24x256xf32>
    %1133 = vector.broadcast %1083 : vector<1x256xf32> to vector<24x256xf32>
    %1134 = arith.cmpf oeq, %46, %1133 : vector<24x256xf32>
    %cst_406 = arith.constant 0.000000e+00 : f32
    %1135 = vector.shape_cast %1110 : vector<1x256xf32> to vector<1x256xf32>
    %1136 = vector.broadcast %1135 : vector<1x256xf32> to vector<24x256xf32>
    %1137 = vector.broadcast %cst_406 : f32 to vector<24x256xf32>
    %1138 = arith.select %1134, %1136, %1137 : vector<24x256xi1>, vector<24x256xf32>
    %1139 = vector.broadcast %1089 : vector<1x256xf32> to vector<24x256xf32>
    %1140 = arith.cmpf oeq, %46, %1139 : vector<24x256xf32>
    %cst_407 = arith.constant 0.000000e+00 : f32
    %1141 = vector.shape_cast %1113 : vector<1x256xf32> to vector<1x256xf32>
    %1142 = vector.broadcast %1141 : vector<1x256xf32> to vector<24x256xf32>
    %1143 = vector.broadcast %cst_407 : f32 to vector<24x256xf32>
    %1144 = arith.select %1140, %1142, %1143 : vector<24x256xi1>, vector<24x256xf32>
    %1145 = arith.addf %1138, %1144 : vector<24x256xf32>
    %c1_408 = arith.constant 1 : index
    %c0_409 = arith.constant 0 : index
    %c0_410 = arith.constant 0 : index
    %1146 = vector.load %arg2[%c1_408, %c0_409, %c0_410] : memref<2x96x24xf32, #tpu.memory_space<vmem>>, vector<1x96x24xf32>
    %1147 = vector.shape_cast %1146 : vector<1x96x24xf32> to vector<96x24xf32>
    %cst_411 = arith.constant dense<0.000000e+00> : vector<96x256xf32>
    %1148 = tpu.matmul %1147, %1132, %cst_411 {dimension_numbers = #tpu.dot_dimension_numbers<[1], [0], [0], [1], [0, 0, 1, 1], [], []>} : vector<96x24xf32>, vector<24x256xf32>, vector<96x256xf32> -> vector<96x256xf32>
    %1149 = vector.shape_cast %1148 : vector<96x256xf32> to vector<4x24x256xf32>
    %1150 = vector.shape_cast %1145 : vector<24x256xf32> to vector<1x24x256xf32>
    %1151 = vector.broadcast %1150 : vector<1x24x256xf32> to vector<4x24x256xf32>
    %1152 = arith.mulf %1149, %1151 : vector<4x24x256xf32>
    %cst_412 = arith.constant dense<0.000000e+00> : vector<4x256xf32>
    %1153 = vector.multi_reduction <add>, %1152, %cst_412 [1] : vector<4x24x256xf32> to vector<4x256xf32>
    %c16_413 = arith.constant 16 : index
    %c256_414 = arith.constant 256 : index
    %1154 = vector.load %arg6[%c16_413, %c256_414] : memref<40x512xf32, #tpu.memory_space<vmem>>, vector<4x256xf32>
    tpu.vector_store %arg6[%c16_413, %c256_414], %1153 {strides = array<i32>} : memref<40x512xf32, #tpu.memory_space<vmem>>, vector<4x256xf32>,
    %1155 = vector.extract_strided_slice %39 {offsets = [5, 256], sizes = [1, 256], strides = [1, 1]} : vector<9x512xf32> to vector<1x256xf32>
    %1156 = vector.extract_strided_slice %44 {offsets = [5, 256], sizes = [1, 256], strides = [1, 1]} : vector<9x512xf32> to vector<1x256xf32>
    %1157 = math.floor %1155 : vector<1x256xf32>
    %1158 = math.floor %1156 : vector<1x256xf32>
    %cst_415 = arith.constant 0.000000e+00 : f32
    %cst_416 = arith.constant 1.700000e+01 : f32
    %1159 = vector.broadcast %cst_415 : f32 to vector<1x256xf32>
    %1160 = arith.maximumf %1159, %1157 : vector<1x256xf32>
    %1161 = vector.broadcast %cst_416 : f32 to vector<1x256xf32>
    %1162 = arith.minimumf %1161, %1160 : vector<1x256xf32>
    %cst_417 = arith.constant 1.000000e+00 : f32
    %1163 = vector.broadcast %cst_417 : f32 to vector<1x256xf32>
    %1164 = arith.addf %1157, %1163 : vector<1x256xf32>
    %cst_418 = arith.constant 0.000000e+00 : f32
    %cst_419 = arith.constant 1.700000e+01 : f32
    %1165 = vector.broadcast %cst_418 : f32 to vector<1x256xf32>
    %1166 = arith.maximumf %1165, %1164 : vector<1x256xf32>
    %1167 = vector.broadcast %cst_419 : f32 to vector<1x256xf32>
    %1168 = arith.minimumf %1167, %1166 : vector<1x256xf32>
    %cst_420 = arith.constant 0.000000e+00 : f32
    %cst_421 = arith.constant 1.700000e+01 : f32
    %1169 = vector.broadcast %cst_420 : f32 to vector<1x256xf32>
    %1170 = arith.maximumf %1169, %1158 : vector<1x256xf32>
    %1171 = vector.broadcast %cst_421 : f32 to vector<1x256xf32>
    %1172 = arith.minimumf %1171, %1170 : vector<1x256xf32>
    %cst_422 = arith.constant 1.000000e+00 : f32
    %1173 = vector.broadcast %cst_422 : f32 to vector<1x256xf32>
    %1174 = arith.addf %1158, %1173 : vector<1x256xf32>
    %cst_423 = arith.constant 0.000000e+00 : f32
    %cst_424 = arith.constant 1.700000e+01 : f32
    %1175 = vector.broadcast %cst_423 : f32 to vector<1x256xf32>
    %1176 = arith.maximumf %1175, %1174 : vector<1x256xf32>
    %1177 = vector.broadcast %cst_424 : f32 to vector<1x256xf32>
    %1178 = arith.minimumf %1177, %1176 : vector<1x256xf32>
    %cst_425 = arith.constant 0.000000e+00 : f32
    %cst_426 = arith.constant 1.700000e+01 : f32
    %1179 = vector.broadcast %cst_425 : f32 to vector<1x256xf32>
    %1180 = arith.maximumf %1179, %1155 : vector<1x256xf32>
    %1181 = vector.broadcast %cst_426 : f32 to vector<1x256xf32>
    %1182 = arith.minimumf %1181, %1180 : vector<1x256xf32>
    %cst_427 = arith.constant 0.000000e+00 : f32
    %cst_428 = arith.constant 1.700000e+01 : f32
    %1183 = vector.broadcast %cst_427 : f32 to vector<1x256xf32>
    %1184 = arith.maximumf %1183, %1156 : vector<1x256xf32>
    %1185 = vector.broadcast %cst_428 : f32 to vector<1x256xf32>
    %1186 = arith.minimumf %1185, %1184 : vector<1x256xf32>
    %cst_429 = arith.constant 1.000000e+00 : f32
    %1187 = vector.broadcast %cst_429 : f32 to vector<1x256xf32>
    %1188 = arith.addf %1187, %1162 : vector<1x256xf32>
    %1189 = arith.subf %1188, %1182 : vector<1x256xf32>
    %cst_430 = arith.constant 1.000000e+00 : f32
    %1190 = vector.broadcast %cst_430 : f32 to vector<1x256xf32>
    %1191 = arith.subf %1190, %1168 : vector<1x256xf32>
    %1192 = arith.addf %1191, %1182 : vector<1x256xf32>
    %cst_431 = arith.constant 1.000000e+00 : f32
    %1193 = vector.broadcast %cst_431 : f32 to vector<1x256xf32>
    %1194 = arith.addf %1193, %1172 : vector<1x256xf32>
    %1195 = arith.subf %1194, %1186 : vector<1x256xf32>
    %cst_432 = arith.constant 1.000000e+00 : f32
    %1196 = vector.broadcast %cst_432 : f32 to vector<1x256xf32>
    %1197 = arith.subf %1196, %1178 : vector<1x256xf32>
    %1198 = arith.addf %1197, %1186 : vector<1x256xf32>
    %1199 = vector.broadcast %1172 : vector<1x256xf32> to vector<24x256xf32>
    %1200 = arith.cmpf oeq, %46, %1199 : vector<24x256xf32>
    %cst_433 = arith.constant 0.000000e+00 : f32
    %1201 = vector.shape_cast %1195 : vector<1x256xf32> to vector<1x256xf32>
    %1202 = vector.broadcast %1201 : vector<1x256xf32> to vector<24x256xf32>
    %1203 = vector.broadcast %cst_433 : f32 to vector<24x256xf32>
    %1204 = arith.select %1200, %1202, %1203 : vector<24x256xi1>, vector<24x256xf32>
    %1205 = vector.broadcast %1178 : vector<1x256xf32> to vector<24x256xf32>
    %1206 = arith.cmpf oeq, %46, %1205 : vector<24x256xf32>
    %cst_434 = arith.constant 0.000000e+00 : f32
    %1207 = vector.shape_cast %1198 : vector<1x256xf32> to vector<1x256xf32>
    %1208 = vector.broadcast %1207 : vector<1x256xf32> to vector<24x256xf32>
    %1209 = vector.broadcast %cst_434 : f32 to vector<24x256xf32>
    %1210 = arith.select %1206, %1208, %1209 : vector<24x256xi1>, vector<24x256xf32>
    %1211 = arith.addf %1204, %1210 : vector<24x256xf32>
    %1212 = vector.broadcast %1162 : vector<1x256xf32> to vector<24x256xf32>
    %1213 = arith.cmpf oeq, %46, %1212 : vector<24x256xf32>
    %cst_435 = arith.constant 0.000000e+00 : f32
    %1214 = vector.shape_cast %1189 : vector<1x256xf32> to vector<1x256xf32>
    %1215 = vector.broadcast %1214 : vector<1x256xf32> to vector<24x256xf32>
    %1216 = vector.broadcast %cst_435 : f32 to vector<24x256xf32>
    %1217 = arith.select %1213, %1215, %1216 : vector<24x256xi1>, vector<24x256xf32>
    %1218 = vector.broadcast %1168 : vector<1x256xf32> to vector<24x256xf32>
    %1219 = arith.cmpf oeq, %46, %1218 : vector<24x256xf32>
    %cst_436 = arith.constant 0.000000e+00 : f32
    %1220 = vector.shape_cast %1192 : vector<1x256xf32> to vector<1x256xf32>
    %1221 = vector.broadcast %1220 : vector<1x256xf32> to vector<24x256xf32>
    %1222 = vector.broadcast %cst_436 : f32 to vector<24x256xf32>
    %1223 = arith.select %1219, %1221, %1222 : vector<24x256xi1>, vector<24x256xf32>
    %1224 = arith.addf %1217, %1223 : vector<24x256xf32>
    %c1_437 = arith.constant 1 : index
    %c0_438 = arith.constant 0 : index
    %c0_439 = arith.constant 0 : index
    %1225 = vector.load %arg2[%c1_437, %c0_438, %c0_439] : memref<2x96x24xf32, #tpu.memory_space<vmem>>, vector<1x96x24xf32>
    %1226 = vector.shape_cast %1225 : vector<1x96x24xf32> to vector<96x24xf32>
    %cst_440 = arith.constant dense<0.000000e+00> : vector<96x256xf32>
    %1227 = tpu.matmul %1226, %1211, %cst_440 {dimension_numbers = #tpu.dot_dimension_numbers<[1], [0], [0], [1], [0, 0, 1, 1], [], []>} : vector<96x24xf32>, vector<24x256xf32>, vector<96x256xf32> -> vector<96x256xf32>
    %1228 = vector.shape_cast %1227 : vector<96x256xf32> to vector<4x24x256xf32>
    %1229 = vector.shape_cast %1224 : vector<24x256xf32> to vector<1x24x256xf32>
    %1230 = vector.broadcast %1229 : vector<1x24x256xf32> to vector<4x24x256xf32>
    %1231 = arith.mulf %1228, %1230 : vector<4x24x256xf32>
    %cst_441 = arith.constant dense<0.000000e+00> : vector<4x256xf32>
    %1232 = vector.multi_reduction <add>, %1231, %cst_441 [1] : vector<4x24x256xf32> to vector<4x256xf32>
    %c20_442 = arith.constant 20 : index
    %c256_443 = arith.constant 256 : index
    %1233 = vector.load %arg6[%c20_442, %c256_443] : memref<40x512xf32, #tpu.memory_space<vmem>>, vector<4x256xf32>
    tpu.vector_store %arg6[%c20_442, %c256_443], %1232 {strides = array<i32>} : memref<40x512xf32, #tpu.memory_space<vmem>>, vector<4x256xf32>,
    %1234 = vector.extract_strided_slice %39 {offsets = [6, 256], sizes = [1, 256], strides = [1, 1]} : vector<9x512xf32> to vector<1x256xf32>
    %1235 = vector.extract_strided_slice %44 {offsets = [6, 256], sizes = [1, 256], strides = [1, 1]} : vector<9x512xf32> to vector<1x256xf32>
    %1236 = math.floor %1234 : vector<1x256xf32>
    %1237 = math.floor %1235 : vector<1x256xf32>
    %cst_444 = arith.constant 0.000000e+00 : f32
    %cst_445 = arith.constant 1.700000e+01 : f32
    %1238 = vector.broadcast %cst_444 : f32 to vector<1x256xf32>
    %1239 = arith.maximumf %1238, %1236 : vector<1x256xf32>
    %1240 = vector.broadcast %cst_445 : f32 to vector<1x256xf32>
    %1241 = arith.minimumf %1240, %1239 : vector<1x256xf32>
    %cst_446 = arith.constant 1.000000e+00 : f32
    %1242 = vector.broadcast %cst_446 : f32 to vector<1x256xf32>
    %1243 = arith.addf %1236, %1242 : vector<1x256xf32>
    %cst_447 = arith.constant 0.000000e+00 : f32
    %cst_448 = arith.constant 1.700000e+01 : f32
    %1244 = vector.broadcast %cst_447 : f32 to vector<1x256xf32>
    %1245 = arith.maximumf %1244, %1243 : vector<1x256xf32>
    %1246 = vector.broadcast %cst_448 : f32 to vector<1x256xf32>
    %1247 = arith.minimumf %1246, %1245 : vector<1x256xf32>
    %cst_449 = arith.constant 0.000000e+00 : f32
    %cst_450 = arith.constant 1.700000e+01 : f32
    %1248 = vector.broadcast %cst_449 : f32 to vector<1x256xf32>
    %1249 = arith.maximumf %1248, %1237 : vector<1x256xf32>
    %1250 = vector.broadcast %cst_450 : f32 to vector<1x256xf32>
    %1251 = arith.minimumf %1250, %1249 : vector<1x256xf32>
    %cst_451 = arith.constant 1.000000e+00 : f32
    %1252 = vector.broadcast %cst_451 : f32 to vector<1x256xf32>
    %1253 = arith.addf %1237, %1252 : vector<1x256xf32>
    %cst_452 = arith.constant 0.000000e+00 : f32
    %cst_453 = arith.constant 1.700000e+01 : f32
    %1254 = vector.broadcast %cst_452 : f32 to vector<1x256xf32>
    %1255 = arith.maximumf %1254, %1253 : vector<1x256xf32>
    %1256 = vector.broadcast %cst_453 : f32 to vector<1x256xf32>
    %1257 = arith.minimumf %1256, %1255 : vector<1x256xf32>
    %cst_454 = arith.constant 0.000000e+00 : f32
    %cst_455 = arith.constant 1.700000e+01 : f32
    %1258 = vector.broadcast %cst_454 : f32 to vector<1x256xf32>
    %1259 = arith.maximumf %1258, %1234 : vector<1x256xf32>
    %1260 = vector.broadcast %cst_455 : f32 to vector<1x256xf32>
    %1261 = arith.minimumf %1260, %1259 : vector<1x256xf32>
    %cst_456 = arith.constant 0.000000e+00 : f32
    %cst_457 = arith.constant 1.700000e+01 : f32
    %1262 = vector.broadcast %cst_456 : f32 to vector<1x256xf32>
    %1263 = arith.maximumf %1262, %1235 : vector<1x256xf32>
    %1264 = vector.broadcast %cst_457 : f32 to vector<1x256xf32>
    %1265 = arith.minimumf %1264, %1263 : vector<1x256xf32>
    %cst_458 = arith.constant 1.000000e+00 : f32
    %1266 = vector.broadcast %cst_458 : f32 to vector<1x256xf32>
    %1267 = arith.addf %1266, %1241 : vector<1x256xf32>
    %1268 = arith.subf %1267, %1261 : vector<1x256xf32>
    %cst_459 = arith.constant 1.000000e+00 : f32
    %1269 = vector.broadcast %cst_459 : f32 to vector<1x256xf32>
    %1270 = arith.subf %1269, %1247 : vector<1x256xf32>
    %1271 = arith.addf %1270, %1261 : vector<1x256xf32>
    %cst_460 = arith.constant 1.000000e+00 : f32
    %1272 = vector.broadcast %cst_460 : f32 to vector<1x256xf32>
    %1273 = arith.addf %1272, %1251 : vector<1x256xf32>
    %1274 = arith.subf %1273, %1265 : vector<1x256xf32>
    %cst_461 = arith.constant 1.000000e+00 : f32
    %1275 = vector.broadcast %cst_461 : f32 to vector<1x256xf32>
    %1276 = arith.subf %1275, %1257 : vector<1x256xf32>
    %1277 = arith.addf %1276, %1265 : vector<1x256xf32>
    %1278 = vector.broadcast %1251 : vector<1x256xf32> to vector<24x256xf32>
    %1279 = arith.cmpf oeq, %46, %1278 : vector<24x256xf32>
    %cst_462 = arith.constant 0.000000e+00 : f32
    %1280 = vector.shape_cast %1274 : vector<1x256xf32> to vector<1x256xf32>
    %1281 = vector.broadcast %1280 : vector<1x256xf32> to vector<24x256xf32>
    %1282 = vector.broadcast %cst_462 : f32 to vector<24x256xf32>
    %1283 = arith.select %1279, %1281, %1282 : vector<24x256xi1>, vector<24x256xf32>
    %1284 = vector.broadcast %1257 : vector<1x256xf32> to vector<24x256xf32>
    %1285 = arith.cmpf oeq, %46, %1284 : vector<24x256xf32>
    %cst_463 = arith.constant 0.000000e+00 : f32
    %1286 = vector.shape_cast %1277 : vector<1x256xf32> to vector<1x256xf32>
    %1287 = vector.broadcast %1286 : vector<1x256xf32> to vector<24x256xf32>
    %1288 = vector.broadcast %cst_463 : f32 to vector<24x256xf32>
    %1289 = arith.select %1285, %1287, %1288 : vector<24x256xi1>, vector<24x256xf32>
    %1290 = arith.addf %1283, %1289 : vector<24x256xf32>
    %1291 = vector.broadcast %1241 : vector<1x256xf32> to vector<24x256xf32>
    %1292 = arith.cmpf oeq, %46, %1291 : vector<24x256xf32>
    %cst_464 = arith.constant 0.000000e+00 : f32
    %1293 = vector.shape_cast %1268 : vector<1x256xf32> to vector<1x256xf32>
    %1294 = vector.broadcast %1293 : vector<1x256xf32> to vector<24x256xf32>
    %1295 = vector.broadcast %cst_464 : f32 to vector<24x256xf32>
    %1296 = arith.select %1292, %1294, %1295 : vector<24x256xi1>, vector<24x256xf32>
    %1297 = vector.broadcast %1247 : vector<1x256xf32> to vector<24x256xf32>
    %1298 = arith.cmpf oeq, %46, %1297 : vector<24x256xf32>
    %cst_465 = arith.constant 0.000000e+00 : f32
    %1299 = vector.shape_cast %1271 : vector<1x256xf32> to vector<1x256xf32>
    %1300 = vector.broadcast %1299 : vector<1x256xf32> to vector<24x256xf32>
    %1301 = vector.broadcast %cst_465 : f32 to vector<24x256xf32>
    %1302 = arith.select %1298, %1300, %1301 : vector<24x256xi1>, vector<24x256xf32>
    %1303 = arith.addf %1296, %1302 : vector<24x256xf32>
    %c1_466 = arith.constant 1 : index
    %c0_467 = arith.constant 0 : index
    %c0_468 = arith.constant 0 : index
    %1304 = vector.load %arg2[%c1_466, %c0_467, %c0_468] : memref<2x96x24xf32, #tpu.memory_space<vmem>>, vector<1x96x24xf32>
    %1305 = vector.shape_cast %1304 : vector<1x96x24xf32> to vector<96x24xf32>
    %cst_469 = arith.constant dense<0.000000e+00> : vector<96x256xf32>
    %1306 = tpu.matmul %1305, %1290, %cst_469 {dimension_numbers = #tpu.dot_dimension_numbers<[1], [0], [0], [1], [0, 0, 1, 1], [], []>} : vector<96x24xf32>, vector<24x256xf32>, vector<96x256xf32> -> vector<96x256xf32>
    %1307 = vector.shape_cast %1306 : vector<96x256xf32> to vector<4x24x256xf32>
    %1308 = vector.shape_cast %1303 : vector<24x256xf32> to vector<1x24x256xf32>
    %1309 = vector.broadcast %1308 : vector<1x24x256xf32> to vector<4x24x256xf32>
    %1310 = arith.mulf %1307, %1309 : vector<4x24x256xf32>
    %cst_470 = arith.constant dense<0.000000e+00> : vector<4x256xf32>
    %1311 = vector.multi_reduction <add>, %1310, %cst_470 [1] : vector<4x24x256xf32> to vector<4x256xf32>
    %c24_471 = arith.constant 24 : index
    %c256_472 = arith.constant 256 : index
    %1312 = vector.load %arg6[%c24_471, %c256_472] : memref<40x512xf32, #tpu.memory_space<vmem>>, vector<4x256xf32>
    tpu.vector_store %arg6[%c24_471, %c256_472], %1311 {strides = array<i32>} : memref<40x512xf32, #tpu.memory_space<vmem>>, vector<4x256xf32>,
    %1313 = vector.extract_strided_slice %39 {offsets = [7, 256], sizes = [1, 256], strides = [1, 1]} : vector<9x512xf32> to vector<1x256xf32>
    %1314 = vector.extract_strided_slice %44 {offsets = [7, 256], sizes = [1, 256], strides = [1, 1]} : vector<9x512xf32> to vector<1x256xf32>
    %1315 = math.floor %1313 : vector<1x256xf32>
    %1316 = math.floor %1314 : vector<1x256xf32>
    %cst_473 = arith.constant 0.000000e+00 : f32
    %cst_474 = arith.constant 1.700000e+01 : f32
    %1317 = vector.broadcast %cst_473 : f32 to vector<1x256xf32>
    %1318 = arith.maximumf %1317, %1315 : vector<1x256xf32>
    %1319 = vector.broadcast %cst_474 : f32 to vector<1x256xf32>
    %1320 = arith.minimumf %1319, %1318 : vector<1x256xf32>
    %cst_475 = arith.constant 1.000000e+00 : f32
    %1321 = vector.broadcast %cst_475 : f32 to vector<1x256xf32>
    %1322 = arith.addf %1315, %1321 : vector<1x256xf32>
    %cst_476 = arith.constant 0.000000e+00 : f32
    %cst_477 = arith.constant 1.700000e+01 : f32
    %1323 = vector.broadcast %cst_476 : f32 to vector<1x256xf32>
    %1324 = arith.maximumf %1323, %1322 : vector<1x256xf32>
    %1325 = vector.broadcast %cst_477 : f32 to vector<1x256xf32>
    %1326 = arith.minimumf %1325, %1324 : vector<1x256xf32>
    %cst_478 = arith.constant 0.000000e+00 : f32
    %cst_479 = arith.constant 1.700000e+01 : f32
    %1327 = vector.broadcast %cst_478 : f32 to vector<1x256xf32>
    %1328 = arith.maximumf %1327, %1316 : vector<1x256xf32>
    %1329 = vector.broadcast %cst_479 : f32 to vector<1x256xf32>
    %1330 = arith.minimumf %1329, %1328 : vector<1x256xf32>
    %cst_480 = arith.constant 1.000000e+00 : f32
    %1331 = vector.broadcast %cst_480 : f32 to vector<1x256xf32>
    %1332 = arith.addf %1316, %1331 : vector<1x256xf32>
    %cst_481 = arith.constant 0.000000e+00 : f32
    %cst_482 = arith.constant 1.700000e+01 : f32
    %1333 = vector.broadcast %cst_481 : f32 to vector<1x256xf32>
    %1334 = arith.maximumf %1333, %1332 : vector<1x256xf32>
    %1335 = vector.broadcast %cst_482 : f32 to vector<1x256xf32>
    %1336 = arith.minimumf %1335, %1334 : vector<1x256xf32>
    %cst_483 = arith.constant 0.000000e+00 : f32
    %cst_484 = arith.constant 1.700000e+01 : f32
    %1337 = vector.broadcast %cst_483 : f32 to vector<1x256xf32>
    %1338 = arith.maximumf %1337, %1313 : vector<1x256xf32>
    %1339 = vector.broadcast %cst_484 : f32 to vector<1x256xf32>
    %1340 = arith.minimumf %1339, %1338 : vector<1x256xf32>
    %cst_485 = arith.constant 0.000000e+00 : f32
    %cst_486 = arith.constant 1.700000e+01 : f32
    %1341 = vector.broadcast %cst_485 : f32 to vector<1x256xf32>
    %1342 = arith.maximumf %1341, %1314 : vector<1x256xf32>
    %1343 = vector.broadcast %cst_486 : f32 to vector<1x256xf32>
    %1344 = arith.minimumf %1343, %1342 : vector<1x256xf32>
    %cst_487 = arith.constant 1.000000e+00 : f32
    %1345 = vector.broadcast %cst_487 : f32 to vector<1x256xf32>
    %1346 = arith.addf %1345, %1320 : vector<1x256xf32>
    %1347 = arith.subf %1346, %1340 : vector<1x256xf32>
    %cst_488 = arith.constant 1.000000e+00 : f32
    %1348 = vector.broadcast %cst_488 : f32 to vector<1x256xf32>
    %1349 = arith.subf %1348, %1326 : vector<1x256xf32>
    %1350 = arith.addf %1349, %1340 : vector<1x256xf32>
    %cst_489 = arith.constant 1.000000e+00 : f32
    %1351 = vector.broadcast %cst_489 : f32 to vector<1x256xf32>
    %1352 = arith.addf %1351, %1330 : vector<1x256xf32>
    %1353 = arith.subf %1352, %1344 : vector<1x256xf32>
    %cst_490 = arith.constant 1.000000e+00 : f32
    %1354 = vector.broadcast %cst_490 : f32 to vector<1x256xf32>
    %1355 = arith.subf %1354, %1336 : vector<1x256xf32>
    %1356 = arith.addf %1355, %1344 : vector<1x256xf32>
    %1357 = vector.broadcast %1330 : vector<1x256xf32> to vector<24x256xf32>
    %1358 = arith.cmpf oeq, %46, %1357 : vector<24x256xf32>
    %cst_491 = arith.constant 0.000000e+00 : f32
    %1359 = vector.shape_cast %1353 : vector<1x256xf32> to vector<1x256xf32>
    %1360 = vector.broadcast %1359 : vector<1x256xf32> to vector<24x256xf32>
    %1361 = vector.broadcast %cst_491 : f32 to vector<24x256xf32>
    %1362 = arith.select %1358, %1360, %1361 : vector<24x256xi1>, vector<24x256xf32>
    %1363 = vector.broadcast %1336 : vector<1x256xf32> to vector<24x256xf32>
    %1364 = arith.cmpf oeq, %46, %1363 : vector<24x256xf32>
    %cst_492 = arith.constant 0.000000e+00 : f32
    %1365 = vector.shape_cast %1356 : vector<1x256xf32> to vector<1x256xf32>
    %1366 = vector.broadcast %1365 : vector<1x256xf32> to vector<24x256xf32>
    %1367 = vector.broadcast %cst_492 : f32 to vector<24x256xf32>
    %1368 = arith.select %1364, %1366, %1367 : vector<24x256xi1>, vector<24x256xf32>
    %1369 = arith.addf %1362, %1368 : vector<24x256xf32>
    %1370 = vector.broadcast %1320 : vector<1x256xf32> to vector<24x256xf32>
    %1371 = arith.cmpf oeq, %46, %1370 : vector<24x256xf32>
    %cst_493 = arith.constant 0.000000e+00 : f32
    %1372 = vector.shape_cast %1347 : vector<1x256xf32> to vector<1x256xf32>
    %1373 = vector.broadcast %1372 : vector<1x256xf32> to vector<24x256xf32>
    %1374 = vector.broadcast %cst_493 : f32 to vector<24x256xf32>
    %1375 = arith.select %1371, %1373, %1374 : vector<24x256xi1>, vector<24x256xf32>
    %1376 = vector.broadcast %1326 : vector<1x256xf32> to vector<24x256xf32>
    %1377 = arith.cmpf oeq, %46, %1376 : vector<24x256xf32>
    %cst_494 = arith.constant 0.000000e+00 : f32
    %1378 = vector.shape_cast %1350 : vector<1x256xf32> to vector<1x256xf32>
    %1379 = vector.broadcast %1378 : vector<1x256xf32> to vector<24x256xf32>
    %1380 = vector.broadcast %cst_494 : f32 to vector<24x256xf32>
    %1381 = arith.select %1377, %1379, %1380 : vector<24x256xi1>, vector<24x256xf32>
    %1382 = arith.addf %1375, %1381 : vector<24x256xf32>
    %c1_495 = arith.constant 1 : index
    %c0_496 = arith.constant 0 : index
    %c0_497 = arith.constant 0 : index
    %1383 = vector.load %arg2[%c1_495, %c0_496, %c0_497] : memref<2x96x24xf32, #tpu.memory_space<vmem>>, vector<1x96x24xf32>
    %1384 = vector.shape_cast %1383 : vector<1x96x24xf32> to vector<96x24xf32>
    %cst_498 = arith.constant dense<0.000000e+00> : vector<96x256xf32>
    %1385 = tpu.matmul %1384, %1369, %cst_498 {dimension_numbers = #tpu.dot_dimension_numbers<[1], [0], [0], [1], [0, 0, 1, 1], [], []>} : vector<96x24xf32>, vector<24x256xf32>, vector<96x256xf32> -> vector<96x256xf32>
    %1386 = vector.shape_cast %1385 : vector<96x256xf32> to vector<4x24x256xf32>
    %1387 = vector.shape_cast %1382 : vector<24x256xf32> to vector<1x24x256xf32>
    %1388 = vector.broadcast %1387 : vector<1x24x256xf32> to vector<4x24x256xf32>
    %1389 = arith.mulf %1386, %1388 : vector<4x24x256xf32>
    %cst_499 = arith.constant dense<0.000000e+00> : vector<4x256xf32>
    %1390 = vector.multi_reduction <add>, %1389, %cst_499 [1] : vector<4x24x256xf32> to vector<4x256xf32>
    %c28_500 = arith.constant 28 : index
    %c256_501 = arith.constant 256 : index
    %1391 = vector.load %arg6[%c28_500, %c256_501] : memref<40x512xf32, #tpu.memory_space<vmem>>, vector<4x256xf32>
    tpu.vector_store %arg6[%c28_500, %c256_501], %1390 {strides = array<i32>} : memref<40x512xf32, #tpu.memory_space<vmem>>, vector<4x256xf32>,
    %1392 = vector.extract_strided_slice %39 {offsets = [8, 256], sizes = [1, 256], strides = [1, 1]} : vector<9x512xf32> to vector<1x256xf32>
    %1393 = vector.extract_strided_slice %44 {offsets = [8, 256], sizes = [1, 256], strides = [1, 1]} : vector<9x512xf32> to vector<1x256xf32>
    %1394 = math.floor %1392 : vector<1x256xf32>
    %1395 = math.floor %1393 : vector<1x256xf32>
    %cst_502 = arith.constant 0.000000e+00 : f32
    %cst_503 = arith.constant 1.700000e+01 : f32
    %1396 = vector.broadcast %cst_502 : f32 to vector<1x256xf32>
    %1397 = arith.maximumf %1396, %1394 : vector<1x256xf32>
    %1398 = vector.broadcast %cst_503 : f32 to vector<1x256xf32>
    %1399 = arith.minimumf %1398, %1397 : vector<1x256xf32>
    %cst_504 = arith.constant 1.000000e+00 : f32
    %1400 = vector.broadcast %cst_504 : f32 to vector<1x256xf32>
    %1401 = arith.addf %1394, %1400 : vector<1x256xf32>
    %cst_505 = arith.constant 0.000000e+00 : f32
    %cst_506 = arith.constant 1.700000e+01 : f32
    %1402 = vector.broadcast %cst_505 : f32 to vector<1x256xf32>
    %1403 = arith.maximumf %1402, %1401 : vector<1x256xf32>
    %1404 = vector.broadcast %cst_506 : f32 to vector<1x256xf32>
    %1405 = arith.minimumf %1404, %1403 : vector<1x256xf32>
    %cst_507 = arith.constant 0.000000e+00 : f32
    %cst_508 = arith.constant 1.700000e+01 : f32
    %1406 = vector.broadcast %cst_507 : f32 to vector<1x256xf32>
    %1407 = arith.maximumf %1406, %1395 : vector<1x256xf32>
    %1408 = vector.broadcast %cst_508 : f32 to vector<1x256xf32>
    %1409 = arith.minimumf %1408, %1407 : vector<1x256xf32>
    %cst_509 = arith.constant 1.000000e+00 : f32
    %1410 = vector.broadcast %cst_509 : f32 to vector<1x256xf32>
    %1411 = arith.addf %1395, %1410 : vector<1x256xf32>
    %cst_510 = arith.constant 0.000000e+00 : f32
    %cst_511 = arith.constant 1.700000e+01 : f32
    %1412 = vector.broadcast %cst_510 : f32 to vector<1x256xf32>
    %1413 = arith.maximumf %1412, %1411 : vector<1x256xf32>
    %1414 = vector.broadcast %cst_511 : f32 to vector<1x256xf32>
    %1415 = arith.minimumf %1414, %1413 : vector<1x256xf32>
    %cst_512 = arith.constant 0.000000e+00 : f32
    %cst_513 = arith.constant 1.700000e+01 : f32
    %1416 = vector.broadcast %cst_512 : f32 to vector<1x256xf32>
    %1417 = arith.maximumf %1416, %1392 : vector<1x256xf32>
    %1418 = vector.broadcast %cst_513 : f32 to vector<1x256xf32>
    %1419 = arith.minimumf %1418, %1417 : vector<1x256xf32>
    %cst_514 = arith.constant 0.000000e+00 : f32
    %cst_515 = arith.constant 1.700000e+01 : f32
    %1420 = vector.broadcast %cst_514 : f32 to vector<1x256xf32>
    %1421 = arith.maximumf %1420, %1393 : vector<1x256xf32>
    %1422 = vector.broadcast %cst_515 : f32 to vector<1x256xf32>
    %1423 = arith.minimumf %1422, %1421 : vector<1x256xf32>
    %cst_516 = arith.constant 1.000000e+00 : f32
    %1424 = vector.broadcast %cst_516 : f32 to vector<1x256xf32>
    %1425 = arith.addf %1424, %1399 : vector<1x256xf32>
    %1426 = arith.subf %1425, %1419 : vector<1x256xf32>
    %cst_517 = arith.constant 1.000000e+00 : f32
    %1427 = vector.broadcast %cst_517 : f32 to vector<1x256xf32>
    %1428 = arith.subf %1427, %1405 : vector<1x256xf32>
    %1429 = arith.addf %1428, %1419 : vector<1x256xf32>
    %cst_518 = arith.constant 1.000000e+00 : f32
    %1430 = vector.broadcast %cst_518 : f32 to vector<1x256xf32>
    %1431 = arith.addf %1430, %1409 : vector<1x256xf32>
    %1432 = arith.subf %1431, %1423 : vector<1x256xf32>
    %cst_519 = arith.constant 1.000000e+00 : f32
    %1433 = vector.broadcast %cst_519 : f32 to vector<1x256xf32>
    %1434 = arith.subf %1433, %1415 : vector<1x256xf32>
    %1435 = arith.addf %1434, %1423 : vector<1x256xf32>
    %1436 = vector.broadcast %1409 : vector<1x256xf32> to vector<24x256xf32>
    %1437 = arith.cmpf oeq, %46, %1436 : vector<24x256xf32>
    %cst_520 = arith.constant 0.000000e+00 : f32
    %1438 = vector.shape_cast %1432 : vector<1x256xf32> to vector<1x256xf32>
    %1439 = vector.broadcast %1438 : vector<1x256xf32> to vector<24x256xf32>
    %1440 = vector.broadcast %cst_520 : f32 to vector<24x256xf32>
    %1441 = arith.select %1437, %1439, %1440 : vector<24x256xi1>, vector<24x256xf32>
    %1442 = vector.broadcast %1415 : vector<1x256xf32> to vector<24x256xf32>
    %1443 = arith.cmpf oeq, %46, %1442 : vector<24x256xf32>
    %cst_521 = arith.constant 0.000000e+00 : f32
    %1444 = vector.shape_cast %1435 : vector<1x256xf32> to vector<1x256xf32>
    %1445 = vector.broadcast %1444 : vector<1x256xf32> to vector<24x256xf32>
    %1446 = vector.broadcast %cst_521 : f32 to vector<24x256xf32>
    %1447 = arith.select %1443, %1445, %1446 : vector<24x256xi1>, vector<24x256xf32>
    %1448 = arith.addf %1441, %1447 : vector<24x256xf32>
    %1449 = vector.broadcast %1399 : vector<1x256xf32> to vector<24x256xf32>
    %1450 = arith.cmpf oeq, %46, %1449 : vector<24x256xf32>
    %cst_522 = arith.constant 0.000000e+00 : f32
    %1451 = vector.shape_cast %1426 : vector<1x256xf32> to vector<1x256xf32>
    %1452 = vector.broadcast %1451 : vector<1x256xf32> to vector<24x256xf32>
    %1453 = vector.broadcast %cst_522 : f32 to vector<24x256xf32>
    %1454 = arith.select %1450, %1452, %1453 : vector<24x256xi1>, vector<24x256xf32>
    %1455 = vector.broadcast %1405 : vector<1x256xf32> to vector<24x256xf32>
    %1456 = arith.cmpf oeq, %46, %1455 : vector<24x256xf32>
    %cst_523 = arith.constant 0.000000e+00 : f32
    %1457 = vector.shape_cast %1429 : vector<1x256xf32> to vector<1x256xf32>
    %1458 = vector.broadcast %1457 : vector<1x256xf32> to vector<24x256xf32>
    %1459 = vector.broadcast %cst_523 : f32 to vector<24x256xf32>
    %1460 = arith.select %1456, %1458, %1459 : vector<24x256xi1>, vector<24x256xf32>
    %1461 = arith.addf %1454, %1460 : vector<24x256xf32>
    %c1_524 = arith.constant 1 : index
    %c0_525 = arith.constant 0 : index
    %c0_526 = arith.constant 0 : index
    %1462 = vector.load %arg2[%c1_524, %c0_525, %c0_526] : memref<2x96x24xf32, #tpu.memory_space<vmem>>, vector<1x96x24xf32>
    %1463 = vector.shape_cast %1462 : vector<1x96x24xf32> to vector<96x24xf32>
    %cst_527 = arith.constant dense<0.000000e+00> : vector<96x256xf32>
    %1464 = tpu.matmul %1463, %1448, %cst_527 {dimension_numbers = #tpu.dot_dimension_numbers<[1], [0], [0], [1], [0, 0, 1, 1], [], []>} : vector<96x24xf32>, vector<24x256xf32>, vector<96x256xf32> -> vector<96x256xf32>
    %1465 = vector.shape_cast %1464 : vector<96x256xf32> to vector<4x24x256xf32>
    %1466 = vector.shape_cast %1461 : vector<24x256xf32> to vector<1x24x256xf32>
    %1467 = vector.broadcast %1466 : vector<1x24x256xf32> to vector<4x24x256xf32>
    %1468 = arith.mulf %1465, %1467 : vector<4x24x256xf32>
    %cst_528 = arith.constant dense<0.000000e+00> : vector<4x256xf32>
    %1469 = vector.multi_reduction <add>, %1468, %cst_528 [1] : vector<4x24x256xf32> to vector<4x256xf32>
    %c32_529 = arith.constant 32 : index
    %c256_530 = arith.constant 256 : index
    %1470 = vector.load %arg6[%c32_529, %c256_530] : memref<40x512xf32, #tpu.memory_space<vmem>>, vector<4x256xf32>
    tpu.vector_store %arg6[%c32_529, %c256_530], %1469 {strides = array<i32>} : memref<40x512xf32, #tpu.memory_space<vmem>>, vector<4x256xf32>,
    %c0_531 = arith.constant 0 : index
    %c0_532 = arith.constant 0 : index
    %1471 = vector.load %arg4[%c0_531, %c0_532] : memref<8x40xf32, #tpu.memory_space<vmem>>, vector<8x40xf32>
    %c0_533 = arith.constant 0 : index
    %c0_534 = arith.constant 0 : index
    %1472 = vector.load %arg6[%c0_533, %c0_534] : memref<40x512xf32, #tpu.memory_space<vmem>>, vector<40x512xf32>
    %cst_535 = arith.constant dense<0.000000e+00> : vector<8x512xf32>
    %1473 = tpu.matmul %1471, %1472, %cst_535 {dimension_numbers = #tpu.dot_dimension_numbers<[1], [0], [0], [1], [0, 0, 1, 1], [], []>} : vector<8x40xf32>, vector<40x512xf32>, vector<8x512xf32> -> vector<8x512xf32>
    %1474 = vector.extract_strided_slice %1473 {offsets = [0, 0], sizes = [8, 256], strides = [1, 1]} : vector<8x512xf32> to vector<8x256xf32>
    %c0_536 = arith.constant 0 : index
    %c0_537 = arith.constant 0 : index
    %c0_538 = arith.constant 0 : index
    %1475 = vector.load %arg5[%c0_536, %c0_537, %c0_538] : memref<2x8x256xf32, #tpu.memory_space<vmem>>, vector<1x8x256xf32>
    %1476 = vector.shape_cast %1475 : vector<1x8x256xf32> to vector<8x256xf32>
    %1477 = vector.shape_cast %1474 : vector<8x256xf32> to vector<1x8x256xf32>
    tpu.vector_store %arg5[%c0_536, %c0_537, %c0_538], %1477 {strides = array<i32>} : memref<2x8x256xf32, #tpu.memory_space<vmem>>, vector<1x8x256xf32>,
    %1478 = vector.extract_strided_slice %1473 {offsets = [0, 256], sizes = [8, 256], strides = [1, 1]} : vector<8x512xf32> to vector<8x256xf32>
    %c1_539 = arith.constant 1 : index
    %c0_540 = arith.constant 0 : index
    %c0_541 = arith.constant 0 : index
    %1479 = vector.load %arg5[%c1_539, %c0_540, %c0_541] : memref<2x8x256xf32, #tpu.memory_space<vmem>>, vector<1x8x256xf32>
    %1480 = vector.shape_cast %1479 : vector<1x8x256xf32> to vector<8x256xf32>
    %1481 = vector.shape_cast %1478 : vector<8x256xf32> to vector<1x8x256xf32>
    tpu.vector_store %arg5[%c1_539, %c0_540, %c0_541], %1481 {strides = array<i32>} : memref<2x8x256xf32, #tpu.memory_space<vmem>>, vector<1x8x256xf32>,
    return
  }
  func.func @transform_0(%arg0: i32) -> (i32, i32) {
    %c0_i32 = arith.constant 0 : i32
    %c0_i32_0 = arith.constant 0 : i32
    %c0_i32_1 = arith.constant 0 : i32
    return %c0_i32, %c0_i32_0 : i32, i32
  }
  func.func @transform_1(%arg0: i32) -> (i32, i32, i32) {
    %c0_i32 = arith.constant 0 : i32
    %c0_i32_0 = arith.constant 0 : i32
    %c0_i32_1 = arith.constant 0 : i32
    %c0_i32_2 = arith.constant 0 : i32
    return %c0_i32, %c0_i32_0, %c0_i32_1 : i32, i32, i32
  }
  func.func @transform_2(%arg0: i32) -> (i32, i32) {
    %c0_i32 = arith.constant 0 : i32
    %c0_i32_0 = arith.constant 0 : i32
    %c0_i32_1 = arith.constant 0 : i32
    return %c0_i32, %c0_i32_0 : i32, i32
  }
  func.func @transform_3(%arg0: i32) -> (i32, i32) {
    %c0_i32 = arith.constant 0 : i32
    %c0_i32_0 = arith.constant 0 : i32
    %c0_i32_1 = arith.constant 0 : i32
    return %c0_i32, %c0_i32_0 : i32, i32
  }
  func.func @transform_4(%arg0: i32) -> (i32, i32, i32) {
    %c0_i32 = arith.constant 0 : i32
    %c0_i32_0 = arith.constant 0 : i32
    %c0_i32_1 = arith.constant 0 : i32
    %c0_i32_2 = arith.constant 0 : i32
    return %c0_i32, %c0_i32_0, %c0_i32_1 : i32, i32, i32
  }
}

</mosaic_0001>

<llo_original>
// kernel: tpu_custom_call.1
$region0: #{tpu_custom_call.1}
  #allocation0 [shape = 'u32[]', space=smem, size = 0x4, offset = 0x4, fixed_abs, tag = 'smem constant byte address 0x4 - core index']
  #allocation1 [shape = 'u32[72,128]{1,0:T(1,128)}', space=vmem, size = 0x9000, scoped, tag = 'internal scratch']
  #allocation2 [shape = 'f32[40,512]{1,0:T(8,128)}', space=vmem, size = 0x14000, scoped, tag = 'scratch operand']
  %s0 = inlined_call_operand.vmem [shape: f32[37,512], index: 0, kind: input, shape index: {}]
  %s1 = inlined_call_operand.vmem [shape: f32[2,96,24], index: 1, kind: input, shape index: {}]
  %s2 = inlined_call_operand.vmem [shape: f32[18,37], index: 2, kind: input, shape index: {}]
  %s3 = inlined_call_operand.vmem [shape: f32[8,40], index: 3, kind: input, shape index: {}]
  %s4 = inlined_call_operand.hbm [shape: f32[2,8,256], index: 4, kind: output, shape index: {}]
  %s5 = sld [smem:[#allocation0]]
  $region26: #{tpu_custom_call.1} parent=0
    _
  %s7 = ssub.s32 1, %s5
  %s8 = scalar_select 0, %s7, %s5
  $region1: #{tpu_custom_call.1} parent=0
    #allocation3 [shape = 'u8[16384]{0}', space=vmem, size = 0x4000, scoped, tag = 'output window, operand 0, single buffered']
    #allocation4 [shape = 's32[1]{0}', space=sflag, size = 0x4, scoped, tag = 'scoped memory for tpu_custom_call.1']
    %9 = vsyncpa [#allocation4], 0
    // Predicated region
    $region2: #{tpu_custom_call.1} parent=1 // pred_check
      _
    $region3: #{tpu_custom_call.1} parent=1 // pred_check_branch
      %11 = sbr.rel (0) target = $region5
    $region4: #{tpu_custom_call.1} parent=1 // pred_region
      _
    $region5: #{tpu_custom_call.1} parent=1 // pred_fallthru
      _
    // Predicated region
    $region6: #{tpu_custom_call.1} parent=1 // pred_check
      _
    $region7: #{tpu_custom_call.1} parent=1 // pred_check_branch
      %13 = sbr.rel (0) target = $region9
    $region8: #{tpu_custom_call.1} parent=1 // pred_region
      _
    $region9: #{tpu_custom_call.1} parent=1 // pred_fallthru
      _
    // Predicated region
    $region10: #{tpu_custom_call.1} parent=1 // pred_check
      _
    $region11: #{tpu_custom_call.1} parent=1 // pred_check_branch
      %15 = sbr.rel (0) target = $region13
    $region12: #{tpu_custom_call.1} parent=1 // pred_region
      _
    $region13: #{tpu_custom_call.1} parent=1 // pred_fallthru
      _
    // Predicated region
    $region14: #{tpu_custom_call.1} parent=1 // pred_check
      _
    $region15: #{tpu_custom_call.1} parent=1 // pred_check_branch
      %17 = sbr.rel (0) target = $region17
    $region16: #{tpu_custom_call.1} parent=1 // pred_region
      _
    $region17: #{tpu_custom_call.1} parent=1 // pred_fallthru
      _
    %v18 = vld [vmem:[%s2] sm:$0xff]
    %v19 = vld [vmem:[%s2 + $0x8] sm:$0xff]
    %v20 = vld [vmem:[%s2 + $0x10] sm:$0x3]
    %v21 = vld [vmem:[%s0] sm:$0xff]
    %v22 = vld [vmem:[%s0 + $0x8] sm:$0xff]
    %v23 = vld [vmem:[%s0 + $0x10] sm:$0xff]
    %v24 = vld [vmem:[%s0 + $0x18] sm:$0xff]
    %v25 = vld [vmem:[%s0 + $0x20] sm:$0xff]
    %v26 = vld [vmem:[%s0 + $0x28] sm:$0xff]
    %v27 = vld [vmem:[%s0 + $0x30] sm:$0xff]
    %v28 = vld [vmem:[%s0 + $0x38] sm:$0xff]
    %v29 = vld [vmem:[%s0 + $0x40] sm:$0xff]
    %v30 = vld [vmem:[%s0 + $0x48] sm:$0xff]
    %v31 = vld [vmem:[%s0 + $0x50] sm:$0xff]
    %v32 = vld [vmem:[%s0 + $0x58] sm:$0xff]
    %v33 = vld [vmem:[%s0 + $0x60] sm:$0xff]
    %v34 = vld [vmem:[%s0 + $0x68] sm:$0xff]
    %v35 = vld [vmem:[%s0 + $0x70] sm:$0xff]
    %v36 = vld [vmem:[%s0 + $0x78] sm:$0xff]
    %v37 = vld [vmem:[%s0 + $0x80] sm:$0x1f]
    %v38 = vld [vmem:[%s0 + $0x88] sm:$0x1f]
    %v39 = vld [vmem:[%s0 + $0x90] sm:$0x1f]
    %v40 = vld [vmem:[%s0 + $0x98] sm:$0x1f]
    %vm41 = vcmask 302080
    %v43 = vsel %vm41, %v18, 0
    %v46 = vsel %vm41, %v19, 0
    %v49 = vsel %vm41, %v20, 0
    %vm51 = vcmask 1044480
    %v53 = vsel %vm51, %v37, 0
    %v56 = vsel %vm51, %v38, 0
    %v59 = vsel %vm51, %v39, 0
    %v62 = vsel %vm51, %v40, 0
    %64 = vmatpush.msra.mxu0 0.0
    %65 = vmatpush.msra.mxu0 0.0
    %66 = vmatpush.msra.mxu0 0.0
    %67 = vmatpush.msra.mxu0 0.0
    %68 = vmatpush.msra.mxu0 0.0
    %69 = vmatpush.msra.mxu0 0.0
    %70 = vmatpush.msra.mxu0 0.0
    %71 = vmatpush.msra.mxu0 0.0
    %72 = vmatpush.msra.mxu0 0.0
    %73 = vmatpush.msra.mxu0 0.0
    %74 = vmatpush.msra.mxu0 0.0
    %75 = vmatpush.msra.mxu0 %v53
    %76 = vmatpush.msra.mxu0 %v33
    %77 = vmatpush.msra.mxu0 %v29
    %78 = vmatpush.msra.mxu0 %v25
    %79 = vmatpush.msra.mxu0 %v21
    %80 = vmatmul.f32.gmra.mxu0 %v43
    %v81 = vpop.f32.mrf.mxu0
    %v82 = vadd.f32 0.0, %v81
    %83 = vmatmul.f32.gmra.mxu0 %v46
    %v84 = vpop.f32.mrf.mxu0
    %v85 = vadd.f32 0.0, %v84
    %86 = vmatmul.f32.gmra.mxu0 %v49
    %v87 = vpop.f32.mrf.mxu0
    %v88 = vadd.f32 0.0, %v87
    %89 = vdwg.mxu0
    %90 = vmatpush.msra.mxu0 0.0
    %91 = vmatpush.msra.mxu0 0.0
    %92 = vmatpush.msra.mxu0 0.0
    %93 = vmatpush.msra.mxu0 0.0
    %94 = vmatpush.msra.mxu0 0.0
    %95 = vmatpush.msra.mxu0 0.0
    %96 = vmatpush.msra.mxu0 0.0
    %97 = vmatpush.msra.mxu0 0.0
    %98 = vmatpush.msra.mxu0 0.0
    %99 = vmatpush.msra.mxu0 0.0
    %100 = vmatpush.msra.mxu0 0.0
    %101 = vmatpush.msra.mxu0 %v56
    %102 = vmatpush.msra.mxu0 %v34
    %103 = vmatpush.msra.mxu0 %v30
    %104 = vmatpush.msra.mxu0 %v26
    %105 = vmatpush.msra.mxu0 %v22
    %106 = vmatmul.f32.gmra.mxu0 %v43
    %v107 = vpop.f32.mrf.mxu0
    %v108 = vadd.f32 0.0, %v107
    %109 = vmatmul.f32.gmra.mxu0 %v46
    %v110 = vpop.f32.mrf.mxu0
    %v111 = vadd.f32 0.0, %v110
    %112 = vmatmul.f32.gmra.mxu0 %v49
    %v113 = vpop.f32.mrf.mxu0
    %v114 = vadd.f32 0.0, %v113
    %115 = vdwg.mxu0
    %116 = vmatpush.msra.mxu0 0.0
    %117 = vmatpush.msra.mxu0 0.0
    %118 = vmatpush.msra.mxu0 0.0
    %119 = vmatpush.msra.mxu0 0.0
    %120 = vmatpush.msra.mxu0 0.0
    %121 = vmatpush.msra.mxu0 0.0
    %122 = vmatpush.msra.mxu0 0.0
    %123 = vmatpush.msra.mxu0 0.0
    %124 = vmatpush.msra.mxu0 0.0
    %125 = vmatpush.msra.mxu0 0.0
    %126 = vmatpush.msra.mxu0 0.0
    %127 = vmatpush.msra.mxu0 %v59
    %128 = vmatpush.msra.mxu0 %v35
    %129 = vmatpush.msra.mxu0 %v31
    %130 = vmatpush.msra.mxu0 %v27
    %131 = vmatpush.msra.mxu0 %v23
    %132 = vmatmul.f32.gmra.mxu0 %v43
    %v133 = vpop.f32.mrf.mxu0
    %v134 = vadd.f32 0.0, %v133
    %135 = vmatmul.f32.gmra.mxu0 %v46
    %v136 = vpop.f32.mrf.mxu0
    %v137 = vadd.f32 0.0, %v136
    %138 = vmatmul.f32.gmra.mxu0 %v49
    %v139 = vpop.f32.mrf.mxu0
    %v140 = vadd.f32 0.0, %v139
    %141 = vdwg.mxu0
    %142 = vmatpush.msra.mxu0 0.0
    %143 = vmatpush.msra.mxu0 0.0
    %144 = vmatpush.msra.mxu0 0.0
    %145 = vmatpush.msra.mxu0 0.0
    %146 = vmatpush.msra.mxu0 0.0
    %147 = vmatpush.msra.mxu0 0.0
    %148 = vmatpush.msra.mxu0 0.0
    %149 = vmatpush.msra.mxu0 0.0
    %150 = vmatpush.msra.mxu0 0.0
    %151 = vmatpush.msra.mxu0 0.0
    %152 = vmatpush.msra.mxu0 0.0
    %153 = vmatpush.msra.mxu0 %v62
    %154 = vmatpush.msra.mxu0 %v36
    %155 = vmatpush.msra.mxu0 %v32
    %156 = vmatpush.msra.mxu0 %v28
    %157 = vmatpush.msra.mxu0 %v24
    %158 = vmatmul.f32.gmra.mxu0 %v43
    %v159 = vpop.f32.mrf.mxu0
    %v160 = vadd.f32 0.0, %v159
    %161 = vmatmul.f32.gmra.mxu0 %v46
    %v162 = vpop.f32.mrf.mxu0
    %v163 = vadd.f32 0.0, %v162
    %164 = vmatmul.f32.gmra.mxu0 %v49
    %v165 = vpop.f32.mrf.mxu0
    %v166 = vadd.f32 0.0, %v165
    %167 = vdwg.mxu0
    %v168 = vlaneseq
    %v169 = vand.u32 %v168, 127
    %v170 = vadd.s32 %v169, 128
    %v171 = vadd.s32 %v169, 256
    %v172 = vadd.s32 %v169, 384
    %v173 = vcvt.s32.f32 %v169
    %v174 = vcvt.s32.f32 %v170
    %v175 = vcvt.s32.f32 %v171
    %v176 = vcvt.s32.f32 %v172
    %v177 = vlaneseq
    %v178 = vshrl.u32 %v177, 7
    %v179 = vadd.s32 %v178, 8
    %v180 = vcvt.s32.f32 %v178
    %v181 = vcvt.s32.f32 %v179
    %v182 = vmul.f32 %v173, 0.00390625
    %v183 = vmul.f32 %v174, 0.00390625
    %v184 = vmul.f32 %v175, 0.00390625
    %v185 = vmul.f32 %v176, 0.00390625
    %v186 = vfloor.f32 %v182
    %v187 = vfloor.f32 %v183
    %v188 = vfloor.f32 %v184
    %v189 = vfloor.f32 %v185
    %v190 = vmul.f32 %v186, 256.0
    %v191 = vmul.f32 %v187, 256.0
    %v192 = vmul.f32 %v188, 256.0
    %v193 = vmul.f32 %v189, 256.0
    %v194 = vsub.f32 %v173, %v190
    %v195 = vsub.f32 %v174, %v191
    %v196 = vsub.f32 %v175, %v192
    %v197 = vsub.f32 %v176, %v193
    %v198 = vmul.f32 %v194, 0.0625
    %v199 = vmul.f32 %v195, 0.0625
    %v200 = vmul.f32 %v196, 0.0625
    %v201 = vmul.f32 %v197, 0.0625
    %v202 = vfloor.f32 %v198
    %v203 = vfloor.f32 %v199
    %v204 = vfloor.f32 %v200
    %v205 = vfloor.f32 %v201
    %v206 = vmul.f32 %v202, 16.0
    %v207 = vmul.f32 %v203, 16.0
    %v208 = vmul.f32 %v204, 16.0
    %v209 = vmul.f32 %v205, 16.0
    %v210 = vsub.f32 %v194, %v206
    %v211 = vsub.f32 %v195, %v207
    %v212 = vsub.f32 %v196, %v208
    %v213 = vsub.f32 %v197, %v209
    %vm214 = vcmp.lt.f32.partialorder %v180, 3.0
    %vm215 = vcmp.lt.f32.partialorder %v181, 3.0
    %vm216 = vcmp.lt.f32.partialorder %v180, 6.0
    %vm217 = vcmp.lt.f32.partialorder %v181, 6.0
    %v218 = vsel %vm216, 0.0, 1.0
    %v219 = vsel %vm217, 0.0, 1.0
    %v220 = vsel %vm214, -1.0, %v218
    %v221 = vsel %vm215, -1.0, %v219
    %v222 = vadd.f32 %v220, 1.0
    %v223 = vadd.f32 %v221, 1.0
    %v224 = vmul.f32 %v222, 3.0
    %v225 = vmul.f32 %v223, 3.0
    %v226 = vsub.f32 %v180, %v224
    %v227 = vsub.f32 %v181, %v225
    %v228 = vsub.f32 %v226, 1.0
    %v229 = vsub.f32 %v227, 1.0
    %v230 = vadd.f32 %v202, 1.0
    %v231 = vadd.f32 %v203, 1.0
    %v232 = vadd.f32 %v204, 1.0
    %v233 = vadd.f32 %v205, 1.0
    %v234 = vadd.f32 %v230, %v220
    %v235 = vadd.f32 %v231, %v220
    %v236 = vadd.f32 %v232, %v220
    %v237 = vadd.f32 %v233, %v220
    %v238 = vadd.f32 %v230, %v221
    %v239 = vadd.f32 %v231, %v221
    %v240 = vadd.f32 %v232, %v221
    %v241 = vadd.f32 %v233, %v221
    %v242 = vadd.f32 %v234, %v82
    %v243 = vadd.f32 %v235, %v108
    %v244 = vadd.f32 %v236, %v134
    %v245 = vadd.f32 %v237, %v160
    %v246 = vadd.f32 %v238, %v85
    %v247 = vadd.f32 %v239, %v111
    %v248 = vadd.f32 %v240, %v137
    %v249 = vadd.f32 %v241, %v163
    %v250 = vadd.f32 %v210, 1.0
    %v251 = vadd.f32 %v211, 1.0
    %v252 = vadd.f32 %v212, 1.0
    %v253 = vadd.f32 %v213, 1.0
    %v254 = vadd.f32 %v250, %v228
    %v255 = vadd.f32 %v251, %v228
    %v256 = vadd.f32 %v252, %v228
    %v257 = vadd.f32 %v253, %v228
    %v258 = vadd.f32 %v250, %v229
    %v259 = vadd.f32 %v251, %v229
    %v260 = vadd.f32 %v252, %v229
    %v261 = vadd.f32 %v253, %v229
    %vm270 = vcmask 1046528
    %v271 = vrot.slane %v85, 1
    %v272 = vrot.slane %v88, 1
    %v273 = vsel %vm270, %v271, %v272
    %v274 = vrot.slane %v111, 1
    %v275 = vrot.slane %v114, 1
    %v276 = vsel %vm270, %v274, %v275
    %v277 = vrot.slane %v137, 1
    %v278 = vrot.slane %v140, 1
    %v279 = vsel %vm270, %v277, %v278
    %v280 = vrot.slane %v163, 1
    %v281 = vrot.slane %v166, 1
    %v282 = vsel %vm270, %v280, %v281
    %v291 = vadd.f32 %v254, %v273
    %v292 = vadd.f32 %v255, %v276
    %v293 = vadd.f32 %v256, %v279
    %v294 = vadd.f32 %v257, %v282
    %v295 = vadd.f32 %v258, %v272
    %v296 = vadd.f32 %v259, %v275
    %v297 = vadd.f32 %v260, %v278
    %v298 = vadd.f32 %v261, %v281
    %v299 = vadd.s32 %v178, 16
    %v300 = vcvt.s32.f32 %v299
    %301 = vst [vmem:[#allocation2 + $0x80] sm:$0xf0] 0.0
    %302 = vst [vmem:[#allocation2 + $0x88] sm:$0xf0] 0.0
    %303 = vst [vmem:[#allocation2 + $0x90] sm:$0xf0] 0.0
    %304 = vst [vmem:[#allocation2 + $0x98] sm:$0xf0] 0.0
    %v305 = vfloor.f32 %v242
    %v306 = vfloor.f32 %v243
    %v307 = vfloor.f32 %v291
    %v308 = vfloor.f32 %v292
    %v309 = vmax.f32 %v305, 0.0
    %v310 = vmax.f32 %v306, 0.0
    %v311 = vmin.f32 %v309, 17.0
    %v312 = vmin.f32 %v310, 17.0
    %v313 = vadd.f32 %v305, 1.0
    %v314 = vadd.f32 %v306, 1.0
    %v315 = vmax.f32 %v313, 0.0
    %v316 = vmax.f32 %v314, 0.0
    %v317 = vmin.f32 %v315, 17.0
    %v318 = vmin.f32 %v316, 17.0
    %v319 = vmax.f32 %v307, 0.0
    %v320 = vmax.f32 %v308, 0.0
    %v321 = vmin.f32 %v319, 17.0
    %v322 = vmin.f32 %v320, 17.0
    %v323 = vadd.f32 %v307, 1.0
    %v324 = vadd.f32 %v308, 1.0
    %v325 = vmax.f32 %v323, 0.0
    %v326 = vmax.f32 %v324, 0.0
    %v327 = vmin.f32 %v325, 17.0
    %v328 = vmin.f32 %v326, 17.0
    %v329 = vmax.f32 %v242, 0.0
    %v330 = vmax.f32 %v243, 0.0
    %v331 = vmin.f32 %v329, 17.0
    %v332 = vmin.f32 %v330, 17.0
    %v333 = vmax.f32 %v291, 0.0
    %v334 = vmax.f32 %v292, 0.0
    %v335 = vmin.f32 %v333, 17.0
    %v336 = vmin.f32 %v334, 17.0
    %v337 = vadd.f32 %v311, 1.0
    %v338 = vadd.f32 %v312, 1.0
    %v339 = vsub.f32 %v337, %v331
    %v340 = vsub.f32 %v338, %v332
    %v341 = vsub.f32 1.0, %v317
    %v342 = vsub.f32 1.0, %v318
    %v343 = vadd.f32 %v341, %v331
    %v344 = vadd.f32 %v342, %v332
    %v345 = vadd.f32 %v321, 1.0
    %v346 = vadd.f32 %v322, 1.0
    %v347 = vsub.f32 %v345, %v335
    %v348 = vsub.f32 %v346, %v336
    %v349 = vsub.f32 1.0, %v327
    %v350 = vsub.f32 1.0, %v328
    %v351 = vadd.f32 %v349, %v335
    %v352 = vadd.f32 %v350, %v336
    %v353 = vperm.slane %v321, 0
    %v354 = vperm.slane %v322, 0
    %vm355 = vcmp.eq.f32.partialorder %v180, %v353
    %vm356 = vcmp.eq.f32.partialorder %v180, %v354
    %vm357 = vcmp.eq.f32.partialorder %v181, %v353
    %vm358 = vcmp.eq.f32.partialorder %v181, %v354
    %vm359 = vcmp.eq.f32.partialorder %v300, %v353
    %vm360 = vcmp.eq.f32.partialorder %v300, %v354
    %v361 = vperm.slane %v347, 0
    %v362 = vperm.slane %v348, 0
    %v363 = vsel %vm355, %v361, 0.0
    %v364 = vsel %vm356, %v362, 0.0
    %v365 = vsel %vm357, %v361, 0.0
    %v366 = vsel %vm358, %v362, 0.0
    %v367 = vsel %vm359, %v361, 0.0
    %v368 = vsel %vm360, %v362, 0.0
    %v369 = vperm.slane %v327, 0
    %v370 = vperm.slane %v328, 0
    %vm371 = vcmp.eq.f32.partialorder %v180, %v369
    %vm372 = vcmp.eq.f32.partialorder %v180, %v370
    %vm373 = vcmp.eq.f32.partialorder %v181, %v369
    %vm374 = vcmp.eq.f32.partialorder %v181, %v370
    %vm375 = vcmp.eq.f32.partialorder %v300, %v369
    %vm376 = vcmp.eq.f32.partialorder %v300, %v370
    %v377 = vperm.slane %v351, 0
    %v378 = vperm.slane %v352, 0
    %v379 = vsel %vm371, %v377, 0.0
    %v380 = vsel %vm372, %v378, 0.0
    %v381 = vsel %vm373, %v377, 0.0
    %v382 = vsel %vm374, %v378, 0.0
    %v383 = vsel %vm375, %v377, 0.0
    %v384 = vsel %vm376, %v378, 0.0
    %v385 = vadd.f32 %v363, %v379
    %v386 = vadd.f32 %v364, %v380
    %v387 = vadd.f32 %v365, %v381
    %v388 = vadd.f32 %v366, %v382
    %v389 = vadd.f32 %v367, %v383
    %v390 = vadd.f32 %v368, %v384
    %v391 = vperm.slane %v311, 0
    %v392 = vperm.slane %v312, 0
    %vm393 = vcmp.eq.f32.partialorder %v180, %v391
    %vm394 = vcmp.eq.f32.partialorder %v180, %v392
    %vm395 = vcmp.eq.f32.partialorder %v181, %v391
    %vm396 = vcmp.eq.f32.partialorder %v181, %v392
    %vm397 = vcmp.eq.f32.partialorder %v300, %v391
    %vm398 = vcmp.eq.f32.partialorder %v300, %v392
    %v399 = vperm.slane %v339, 0
    %v400 = vperm.slane %v340, 0
    %v401 = vsel %vm393, %v399, 0.0
    %v402 = vsel %vm394, %v400, 0.0
    %v403 = vsel %vm395, %v399, 0.0
    %v404 = vsel %vm396, %v400, 0.0
    %v405 = vsel %vm397, %v399, 0.0
    %v406 = vsel %vm398, %v400, 0.0
    %v407 = vperm.slane %v317, 0
    %v408 = vperm.slane %v318, 0
    %vm409 = vcmp.eq.f32.partialorder %v180, %v407
    %vm410 = vcmp.eq.f32.partialorder %v180, %v408
    %vm411 = vcmp.eq.f32.partialorder %v181, %v407
    %vm412 = vcmp.eq.f32.partialorder %v181, %v408
    %vm413 = vcmp.eq.f32.partialorder %v300, %v407
    %vm414 = vcmp.eq.f32.partialorder %v300, %v408
    %v415 = vperm.slane %v343, 0
    %v416 = vperm.slane %v344, 0
    %v417 = vsel %vm409, %v415, 0.0
    %v418 = vsel %vm410, %v416, 0.0
    %v419 = vsel %vm411, %v415, 0.0
    %v420 = vsel %vm412, %v416, 0.0
    %v421 = vsel %vm413, %v415, 0.0
    %v422 = vsel %vm414, %v416, 0.0
    %v423 = vadd.f32 %v401, %v417
    %v424 = vadd.f32 %v402, %v418
    %v425 = vadd.f32 %v403, %v419
    %v426 = vadd.f32 %v404, %v420
    %v427 = vadd.f32 %v405, %v421
    %v428 = vadd.f32 %v406, %v422
    %v429 = vld [vmem:[%s1] sm:$0xff]
    %v430 = vld [vmem:[%s1 + $0x8] sm:$0xff]
    %v431 = vld [vmem:[%s1 + $0x10] sm:$0xff]
    %v432 = vld [vmem:[%s1 + $0x18] sm:$0xff]
    %v433 = vld [vmem:[%s1 + $0x20] sm:$0xff]
    %v434 = vld [vmem:[%s1 + $0x28] sm:$0xff]
    %v435 = vld [vmem:[%s1 + $0x30] sm:$0xff]
    %v436 = vld [vmem:[%s1 + $0x38] sm:$0xff]
    %v437 = vld [vmem:[%s1 + $0x40] sm:$0xff]
    %v438 = vld [vmem:[%s1 + $0x48] sm:$0xff]
    %v439 = vld [vmem:[%s1 + $0x50] sm:$0xff]
    %v440 = vld [vmem:[%s1 + $0x58] sm:$0xff]
    %vm441 = vcmask 195584
    %v443 = vsel %vm441, %v429, 0
    %v446 = vsel %vm441, %v430, 0
    %v449 = vsel %vm441, %v431, 0
    %v452 = vsel %vm441, %v432, 0
    %v455 = vsel %vm441, %v433, 0
    %v458 = vsel %vm441, %v434, 0
    %v461 = vsel %vm441, %v435, 0
    %v464 = vsel %vm441, %v436, 0
    %v467 = vsel %vm441, %v437, 0
    %v470 = vsel %vm441, %v438, 0
    %v473 = vsel %vm441, %v439, 0
    %v476 = vsel %vm441, %v440, 0
    %478 = vmatpush.msra.mxu0 0.0
    %479 = vmatpush.msra.mxu0 0.0
    %480 = vmatpush.msra.mxu0 0.0
    %481 = vmatpush.msra.mxu0 0.0
    %482 = vmatpush.msra.mxu0 0.0
    %483 = vmatpush.msra.mxu0 0.0
    %484 = vmatpush.msra.mxu0 0.0
    %485 = vmatpush.msra.mxu0 0.0
    %486 = vmatpush.msra.mxu0 0.0
    %487 = vmatpush.msra.mxu0 0.0
    %488 = vmatpush.msra.mxu0 0.0
    %489 = vmatpush.msra.mxu0 0.0
    %490 = vmatpush.msra.mxu0 0.0
    %491 = vmatpush.msra.mxu0 %v389
    %492 = vmatpush.msra.mxu0 %v387
    %493 = vmatpush.msra.mxu0 %v385
    %494 = vmatmul.f32.gmra.mxu0 %v443
    %v495 = vpop.f32.mrf.mxu0
    %v496 = vadd.f32 0.0, %v495
    %497 = vmatmul.f32.gmra.mxu0 %v446
    %v498 = vpop.f32.mrf.mxu0
    %v499 = vadd.f32 0.0, %v498
    %500 = vmatmul.f32.gmra.mxu0 %v449
    %v501 = vpop.f32.mrf.mxu0
    %v502 = vadd.f32 0.0, %v501
    %503 = vmatmul.f32.gmra.mxu0 %v452
    %v504 = vpop.f32.mrf.mxu0
    %v505 = vadd.f32 0.0, %v504
    %506 = vmatmul.f32.gmra.mxu0 %v455
    %v507 = vpop.f32.mrf.mxu0
    %v508 = vadd.f32 0.0, %v507
    %509 = vmatmul.f32.gmra.mxu0 %v458
    %v510 = vpop.f32.mrf.mxu0
    %v511 = vadd.f32 0.0, %v510
    %512 = vmatmul.f32.gmra.mxu0 %v461
    %v513 = vpop.f32.mrf.mxu0
    %v514 = vadd.f32 0.0, %v513
    %515 = vmatmul.f32.gmra.mxu0 %v464
    %v516 = vpop.f32.mrf.mxu0
    %v517 = vadd.f32 0.0, %v516
    %518 = vmatmul.f32.gmra.mxu0 %v467
    %v519 = vpop.f32.mrf.mxu0
    %v520 = vadd.f32 0.0, %v519
    %521 = vmatmul.f32.gmra.mxu0 %v470
    %v522 = vpop.f32.mrf.mxu0
    %v523 = vadd.f32 0.0, %v522
    %524 = vmatmul.f32.gmra.mxu0 %v473
    %v525 = vpop.f32.mrf.mxu0
    %v526 = vadd.f32 0.0, %v525
    %527 = vmatmul.f32.gmra.mxu0 %v476
    %v528 = vpop.f32.mrf.mxu0
    %v529 = vadd.f32 0.0, %v528
    %530 = vdwg.mxu0
    %531 = vmatpush.msra.mxu0 0.0
    %532 = vmatpush.msra.mxu0 0.0
    %533 = vmatpush.msra.mxu0 0.0
    %534 = vmatpush.msra.mxu0 0.0
    %535 = vmatpush.msra.mxu0 0.0
    %536 = vmatpush.msra.mxu0 0.0
    %537 = vmatpush.msra.mxu0 0.0
    %538 = vmatpush.msra.mxu0 0.0
    %539 = vmatpush.msra.mxu0 0.0
    %540 = vmatpush.msra.mxu0 0.0
    %541 = vmatpush.msra.mxu0 0.0
    %542 = vmatpush.msra.mxu0 0.0
    %543 = vmatpush.msra.mxu0 0.0
    %544 = vmatpush.msra.mxu0 %v390
    %545 = vmatpush.msra.mxu0 %v388
    %546 = vmatpush.msra.mxu0 %v386
    %547 = vmatmul.f32.gmra.mxu0 %v443
    %v548 = vpop.f32.mrf.mxu0
    %v549 = vadd.f32 0.0, %v548
    %550 = vmatmul.f32.gmra.mxu0 %v446
    %v551 = vpop.f32.mrf.mxu0
    %v552 = vadd.f32 0.0, %v551
    %553 = vmatmul.f32.gmra.mxu0 %v449
    %v554 = vpop.f32.mrf.mxu0
    %v555 = vadd.f32 0.0, %v554
    %556 = vmatmul.f32.gmra.mxu0 %v452
    %v557 = vpop.f32.mrf.mxu0
    %v558 = vadd.f32 0.0, %v557
    %559 = vmatmul.f32.gmra.mxu0 %v455
    %v560 = vpop.f32.mrf.mxu0
    %v561 = vadd.f32 0.0, %v560
    %562 = vmatmul.f32.gmra.mxu0 %v458
    %v563 = vpop.f32.mrf.mxu0
    %v564 = vadd.f32 0.0, %v563
    %565 = vmatmul.f32.gmra.mxu0 %v461
    %v566 = vpop.f32.mrf.mxu0
    %v567 = vadd.f32 0.0, %v566
    %568 = vmatmul.f32.gmra.mxu0 %v464
    %v569 = vpop.f32.mrf.mxu0
    %v570 = vadd.f32 0.0, %v569
    %571 = vmatmul.f32.gmra.mxu0 %v467
    %v572 = vpop.f32.mrf.mxu0
    %v573 = vadd.f32 0.0, %v572
    %574 = vmatmul.f32.gmra.mxu0 %v470
    %v575 = vpop.f32.mrf.mxu0
    %v576 = vadd.f32 0.0, %v575
    %577 = vmatmul.f32.gmra.mxu0 %v473
    %v578 = vpop.f32.mrf.mxu0
    %v579 = vadd.f32 0.0, %v578
    %580 = vmatmul.f32.gmra.mxu0 %v476
    %v581 = vpop.f32.mrf.mxu0
    %v582 = vadd.f32 0.0, %v581
    %583 = vdwg.mxu0
    %v584 = vmul.f32 %v496, %v423
    %v585 = vmul.f32 %v549, %v424
    %v586 = vmul.f32 %v499, %v425
    %v587 = vmul.f32 %v552, %v426
    %v588 = vmul.f32 %v502, %v427
    %v589 = vmul.f32 %v555, %v428
    %v590 = vmul.f32 %v505, %v423
    %v591 = vmul.f32 %v558, %v424
    %v592 = vmul.f32 %v508, %v425
    %v593 = vmul.f32 %v561, %v426
    %v594 = vmul.f32 %v511, %v427
    %v595 = vmul.f32 %v564, %v428
    %v596 = vmul.f32 %v514, %v423
    %v597 = vmul.f32 %v567, %v424
    %v598 = vmul.f32 %v517, %v425
    %v599 = vmul.f32 %v570, %v426
    %v600 = vmul.f32 %v520, %v427
    %v601 = vmul.f32 %v573, %v428
    %v602 = vmul.f32 %v523, %v423
    %v603 = vmul.f32 %v576, %v424
    %v604 = vmul.f32 %v526, %v425
    %v605 = vmul.f32 %v579, %v426
    %v606 = vmul.f32 %v529, %v427
    %v607 = vmul.f32 %v582, %v428
    %v608 = vadd.f32 %v584, %v586
    %v609 = vadd.f32 %v608, %v588
    %v610 = vrot.slane %v609, 4
    %v611 = vadd.f32 %v609, %v610
    %v612 = vrot.slane %v611, 2
    %v613 = vadd.f32 %v611, %v612
    %v614 = vrot.slane %v613, 1
    %v615 = vadd.f32 %v613, %v614
    %v616 = vadd.f32 %v585, %v587
    %v617 = vadd.f32 %v616, %v589
    %v618 = vrot.slane %v617, 4
    %v619 = vadd.f32 %v617, %v618
    %v620 = vrot.slane %v619, 2
    %v621 = vadd.f32 %v619, %v620
    %v622 = vrot.slane %v621, 1
    %v623 = vadd.f32 %v621, %v622
    %v624 = vadd.f32 %v590, %v592
    %v625 = vadd.f32 %v624, %v594
    %v626 = vrot.slane %v625, 4
    %v627 = vadd.f32 %v625, %v626
    %v628 = vrot.slane %v627, 2
    %v629 = vadd.f32 %v627, %v628
    %v630 = vrot.slane %v629, 1
    %v631 = vadd.f32 %v629, %v630
    %v632 = vadd.f32 %v591, %v593
    %v633 = vadd.f32 %v632, %v595
    %v634 = vrot.slane %v633, 4
    %v635 = vadd.f32 %v633, %v634
    %v636 = vrot.slane %v635, 2
    %v637 = vadd.f32 %v635, %v636
    %v638 = vrot.slane %v637, 1
    %v639 = vadd.f32 %v637, %v638
    %v640 = vadd.f32 %v596, %v598
    %v641 = vadd.f32 %v640, %v600
    %v642 = vrot.slane %v641, 4
    %v643 = vadd.f32 %v641, %v642
    %v644 = vrot.slane %v643, 2
    %v645 = vadd.f32 %v643, %v644
    %v646 = vrot.slane %v645, 1
    %v647 = vadd.f32 %v645, %v646
    %v648 = vadd.f32 %v597, %v599
    %v649 = vadd.f32 %v648, %v601
    %v650 = vrot.slane %v649, 4
    %v651 = vadd.f32 %v649, %v650
    %v652 = vrot.slane %v651, 2
    %v653 = vadd.f32 %v651, %v652
    %v654 = vrot.slane %v653, 1
    %v655 = vadd.f32 %v653, %v654
    %v656 = vadd.f32 %v602, %v604
    %v657 = vadd.f32 %v656, %v606
    %v658 = vrot.slane %v657, 4
    %v659 = vadd.f32 %v657, %v658
    %v660 = vrot.slane %v659, 2
    %v661 = vadd.f32 %v659, %v660
    %v662 = vrot.slane %v661, 1
    %v663 = vadd.f32 %v661, %v662
    %v664 = vadd.f32 %v603, %v605
    %v665 = vadd.f32 %v664, %v607
    %v666 = vrot.slane %v665, 4
    %v667 = vadd.f32 %v665, %v666
    %v668 = vrot.slane %v667, 2
    %v669 = vadd.f32 %v667, %v668
    %v670 = vrot.slane %v669, 1
    %v671 = vadd.f32 %v669, %v670
    %vm680 = vcmask 1041409
    %v681 = vsel %vm680, %v631, %v615
    %vm682 = vcmask 1042434
    %v683 = vsel %vm682, %v647, %v681
    %vm684 = vcmask 1043459
    %v685 = vsel %vm684, %v663, %v683
    %v686 = vsel %vm680, %v639, %v623
    %v687 = vsel %vm682, %v655, %v686
    %v688 = vsel %vm684, %v671, %v687
    %691 = vst [vmem:[#allocation2] sm:$0xf] %v685
    %692 = vst [vmem:[#allocation2 + $0x8] sm:$0xf] %v688
    %v693 = vperm.slane %v321, 1
    %v694 = vperm.slane %v322, 1
    %vm695 = vcmp.eq.f32.partialorder %v180, %v693
    %vm696 = vcmp.eq.f32.partialorder %v180, %v694
    %vm697 = vcmp.eq.f32.partialorder %v181, %v693
    %vm698 = vcmp.eq.f32.partialorder %v181, %v694
    %vm699 = vcmp.eq.f32.partialorder %v300, %v693
    %vm700 = vcmp.eq.f32.partialorder %v300, %v694
    %v701 = vperm.slane %v347, 1
    %v702 = vperm.slane %v348, 1
    %v703 = vsel %vm695, %v701, 0.0
    %v704 = vsel %vm696, %v702, 0.0
    %v705 = vsel %vm697, %v701, 0.0
    %v706 = vsel %vm698, %v702, 0.0
    %v707 = vsel %vm699, %v701, 0.0
    %v708 = vsel %vm700, %v702, 0.0
    %v709 = vperm.slane %v327, 1
    %v710 = vperm.slane %v328, 1
    %vm711 = vcmp.eq.f32.partialorder %v180, %v709
    %vm712 = vcmp.eq.f32.partialorder %v180, %v710
    %vm713 = vcmp.eq.f32.partialorder %v181, %v709
    %vm714 = vcmp.eq.f32.partialorder %v181, %v710
    %vm715 = vcmp.eq.f32.partialorder %v300, %v709
    %vm716 = vcmp.eq.f32.partialorder %v300, %v710
    %v717 = vperm.slane %v351, 1
    %v718 = vperm.slane %v352, 1
    %v719 = vsel %vm711, %v717, 0.0
    %v720 = vsel %vm712, %v718, 0.0
    %v721 = vsel %vm713, %v717, 0.0
    %v722 = vsel %vm714, %v718, 0.0
    %v723 = vsel %vm715, %v717, 0.0
    %v724 = vsel %vm716, %v718, 0.0
    %v725 = vadd.f32 %v703, %v719
    %v726 = vadd.f32 %v704, %v720
    %v727 = vadd.f32 %v705, %v721
    %v728 = vadd.f32 %v706, %v722
    %v729 = vadd.f32 %v707, %v723
    %v730 = vadd.f32 %v708, %v724
    %v731 = vperm.slane %v311, 1
    %v732 = vperm.slane %v312, 1
    %vm733 = vcmp.eq.f32.partialorder %v180, %v731
    %vm734 = vcmp.eq.f32.partialorder %v180, %v732
    %vm735 = vcmp.eq.f32.partialorder %v181, %v731
    %vm736 = vcmp.eq.f32.partialorder %v181, %v732
    %vm737 = vcmp.eq.f32.partialorder %v300, %v731
    %vm738 = vcmp.eq.f32.partialorder %v300, %v732
    %v739 = vperm.slane %v339, 1
    %v740 = vperm.slane %v340, 1
    %v741 = vsel %vm733, %v739, 0.0
    %v742 = vsel %vm734, %v740, 0.0
    %v743 = vsel %vm735, %v739, 0.0
    %v744 = vsel %vm736, %v740, 0.0
    %v745 = vsel %vm737, %v739, 0.0
    %v746 = vsel %vm738, %v740, 0.0
    %v747 = vperm.slane %v317, 1
    %v748 = vperm.slane %v318, 1
    %vm749 = vcmp.eq.f32.partialorder %v180, %v747
    %vm750 = vcmp.eq.f32.partialorder %v180, %v748
    %vm751 = vcmp.eq.f32.partialorder %v181, %v747
    %vm752 = vcmp.eq.f32.partialorder %v181, %v748
    %vm753 = vcmp.eq.f32.partialorder %v300, %v747
    %vm754 = vcmp.eq.f32.partialorder %v300, %v748
    %v755 = vperm.slane %v343, 1
    %v756 = vperm.slane %v344, 1
    %v757 = vsel %vm749, %v755, 0.0
    %v758 = vsel %vm750, %v756, 0.0
    %v759 = vsel %vm751, %v755, 0.0
    %v760 = vsel %vm752, %v756, 0.0
    %v761 = vsel %vm753, %v755, 0.0
    %v762 = vsel %vm754, %v756, 0.0
    %v763 = vadd.f32 %v741, %v757
    %v764 = vadd.f32 %v742, %v758
    %v765 = vadd.f32 %v743, %v759
    %v766 = vadd.f32 %v744, %v760
    %v767 = vadd.f32 %v745, %v761
    %v768 = vadd.f32 %v746, %v762
    %v769 = vld [vmem:[%s1] sm:$0xff]
    %v770 = vld [vmem:[%s1 + $0x8] sm:$0xff]
    %v771 = vld [vmem:[%s1 + $0x10] sm:$0xff]
    %v772 = vld [vmem:[%s1 + $0x18] sm:$0xff]
    %v773 = vld [vmem:[%s1 + $0x20] sm:$0xff]
    %v774 = vld [vmem:[%s1 + $0x28] sm:$0xff]
    %v775 = vld [vmem:[%s1 + $0x30] sm:$0xff]
    %v776 = vld [vmem:[%s1 + $0x38] sm:$0xff]
    %v777 = vld [vmem:[%s1 + $0x40] sm:$0xff]
    %v778 = vld [vmem:[%s1 + $0x48] sm:$0xff]
    %v779 = vld [vmem:[%s1 + $0x50] sm:$0xff]
    %v780 = vld [vmem:[%s1 + $0x58] sm:$0xff]
    %v782 = vsel %vm441, %v769, 0
    %v785 = vsel %vm441, %v770, 0
    %v788 = vsel %vm441, %v771, 0
    %v791 = vsel %vm441, %v772, 0
    %v794 = vsel %vm441, %v773, 0
    %v797 = vsel %vm441, %v774, 0
    %v800 = vsel %vm441, %v775, 0
    %v803 = vsel %vm441, %v776, 0
    %v806 = vsel %vm441, %v777, 0
    %v809 = vsel %vm441, %v778, 0
    %v812 = vsel %vm441, %v779, 0
    %v815 = vsel %vm441, %v780, 0
    %817 = vmatpush.msra.mxu0 0.0
    %818 = vmatpush.msra.mxu0 0.0
    %819 = vmatpush.msra.mxu0 0.0
    %820 = vmatpush.msra.mxu0 0.0
    %821 = vmatpush.msra.mxu0 0.0
    %822 = vmatpush.msra.mxu0 0.0
    %823 = vmatpush.msra.mxu0 0.0
    %824 = vmatpush.msra.mxu0 0.0
    %825 = vmatpush.msra.mxu0 0.0
    %826 = vmatpush.msra.mxu0 0.0
    %827 = vmatpush.msra.mxu0 0.0
    %828 = vmatpush.msra.mxu0 0.0
    %829 = vmatpush.msra.mxu0 0.0
    %830 = vmatpush.msra.mxu0 %v729
    %831 = vmatpush.msra.mxu0 %v727
    %832 = vmatpush.msra.mxu0 %v725
    %833 = vmatmul.f32.gmra.mxu0 %v782
    %v834 = vpop.f32.mrf.mxu0
    %v835 = vadd.f32 0.0, %v834
    %836 = vmatmul.f32.gmra.mxu0 %v785
    %v837 = vpop.f32.mrf.mxu0
    %v838 = vadd.f32 0.0, %v837
    %839 = vmatmul.f32.gmra.mxu0 %v788
    %v840 = vpop.f32.mrf.mxu0
    %v841 = vadd.f32 0.0, %v840
    %842 = vmatmul.f32.gmra.mxu0 %v791
    %v843 = vpop.f32.mrf.mxu0
    %v844 = vadd.f32 0.0, %v843
    %845 = vmatmul.f32.gmra.mxu0 %v794
    %v846 = vpop.f32.mrf.mxu0
    %v847 = vadd.f32 0.0, %v846
    %848 = vmatmul.f32.gmra.mxu0 %v797
    %v849 = vpop.f32.mrf.mxu0
    %v850 = vadd.f32 0.0, %v849
    %851 = vmatmul.f32.gmra.mxu0 %v800
    %v852 = vpop.f32.mrf.mxu0
    %v853 = vadd.f32 0.0, %v852
    %854 = vmatmul.f32.gmra.mxu0 %v803
    %v855 = vpop.f32.mrf.mxu0
    %v856 = vadd.f32 0.0, %v855
    %857 = vmatmul.f32.gmra.mxu0 %v806
    %v858 = vpop.f32.mrf.mxu0
    %v859 = vadd.f32 0.0, %v858
    %860 = vmatmul.f32.gmra.mxu0 %v809
    %v861 = vpop.f32.mrf.mxu0
    %v862 = vadd.f32 0.0, %v861
    %863 = vmatmul.f32.gmra.mxu0 %v812
    %v864 = vpop.f32.mrf.mxu0
    %v865 = vadd.f32 0.0, %v864
    %866 = vmatmul.f32.gmra.mxu0 %v815
    %v867 = vpop.f32.mrf.mxu0
    %v868 = vadd.f32 0.0, %v867
    %869 = vdwg.mxu0
    %870 = vmatpush.msra.mxu0 0.0
    %871 = vmatpush.msra.mxu0 0.0
    %872 = vmatpush.msra.mxu0 0.0
    %873 = vmatpush.msra.mxu0 0.0
    %874 = vmatpush.msra.mxu0 0.0
    %875 = vmatpush.msra.mxu0 0.0
    %876 = vmatpush.msra.mxu0 0.0
    %877 = vmatpush.msra.mxu0 0.0
    %878 = vmatpush.msra.mxu0 0.0
    %879 = vmatpush.msra.mxu0 0.0
    %880 = vmatpush.msra.mxu0 0.0
    %881 = vmatpush.msra.mxu0 0.0
    %882 = vmatpush.msra.mxu0 0.0
    %883 = vmatpush.msra.mxu0 %v730
    %884 = vmatpush.msra.mxu0 %v728
    %885 = vmatpush.msra.mxu0 %v726
    %886 = vmatmul.f32.gmra.mxu0 %v782
    %v887 = vpop.f32.mrf.mxu0
    %v888 = vadd.f32 0.0, %v887
    %889 = vmatmul.f32.gmra.mxu0 %v785
    %v890 = vpop.f32.mrf.mxu0
    %v891 = vadd.f32 0.0, %v890
    %892 = vmatmul.f32.gmra.mxu0 %v788
    %v893 = vpop.f32.mrf.mxu0
    %v894 = vadd.f32 0.0, %v893
    %895 = vmatmul.f32.gmra.mxu0 %v791
    %v896 = vpop.f32.mrf.mxu0
    %v897 = vadd.f32 0.0, %v896
    %898 = vmatmul.f32.gmra.mxu0 %v794
    %v899 = vpop.f32.mrf.mxu0
    %v900 = vadd.f32 0.0, %v899
    %901 = vmatmul.f32.gmra.mxu0 %v797
    %v902 = vpop.f32.mrf.mxu0
    %v903 = vadd.f32 0.0, %v902
    %904 = vmatmul.f32.gmra.mxu0 %v800
    %v905 = vpop.f32.mrf.mxu0
    %v906 = vadd.f32 0.0, %v905
    %907 = vmatmul.f32.gmra.mxu0 %v803
    %v908 = vpop.f32.mrf.mxu0
    %v909 = vadd.f32 0.0, %v908
    %910 = vmatmul.f32.gmra.mxu0 %v806
    %v911 = vpop.f32.mrf.mxu0
    %v912 = vadd.f32 0.0, %v911
    %913 = vmatmul.f32.gmra.mxu0 %v809
    %v914 = vpop.f32.mrf.mxu0
    %v915 = vadd.f32 0.0, %v914
    %916 = vmatmul.f32.gmra.mxu0 %v812
    %v917 = vpop.f32.mrf.mxu0
    %v918 = vadd.f32 0.0, %v917
    %919 = vmatmul.f32.gmra.mxu0 %v815
    %v920 = vpop.f32.mrf.mxu0
    %v921 = vadd.f32 0.0, %v920
    %922 = vdwg.mxu0
    %v923 = vmul.f32 %v835, %v763
    %v924 = vmul.f32 %v888, %v764
    %v925 = vmul.f32 %v838, %v765
    %v926 = vmul.f32 %v891, %v766
    %v927 = vmul.f32 %v841, %v767
    %v928 = vmul.f32 %v894, %v768
    %v929 = vmul.f32 %v844, %v763
    %v930 = vmul.f32 %v897, %v764
    %v931 = vmul.f32 %v847, %v765
    %v932 = vmul.f32 %v900, %v766
    %v933 = vmul.f32 %v850, %v767
    %v934 = vmul.f32 %v903, %v768
    %v935 = vmul.f32 %v853, %v763
    %v936 = vmul.f32 %v906, %v764
    %v937 = vmul.f32 %v856, %v765
    %v938 = vmul.f32 %v909, %v766
    %v939 = vmul.f32 %v859, %v767
    %v940 = vmul.f32 %v912, %v768
    %v941 = vmul.f32 %v862, %v763
    %v942 = vmul.f32 %v915, %v764
    %v943 = vmul.f32 %v865, %v765
    %v944 = vmul.f32 %v918, %v766
    %v945 = vmul.f32 %v868, %v767
    %v946 = vmul.f32 %v921, %v768
    %v947 = vadd.f32 %v923, %v925
    %v948 = vadd.f32 %v947, %v927
    %v949 = vrot.slane %v948, 4
    %v950 = vadd.f32 %v948, %v949
    %v951 = vrot.slane %v950, 2
    %v952 = vadd.f32 %v950, %v951
    %v953 = vrot.slane %v952, 1
    %v954 = vadd.f32 %v952, %v953
    %v955 = vadd.f32 %v924, %v926
    %v956 = vadd.f32 %v955, %v928
    %v957 = vrot.slane %v956, 4
    %v958 = vadd.f32 %v956, %v957
    %v959 = vrot.slane %v958, 2
    %v960 = vadd.f32 %v958, %v959
    %v961 = vrot.slane %v960, 1
    %v962 = vadd.f32 %v960, %v961
    %v963 = vadd.f32 %v929, %v931
    %v964 = vadd.f32 %v963, %v933
    %v965 = vrot.slane %v964, 4
    %v966 = vadd.f32 %v964, %v965
    %v967 = vrot.slane %v966, 2
    %v968 = vadd.f32 %v966, %v967
    %v969 = vrot.slane %v968, 1
    %v970 = vadd.f32 %v968, %v969
    %v971 = vadd.f32 %v930, %v932
    %v972 = vadd.f32 %v971, %v934
    %v973 = vrot.slane %v972, 4
    %v974 = vadd.f32 %v972, %v973
    %v975 = vrot.slane %v974, 2
    %v976 = vadd.f32 %v974, %v975
    %v977 = vrot.slane %v976, 1
    %v978 = vadd.f32 %v976, %v977
    %v979 = vadd.f32 %v935, %v937
    %v980 = vadd.f32 %v979, %v939
    %v981 = vrot.slane %v980, 4
    %v982 = vadd.f32 %v980, %v981
    %v983 = vrot.slane %v982, 2
    %v984 = vadd.f32 %v982, %v983
    %v985 = vrot.slane %v984, 1
    %v986 = vadd.f32 %v984, %v985
    %v987 = vadd.f32 %v936, %v938
    %v988 = vadd.f32 %v987, %v940
    %v989 = vrot.slane %v988, 4
    %v990 = vadd.f32 %v988, %v989
    %v991 = vrot.slane %v990, 2
    %v992 = vadd.f32 %v990, %v991
    %v993 = vrot.slane %v992, 1
    %v994 = vadd.f32 %v992, %v993
    %v995 = vadd.f32 %v941, %v943
    %v996 = vadd.f32 %v995, %v945
    %v997 = vrot.slane %v996, 4
    %v998 = vadd.f32 %v996, %v997
    %v999 = vrot.slane %v998, 2
    %v1000 = vadd.f32 %v998, %v999
    %v1001 = vrot.slane %v1000, 1
    %v1002 = vadd.f32 %v1000, %v1001
    %v1003 = vadd.f32 %v942, %v944
    %v1004 = vadd.f32 %v1003, %v946
    %v1005 = vrot.slane %v1004, 4
    %v1006 = vadd.f32 %v1004, %v1005
    %v1007 = vrot.slane %v1006, 2
    %v1008 = vadd.f32 %v1006, %v1007
    %v1009 = vrot.slane %v1008, 1
    %v1010 = vadd.f32 %v1008, %v1009
    %vm1019 = vcmask 1045509
    %v1020 = vsel %vm1019, %v970, %v954
    %vm1021 = vcmask 1046534
    %v1022 = vsel %vm1021, %v986, %v1020
    %vm1023 = vcmask 1047559
    %v1024 = vsel %vm1023, %v1002, %v1022
    %v1025 = vsel %vm1019, %v978, %v962
    %v1026 = vsel %vm1021, %v994, %v1025
    %v1027 = vsel %vm1023, %v1010, %v1026
    %1030 = vst [vmem:[#allocation2] sm:$0xf0] %v1024
    %1031 = vst [vmem:[#allocation2 + $0x8] sm:$0xf0] %v1027
    %v1032 = vperm.slane %v321, 2
    %v1033 = vperm.slane %v322, 2
    %vm1034 = vcmp.eq.f32.partialorder %v180, %v1032
    %vm1035 = vcmp.eq.f32.partialorder %v180, %v1033
    %vm1036 = vcmp.eq.f32.partialorder %v181, %v1032
    %vm1037 = vcmp.eq.f32.partialorder %v181, %v1033
    %vm1038 = vcmp.eq.f32.partialorder %v300, %v1032
    %vm1039 = vcmp.eq.f32.partialorder %v300, %v1033
    %v1040 = vperm.slane %v347, 2
    %v1041 = vperm.slane %v348, 2
    %v1042 = vsel %vm1034, %v1040, 0.0
    %v1043 = vsel %vm1035, %v1041, 0.0
    %v1044 = vsel %vm1036, %v1040, 0.0
    %v1045 = vsel %vm1037, %v1041, 0.0
    %v1046 = vsel %vm1038, %v1040, 0.0
    %v1047 = vsel %vm1039, %v1041, 0.0
    %v1048 = vperm.slane %v327, 2
    %v1049 = vperm.slane %v328, 2
    %vm1050 = vcmp.eq.f32.partialorder %v180, %v1048
    %vm1051 = vcmp.eq.f32.partialorder %v180, %v1049
    %vm1052 = vcmp.eq.f32.partialorder %v181, %v1048
    %vm1053 = vcmp.eq.f32.partialorder %v181, %v1049
    %vm1054 = vcmp.eq.f32.partialorder %v300, %v1048
    %vm1055 = vcmp.eq.f32.partialorder %v300, %v1049
    %v1056 = vperm.slane %v351, 2
    %v1057 = vperm.slane %v352, 2
    %v1058 = vsel %vm1050, %v1056, 0.0
    %v1059 = vsel %vm1051, %v1057, 0.0
    %v1060 = vsel %vm1052, %v1056, 0.0
    %v1061 = vsel %vm1053, %v1057, 0.0
    %v1062 = vsel %vm1054, %v1056, 0.0
    %v1063 = vsel %vm1055, %v1057, 0.0
    %v1064 = vadd.f32 %v1042, %v1058
    %v1065 = vadd.f32 %v1043, %v1059
    %v1066 = vadd.f32 %v1044, %v1060
    %v1067 = vadd.f32 %v1045, %v1061
    %v1068 = vadd.f32 %v1046, %v1062
    %v1069 = vadd.f32 %v1047, %v1063
    %v1070 = vperm.slane %v311, 2
    %v1071 = vperm.slane %v312, 2
    %vm1072 = vcmp.eq.f32.partialorder %v180, %v1070
    %vm1073 = vcmp.eq.f32.partialorder %v180, %v1071
    %vm1074 = vcmp.eq.f32.partialorder %v181, %v1070
    %vm1075 = vcmp.eq.f32.partialorder %v181, %v1071
    %vm1076 = vcmp.eq.f32.partialorder %v300, %v1070
    %vm1077 = vcmp.eq.f32.partialorder %v300, %v1071
    %v1078 = vperm.slane %v339, 2
    %v1079 = vperm.slane %v340, 2
    %v1080 = vsel %vm1072, %v1078, 0.0
    %v1081 = vsel %vm1073, %v1079, 0.0
    %v1082 = vsel %vm1074, %v1078, 0.0
    %v1083 = vsel %vm1075, %v1079, 0.0
    %v1084 = vsel %vm1076, %v1078, 0.0
    %v1085 = vsel %vm1077, %v1079, 0.0
    %v1086 = vperm.slane %v317, 2
    %v1087 = vperm.slane %v318, 2
    %vm1088 = vcmp.eq.f32.partialorder %v180, %v1086
    %vm1089 = vcmp.eq.f32.partialorder %v180, %v1087
    %vm1090 = vcmp.eq.f32.partialorder %v181, %v1086
    %vm1091 = vcmp.eq.f32.partialorder %v181, %v1087
    %vm1092 = vcmp.eq.f32.partialorder %v300, %v1086
    %vm1093 = vcmp.eq.f32.partialorder %v300, %v1087
    %v1094 = vperm.slane %v343, 2
    %v1095 = vperm.slane %v344, 2
    %v1096 = vsel %vm1088, %v1094, 0.0
    %v1097 = vsel %vm1089, %v1095, 0.0
    %v1098 = vsel %vm1090, %v1094, 0.0
    %v1099 = vsel %vm1091, %v1095, 0.0
    %v1100 = vsel %vm1092, %v1094, 0.0
    %v1101 = vsel %vm1093, %v1095, 0.0
    %v1102 = vadd.f32 %v1080, %v1096
    %v1103 = vadd.f32 %v1081, %v1097
    %v1104 = vadd.f32 %v1082, %v1098
    %v1105 = vadd.f32 %v1083, %v1099
    %v1106 = vadd.f32 %v1084, %v1100
    %v1107 = vadd.f32 %v1085, %v1101
    %v1108 = vld [vmem:[%s1] sm:$0xff]
    %v1109 = vld [vmem:[%s1 + $0x8] sm:$0xff]
    %v1110 = vld [vmem:[%s1 + $0x10] sm:$0xff]
    %v1111 = vld [vmem:[%s1 + $0x18] sm:$0xff]
    %v1112 = vld [vmem:[%s1 + $0x20] sm:$0xff]
    %v1113 = vld [vmem:[%s1 + $0x28] sm:$0xff]
    %v1114 = vld [vmem:[%s1 + $0x30] sm:$0xff]
    %v1115 = vld [vmem:[%s1 + $0x38] sm:$0xff]
    %v1116 = vld [vmem:[%s1 + $0x40] sm:$0xff]
    %v1117 = vld [vmem:[%s1 + $0x48] sm:$0xff]
    %v1118 = vld [vmem:[%s1 + $0x50] sm:$0xff]
    %v1119 = vld [vmem:[%s1 + $0x58] sm:$0xff]
    %v1121 = vsel %vm441, %v1108, 0
    %v1124 = vsel %vm441, %v1109, 0
    %v1127 = vsel %vm441, %v1110, 0
    %v1130 = vsel %vm441, %v1111, 0
    %v1133 = vsel %vm441, %v1112, 0
    %v1136 = vsel %vm441, %v1113, 0
    %v1139 = vsel %vm441, %v1114, 0
    %v1142 = vsel %vm441, %v1115, 0
    %v1145 = vsel %vm441, %v1116, 0
    %v1148 = vsel %vm441, %v1117, 0
    %v1151 = vsel %vm441, %v1118, 0
    %v1154 = vsel %vm441, %v1119, 0
    %1156 = vmatpush.msra.mxu0 0.0
    %1157 = vmatpush.msra.mxu0 0.0
    %1158 = vmatpush.msra.mxu0 0.0
    %1159 = vmatpush.msra.mxu0 0.0
    %1160 = vmatpush.msra.mxu0 0.0
    %1161 = vmatpush.msra.mxu0 0.0
    %1162 = vmatpush.msra.mxu0 0.0
    %1163 = vmatpush.msra.mxu0 0.0
    %1164 = vmatpush.msra.mxu0 0.0
    %1165 = vmatpush.msra.mxu0 0.0
    %1166 = vmatpush.msra.mxu0 0.0
    %1167 = vmatpush.msra.mxu0 0.0
    %1168 = vmatpush.msra.mxu0 0.0
    %1169 = vmatpush.msra.mxu0 %v1068
    %1170 = vmatpush.msra.mxu0 %v1066
    %1171 = vmatpush.msra.mxu0 %v1064
    %1172 = vmatmul.f32.gmra.mxu0 %v1121
    %v1173 = vpop.f32.mrf.mxu0
    %v1174 = vadd.f32 0.0, %v1173
    %1175 = vmatmul.f32.gmra.mxu0 %v1124
    %v1176 = vpop.f32.mrf.mxu0
    %v1177 = vadd.f32 0.0, %v1176
    %1178 = vmatmul.f32.gmra.mxu0 %v1127
    %v1179 = vpop.f32.mrf.mxu0
    %v1180 = vadd.f32 0.0, %v1179
    %1181 = vmatmul.f32.gmra.mxu0 %v1130
    %v1182 = vpop.f32.mrf.mxu0
    %v1183 = vadd.f32 0.0, %v1182
    %1184 = vmatmul.f32.gmra.mxu0 %v1133
    %v1185 = vpop.f32.mrf.mxu0
    %v1186 = vadd.f32 0.0, %v1185
    %1187 = vmatmul.f32.gmra.mxu0 %v1136
    %v1188 = vpop.f32.mrf.mxu0
    %v1189 = vadd.f32 0.0, %v1188
    %1190 = vmatmul.f32.gmra.mxu0 %v1139
    %v1191 = vpop.f32.mrf.mxu0
    %v1192 = vadd.f32 0.0, %v1191
    %1193 = vmatmul.f32.gmra.mxu0 %v1142
    %v1194 = vpop.f32.mrf.mxu0
    %v1195 = vadd.f32 0.0, %v1194
    %1196 = vmatmul.f32.gmra.mxu0 %v1145
    %v1197 = vpop.f32.mrf.mxu0
    %v1198 = vadd.f32 0.0, %v1197
    %1199 = vmatmul.f32.gmra.mxu0 %v1148
    %v1200 = vpop.f32.mrf.mxu0
    %v1201 = vadd.f32 0.0, %v1200
    %1202 = vmatmul.f32.gmra.mxu0 %v1151
    %v1203 = vpop.f32.mrf.mxu0
    %v1204 = vadd.f32 0.0, %v1203
    %1205 = vmatmul.f32.gmra.mxu0 %v1154
    %v1206 = vpop.f32.mrf.mxu0
    %v1207 = vadd.f32 0.0, %v1206
    %1208 = vdwg.mxu0
    %1209 = vmatpush.msra.mxu0 0.0
    %1210 = vmatpush.msra.mxu0 0.0
    %1211 = vmatpush.msra.mxu0 0.0
    %1212 = vmatpush.msra.mxu0 0.0
    %1213 = vmatpush.msra.mxu0 0.0
    %1214 = vmatpush.msra.mxu0 0.0
    %1215 = vmatpush.msra.mxu0 0.0
    %1216 = vmatpush.msra.mxu0 0.0
    %1217 = vmatpush.msra.mxu0 0.0
    %1218 = vmatpush.msra.mxu0 0.0
    %1219 = vmatpush.msra.mxu0 0.0
    %1220 = vmatpush.msra.mxu0 0.0
    %1221 = vmatpush.msra.mxu0 0.0
    %1222 = vmatpush.msra.mxu0 %v1069
    %1223 = vmatpush.msra.mxu0 %v1067
    %1224 = vmatpush.msra.mxu0 %v1065
    %1225 = vmatmul.f32.gmra.mxu0 %v1121
    %v1226 = vpop.f32.mrf.mxu0
    %v1227 = vadd.f32 0.0, %v1226
    %1228 = vmatmul.f32.gmra.mxu0 %v1124
    %v1229 = vpop.f32.mrf.mxu0
    %v1230 = vadd.f32 0.0, %v1229
    %1231 = vmatmul.f32.gmra.mxu0 %v1127
    %v1232 = vpop.f32.mrf.mxu0
    %v1233 = vadd.f32 0.0, %v1232
    %1234 = vmatmul.f32.gmra.mxu0 %v1130
    %v1235 = vpop.f32.mrf.mxu0
    %v1236 = vadd.f32 0.0, %v1235
    %1237 = vmatmul.f32.gmra.mxu0 %v1133
    %v1238 = vpop.f32.mrf.mxu0
    %v1239 = vadd.f32 0.0, %v1238
    %1240 = vmatmul.f32.gmra.mxu0 %v1136
    %v1241 = vpop.f32.mrf.mxu0
    %v1242 = vadd.f32 0.0, %v1241
    %1243 = vmatmul.f32.gmra.mxu0 %v1139
    %v1244 = vpop.f32.mrf.mxu0
    %v1245 = vadd.f32 0.0, %v1244
    %1246 = vmatmul.f32.gmra.mxu0 %v1142
    %v1247 = vpop.f32.mrf.mxu0
    %v1248 = vadd.f32 0.0, %v1247
    %1249 = vmatmul.f32.gmra.mxu0 %v1145
    %v1250 = vpop.f32.mrf.mxu0
    %v1251 = vadd.f32 0.0, %v1250
    %1252 = vmatmul.f32.gmra.mxu0 %v1148
    %v1253 = vpop.f32.mrf.mxu0
    %v1254 = vadd.f32 0.0, %v1253
    %1255 = vmatmul.f32.gmra.mxu0 %v1151
    %v1256 = vpop.f32.mrf.mxu0
    %v1257 = vadd.f32 0.0, %v1256
    %1258 = vmatmul.f32.gmra.mxu0 %v1154
    %v1259 = vpop.f32.mrf.mxu0
    %v1260 = vadd.f32 0.0, %v1259
    %1261 = vdwg.mxu0
    %v1262 = vmul.f32 %v1174, %v1102
    %v1263 = vmul.f32 %v1227, %v1103
    %v1264 = vmul.f32 %v1177, %v1104
    %v1265 = vmul.f32 %v1230, %v1105
    %v1266 = vmul.f32 %v1180, %v1106
    %v1267 = vmul.f32 %v1233, %v1107
    %v1268 = vmul.f32 %v1183, %v1102
    %v1269 = vmul.f32 %v1236, %v1103
    %v1270 = vmul.f32 %v1186, %v1104
    %v1271 = vmul.f32 %v1239, %v1105
    %v1272 = vmul.f32 %v1189, %v1106
    %v1273 = vmul.f32 %v1242, %v1107
    %v1274 = vmul.f32 %v1192, %v1102
    %v1275 = vmul.f32 %v1245, %v1103
    %v1276 = vmul.f32 %v1195, %v1104
    %v1277 = vmul.f32 %v1248, %v1105
    %v1278 = vmul.f32 %v1198, %v1106
    %v1279 = vmul.f32 %v1251, %v1107
    %v1280 = vmul.f32 %v1201, %v1102
    %v1281 = vmul.f32 %v1254, %v1103
    %v1282 = vmul.f32 %v1204, %v1104
    %v1283 = vmul.f32 %v1257, %v1105
    %v1284 = vmul.f32 %v1207, %v1106
    %v1285 = vmul.f32 %v1260, %v1107
    %v1286 = vadd.f32 %v1262, %v1264
    %v1287 = vadd.f32 %v1286, %v1266
    %v1288 = vrot.slane %v1287, 4
    %v1289 = vadd.f32 %v1287, %v1288
    %v1290 = vrot.slane %v1289, 2
    %v1291 = vadd.f32 %v1289, %v1290
    %v1292 = vrot.slane %v1291, 1
    %v1293 = vadd.f32 %v1291, %v1292
    %v1294 = vadd.f32 %v1263, %v1265
    %v1295 = vadd.f32 %v1294, %v1267
    %v1296 = vrot.slane %v1295, 4
    %v1297 = vadd.f32 %v1295, %v1296
    %v1298 = vrot.slane %v1297, 2
    %v1299 = vadd.f32 %v1297, %v1298
    %v1300 = vrot.slane %v1299, 1
    %v1301 = vadd.f32 %v1299, %v1300
    %v1302 = vadd.f32 %v1268, %v1270
    %v1303 = vadd.f32 %v1302, %v1272
    %v1304 = vrot.slane %v1303, 4
    %v1305 = vadd.f32 %v1303, %v1304
    %v1306 = vrot.slane %v1305, 2
    %v1307 = vadd.f32 %v1305, %v1306
    %v1308 = vrot.slane %v1307, 1
    %v1309 = vadd.f32 %v1307, %v1308
    %v1310 = vadd.f32 %v1269, %v1271
    %v1311 = vadd.f32 %v1310, %v1273
    %v1312 = vrot.slane %v1311, 4
    %v1313 = vadd.f32 %v1311, %v1312
    %v1314 = vrot.slane %v1313, 2
    %v1315 = vadd.f32 %v1313, %v1314
    %v1316 = vrot.slane %v1315, 1
    %v1317 = vadd.f32 %v1315, %v1316
    %v1318 = vadd.f32 %v1274, %v1276
    %v1319 = vadd.f32 %v1318, %v1278
    %v1320 = vrot.slane %v1319, 4
    %v1321 = vadd.f32 %v1319, %v1320
    %v1322 = vrot.slane %v1321, 2
    %v1323 = vadd.f32 %v1321, %v1322
    %v1324 = vrot.slane %v1323, 1
    %v1325 = vadd.f32 %v1323, %v1324
    %v1326 = vadd.f32 %v1275, %v1277
    %v1327 = vadd.f32 %v1326, %v1279
    %v1328 = vrot.slane %v1327, 4
    %v1329 = vadd.f32 %v1327, %v1328
    %v1330 = vrot.slane %v1329, 2
    %v1331 = vadd.f32 %v1329, %v1330
    %v1332 = vrot.slane %v1331, 1
    %v1333 = vadd.f32 %v1331, %v1332
    %v1334 = vadd.f32 %v1280, %v1282
    %v1335 = vadd.f32 %v1334, %v1284
    %v1336 = vrot.slane %v1335, 4
    %v1337 = vadd.f32 %v1335, %v1336
    %v1338 = vrot.slane %v1337, 2
    %v1339 = vadd.f32 %v1337, %v1338
    %v1340 = vrot.slane %v1339, 1
    %v1341 = vadd.f32 %v1339, %v1340
    %v1342 = vadd.f32 %v1281, %v1283
    %v1343 = vadd.f32 %v1342, %v1285
    %v1344 = vrot.slane %v1343, 4
    %v1345 = vadd.f32 %v1343, %v1344
    %v1346 = vrot.slane %v1345, 2
    %v1347 = vadd.f32 %v1345, %v1346
    %v1348 = vrot.slane %v1347, 1
    %v1349 = vadd.f32 %v1347, %v1348
    %v1358 = vsel %vm680, %v1309, %v1293
    %v1359 = vsel %vm682, %v1325, %v1358
    %v1360 = vsel %vm684, %v1341, %v1359
    %v1361 = vsel %vm680, %v1317, %v1301
    %v1362 = vsel %vm682, %v1333, %v1361
    %v1363 = vsel %vm684, %v1349, %v1362
    %1366 = vst [vmem:[#allocation2 + $0x20] sm:$0xf] %v1360
    %1367 = vst [vmem:[#allocation2 + $0x28] sm:$0xf] %v1363
    %v1368 = vperm.slane %v321, 3
    %v1369 = vperm.slane %v322, 3
    %vm1370 = vcmp.eq.f32.partialorder %v180, %v1368
    %vm1371 = vcmp.eq.f32.partialorder %v180, %v1369
    %vm1372 = vcmp.eq.f32.partialorder %v181, %v1368
    %vm1373 = vcmp.eq.f32.partialorder %v181, %v1369
    %vm1374 = vcmp.eq.f32.partialorder %v300, %v1368
    %vm1375 = vcmp.eq.f32.partialorder %v300, %v1369
    %v1376 = vperm.slane %v347, 3
    %v1377 = vperm.slane %v348, 3
    %v1378 = vsel %vm1370, %v1376, 0.0
    %v1379 = vsel %vm1371, %v1377, 0.0
    %v1380 = vsel %vm1372, %v1376, 0.0
    %v1381 = vsel %vm1373, %v1377, 0.0
    %v1382 = vsel %vm1374, %v1376, 0.0
    %v1383 = vsel %vm1375, %v1377, 0.0
    %v1384 = vperm.slane %v327, 3
    %v1385 = vperm.slane %v328, 3
    %vm1386 = vcmp.eq.f32.partialorder %v180, %v1384
    %vm1387 = vcmp.eq.f32.partialorder %v180, %v1385
    %vm1388 = vcmp.eq.f32.partialorder %v181, %v1384
    %vm1389 = vcmp.eq.f32.partialorder %v181, %v1385
    %vm1390 = vcmp.eq.f32.partialorder %v300, %v1384
    %vm1391 = vcmp.eq.f32.partialorder %v300, %v1385
    %v1392 = vperm.slane %v351, 3
    %v1393 = vperm.slane %v352, 3
    %v1394 = vsel %vm1386, %v1392, 0.0
    %v1395 = vsel %vm1387, %v1393, 0.0
    %v1396 = vsel %vm1388, %v1392, 0.0
    %v1397 = vsel %vm1389, %v1393, 0.0
    %v1398 = vsel %vm1390, %v1392, 0.0
    %v1399 = vsel %vm1391, %v1393, 0.0
    %v1400 = vadd.f32 %v1378, %v1394
    %v1401 = vadd.f32 %v1379, %v1395
    %v1402 = vadd.f32 %v1380, %v1396
    %v1403 = vadd.f32 %v1381, %v1397
    %v1404 = vadd.f32 %v1382, %v1398
    %v1405 = vadd.f32 %v1383, %v1399
    %v1406 = vperm.slane %v311, 3
    %v1407 = vperm.slane %v312, 3
    %vm1408 = vcmp.eq.f32.partialorder %v180, %v1406
    %vm1409 = vcmp.eq.f32.partialorder %v180, %v1407
    %vm1410 = vcmp.eq.f32.partialorder %v181, %v1406
    %vm1411 = vcmp.eq.f32.partialorder %v181, %v1407
    %vm1412 = vcmp.eq.f32.partialorder %v300, %v1406
    %vm1413 = vcmp.eq.f32.partialorder %v300, %v1407
    %v1414 = vperm.slane %v339, 3
    %v1415 = vperm.slane %v340, 3
    %v1416 = vsel %vm1408, %v1414, 0.0
    %v1417 = vsel %vm1409, %v1415, 0.0
    %v1418 = vsel %vm1410, %v1414, 0.0
    %v1419 = vsel %vm1411, %v1415, 0.0
    %v1420 = vsel %vm1412, %v1414, 0.0
    %v1421 = vsel %vm1413, %v1415, 0.0
    %v1422 = vperm.slane %v317, 3
    %v1423 = vperm.slane %v318, 3
    %vm1424 = vcmp.eq.f32.partialorder %v180, %v1422
    %vm1425 = vcmp.eq.f32.partialorder %v180, %v1423
    %vm1426 = vcmp.eq.f32.partialorder %v181, %v1422
    %vm1427 = vcmp.eq.f32.partialorder %v181, %v1423
    %vm1428 = vcmp.eq.f32.partialorder %v300, %v1422
    %vm1429 = vcmp.eq.f32.partialorder %v300, %v1423
    %v1430 = vperm.slane %v343, 3
    %v1431 = vperm.slane %v344, 3
    %v1432 = vsel %vm1424, %v1430, 0.0
    %v1433 = vsel %vm1425, %v1431, 0.0
    %v1434 = vsel %vm1426, %v1430, 0.0
    %v1435 = vsel %vm1427, %v1431, 0.0
    %v1436 = vsel %vm1428, %v1430, 0.0
    %v1437 = vsel %vm1429, %v1431, 0.0
    %v1438 = vadd.f32 %v1416, %v1432
    %v1439 = vadd.f32 %v1417, %v1433
    %v1440 = vadd.f32 %v1418, %v1434
    %v1441 = vadd.f32 %v1419, %v1435
    %v1442 = vadd.f32 %v1420, %v1436
    %v1443 = vadd.f32 %v1421, %v1437
    %v1444 = vld [vmem:[%s1] sm:$0xff]
    %v1445 = vld [vmem:[%s1 + $0x8] sm:$0xff]
    %v1446 = vld [vmem:[%s1 + $0x10] sm:$0xff]
    %v1447 = vld [vmem:[%s1 + $0x18] sm:$0xff]
    %v1448 = vld [vmem:[%s1 + $0x20] sm:$0xff]
    %v1449 = vld [vmem:[%s1 + $0x28] sm:$0xff]
    %v1450 = vld [vmem:[%s1 + $0x30] sm:$0xff]
    %v1451 = vld [vmem:[%s1 + $0x38] sm:$0xff]
    %v1452 = vld [vmem:[%s1 + $0x40] sm:$0xff]
    %v1453 = vld [vmem:[%s1 + $0x48] sm:$0xff]
    %v1454 = vld [vmem:[%s1 + $0x50] sm:$0xff]
    %v1455 = vld [vmem:[%s1 + $0x58] sm:$0xff]
    %v1457 = vsel %vm441, %v1444, 0
    %v1460 = vsel %vm441, %v1445, 0
    %v1463 = vsel %vm441, %v1446, 0
    %v1466 = vsel %vm441, %v1447, 0
    %v1469 = vsel %vm441, %v1448, 0
    %v1472 = vsel %vm441, %v1449, 0
    %v1475 = vsel %vm441, %v1450, 0
    %v1478 = vsel %vm441, %v1451, 0
    %v1481 = vsel %vm441, %v1452, 0
    %v1484 = vsel %vm441, %v1453, 0
    %v1487 = vsel %vm441, %v1454, 0
    %v1490 = vsel %vm441, %v1455, 0
    %1492 = vmatpush.msra.mxu0 0.0
    %1493 = vmatpush.msra.mxu0 0.0
    %1494 = vmatpush.msra.mxu0 0.0
    %1495 = vmatpush.msra.mxu0 0.0
    %1496 = vmatpush.msra.mxu0 0.0
    %1497 = vmatpush.msra.mxu0 0.0
    %1498 = vmatpush.msra.mxu0 0.0
    %1499 = vmatpush.msra.mxu0 0.0
    %1500 = vmatpush.msra.mxu0 0.0
    %1501 = vmatpush.msra.mxu0 0.0
    %1502 = vmatpush.msra.mxu0 0.0
    %1503 = vmatpush.msra.mxu0 0.0
    %1504 = vmatpush.msra.mxu0 0.0
    %1505 = vmatpush.msra.mxu0 %v1404
    %1506 = vmatpush.msra.mxu0 %v1402
    %1507 = vmatpush.msra.mxu0 %v1400
    %1508 = vmatmul.f32.gmra.mxu0 %v1457
    %v1509 = vpop.f32.mrf.mxu0
    %v1510 = vadd.f32 0.0, %v1509
    %1511 = vmatmul.f32.gmra.mxu0 %v1460
    %v1512 = vpop.f32.mrf.mxu0
    %v1513 = vadd.f32 0.0, %v1512
    %1514 = vmatmul.f32.gmra.mxu0 %v1463
    %v1515 = vpop.f32.mrf.mxu0
    %v1516 = vadd.f32 0.0, %v1515
    %1517 = vmatmul.f32.gmra.mxu0 %v1466
    %v1518 = vpop.f32.mrf.mxu0
    %v1519 = vadd.f32 0.0, %v1518
    %1520 = vmatmul.f32.gmra.mxu0 %v1469
    %v1521 = vpop.f32.mrf.mxu0
    %v1522 = vadd.f32 0.0, %v1521
    %1523 = vmatmul.f32.gmra.mxu0 %v1472
    %v1524 = vpop.f32.mrf.mxu0
    %v1525 = vadd.f32 0.0, %v1524
    %1526 = vmatmul.f32.gmra.mxu0 %v1475
    %v1527 = vpop.f32.mrf.mxu0
    %v1528 = vadd.f32 0.0, %v1527
    %1529 = vmatmul.f32.gmra.mxu0 %v1478
    %v1530 = vpop.f32.mrf.mxu0
    %v1531 = vadd.f32 0.0, %v1530
    %1532 = vmatmul.f32.gmra.mxu0 %v1481
    %v1533 = vpop.f32.mrf.mxu0
    %v1534 = vadd.f32 0.0, %v1533
    %1535 = vmatmul.f32.gmra.mxu0 %v1484
    %v1536 = vpop.f32.mrf.mxu0
    %v1537 = vadd.f32 0.0, %v1536
    %1538 = vmatmul.f32.gmra.mxu0 %v1487
    %v1539 = vpop.f32.mrf.mxu0
    %v1540 = vadd.f32 0.0, %v1539
    %1541 = vmatmul.f32.gmra.mxu0 %v1490
    %v1542 = vpop.f32.mrf.mxu0
    %v1543 = vadd.f32 0.0, %v1542
    %1544 = vdwg.mxu0
    %1545 = vmatpush.msra.mxu0 0.0
    %1546 = vmatpush.msra.mxu0 0.0
    %1547 = vmatpush.msra.mxu0 0.0
    %1548 = vmatpush.msra.mxu0 0.0
    %1549 = vmatpush.msra.mxu0 0.0
    %1550 = vmatpush.msra.mxu0 0.0
    %1551 = vmatpush.msra.mxu0 0.0
    %1552 = vmatpush.msra.mxu0 0.0
    %1553 = vmatpush.msra.mxu0 0.0
    %1554 = vmatpush.msra.mxu0 0.0
    %1555 = vmatpush.msra.mxu0 0.0
    %1556 = vmatpush.msra.mxu0 0.0
    %1557 = vmatpush.msra.mxu0 0.0
    %1558 = vmatpush.msra.mxu0 %v1405
    %1559 = vmatpush.msra.mxu0 %v1403
    %1560 = vmatpush.msra.mxu0 %v1401
    %1561 = vmatmul.f32.gmra.mxu0 %v1457
    %v1562 = vpop.f32.mrf.mxu0
    %v1563 = vadd.f32 0.0, %v1562
    %1564 = vmatmul.f32.gmra.mxu0 %v1460
    %v1565 = vpop.f32.mrf.mxu0
    %v1566 = vadd.f32 0.0, %v1565
    %1567 = vmatmul.f32.gmra.mxu0 %v1463
    %v1568 = vpop.f32.mrf.mxu0
    %v1569 = vadd.f32 0.0, %v1568
    %1570 = vmatmul.f32.gmra.mxu0 %v1466
    %v1571 = vpop.f32.mrf.mxu0
    %v1572 = vadd.f32 0.0, %v1571
    %1573 = vmatmul.f32.gmra.mxu0 %v1469
    %v1574 = vpop.f32.mrf.mxu0
    %v1575 = vadd.f32 0.0, %v1574
    %1576 = vmatmul.f32.gmra.mxu0 %v1472
    %v1577 = vpop.f32.mrf.mxu0
    %v1578 = vadd.f32 0.0, %v1577
    %1579 = vmatmul.f32.gmra.mxu0 %v1475
    %v1580 = vpop.f32.mrf.mxu0
    %v1581 = vadd.f32 0.0, %v1580
    %1582 = vmatmul.f32.gmra.mxu0 %v1478
    %v1583 = vpop.f32.mrf.mxu0
    %v1584 = vadd.f32 0.0, %v1583
    %1585 = vmatmul.f32.gmra.mxu0 %v1481
    %v1586 = vpop.f32.mrf.mxu0
    %v1587 = vadd.f32 0.0, %v1586
    %1588 = vmatmul.f32.gmra.mxu0 %v1484
    %v1589 = vpop.f32.mrf.mxu0
    %v1590 = vadd.f32 0.0, %v1589
    %1591 = vmatmul.f32.gmra.mxu0 %v1487
    %v1592 = vpop.f32.mrf.mxu0
    %v1593 = vadd.f32 0.0, %v1592
    %1594 = vmatmul.f32.gmra.mxu0 %v1490
    %v1595 = vpop.f32.mrf.mxu0
    %v1596 = vadd.f32 0.0, %v1595
    %1597 = vdwg.mxu0
    %v1598 = vmul.f32 %v1510, %v1438
    %v1599 = vmul.f32 %v1563, %v1439
    %v1600 = vmul.f32 %v1513, %v1440
    %v1601 = vmul.f32 %v1566, %v1441
    %v1602 = vmul.f32 %v1516, %v1442
    %v1603 = vmul.f32 %v1569, %v1443
    %v1604 = vmul.f32 %v1519, %v1438
    %v1605 = vmul.f32 %v1572, %v1439
    %v1606 = vmul.f32 %v1522, %v1440
    %v1607 = vmul.f32 %v1575, %v1441
    %v1608 = vmul.f32 %v1525, %v1442
    %v1609 = vmul.f32 %v1578, %v1443
    %v1610 = vmul.f32 %v1528, %v1438
    %v1611 = vmul.f32 %v1581, %v1439
    %v1612 = vmul.f32 %v1531, %v1440
    %v1613 = vmul.f32 %v1584, %v1441
    %v1614 = vmul.f32 %v1534, %v1442
    %v1615 = vmul.f32 %v1587, %v1443
    %v1616 = vmul.f32 %v1537, %v1438
    %v1617 = vmul.f32 %v1590, %v1439
    %v1618 = vmul.f32 %v1540, %v1440
    %v1619 = vmul.f32 %v1593, %v1441
    %v1620 = vmul.f32 %v1543, %v1442
    %v1621 = vmul.f32 %v1596, %v1443
    %v1622 = vadd.f32 %v1598, %v1600
    %v1623 = vadd.f32 %v1622, %v1602
    %v1624 = vrot.slane %v1623, 4
    %v1625 = vadd.f32 %v1623, %v1624
    %v1626 = vrot.slane %v1625, 2
    %v1627 = vadd.f32 %v1625, %v1626
    %v1628 = vrot.slane %v1627, 1
    %v1629 = vadd.f32 %v1627, %v1628
    %v1630 = vadd.f32 %v1599, %v1601
    %v1631 = vadd.f32 %v1630, %v1603
    %v1632 = vrot.slane %v1631, 4
    %v1633 = vadd.f32 %v1631, %v1632
    %v1634 = vrot.slane %v1633, 2
    %v1635 = vadd.f32 %v1633, %v1634
    %v1636 = vrot.slane %v1635, 1
    %v1637 = vadd.f32 %v1635, %v1636
    %v1638 = vadd.f32 %v1604, %v1606
    %v1639 = vadd.f32 %v1638, %v1608
    %v1640 = vrot.slane %v1639, 4
    %v1641 = vadd.f32 %v1639, %v1640
    %v1642 = vrot.slane %v1641, 2
    %v1643 = vadd.f32 %v1641, %v1642
    %v1644 = vrot.slane %v1643, 1
    %v1645 = vadd.f32 %v1643, %v1644
    %v1646 = vadd.f32 %v1605, %v1607
    %v1647 = vadd.f32 %v1646, %v1609
    %v1648 = vrot.slane %v1647, 4
    %v1649 = vadd.f32 %v1647, %v1648
    %v1650 = vrot.slane %v1649, 2
    %v1651 = vadd.f32 %v1649, %v1650
    %v1652 = vrot.slane %v1651, 1
    %v1653 = vadd.f32 %v1651, %v1652
    %v1654 = vadd.f32 %v1610, %v1612
    %v1655 = vadd.f32 %v1654, %v1614
    %v1656 = vrot.slane %v1655, 4
    %v1657 = vadd.f32 %v1655, %v1656
    %v1658 = vrot.slane %v1657, 2
    %v1659 = vadd.f32 %v1657, %v1658
    %v1660 = vrot.slane %v1659, 1
    %v1661 = vadd.f32 %v1659, %v1660
    %v1662 = vadd.f32 %v1611, %v1613
    %v1663 = vadd.f32 %v1662, %v1615
    %v1664 = vrot.slane %v1663, 4
    %v1665 = vadd.f32 %v1663, %v1664
    %v1666 = vrot.slane %v1665, 2
    %v1667 = vadd.f32 %v1665, %v1666
    %v1668 = vrot.slane %v1667, 1
    %v1669 = vadd.f32 %v1667, %v1668
    %v1670 = vadd.f32 %v1616, %v1618
    %v1671 = vadd.f32 %v1670, %v1620
    %v1672 = vrot.slane %v1671, 4
    %v1673 = vadd.f32 %v1671, %v1672
    %v1674 = vrot.slane %v1673, 2
    %v1675 = vadd.f32 %v1673, %v1674
    %v1676 = vrot.slane %v1675, 1
    %v1677 = vadd.f32 %v1675, %v1676
    %v1678 = vadd.f32 %v1617, %v1619
    %v1679 = vadd.f32 %v1678, %v1621
    %v1680 = vrot.slane %v1679, 4
    %v1681 = vadd.f32 %v1679, %v1680
    %v1682 = vrot.slane %v1681, 2
    %v1683 = vadd.f32 %v1681, %v1682
    %v1684 = vrot.slane %v1683, 1
    %v1685 = vadd.f32 %v1683, %v1684
    %v1694 = vsel %vm1019, %v1645, %v1629
    %v1695 = vsel %vm1021, %v1661, %v1694
    %v1696 = vsel %vm1023, %v1677, %v1695
    %v1697 = vsel %vm1019, %v1653, %v1637
    %v1698 = vsel %vm1021, %v1669, %v1697
    %v1699 = vsel %vm1023, %v1685, %v1698
    %1702 = vst [vmem:[#allocation2 + $0x20] sm:$0xf0] %v1696
    %1703 = vst [vmem:[#allocation2 + $0x28] sm:$0xf0] %v1699
    %v1704 = vperm.slane %v321, 4
    %v1705 = vperm.slane %v322, 4
    %vm1706 = vcmp.eq.f32.partialorder %v180, %v1704
    %vm1707 = vcmp.eq.f32.partialorder %v180, %v1705
    %vm1708 = vcmp.eq.f32.partialorder %v181, %v1704
    %vm1709 = vcmp.eq.f32.partialorder %v181, %v1705
    %vm1710 = vcmp.eq.f32.partialorder %v300, %v1704
    %vm1711 = vcmp.eq.f32.partialorder %v300, %v1705
    %v1712 = vperm.slane %v347, 4
    %v1713 = vperm.slane %v348, 4
    %v1714 = vsel %vm1706, %v1712, 0.0
    %v1715 = vsel %vm1707, %v1713, 0.0
    %v1716 = vsel %vm1708, %v1712, 0.0
    %v1717 = vsel %vm1709, %v1713, 0.0
    %v1718 = vsel %vm1710, %v1712, 0.0
    %v1719 = vsel %vm1711, %v1713, 0.0
    %v1720 = vperm.slane %v327, 4
    %v1721 = vperm.slane %v328, 4
    %vm1722 = vcmp.eq.f32.partialorder %v180, %v1720
    %vm1723 = vcmp.eq.f32.partialorder %v180, %v1721
    %vm1724 = vcmp.eq.f32.partialorder %v181, %v1720
    %vm1725 = vcmp.eq.f32.partialorder %v181, %v1721
    %vm1726 = vcmp.eq.f32.partialorder %v300, %v1720
    %vm1727 = vcmp.eq.f32.partialorder %v300, %v1721
    %v1728 = vperm.slane %v351, 4
    %v1729 = vperm.slane %v352, 4
    %v1730 = vsel %vm1722, %v1728, 0.0
    %v1731 = vsel %vm1723, %v1729, 0.0
    %v1732 = vsel %vm1724, %v1728, 0.0
    %v1733 = vsel %vm1725, %v1729, 0.0
    %v1734 = vsel %vm1726, %v1728, 0.0
    %v1735 = vsel %vm1727, %v1729, 0.0
    %v1736 = vadd.f32 %v1714, %v1730
    %v1737 = vadd.f32 %v1715, %v1731
    %v1738 = vadd.f32 %v1716, %v1732
    %v1739 = vadd.f32 %v1717, %v1733
    %v1740 = vadd.f32 %v1718, %v1734
    %v1741 = vadd.f32 %v1719, %v1735
    %v1742 = vperm.slane %v311, 4
    %v1743 = vperm.slane %v312, 4
    %vm1744 = vcmp.eq.f32.partialorder %v180, %v1742
    %vm1745 = vcmp.eq.f32.partialorder %v180, %v1743
    %vm1746 = vcmp.eq.f32.partialorder %v181, %v1742
    %vm1747 = vcmp.eq.f32.partialorder %v181, %v1743
    %vm1748 = vcmp.eq.f32.partialorder %v300, %v1742
    %vm1749 = vcmp.eq.f32.partialorder %v300, %v1743
    %v1750 = vperm.slane %v339, 4
    %v1751 = vperm.slane %v340, 4
    %v1752 = vsel %vm1744, %v1750, 0.0
    %v1753 = vsel %vm1745, %v1751, 0.0
    %v1754 = vsel %vm1746, %v1750, 0.0
    %v1755 = vsel %vm1747, %v1751, 0.0
    %v1756 = vsel %vm1748, %v1750, 0.0
    %v1757 = vsel %vm1749, %v1751, 0.0
    %v1758 = vperm.slane %v317, 4
    %v1759 = vperm.slane %v318, 4
    %vm1760 = vcmp.eq.f32.partialorder %v180, %v1758
    %vm1761 = vcmp.eq.f32.partialorder %v180, %v1759
    %vm1762 = vcmp.eq.f32.partialorder %v181, %v1758
    %vm1763 = vcmp.eq.f32.partialorder %v181, %v1759
    %vm1764 = vcmp.eq.f32.partialorder %v300, %v1758
    %vm1765 = vcmp.eq.f32.partialorder %v300, %v1759
    %v1766 = vperm.slane %v343, 4
    %v1767 = vperm.slane %v344, 4
    %v1768 = vsel %vm1760, %v1766, 0.0
    %v1769 = vsel %vm1761, %v1767, 0.0
    %v1770 = vsel %vm1762, %v1766, 0.0
    %v1771 = vsel %vm1763, %v1767, 0.0
    %v1772 = vsel %vm1764, %v1766, 0.0
    %v1773 = vsel %vm1765, %v1767, 0.0
    %v1774 = vadd.f32 %v1752, %v1768
    %v1775 = vadd.f32 %v1753, %v1769
    %v1776 = vadd.f32 %v1754, %v1770
    %v1777 = vadd.f32 %v1755, %v1771
    %v1778 = vadd.f32 %v1756, %v1772
    %v1779 = vadd.f32 %v1757, %v1773
    %v1780 = vld [vmem:[%s1] sm:$0xff]
    %v1781 = vld [vmem:[%s1 + $0x8] sm:$0xff]
    %v1782 = vld [vmem:[%s1 + $0x10] sm:$0xff]
    %v1783 = vld [vmem:[%s1 + $0x18] sm:$0xff]
    %v1784 = vld [vmem:[%s1 + $0x20] sm:$0xff]
    %v1785 = vld [vmem:[%s1 + $0x28] sm:$0xff]
    %v1786 = vld [vmem:[%s1 + $0x30] sm:$0xff]
    %v1787 = vld [vmem:[%s1 + $0x38] sm:$0xff]
    %v1788 = vld [vmem:[%s1 + $0x40] sm:$0xff]
    %v1789 = vld [vmem:[%s1 + $0x48] sm:$0xff]
    %v1790 = vld [vmem:[%s1 + $0x50] sm:$0xff]
    %v1791 = vld [vmem:[%s1 + $0x58] sm:$0xff]
    %v1793 = vsel %vm441, %v1780, 0
    %v1796 = vsel %vm441, %v1781, 0
    %v1799 = vsel %vm441, %v1782, 0
    %v1802 = vsel %vm441, %v1783, 0
    %v1805 = vsel %vm441, %v1784, 0
    %v1808 = vsel %vm441, %v1785, 0
    %v1811 = vsel %vm441, %v1786, 0
    %v1814 = vsel %vm441, %v1787, 0
    %v1817 = vsel %vm441, %v1788, 0
    %v1820 = vsel %vm441, %v1789, 0
    %v1823 = vsel %vm441, %v1790, 0
    %v1826 = vsel %vm441, %v1791, 0
    %1828 = vmatpush.msra.mxu0 0.0
    %1829 = vmatpush.msra.mxu0 0.0
    %1830 = vmatpush.msra.mxu0 0.0
    %1831 = vmatpush.msra.mxu0 0.0
    %1832 = vmatpush.msra.mxu0 0.0
    %1833 = vmatpush.msra.mxu0 0.0
    %1834 = vmatpush.msra.mxu0 0.0
    %1835 = vmatpush.msra.mxu0 0.0
    %1836 = vmatpush.msra.mxu0 0.0
    %1837 = vmatpush.msra.mxu0 0.0
    %1838 = vmatpush.msra.mxu0 0.0
    %1839 = vmatpush.msra.mxu0 0.0
    %1840 = vmatpush.msra.mxu0 0.0
    %1841 = vmatpush.msra.mxu0 %v1740
    %1842 = vmatpush.msra.mxu0 %v1738
    %1843 = vmatpush.msra.mxu0 %v1736
    %1844 = vmatmul.f32.gmra.mxu0 %v1793
    %v1845 = vpop.f32.mrf.mxu0
    %v1846 = vadd.f32 0.0, %v1845
    %1847 = vmatmul.f32.gmra.mxu0 %v1796
    %v1848 = vpop.f32.mrf.mxu0
    %v1849 = vadd.f32 0.0, %v1848
    %1850 = vmatmul.f32.gmra.mxu0 %v1799
    %v1851 = vpop.f32.mrf.mxu0
    %v1852 = vadd.f32 0.0, %v1851
    %1853 = vmatmul.f32.gmra.mxu0 %v1802
    %v1854 = vpop.f32.mrf.mxu0
    %v1855 = vadd.f32 0.0, %v1854
    %1856 = vmatmul.f32.gmra.mxu0 %v1805
    %v1857 = vpop.f32.mrf.mxu0
    %v1858 = vadd.f32 0.0, %v1857
    %1859 = vmatmul.f32.gmra.mxu0 %v1808
    %v1860 = vpop.f32.mrf.mxu0
    %v1861 = vadd.f32 0.0, %v1860
    %1862 = vmatmul.f32.gmra.mxu0 %v1811
    %v1863 = vpop.f32.mrf.mxu0
    %v1864 = vadd.f32 0.0, %v1863
    %1865 = vmatmul.f32.gmra.mxu0 %v1814
    %v1866 = vpop.f32.mrf.mxu0
    %v1867 = vadd.f32 0.0, %v1866
    %1868 = vmatmul.f32.gmra.mxu0 %v1817
    %v1869 = vpop.f32.mrf.mxu0
    %v1870 = vadd.f32 0.0, %v1869
    %1871 = vmatmul.f32.gmra.mxu0 %v1820
    %v1872 = vpop.f32.mrf.mxu0
    %v1873 = vadd.f32 0.0, %v1872
    %1874 = vmatmul.f32.gmra.mxu0 %v1823
    %v1875 = vpop.f32.mrf.mxu0
    %v1876 = vadd.f32 0.0, %v1875
    %1877 = vmatmul.f32.gmra.mxu0 %v1826
    %v1878 = vpop.f32.mrf.mxu0
    %v1879 = vadd.f32 0.0, %v1878
    %1880 = vdwg.mxu0
    %1881 = vmatpush.msra.mxu0 0.0
    %1882 = vmatpush.msra.mxu0 0.0
    %1883 = vmatpush.msra.mxu0 0.0
    %1884 = vmatpush.msra.mxu0 0.0
    %1885 = vmatpush.msra.mxu0 0.0
    %1886 = vmatpush.msra.mxu0 0.0
    %1887 = vmatpush.msra.mxu0 0.0
    %1888 = vmatpush.msra.mxu0 0.0
    %1889 = vmatpush.msra.mxu0 0.0
    %1890 = vmatpush.msra.mxu0 0.0
    %1891 = vmatpush.msra.mxu0 0.0
    %1892 = vmatpush.msra.mxu0 0.0
    %1893 = vmatpush.msra.mxu0 0.0
    %1894 = vmatpush.msra.mxu0 %v1741
    %1895 = vmatpush.msra.mxu0 %v1739
    %1896 = vmatpush.msra.mxu0 %v1737
    %1897 = vmatmul.f32.gmra.mxu0 %v1793
    %v1898 = vpop.f32.mrf.mxu0
    %v1899 = vadd.f32 0.0, %v1898
    %1900 = vmatmul.f32.gmra.mxu0 %v1796
    %v1901 = vpop.f32.mrf.mxu0
    %v1902 = vadd.f32 0.0, %v1901
    %1903 = vmatmul.f32.gmra.mxu0 %v1799
    %v1904 = vpop.f32.mrf.mxu0
    %v1905 = vadd.f32 0.0, %v1904
    %1906 = vmatmul.f32.gmra.mxu0 %v1802
    %v1907 = vpop.f32.mrf.mxu0
    %v1908 = vadd.f32 0.0, %v1907
    %1909 = vmatmul.f32.gmra.mxu0 %v1805
    %v1910 = vpop.f32.mrf.mxu0
    %v1911 = vadd.f32 0.0, %v1910
    %1912 = vmatmul.f32.gmra.mxu0 %v1808
    %v1913 = vpop.f32.mrf.mxu0
    %v1914 = vadd.f32 0.0, %v1913
    %1915 = vmatmul.f32.gmra.mxu0 %v1811
    %v1916 = vpop.f32.mrf.mxu0
    %v1917 = vadd.f32 0.0, %v1916
    %1918 = vmatmul.f32.gmra.mxu0 %v1814
    %v1919 = vpop.f32.mrf.mxu0
    %v1920 = vadd.f32 0.0, %v1919
    %1921 = vmatmul.f32.gmra.mxu0 %v1817
    %v1922 = vpop.f32.mrf.mxu0
    %v1923 = vadd.f32 0.0, %v1922
    %1924 = vmatmul.f32.gmra.mxu0 %v1820
    %v1925 = vpop.f32.mrf.mxu0
    %v1926 = vadd.f32 0.0, %v1925
    %1927 = vmatmul.f32.gmra.mxu0 %v1823
    %v1928 = vpop.f32.mrf.mxu0
    %v1929 = vadd.f32 0.0, %v1928
    %1930 = vmatmul.f32.gmra.mxu0 %v1826
    %v1931 = vpop.f32.mrf.mxu0
    %v1932 = vadd.f32 0.0, %v1931
    %1933 = vdwg.mxu0
    %v1934 = vmul.f32 %v1846, %v1774
    %v1935 = vmul.f32 %v1899, %v1775
    %v1936 = vmul.f32 %v1849, %v1776
    %v1937 = vmul.f32 %v1902, %v1777
    %v1938 = vmul.f32 %v1852, %v1778
    %v1939 = vmul.f32 %v1905, %v1779
    %v1940 = vmul.f32 %v1855, %v1774
    %v1941 = vmul.f32 %v1908, %v1775
    %v1942 = vmul.f32 %v1858, %v1776
    %v1943 = vmul.f32 %v1911, %v1777
    %v1944 = vmul.f32 %v1861, %v1778
    %v1945 = vmul.f32 %v1914, %v1779
    %v1946 = vmul.f32 %v1864, %v1774
    %v1947 = vmul.f32 %v1917, %v1775
    %v1948 = vmul.f32 %v1867, %v1776
    %v1949 = vmul.f32 %v1920, %v1777
    %v1950 = vmul.f32 %v1870, %v1778
    %v1951 = vmul.f32 %v1923, %v1779
    %v1952 = vmul.f32 %v1873, %v1774
    %v1953 = vmul.f32 %v1926, %v1775
    %v1954 = vmul.f32 %v1876, %v1776
    %v1955 = vmul.f32 %v1929, %v1777
    %v1956 = vmul.f32 %v1879, %v1778
    %v1957 = vmul.f32 %v1932, %v1779
    %v1958 = vadd.f32 %v1934, %v1936
    %v1959 = vadd.f32 %v1958, %v1938
    %v1960 = vrot.slane %v1959, 4
    %v1961 = vadd.f32 %v1959, %v1960
    %v1962 = vrot.slane %v1961, 2
    %v1963 = vadd.f32 %v1961, %v1962
    %v1964 = vrot.slane %v1963, 1
    %v1965 = vadd.f32 %v1963, %v1964
    %v1966 = vadd.f32 %v1935, %v1937
    %v1967 = vadd.f32 %v1966, %v1939
    %v1968 = vrot.slane %v1967, 4
    %v1969 = vadd.f32 %v1967, %v1968
    %v1970 = vrot.slane %v1969, 2
    %v1971 = vadd.f32 %v1969, %v1970
    %v1972 = vrot.slane %v1971, 1
    %v1973 = vadd.f32 %v1971, %v1972
    %v1974 = vadd.f32 %v1940, %v1942
    %v1975 = vadd.f32 %v1974, %v1944
    %v1976 = vrot.slane %v1975, 4
    %v1977 = vadd.f32 %v1975, %v1976
    %v1978 = vrot.slane %v1977, 2
    %v1979 = vadd.f32 %v1977, %v1978
    %v1980 = vrot.slane %v1979, 1
    %v1981 = vadd.f32 %v1979, %v1980
    %v1982 = vadd.f32 %v1941, %v1943
    %v1983 = vadd.f32 %v1982, %v1945
    %v1984 = vrot.slane %v1983, 4
    %v1985 = vadd.f32 %v1983, %v1984
    %v1986 = vrot.slane %v1985, 2
    %v1987 = vadd.f32 %v1985, %v1986
    %v1988 = vrot.slane %v1987, 1
    %v1989 = vadd.f32 %v1987, %v1988
    %v1990 = vadd.f32 %v1946, %v1948
    %v1991 = vadd.f32 %v1990, %v1950
    %v1992 = vrot.slane %v1991, 4
    %v1993 = vadd.f32 %v1991, %v1992
    %v1994 = vrot.slane %v1993, 2
    %v1995 = vadd.f32 %v1993, %v1994
    %v1996 = vrot.slane %v1995, 1
    %v1997 = vadd.f32 %v1995, %v1996
    %v1998 = vadd.f32 %v1947, %v1949
    %v1999 = vadd.f32 %v1998, %v1951
    %v2000 = vrot.slane %v1999, 4
    %v2001 = vadd.f32 %v1999, %v2000
    %v2002 = vrot.slane %v2001, 2
    %v2003 = vadd.f32 %v2001, %v2002
    %v2004 = vrot.slane %v2003, 1
    %v2005 = vadd.f32 %v2003, %v2004
    %v2006 = vadd.f32 %v1952, %v1954
    %v2007 = vadd.f32 %v2006, %v1956
    %v2008 = vrot.slane %v2007, 4
    %v2009 = vadd.f32 %v2007, %v2008
    %v2010 = vrot.slane %v2009, 2
    %v2011 = vadd.f32 %v2009, %v2010
    %v2012 = vrot.slane %v2011, 1
    %v2013 = vadd.f32 %v2011, %v2012
    %v2014 = vadd.f32 %v1953, %v1955
    %v2015 = vadd.f32 %v2014, %v1957
    %v2016 = vrot.slane %v2015, 4
    %v2017 = vadd.f32 %v2015, %v2016
    %v2018 = vrot.slane %v2017, 2
    %v2019 = vadd.f32 %v2017, %v2018
    %v2020 = vrot.slane %v2019, 1
    %v2021 = vadd.f32 %v2019, %v2020
    %v2030 = vsel %vm680, %v1981, %v1965
    %v2031 = vsel %vm682, %v1997, %v2030
    %v2032 = vsel %vm684, %v2013, %v2031
    %v2033 = vsel %vm680, %v1989, %v1973
    %v2034 = vsel %vm682, %v2005, %v2033
    %v2035 = vsel %vm684, %v2021, %v2034
    %2038 = vst [vmem:[#allocation2 + $0x40] sm:$0xf] %v2032
    %2039 = vst [vmem:[#allocation2 + $0x48] sm:$0xf] %v2035
    %v2040 = vperm.slane %v321, 5
    %v2041 = vperm.slane %v322, 5
    %vm2042 = vcmp.eq.f32.partialorder %v180, %v2040
    %vm2043 = vcmp.eq.f32.partialorder %v180, %v2041
    %vm2044 = vcmp.eq.f32.partialorder %v181, %v2040
    %vm2045 = vcmp.eq.f32.partialorder %v181, %v2041
    %vm2046 = vcmp.eq.f32.partialorder %v300, %v2040
    %vm2047 = vcmp.eq.f32.partialorder %v300, %v2041
    %v2048 = vperm.slane %v347, 5
    %v2049 = vperm.slane %v348, 5
    %v2050 = vsel %vm2042, %v2048, 0.0
    %v2051 = vsel %vm2043, %v2049, 0.0
    %v2052 = vsel %vm2044, %v2048, 0.0
    %v2053 = vsel %vm2045, %v2049, 0.0
    %v2054 = vsel %vm2046, %v2048, 0.0
    %v2055 = vsel %vm2047, %v2049, 0.0
    %v2056 = vperm.slane %v327, 5
    %v2057 = vperm.slane %v328, 5
    %vm2058 = vcmp.eq.f32.partialorder %v180, %v2056
    %vm2059 = vcmp.eq.f32.partialorder %v180, %v2057
    %vm2060 = vcmp.eq.f32.partialorder %v181, %v2056
    %vm2061 = vcmp.eq.f32.partialorder %v181, %v2057
    %vm2062 = vcmp.eq.f32.partialorder %v300, %v2056
    %vm2063 = vcmp.eq.f32.partialorder %v300, %v2057
    %v2064 = vperm.slane %v351, 5
    %v2065 = vperm.slane %v352, 5
    %v2066 = vsel %vm2058, %v2064, 0.0
    %v2067 = vsel %vm2059, %v2065, 0.0
    %v2068 = vsel %vm2060, %v2064, 0.0
    %v2069 = vsel %vm2061, %v2065, 0.0
    %v2070 = vsel %vm2062, %v2064, 0.0
    %v2071 = vsel %vm2063, %v2065, 0.0
    %v2072 = vadd.f32 %v2050, %v2066
    %v2073 = vadd.f32 %v2051, %v2067
    %v2074 = vadd.f32 %v2052, %v2068
    %v2075 = vadd.f32 %v2053, %v2069
    %v2076 = vadd.f32 %v2054, %v2070
    %v2077 = vadd.f32 %v2055, %v2071
    %v2078 = vperm.slane %v311, 5
    %v2079 = vperm.slane %v312, 5
    %vm2080 = vcmp.eq.f32.partialorder %v180, %v2078
    %vm2081 = vcmp.eq.f32.partialorder %v180, %v2079
    %vm2082 = vcmp.eq.f32.partialorder %v181, %v2078
    %vm2083 = vcmp.eq.f32.partialorder %v181, %v2079
    %vm2084 = vcmp.eq.f32.partialorder %v300, %v2078
    %vm2085 = vcmp.eq.f32.partialorder %v300, %v2079
    %v2086 = vperm.slane %v339, 5
    %v2087 = vperm.slane %v340, 5
    %v2088 = vsel %vm2080, %v2086, 0.0
    %v2089 = vsel %vm2081, %v2087, 0.0
    %v2090 = vsel %vm2082, %v2086, 0.0
    %v2091 = vsel %vm2083, %v2087, 0.0
    %v2092 = vsel %vm2084, %v2086, 0.0
    %v2093 = vsel %vm2085, %v2087, 0.0
    %v2094 = vperm.slane %v317, 5
    %v2095 = vperm.slane %v318, 5
    %vm2096 = vcmp.eq.f32.partialorder %v180, %v2094
    %vm2097 = vcmp.eq.f32.partialorder %v180, %v2095
    %vm2098 = vcmp.eq.f32.partialorder %v181, %v2094
    %vm2099 = vcmp.eq.f32.partialorder %v181, %v2095
    %vm2100 = vcmp.eq.f32.partialorder %v300, %v2094
    %vm2101 = vcmp.eq.f32.partialorder %v300, %v2095
    %v2102 = vperm.slane %v343, 5
    %v2103 = vperm.slane %v344, 5
    %v2104 = vsel %vm2096, %v2102, 0.0
    %v2105 = vsel %vm2097, %v2103, 0.0
    %v2106 = vsel %vm2098, %v2102, 0.0
    %v2107 = vsel %vm2099, %v2103, 0.0
    %v2108 = vsel %vm2100, %v2102, 0.0
    %v2109 = vsel %vm2101, %v2103, 0.0
    %v2110 = vadd.f32 %v2088, %v2104
    %v2111 = vadd.f32 %v2089, %v2105
    %v2112 = vadd.f32 %v2090, %v2106
    %v2113 = vadd.f32 %v2091, %v2107
    %v2114 = vadd.f32 %v2092, %v2108
    %v2115 = vadd.f32 %v2093, %v2109
    %v2116 = vld [vmem:[%s1] sm:$0xff]
    %v2117 = vld [vmem:[%s1 + $0x8] sm:$0xff]
    %v2118 = vld [vmem:[%s1 + $0x10] sm:$0xff]
    %v2119 = vld [vmem:[%s1 + $0x18] sm:$0xff]
    %v2120 = vld [vmem:[%s1 + $0x20] sm:$0xff]
    %v2121 = vld [vmem:[%s1 + $0x28] sm:$0xff]
    %v2122 = vld [vmem:[%s1 + $0x30] sm:$0xff]
    %v2123 = vld [vmem:[%s1 + $0x38] sm:$0xff]
    %v2124 = vld [vmem:[%s1 + $0x40] sm:$0xff]
    %v2125 = vld [vmem:[%s1 + $0x48] sm:$0xff]
    %v2126 = vld [vmem:[%s1 + $0x50] sm:$0xff]
    %v2127 = vld [vmem:[%s1 + $0x58] sm:$0xff]
    %v2129 = vsel %vm441, %v2116, 0
    %v2132 = vsel %vm441, %v2117, 0
    %v2135 = vsel %vm441, %v2118, 0
    %v2138 = vsel %vm441, %v2119, 0
    %v2141 = vsel %vm441, %v2120, 0
    %v2144 = vsel %vm441, %v2121, 0
    %v2147 = vsel %vm441, %v2122, 0
    %v2150 = vsel %vm441, %v2123, 0
    %v2153 = vsel %vm441, %v2124, 0
    %v2156 = vsel %vm441, %v2125, 0
    %v2159 = vsel %vm441, %v2126, 0
    %v2162 = vsel %vm441, %v2127, 0
    %2164 = vmatpush.msra.mxu0 0.0
    %2165 = vmatpush.msra.mxu0 0.0
    %2166 = vmatpush.msra.mxu0 0.0
    %2167 = vmatpush.msra.mxu0 0.0
    %2168 = vmatpush.msra.mxu0 0.0
    %2169 = vmatpush.msra.mxu0 0.0
    %2170 = vmatpush.msra.mxu0 0.0
    %2171 = vmatpush.msra.mxu0 0.0
    %2172 = vmatpush.msra.mxu0 0.0
    %2173 = vmatpush.msra.mxu0 0.0
    %2174 = vmatpush.msra.mxu0 0.0
    %2175 = vmatpush.msra.mxu0 0.0
    %2176 = vmatpush.msra.mxu0 0.0
    %2177 = vmatpush.msra.mxu0 %v2076
    %2178 = vmatpush.msra.mxu0 %v2074
    %2179 = vmatpush.msra.mxu0 %v2072
    %2180 = vmatmul.f32.gmra.mxu0 %v2129
    %v2181 = vpop.f32.mrf.mxu0
    %v2182 = vadd.f32 0.0, %v2181
    %2183 = vmatmul.f32.gmra.mxu0 %v2132
    %v2184 = vpop.f32.mrf.mxu0
    %v2185 = vadd.f32 0.0, %v2184
    %2186 = vmatmul.f32.gmra.mxu0 %v2135
    %v2187 = vpop.f32.mrf.mxu0
    %v2188 = vadd.f32 0.0, %v2187
    %2189 = vmatmul.f32.gmra.mxu0 %v2138
    %v2190 = vpop.f32.mrf.mxu0
    %v2191 = vadd.f32 0.0, %v2190
    %2192 = vmatmul.f32.gmra.mxu0 %v2141
    %v2193 = vpop.f32.mrf.mxu0
    %v2194 = vadd.f32 0.0, %v2193
    %2195 = vmatmul.f32.gmra.mxu0 %v2144
    %v2196 = vpop.f32.mrf.mxu0
    %v2197 = vadd.f32 0.0, %v2196
    %2198 = vmatmul.f32.gmra.mxu0 %v2147
    %v2199 = vpop.f32.mrf.mxu0
    %v2200 = vadd.f32 0.0, %v2199
    %2201 = vmatmul.f32.gmra.mxu0 %v2150
    %v2202 = vpop.f32.mrf.mxu0
    %v2203 = vadd.f32 0.0, %v2202
    %2204 = vmatmul.f32.gmra.mxu0 %v2153
    %v2205 = vpop.f32.mrf.mxu0
    %v2206 = vadd.f32 0.0, %v2205
    %2207 = vmatmul.f32.gmra.mxu0 %v2156
    %v2208 = vpop.f32.mrf.mxu0
    %v2209 = vadd.f32 0.0, %v2208
    %2210 = vmatmul.f32.gmra.mxu0 %v2159
    %v2211 = vpop.f32.mrf.mxu0
    %v2212 = vadd.f32 0.0, %v2211
    %2213 = vmatmul.f32.gmra.mxu0 %v2162
    %v2214 = vpop.f32.mrf.mxu0
    %v2215 = vadd.f32 0.0, %v2214
    %2216 = vdwg.mxu0
    %2217 = vmatpush.msra.mxu0 0.0
    %2218 = vmatpush.msra.mxu0 0.0
    %2219 = vmatpush.msra.mxu0 0.0
    %2220 = vmatpush.msra.mxu0 0.0
    %2221 = vmatpush.msra.mxu0 0.0
    %2222 = vmatpush.msra.mxu0 0.0
    %2223 = vmatpush.msra.mxu0 0.0
    %2224 = vmatpush.msra.mxu0 0.0
    %2225 = vmatpush.msra.mxu0 0.0
    %2226 = vmatpush.msra.mxu0 0.0
    %2227 = vmatpush.msra.mxu0 0.0
    %2228 = vmatpush.msra.mxu0 0.0
    %2229 = vmatpush.msra.mxu0 0.0
    %2230 = vmatpush.msra.mxu0 %v2077
    %2231 = vmatpush.msra.mxu0 %v2075
    %2232 = vmatpush.msra.mxu0 %v2073
    %2233 = vmatmul.f32.gmra.mxu0 %v2129
    %v2234 = vpop.f32.mrf.mxu0
    %v2235 = vadd.f32 0.0, %v2234
    %2236 = vmatmul.f32.gmra.mxu0 %v2132
    %v2237 = vpop.f32.mrf.mxu0
    %v2238 = vadd.f32 0.0, %v2237
    %2239 = vmatmul.f32.gmra.mxu0 %v2135
    %v2240 = vpop.f32.mrf.mxu0
    %v2241 = vadd.f32 0.0, %v2240
    %2242 = vmatmul.f32.gmra.mxu0 %v2138
    %v2243 = vpop.f32.mrf.mxu0
    %v2244 = vadd.f32 0.0, %v2243
    %2245 = vmatmul.f32.gmra.mxu0 %v2141
    %v2246 = vpop.f32.mrf.mxu0
    %v2247 = vadd.f32 0.0, %v2246
    %2248 = vmatmul.f32.gmra.mxu0 %v2144
    %v2249 = vpop.f32.mrf.mxu0
    %v2250 = vadd.f32 0.0, %v2249
    %2251 = vmatmul.f32.gmra.mxu0 %v2147
    %v2252 = vpop.f32.mrf.mxu0
    %v2253 = vadd.f32 0.0, %v2252
    %2254 = vmatmul.f32.gmra.mxu0 %v2150
    %v2255 = vpop.f32.mrf.mxu0
    %v2256 = vadd.f32 0.0, %v2255
    %2257 = vmatmul.f32.gmra.mxu0 %v2153
    %v2258 = vpop.f32.mrf.mxu0
    %v2259 = vadd.f32 0.0, %v2258
    %2260 = vmatmul.f32.gmra.mxu0 %v2156
    %v2261 = vpop.f32.mrf.mxu0
    %v2262 = vadd.f32 0.0, %v2261
    %2263 = vmatmul.f32.gmra.mxu0 %v2159
    %v2264 = vpop.f32.mrf.mxu0
    %v2265 = vadd.f32 0.0, %v2264
    %2266 = vmatmul.f32.gmra.mxu0 %v2162
    %v2267 = vpop.f32.mrf.mxu0
    %v2268 = vadd.f32 0.0, %v2267
    %2269 = vdwg.mxu0
    %v2270 = vmul.f32 %v2182, %v2110
    %v2271 = vmul.f32 %v2235, %v2111
    %v2272 = vmul.f32 %v2185, %v2112
    %v2273 = vmul.f32 %v2238, %v2113
    %v2274 = vmul.f32 %v2188, %v2114
    %v2275 = vmul.f32 %v2241, %v2115
    %v2276 = vmul.f32 %v2191, %v2110
    %v2277 = vmul.f32 %v2244, %v2111
    %v2278 = vmul.f32 %v2194, %v2112
    %v2279 = vmul.f32 %v2247, %v2113
    %v2280 = vmul.f32 %v2197, %v2114
    %v2281 = vmul.f32 %v2250, %v2115
    %v2282 = vmul.f32 %v2200, %v2110
    %v2283 = vmul.f32 %v2253, %v2111
    %v2284 = vmul.f32 %v2203, %v2112
    %v2285 = vmul.f32 %v2256, %v2113
    %v2286 = vmul.f32 %v2206, %v2114
    %v2287 = vmul.f32 %v2259, %v2115
    %v2288 = vmul.f32 %v2209, %v2110
    %v2289 = vmul.f32 %v2262, %v2111
    %v2290 = vmul.f32 %v2212, %v2112
    %v2291 = vmul.f32 %v2265, %v2113
    %v2292 = vmul.f32 %v2215, %v2114
    %v2293 = vmul.f32 %v2268, %v2115
    %v2294 = vadd.f32 %v2270, %v2272
    %v2295 = vadd.f32 %v2294, %v2274
    %v2296 = vrot.slane %v2295, 4
    %v2297 = vadd.f32 %v2295, %v2296
    %v2298 = vrot.slane %v2297, 2
    %v2299 = vadd.f32 %v2297, %v2298
    %v2300 = vrot.slane %v2299, 1
    %v2301 = vadd.f32 %v2299, %v2300
    %v2302 = vadd.f32 %v2271, %v2273
    %v2303 = vadd.f32 %v2302, %v2275
    %v2304 = vrot.slane %v2303, 4
    %v2305 = vadd.f32 %v2303, %v2304
    %v2306 = vrot.slane %v2305, 2
    %v2307 = vadd.f32 %v2305, %v2306
    %v2308 = vrot.slane %v2307, 1
    %v2309 = vadd.f32 %v2307, %v2308
    %v2310 = vadd.f32 %v2276, %v2278
    %v2311 = vadd.f32 %v2310, %v2280
    %v2312 = vrot.slane %v2311, 4
    %v2313 = vadd.f32 %v2311, %v2312
    %v2314 = vrot.slane %v2313, 2
    %v2315 = vadd.f32 %v2313, %v2314
    %v2316 = vrot.slane %v2315, 1
    %v2317 = vadd.f32 %v2315, %v2316
    %v2318 = vadd.f32 %v2277, %v2279
    %v2319 = vadd.f32 %v2318, %v2281
    %v2320 = vrot.slane %v2319, 4
    %v2321 = vadd.f32 %v2319, %v2320
    %v2322 = vrot.slane %v2321, 2
    %v2323 = vadd.f32 %v2321, %v2322
    %v2324 = vrot.slane %v2323, 1
    %v2325 = vadd.f32 %v2323, %v2324
    %v2326 = vadd.f32 %v2282, %v2284
    %v2327 = vadd.f32 %v2326, %v2286
    %v2328 = vrot.slane %v2327, 4
    %v2329 = vadd.f32 %v2327, %v2328
    %v2330 = vrot.slane %v2329, 2
    %v2331 = vadd.f32 %v2329, %v2330
    %v2332 = vrot.slane %v2331, 1
    %v2333 = vadd.f32 %v2331, %v2332
    %v2334 = vadd.f32 %v2283, %v2285
    %v2335 = vadd.f32 %v2334, %v2287
    %v2336 = vrot.slane %v2335, 4
    %v2337 = vadd.f32 %v2335, %v2336
    %v2338 = vrot.slane %v2337, 2
    %v2339 = vadd.f32 %v2337, %v2338
    %v2340 = vrot.slane %v2339, 1
    %v2341 = vadd.f32 %v2339, %v2340
    %v2342 = vadd.f32 %v2288, %v2290
    %v2343 = vadd.f32 %v2342, %v2292
    %v2344 = vrot.slane %v2343, 4
    %v2345 = vadd.f32 %v2343, %v2344
    %v2346 = vrot.slane %v2345, 2
    %v2347 = vadd.f32 %v2345, %v2346
    %v2348 = vrot.slane %v2347, 1
    %v2349 = vadd.f32 %v2347, %v2348
    %v2350 = vadd.f32 %v2289, %v2291
    %v2351 = vadd.f32 %v2350, %v2293
    %v2352 = vrot.slane %v2351, 4
    %v2353 = vadd.f32 %v2351, %v2352
    %v2354 = vrot.slane %v2353, 2
    %v2355 = vadd.f32 %v2353, %v2354
    %v2356 = vrot.slane %v2355, 1
    %v2357 = vadd.f32 %v2355, %v2356
    %v2366 = vsel %vm1019, %v2317, %v2301
    %v2367 = vsel %vm1021, %v2333, %v2366
    %v2368 = vsel %vm1023, %v2349, %v2367
    %v2369 = vsel %vm1019, %v2325, %v2309
    %v2370 = vsel %vm1021, %v2341, %v2369
    %v2371 = vsel %vm1023, %v2357, %v2370
    %2374 = vst [vmem:[#allocation2 + $0x40] sm:$0xf0] %v2368
    %2375 = vst [vmem:[#allocation2 + $0x48] sm:$0xf0] %v2371
    %v2376 = vperm.slane %v321, 6
    %v2377 = vperm.slane %v322, 6
    %vm2378 = vcmp.eq.f32.partialorder %v180, %v2376
    %vm2379 = vcmp.eq.f32.partialorder %v180, %v2377
    %vm2380 = vcmp.eq.f32.partialorder %v181, %v2376
    %vm2381 = vcmp.eq.f32.partialorder %v181, %v2377
    %vm2382 = vcmp.eq.f32.partialorder %v300, %v2376
    %vm2383 = vcmp.eq.f32.partialorder %v300, %v2377
    %v2384 = vperm.slane %v347, 6
    %v2385 = vperm.slane %v348, 6
    %v2386 = vsel %vm2378, %v2384, 0.0
    %v2387 = vsel %vm2379, %v2385, 0.0
    %v2388 = vsel %vm2380, %v2384, 0.0
    %v2389 = vsel %vm2381, %v2385, 0.0
    %v2390 = vsel %vm2382, %v2384, 0.0
    %v2391 = vsel %vm2383, %v2385, 0.0
    %v2392 = vperm.slane %v327, 6
    %v2393 = vperm.slane %v328, 6
    %vm2394 = vcmp.eq.f32.partialorder %v180, %v2392
    %vm2395 = vcmp.eq.f32.partialorder %v180, %v2393
    %vm2396 = vcmp.eq.f32.partialorder %v181, %v2392
    %vm2397 = vcmp.eq.f32.partialorder %v181, %v2393
    %vm2398 = vcmp.eq.f32.partialorder %v300, %v2392
    %vm2399 = vcmp.eq.f32.partialorder %v300, %v2393
    %v2400 = vperm.slane %v351, 6
    %v2401 = vperm.slane %v352, 6
    %v2402 = vsel %vm2394, %v2400, 0.0
    %v2403 = vsel %vm2395, %v2401, 0.0
    %v2404 = vsel %vm2396, %v2400, 0.0
    %v2405 = vsel %vm2397, %v2401, 0.0
    %v2406 = vsel %vm2398, %v2400, 0.0
    %v2407 = vsel %vm2399, %v2401, 0.0
    %v2408 = vadd.f32 %v2386, %v2402
    %v2409 = vadd.f32 %v2387, %v2403
    %v2410 = vadd.f32 %v2388, %v2404
    %v2411 = vadd.f32 %v2389, %v2405
    %v2412 = vadd.f32 %v2390, %v2406
    %v2413 = vadd.f32 %v2391, %v2407
    %v2414 = vperm.slane %v311, 6
    %v2415 = vperm.slane %v312, 6
    %vm2416 = vcmp.eq.f32.partialorder %v180, %v2414
    %vm2417 = vcmp.eq.f32.partialorder %v180, %v2415
    %vm2418 = vcmp.eq.f32.partialorder %v181, %v2414
    %vm2419 = vcmp.eq.f32.partialorder %v181, %v2415
    %vm2420 = vcmp.eq.f32.partialorder %v300, %v2414
    %vm2421 = vcmp.eq.f32.partialorder %v300, %v2415
    %v2422 = vperm.slane %v339, 6
    %v2423 = vperm.slane %v340, 6
    %v2424 = vsel %vm2416, %v2422, 0.0
    %v2425 = vsel %vm2417, %v2423, 0.0
    %v2426 = vsel %vm2418, %v2422, 0.0
    %v2427 = vsel %vm2419, %v2423, 0.0
    %v2428 = vsel %vm2420, %v2422, 0.0
    %v2429 = vsel %vm2421, %v2423, 0.0
    %v2430 = vperm.slane %v317, 6
    %v2431 = vperm.slane %v318, 6
    %vm2432 = vcmp.eq.f32.partialorder %v180, %v2430
    %vm2433 = vcmp.eq.f32.partialorder %v180, %v2431
    %vm2434 = vcmp.eq.f32.partialorder %v181, %v2430
    %vm2435 = vcmp.eq.f32.partialorder %v181, %v2431
    %vm2436 = vcmp.eq.f32.partialorder %v300, %v2430
    %vm2437 = vcmp.eq.f32.partialorder %v300, %v2431
    %v2438 = vperm.slane %v343, 6
    %v2439 = vperm.slane %v344, 6
    %v2440 = vsel %vm2432, %v2438, 0.0
    %v2441 = vsel %vm2433, %v2439, 0.0
    %v2442 = vsel %vm2434, %v2438, 0.0
    %v2443 = vsel %vm2435, %v2439, 0.0
    %v2444 = vsel %vm2436, %v2438, 0.0
    %v2445 = vsel %vm2437, %v2439, 0.0
    %v2446 = vadd.f32 %v2424, %v2440
    %v2447 = vadd.f32 %v2425, %v2441
    %v2448 = vadd.f32 %v2426, %v2442
    %v2449 = vadd.f32 %v2427, %v2443
    %v2450 = vadd.f32 %v2428, %v2444
    %v2451 = vadd.f32 %v2429, %v2445
    %v2452 = vld [vmem:[%s1] sm:$0xff]
    %v2453 = vld [vmem:[%s1 + $0x8] sm:$0xff]
    %v2454 = vld [vmem:[%s1 + $0x10] sm:$0xff]
    %v2455 = vld [vmem:[%s1 + $0x18] sm:$0xff]
    %v2456 = vld [vmem:[%s1 + $0x20] sm:$0xff]
    %v2457 = vld [vmem:[%s1 + $0x28] sm:$0xff]
    %v2458 = vld [vmem:[%s1 + $0x30] sm:$0xff]
    %v2459 = vld [vmem:[%s1 + $0x38] sm:$0xff]
    %v2460 = vld [vmem:[%s1 + $0x40] sm:$0xff]
    %v2461 = vld [vmem:[%s1 + $0x48] sm:$0xff]
    %v2462 = vld [vmem:[%s1 + $0x50] sm:$0xff]
    %v2463 = vld [vmem:[%s1 + $0x58] sm:$0xff]
    %v2465 = vsel %vm441, %v2452, 0
    %v2468 = vsel %vm441, %v2453, 0
    %v2471 = vsel %vm441, %v2454, 0
    %v2474 = vsel %vm441, %v2455, 0
    %v2477 = vsel %vm441, %v2456, 0
    %v2480 = vsel %vm441, %v2457, 0
    %v2483 = vsel %vm441, %v2458, 0
    %v2486 = vsel %vm441, %v2459, 0
    %v2489 = vsel %vm441, %v2460, 0
    %v2492 = vsel %vm441, %v2461, 0
    %v2495 = vsel %vm441, %v2462, 0
    %v2498 = vsel %vm441, %v2463, 0
    %2500 = vmatpush.msra.mxu0 0.0
    %2501 = vmatpush.msra.mxu0 0.0
    %2502 = vmatpush.msra.mxu0 0.0
    %2503 = vmatpush.msra.mxu0 0.0
    %2504 = vmatpush.msra.mxu0 0.0
    %2505 = vmatpush.msra.mxu0 0.0
    %2506 = vmatpush.msra.mxu0 0.0
    %2507 = vmatpush.msra.mxu0 0.0
    %2508 = vmatpush.msra.mxu0 0.0
    %2509 = vmatpush.msra.mxu0 0.0
    %2510 = vmatpush.msra.mxu0 0.0
    %2511 = vmatpush.msra.mxu0 0.0
    %2512 = vmatpush.msra.mxu0 0.0
    %2513 = vmatpush.msra.mxu0 %v2412
    %2514 = vmatpush.msra.mxu0 %v2410
    %2515 = vmatpush.msra.mxu0 %v2408
    %2516 = vmatmul.f32.gmra.mxu0 %v2465
    %v2517 = vpop.f32.mrf.mxu0
    %v2518 = vadd.f32 0.0, %v2517
    %2519 = vmatmul.f32.gmra.mxu0 %v2468
    %v2520 = vpop.f32.mrf.mxu0
    %v2521 = vadd.f32 0.0, %v2520
    %2522 = vmatmul.f32.gmra.mxu0 %v2471
    %v2523 = vpop.f32.mrf.mxu0
    %v2524 = vadd.f32 0.0, %v2523
    %2525 = vmatmul.f32.gmra.mxu0 %v2474
    %v2526 = vpop.f32.mrf.mxu0
    %v2527 = vadd.f32 0.0, %v2526
    %2528 = vmatmul.f32.gmra.mxu0 %v2477
    %v2529 = vpop.f32.mrf.mxu0
    %v2530 = vadd.f32 0.0, %v2529
    %2531 = vmatmul.f32.gmra.mxu0 %v2480
    %v2532 = vpop.f32.mrf.mxu0
    %v2533 = vadd.f32 0.0, %v2532
    %2534 = vmatmul.f32.gmra.mxu0 %v2483
    %v2535 = vpop.f32.mrf.mxu0
    %v2536 = vadd.f32 0.0, %v2535
    %2537 = vmatmul.f32.gmra.mxu0 %v2486
    %v2538 = vpop.f32.mrf.mxu0
    %v2539 = vadd.f32 0.0, %v2538
    %2540 = vmatmul.f32.gmra.mxu0 %v2489
    %v2541 = vpop.f32.mrf.mxu0
    %v2542 = vadd.f32 0.0, %v2541
    %2543 = vmatmul.f32.gmra.mxu0 %v2492
    %v2544 = vpop.f32.mrf.mxu0
    %v2545 = vadd.f32 0.0, %v2544
    %2546 = vmatmul.f32.gmra.mxu0 %v2495
    %v2547 = vpop.f32.mrf.mxu0
    %v2548 = vadd.f32 0.0, %v2547
    %2549 = vmatmul.f32.gmra.mxu0 %v2498
    %v2550 = vpop.f32.mrf.mxu0
    %v2551 = vadd.f32 0.0, %v2550
    %2552 = vdwg.mxu0
    %2553 = vmatpush.msra.mxu0 0.0
    %2554 = vmatpush.msra.mxu0 0.0
    %2555 = vmatpush.msra.mxu0 0.0
    %2556 = vmatpush.msra.mxu0 0.0
    %2557 = vmatpush.msra.mxu0 0.0
    %2558 = vmatpush.msra.mxu0 0.0
    %2559 = vmatpush.msra.mxu0 0.0
    %2560 = vmatpush.msra.mxu0 0.0
    %2561 = vmatpush.msra.mxu0 0.0
    %2562 = vmatpush.msra.mxu0 0.0
    %2563 = vmatpush.msra.mxu0 0.0
    %2564 = vmatpush.msra.mxu0 0.0
    %2565 = vmatpush.msra.mxu0 0.0
    %2566 = vmatpush.msra.mxu0 %v2413
    %2567 = vmatpush.msra.mxu0 %v2411
    %2568 = vmatpush.msra.mxu0 %v2409
    %2569 = vmatmul.f32.gmra.mxu0 %v2465
    %v2570 = vpop.f32.mrf.mxu0
    %v2571 = vadd.f32 0.0, %v2570
    %2572 = vmatmul.f32.gmra.mxu0 %v2468
    %v2573 = vpop.f32.mrf.mxu0
    %v2574 = vadd.f32 0.0, %v2573
    %2575 = vmatmul.f32.gmra.mxu0 %v2471
    %v2576 = vpop.f32.mrf.mxu0
    %v2577 = vadd.f32 0.0, %v2576
    %2578 = vmatmul.f32.gmra.mxu0 %v2474
    %v2579 = vpop.f32.mrf.mxu0
    %v2580 = vadd.f32 0.0, %v2579
    %2581 = vmatmul.f32.gmra.mxu0 %v2477
    %v2582 = vpop.f32.mrf.mxu0
    %v2583 = vadd.f32 0.0, %v2582
    %2584 = vmatmul.f32.gmra.mxu0 %v2480
    %v2585 = vpop.f32.mrf.mxu0
    %v2586 = vadd.f32 0.0, %v2585
    %2587 = vmatmul.f32.gmra.mxu0 %v2483
    %v2588 = vpop.f32.mrf.mxu0
    %v2589 = vadd.f32 0.0, %v2588
    %2590 = vmatmul.f32.gmra.mxu0 %v2486
    %v2591 = vpop.f32.mrf.mxu0
    %v2592 = vadd.f32 0.0, %v2591
    %2593 = vmatmul.f32.gmra.mxu0 %v2489
    %v2594 = vpop.f32.mrf.mxu0
    %v2595 = vadd.f32 0.0, %v2594
    %2596 = vmatmul.f32.gmra.mxu0 %v2492
    %v2597 = vpop.f32.mrf.mxu0
    %v2598 = vadd.f32 0.0, %v2597
    %2599 = vmatmul.f32.gmra.mxu0 %v2495
    %v2600 = vpop.f32.mrf.mxu0
    %v2601 = vadd.f32 0.0, %v2600
    %2602 = vmatmul.f32.gmra.mxu0 %v2498
    %v2603 = vpop.f32.mrf.mxu0
    %v2604 = vadd.f32 0.0, %v2603
    %2605 = vdwg.mxu0
    %v2606 = vmul.f32 %v2518, %v2446
    %v2607 = vmul.f32 %v2571, %v2447
    %v2608 = vmul.f32 %v2521, %v2448
    %v2609 = vmul.f32 %v2574, %v2449
    %v2610 = vmul.f32 %v2524, %v2450
    %v2611 = vmul.f32 %v2577, %v2451
    %v2612 = vmul.f32 %v2527, %v2446
    %v2613 = vmul.f32 %v2580, %v2447
    %v2614 = vmul.f32 %v2530, %v2448
    %v2615 = vmul.f32 %v2583, %v2449
    %v2616 = vmul.f32 %v2533, %v2450
    %v2617 = vmul.f32 %v2586, %v2451
    %v2618 = vmul.f32 %v2536, %v2446
    %v2619 = vmul.f32 %v2589, %v2447
    %v2620 = vmul.f32 %v2539, %v2448
    %v2621 = vmul.f32 %v2592, %v2449
    %v2622 = vmul.f32 %v2542, %v2450
    %v2623 = vmul.f32 %v2595, %v2451
    %v2624 = vmul.f32 %v2545, %v2446
    %v2625 = vmul.f32 %v2598, %v2447
    %v2626 = vmul.f32 %v2548, %v2448
    %v2627 = vmul.f32 %v2601, %v2449
    %v2628 = vmul.f32 %v2551, %v2450
    %v2629 = vmul.f32 %v2604, %v2451
    %v2630 = vadd.f32 %v2606, %v2608
    %v2631 = vadd.f32 %v2630, %v2610
    %v2632 = vrot.slane %v2631, 4
    %v2633 = vadd.f32 %v2631, %v2632
    %v2634 = vrot.slane %v2633, 2
    %v2635 = vadd.f32 %v2633, %v2634
    %v2636 = vrot.slane %v2635, 1
    %v2637 = vadd.f32 %v2635, %v2636
    %v2638 = vadd.f32 %v2607, %v2609
    %v2639 = vadd.f32 %v2638, %v2611
    %v2640 = vrot.slane %v2639, 4
    %v2641 = vadd.f32 %v2639, %v2640
    %v2642 = vrot.slane %v2641, 2
    %v2643 = vadd.f32 %v2641, %v2642
    %v2644 = vrot.slane %v2643, 1
    %v2645 = vadd.f32 %v2643, %v2644
    %v2646 = vadd.f32 %v2612, %v2614
    %v2647 = vadd.f32 %v2646, %v2616
    %v2648 = vrot.slane %v2647, 4
    %v2649 = vadd.f32 %v2647, %v2648
    %v2650 = vrot.slane %v2649, 2
    %v2651 = vadd.f32 %v2649, %v2650
    %v2652 = vrot.slane %v2651, 1
    %v2653 = vadd.f32 %v2651, %v2652
    %v2654 = vadd.f32 %v2613, %v2615
    %v2655 = vadd.f32 %v2654, %v2617
    %v2656 = vrot.slane %v2655, 4
    %v2657 = vadd.f32 %v2655, %v2656
    %v2658 = vrot.slane %v2657, 2
    %v2659 = vadd.f32 %v2657, %v2658
    %v2660 = vrot.slane %v2659, 1
    %v2661 = vadd.f32 %v2659, %v2660
    %v2662 = vadd.f32 %v2618, %v2620
    %v2663 = vadd.f32 %v2662, %v2622
    %v2664 = vrot.slane %v2663, 4
    %v2665 = vadd.f32 %v2663, %v2664
    %v2666 = vrot.slane %v2665, 2
    %v2667 = vadd.f32 %v2665, %v2666
    %v2668 = vrot.slane %v2667, 1
    %v2669 = vadd.f32 %v2667, %v2668
    %v2670 = vadd.f32 %v2619, %v2621
    %v2671 = vadd.f32 %v2670, %v2623
    %v2672 = vrot.slane %v2671, 4
    %v2673 = vadd.f32 %v2671, %v2672
    %v2674 = vrot.slane %v2673, 2
    %v2675 = vadd.f32 %v2673, %v2674
    %v2676 = vrot.slane %v2675, 1
    %v2677 = vadd.f32 %v2675, %v2676
    %v2678 = vadd.f32 %v2624, %v2626
    %v2679 = vadd.f32 %v2678, %v2628
    %v2680 = vrot.slane %v2679, 4
    %v2681 = vadd.f32 %v2679, %v2680
    %v2682 = vrot.slane %v2681, 2
    %v2683 = vadd.f32 %v2681, %v2682
    %v2684 = vrot.slane %v2683, 1
    %v2685 = vadd.f32 %v2683, %v2684
    %v2686 = vadd.f32 %v2625, %v2627
    %v2687 = vadd.f32 %v2686, %v2629
    %v2688 = vrot.slane %v2687, 4
    %v2689 = vadd.f32 %v2687, %v2688
    %v2690 = vrot.slane %v2689, 2
    %v2691 = vadd.f32 %v2689, %v2690
    %v2692 = vrot.slane %v2691, 1
    %v2693 = vadd.f32 %v2691, %v2692
    %v2702 = vsel %vm680, %v2653, %v2637
    %v2703 = vsel %vm682, %v2669, %v2702
    %v2704 = vsel %vm684, %v2685, %v2703
    %v2705 = vsel %vm680, %v2661, %v2645
    %v2706 = vsel %vm682, %v2677, %v2705
    %v2707 = vsel %vm684, %v2693, %v2706
    %2710 = vst [vmem:[#allocation2 + $0x60] sm:$0xf] %v2704
    %2711 = vst [vmem:[#allocation2 + $0x68] sm:$0xf] %v2707
    %v2712 = vperm.slane %v321, 7
    %v2713 = vperm.slane %v322, 7
    %vm2714 = vcmp.eq.f32.partialorder %v180, %v2712
    %vm2715 = vcmp.eq.f32.partialorder %v180, %v2713
    %vm2716 = vcmp.eq.f32.partialorder %v181, %v2712
    %vm2717 = vcmp.eq.f32.partialorder %v181, %v2713
    %vm2718 = vcmp.eq.f32.partialorder %v300, %v2712
    %vm2719 = vcmp.eq.f32.partialorder %v300, %v2713
    %v2720 = vperm.slane %v347, 7
    %v2721 = vperm.slane %v348, 7
    %v2722 = vsel %vm2714, %v2720, 0.0
    %v2723 = vsel %vm2715, %v2721, 0.0
    %v2724 = vsel %vm2716, %v2720, 0.0
    %v2725 = vsel %vm2717, %v2721, 0.0
    %v2726 = vsel %vm2718, %v2720, 0.0
    %v2727 = vsel %vm2719, %v2721, 0.0
    %v2728 = vperm.slane %v327, 7
    %v2729 = vperm.slane %v328, 7
    %vm2730 = vcmp.eq.f32.partialorder %v180, %v2728
    %vm2731 = vcmp.eq.f32.partialorder %v180, %v2729
    %vm2732 = vcmp.eq.f32.partialorder %v181, %v2728
    %vm2733 = vcmp.eq.f32.partialorder %v181, %v2729
    %vm2734 = vcmp.eq.f32.partialorder %v300, %v2728
    %vm2735 = vcmp.eq.f32.partialorder %v300, %v2729
    %v2736 = vperm.slane %v351, 7
    %v2737 = vperm.slane %v352, 7
    %v2738 = vsel %vm2730, %v2736, 0.0
    %v2739 = vsel %vm2731, %v2737, 0.0
    %v2740 = vsel %vm2732, %v2736, 0.0
    %v2741 = vsel %vm2733, %v2737, 0.0
    %v2742 = vsel %vm2734, %v2736, 0.0
    %v2743 = vsel %vm2735, %v2737, 0.0
    %v2744 = vadd.f32 %v2722, %v2738
    %v2745 = vadd.f32 %v2723, %v2739
    %v2746 = vadd.f32 %v2724, %v2740
    %v2747 = vadd.f32 %v2725, %v2741
    %v2748 = vadd.f32 %v2726, %v2742
    %v2749 = vadd.f32 %v2727, %v2743
    %v2750 = vperm.slane %v311, 7
    %v2751 = vperm.slane %v312, 7
    %vm2752 = vcmp.eq.f32.partialorder %v180, %v2750
    %vm2753 = vcmp.eq.f32.partialorder %v180, %v2751
    %vm2754 = vcmp.eq.f32.partialorder %v181, %v2750
    %vm2755 = vcmp.eq.f32.partialorder %v181, %v2751
    %vm2756 = vcmp.eq.f32.partialorder %v300, %v2750
    %vm2757 = vcmp.eq.f32.partialorder %v300, %v2751
    %v2758 = vperm.slane %v339, 7
    %v2759 = vperm.slane %v340, 7
    %v2760 = vsel %vm2752, %v2758, 0.0
    %v2761 = vsel %vm2753, %v2759, 0.0
    %v2762 = vsel %vm2754, %v2758, 0.0
    %v2763 = vsel %vm2755, %v2759, 0.0
    %v2764 = vsel %vm2756, %v2758, 0.0
    %v2765 = vsel %vm2757, %v2759, 0.0
    %v2766 = vperm.slane %v317, 7
    %v2767 = vperm.slane %v318, 7
    %vm2768 = vcmp.eq.f32.partialorder %v180, %v2766
    %vm2769 = vcmp.eq.f32.partialorder %v180, %v2767
    %vm2770 = vcmp.eq.f32.partialorder %v181, %v2766
    %vm2771 = vcmp.eq.f32.partialorder %v181, %v2767
    %vm2772 = vcmp.eq.f32.partialorder %v300, %v2766
    %vm2773 = vcmp.eq.f32.partialorder %v300, %v2767
    %v2774 = vperm.slane %v343, 7
    %v2775 = vperm.slane %v344, 7
    %v2776 = vsel %vm2768, %v2774, 0.0
    %v2777 = vsel %vm2769, %v2775, 0.0
    %v2778 = vsel %vm2770, %v2774, 0.0
    %v2779 = vsel %vm2771, %v2775, 0.0
    %v2780 = vsel %vm2772, %v2774, 0.0
    %v2781 = vsel %vm2773, %v2775, 0.0
    %v2782 = vadd.f32 %v2760, %v2776
    %v2783 = vadd.f32 %v2761, %v2777
    %v2784 = vadd.f32 %v2762, %v2778
    %v2785 = vadd.f32 %v2763, %v2779
    %v2786 = vadd.f32 %v2764, %v2780
    %v2787 = vadd.f32 %v2765, %v2781
    %v2788 = vld [vmem:[%s1] sm:$0xff]
    %v2789 = vld [vmem:[%s1 + $0x8] sm:$0xff]
    %v2790 = vld [vmem:[%s1 + $0x10] sm:$0xff]
    %v2791 = vld [vmem:[%s1 + $0x18] sm:$0xff]
    %v2792 = vld [vmem:[%s1 + $0x20] sm:$0xff]
    %v2793 = vld [vmem:[%s1 + $0x28] sm:$0xff]
    %v2794 = vld [vmem:[%s1 + $0x30] sm:$0xff]
    %v2795 = vld [vmem:[%s1 + $0x38] sm:$0xff]
    %v2796 = vld [vmem:[%s1 + $0x40] sm:$0xff]
    %v2797 = vld [vmem:[%s1 + $0x48] sm:$0xff]
    %v2798 = vld [vmem:[%s1 + $0x50] sm:$0xff]
    %v2799 = vld [vmem:[%s1 + $0x58] sm:$0xff]
    %v2801 = vsel %vm441, %v2788, 0
    %v2804 = vsel %vm441, %v2789, 0
    %v2807 = vsel %vm441, %v2790, 0
    %v2810 = vsel %vm441, %v2791, 0
    %v2813 = vsel %vm441, %v2792, 0
    %v2816 = vsel %vm441, %v2793, 0
    %v2819 = vsel %vm441, %v2794, 0
    %v2822 = vsel %vm441, %v2795, 0
    %v2825 = vsel %vm441, %v2796, 0
    %v2828 = vsel %vm441, %v2797, 0
    %v2831 = vsel %vm441, %v2798, 0
    %v2834 = vsel %vm441, %v2799, 0
    %2836 = vmatpush.msra.mxu0 0.0
    %2837 = vmatpush.msra.mxu0 0.0
    %2838 = vmatpush.msra.mxu0 0.0
    %2839 = vmatpush.msra.mxu0 0.0
    %2840 = vmatpush.msra.mxu0 0.0
    %2841 = vmatpush.msra.mxu0 0.0
    %2842 = vmatpush.msra.mxu0 0.0
    %2843 = vmatpush.msra.mxu0 0.0
    %2844 = vmatpush.msra.mxu0 0.0
    %2845 = vmatpush.msra.mxu0 0.0
    %2846 = vmatpush.msra.mxu0 0.0
    %2847 = vmatpush.msra.mxu0 0.0
    %2848 = vmatpush.msra.mxu0 0.0
    %2849 = vmatpush.msra.mxu0 %v2748
    %2850 = vmatpush.msra.mxu0 %v2746
    %2851 = vmatpush.msra.mxu0 %v2744
    %2852 = vmatmul.f32.gmra.mxu0 %v2801
    %v2853 = vpop.f32.mrf.mxu0
    %v2854 = vadd.f32 0.0, %v2853
    %2855 = vmatmul.f32.gmra.mxu0 %v2804
    %v2856 = vpop.f32.mrf.mxu0
    %v2857 = vadd.f32 0.0, %v2856
    %2858 = vmatmul.f32.gmra.mxu0 %v2807
    %v2859 = vpop.f32.mrf.mxu0
    %v2860 = vadd.f32 0.0, %v2859
    %2861 = vmatmul.f32.gmra.mxu0 %v2810
    %v2862 = vpop.f32.mrf.mxu0
    %v2863 = vadd.f32 0.0, %v2862
    %2864 = vmatmul.f32.gmra.mxu0 %v2813
    %v2865 = vpop.f32.mrf.mxu0
    %v2866 = vadd.f32 0.0, %v2865
    %2867 = vmatmul.f32.gmra.mxu0 %v2816
    %v2868 = vpop.f32.mrf.mxu0
    %v2869 = vadd.f32 0.0, %v2868
    %2870 = vmatmul.f32.gmra.mxu0 %v2819
    %v2871 = vpop.f32.mrf.mxu0
    %v2872 = vadd.f32 0.0, %v2871
    %2873 = vmatmul.f32.gmra.mxu0 %v2822
    %v2874 = vpop.f32.mrf.mxu0
    %v2875 = vadd.f32 0.0, %v2874
    %2876 = vmatmul.f32.gmra.mxu0 %v2825
    %v2877 = vpop.f32.mrf.mxu0
    %v2878 = vadd.f32 0.0, %v2877
    %2879 = vmatmul.f32.gmra.mxu0 %v2828
    %v2880 = vpop.f32.mrf.mxu0
    %v2881 = vadd.f32 0.0, %v2880
    %2882 = vmatmul.f32.gmra.mxu0 %v2831
    %v2883 = vpop.f32.mrf.mxu0
    %v2884 = vadd.f32 0.0, %v2883
    %2885 = vmatmul.f32.gmra.mxu0 %v2834
    %v2886 = vpop.f32.mrf.mxu0
    %v2887 = vadd.f32 0.0, %v2886
    %2888 = vdwg.mxu0
    %2889 = vmatpush.msra.mxu0 0.0
    %2890 = vmatpush.msra.mxu0 0.0
    %2891 = vmatpush.msra.mxu0 0.0
    %2892 = vmatpush.msra.mxu0 0.0
    %2893 = vmatpush.msra.mxu0 0.0
    %2894 = vmatpush.msra.mxu0 0.0
    %2895 = vmatpush.msra.mxu0 0.0
    %2896 = vmatpush.msra.mxu0 0.0
    %2897 = vmatpush.msra.mxu0 0.0
    %2898 = vmatpush.msra.mxu0 0.0
    %2899 = vmatpush.msra.mxu0 0.0
    %2900 = vmatpush.msra.mxu0 0.0
    %2901 = vmatpush.msra.mxu0 0.0
    %2902 = vmatpush.msra.mxu0 %v2749
    %2903 = vmatpush.msra.mxu0 %v2747
    %2904 = vmatpush.msra.mxu0 %v2745
    %2905 = vmatmul.f32.gmra.mxu0 %v2801
    %v2906 = vpop.f32.mrf.mxu0
    %v2907 = vadd.f32 0.0, %v2906
    %2908 = vmatmul.f32.gmra.mxu0 %v2804
    %v2909 = vpop.f32.mrf.mxu0
    %v2910 = vadd.f32 0.0, %v2909
    %2911 = vmatmul.f32.gmra.mxu0 %v2807
    %v2912 = vpop.f32.mrf.mxu0
    %v2913 = vadd.f32 0.0, %v2912
    %2914 = vmatmul.f32.gmra.mxu0 %v2810
    %v2915 = vpop.f32.mrf.mxu0
    %v2916 = vadd.f32 0.0, %v2915
    %2917 = vmatmul.f32.gmra.mxu0 %v2813
    %v2918 = vpop.f32.mrf.mxu0
    %v2919 = vadd.f32 0.0, %v2918
    %2920 = vmatmul.f32.gmra.mxu0 %v2816
    %v2921 = vpop.f32.mrf.mxu0
    %v2922 = vadd.f32 0.0, %v2921
    %2923 = vmatmul.f32.gmra.mxu0 %v2819
    %v2924 = vpop.f32.mrf.mxu0
    %v2925 = vadd.f32 0.0, %v2924
    %2926 = vmatmul.f32.gmra.mxu0 %v2822
    %v2927 = vpop.f32.mrf.mxu0
    %v2928 = vadd.f32 0.0, %v2927
    %2929 = vmatmul.f32.gmra.mxu0 %v2825
    %v2930 = vpop.f32.mrf.mxu0
    %v2931 = vadd.f32 0.0, %v2930
    %2932 = vmatmul.f32.gmra.mxu0 %v2828
    %v2933 = vpop.f32.mrf.mxu0
    %v2934 = vadd.f32 0.0, %v2933
    %2935 = vmatmul.f32.gmra.mxu0 %v2831
    %v2936 = vpop.f32.mrf.mxu0
    %v2937 = vadd.f32 0.0, %v2936
    %2938 = vmatmul.f32.gmra.mxu0 %v2834
    %v2939 = vpop.f32.mrf.mxu0
    %v2940 = vadd.f32 0.0, %v2939
    %2941 = vdwg.mxu0
    %v2942 = vmul.f32 %v2854, %v2782
    %v2943 = vmul.f32 %v2907, %v2783
    %v2944 = vmul.f32 %v2857, %v2784
    %v2945 = vmul.f32 %v2910, %v2785
    %v2946 = vmul.f32 %v2860, %v2786
    %v2947 = vmul.f32 %v2913, %v2787
    %v2948 = vmul.f32 %v2863, %v2782
    %v2949 = vmul.f32 %v2916, %v2783
    %v2950 = vmul.f32 %v2866, %v2784
    %v2951 = vmul.f32 %v2919, %v2785
    %v2952 = vmul.f32 %v2869, %v2786
    %v2953 = vmul.f32 %v2922, %v2787
    %v2954 = vmul.f32 %v2872, %v2782
    %v2955 = vmul.f32 %v2925, %v2783
    %v2956 = vmul.f32 %v2875, %v2784
    %v2957 = vmul.f32 %v2928, %v2785
    %v2958 = vmul.f32 %v2878, %v2786
    %v2959 = vmul.f32 %v2931, %v2787
    %v2960 = vmul.f32 %v2881, %v2782
    %v2961 = vmul.f32 %v2934, %v2783
    %v2962 = vmul.f32 %v2884, %v2784
    %v2963 = vmul.f32 %v2937, %v2785
    %v2964 = vmul.f32 %v2887, %v2786
    %v2965 = vmul.f32 %v2940, %v2787
    %v2966 = vadd.f32 %v2942, %v2944
    %v2967 = vadd.f32 %v2966, %v2946
    %v2968 = vrot.slane %v2967, 4
    %v2969 = vadd.f32 %v2967, %v2968
    %v2970 = vrot.slane %v2969, 2
    %v2971 = vadd.f32 %v2969, %v2970
    %v2972 = vrot.slane %v2971, 1
    %v2973 = vadd.f32 %v2971, %v2972
    %v2974 = vadd.f32 %v2943, %v2945
    %v2975 = vadd.f32 %v2974, %v2947
    %v2976 = vrot.slane %v2975, 4
    %v2977 = vadd.f32 %v2975, %v2976
    %v2978 = vrot.slane %v2977, 2
    %v2979 = vadd.f32 %v2977, %v2978
    %v2980 = vrot.slane %v2979, 1
    %v2981 = vadd.f32 %v2979, %v2980
    %v2982 = vadd.f32 %v2948, %v2950
    %v2983 = vadd.f32 %v2982, %v2952
    %v2984 = vrot.slane %v2983, 4
    %v2985 = vadd.f32 %v2983, %v2984
    %v2986 = vrot.slane %v2985, 2
    %v2987 = vadd.f32 %v2985, %v2986
    %v2988 = vrot.slane %v2987, 1
    %v2989 = vadd.f32 %v2987, %v2988
    %v2990 = vadd.f32 %v2949, %v2951
    %v2991 = vadd.f32 %v2990, %v2953
    %v2992 = vrot.slane %v2991, 4
    %v2993 = vadd.f32 %v2991, %v2992
    %v2994 = vrot.slane %v2993, 2
    %v2995 = vadd.f32 %v2993, %v2994
    %v2996 = vrot.slane %v2995, 1
    %v2997 = vadd.f32 %v2995, %v2996
    %v2998 = vadd.f32 %v2954, %v2956
    %v2999 = vadd.f32 %v2998, %v2958
    %v3000 = vrot.slane %v2999, 4
    %v3001 = vadd.f32 %v2999, %v3000
    %v3002 = vrot.slane %v3001, 2
    %v3003 = vadd.f32 %v3001, %v3002
    %v3004 = vrot.slane %v3003, 1
    %v3005 = vadd.f32 %v3003, %v3004
    %v3006 = vadd.f32 %v2955, %v2957
    %v3007 = vadd.f32 %v3006, %v2959
    %v3008 = vrot.slane %v3007, 4
    %v3009 = vadd.f32 %v3007, %v3008
    %v3010 = vrot.slane %v3009, 2
    %v3011 = vadd.f32 %v3009, %v3010
    %v3012 = vrot.slane %v3011, 1
    %v3013 = vadd.f32 %v3011, %v3012
    %v3014 = vadd.f32 %v2960, %v2962
    %v3015 = vadd.f32 %v3014, %v2964
    %v3016 = vrot.slane %v3015, 4
    %v3017 = vadd.f32 %v3015, %v3016
    %v3018 = vrot.slane %v3017, 2
    %v3019 = vadd.f32 %v3017, %v3018
    %v3020 = vrot.slane %v3019, 1
    %v3021 = vadd.f32 %v3019, %v3020
    %v3022 = vadd.f32 %v2961, %v2963
    %v3023 = vadd.f32 %v3022, %v2965
    %v3024 = vrot.slane %v3023, 4
    %v3025 = vadd.f32 %v3023, %v3024
    %v3026 = vrot.slane %v3025, 2
    %v3027 = vadd.f32 %v3025, %v3026
    %v3028 = vrot.slane %v3027, 1
    %v3029 = vadd.f32 %v3027, %v3028
    %v3038 = vsel %vm1019, %v2989, %v2973
    %v3039 = vsel %vm1021, %v3005, %v3038
    %v3040 = vsel %vm1023, %v3021, %v3039
    %v3041 = vsel %vm1019, %v2997, %v2981
    %v3042 = vsel %vm1021, %v3013, %v3041
    %v3043 = vsel %vm1023, %v3029, %v3042
    %3046 = vst [vmem:[#allocation2 + $0x60] sm:$0xf0] %v3040
    %3047 = vst [vmem:[#allocation2 + $0x68] sm:$0xf0] %v3043
    %v3048 = vfloor.f32 %v246
    %v3049 = vfloor.f32 %v247
    %v3050 = vfloor.f32 %v295
    %v3051 = vfloor.f32 %v296
    %v3052 = vmax.f32 %v3048, 0.0
    %v3053 = vmax.f32 %v3049, 0.0
    %v3054 = vmin.f32 %v3052, 17.0
    %v3055 = vmin.f32 %v3053, 17.0
    %v3056 = vadd.f32 %v3048, 1.0
    %v3057 = vadd.f32 %v3049, 1.0
    %v3058 = vmax.f32 %v3056, 0.0
    %v3059 = vmax.f32 %v3057, 0.0
    %v3060 = vmin.f32 %v3058, 17.0
    %v3061 = vmin.f32 %v3059, 17.0
    %v3062 = vmax.f32 %v3050, 0.0
    %v3063 = vmax.f32 %v3051, 0.0
    %v3064 = vmin.f32 %v3062, 17.0
    %v3065 = vmin.f32 %v3063, 17.0
    %v3066 = vadd.f32 %v3050, 1.0
    %v3067 = vadd.f32 %v3051, 1.0
    %v3068 = vmax.f32 %v3066, 0.0
    %v3069 = vmax.f32 %v3067, 0.0
    %v3070 = vmin.f32 %v3068, 17.0
    %v3071 = vmin.f32 %v3069, 17.0
    %v3072 = vmax.f32 %v246, 0.0
    %v3073 = vmax.f32 %v247, 0.0
    %v3074 = vmin.f32 %v3072, 17.0
    %v3075 = vmin.f32 %v3073, 17.0
    %v3076 = vmax.f32 %v295, 0.0
    %v3077 = vmax.f32 %v296, 0.0
    %v3078 = vmin.f32 %v3076, 17.0
    %v3079 = vmin.f32 %v3077, 17.0
    %v3080 = vadd.f32 %v3054, 1.0
    %v3081 = vadd.f32 %v3055, 1.0
    %v3082 = vsub.f32 %v3080, %v3074
    %v3083 = vsub.f32 %v3081, %v3075
    %v3084 = vsub.f32 1.0, %v3060
    %v3085 = vsub.f32 1.0, %v3061
    %v3086 = vadd.f32 %v3084, %v3074
    %v3087 = vadd.f32 %v3085, %v3075
    %v3088 = vadd.f32 %v3064, 1.0
    %v3089 = vadd.f32 %v3065, 1.0
    %v3090 = vsub.f32 %v3088, %v3078
    %v3091 = vsub.f32 %v3089, %v3079
    %v3092 = vsub.f32 1.0, %v3070
    %v3093 = vsub.f32 1.0, %v3071
    %v3094 = vadd.f32 %v3092, %v3078
    %v3095 = vadd.f32 %v3093, %v3079
    %v3096 = vperm.slane %v3064, 0
    %v3097 = vperm.slane %v3065, 0
    %vm3098 = vcmp.eq.f32.partialorder %v180, %v3096
    %vm3099 = vcmp.eq.f32.partialorder %v180, %v3097
    %vm3100 = vcmp.eq.f32.partialorder %v181, %v3096
    %vm3101 = vcmp.eq.f32.partialorder %v181, %v3097
    %vm3102 = vcmp.eq.f32.partialorder %v300, %v3096
    %vm3103 = vcmp.eq.f32.partialorder %v300, %v3097
    %v3104 = vperm.slane %v3090, 0
    %v3105 = vperm.slane %v3091, 0
    %v3106 = vsel %vm3098, %v3104, 0.0
    %v3107 = vsel %vm3099, %v3105, 0.0
    %v3108 = vsel %vm3100, %v3104, 0.0
    %v3109 = vsel %vm3101, %v3105, 0.0
    %v3110 = vsel %vm3102, %v3104, 0.0
    %v3111 = vsel %vm3103, %v3105, 0.0
    %v3112 = vperm.slane %v3070, 0
    %v3113 = vperm.slane %v3071, 0
    %vm3114 = vcmp.eq.f32.partialorder %v180, %v3112
    %vm3115 = vcmp.eq.f32.partialorder %v180, %v3113
    %vm3116 = vcmp.eq.f32.partialorder %v181, %v3112
    %vm3117 = vcmp.eq.f32.partialorder %v181, %v3113
    %vm3118 = vcmp.eq.f32.partialorder %v300, %v3112
    %vm3119 = vcmp.eq.f32.partialorder %v300, %v3113
    %v3120 = vperm.slane %v3094, 0
    %v3121 = vperm.slane %v3095, 0
    %v3122 = vsel %vm3114, %v3120, 0.0
    %v3123 = vsel %vm3115, %v3121, 0.0
    %v3124 = vsel %vm3116, %v3120, 0.0
    %v3125 = vsel %vm3117, %v3121, 0.0
    %v3126 = vsel %vm3118, %v3120, 0.0
    %v3127 = vsel %vm3119, %v3121, 0.0
    %v3128 = vadd.f32 %v3106, %v3122
    %v3129 = vadd.f32 %v3107, %v3123
    %v3130 = vadd.f32 %v3108, %v3124
    %v3131 = vadd.f32 %v3109, %v3125
    %v3132 = vadd.f32 %v3110, %v3126
    %v3133 = vadd.f32 %v3111, %v3127
    %v3134 = vperm.slane %v3054, 0
    %v3135 = vperm.slane %v3055, 0
    %vm3136 = vcmp.eq.f32.partialorder %v180, %v3134
    %vm3137 = vcmp.eq.f32.partialorder %v180, %v3135
    %vm3138 = vcmp.eq.f32.partialorder %v181, %v3134
    %vm3139 = vcmp.eq.f32.partialorder %v181, %v3135
    %vm3140 = vcmp.eq.f32.partialorder %v300, %v3134
    %vm3141 = vcmp.eq.f32.partialorder %v300, %v3135
    %v3142 = vperm.slane %v3082, 0
    %v3143 = vperm.slane %v3083, 0
    %v3144 = vsel %vm3136, %v3142, 0.0
    %v3145 = vsel %vm3137, %v3143, 0.0
    %v3146 = vsel %vm3138, %v3142, 0.0
    %v3147 = vsel %vm3139, %v3143, 0.0
    %v3148 = vsel %vm3140, %v3142, 0.0
    %v3149 = vsel %vm3141, %v3143, 0.0
    %v3150 = vperm.slane %v3060, 0
    %v3151 = vperm.slane %v3061, 0
    %vm3152 = vcmp.eq.f32.partialorder %v180, %v3150
    %vm3153 = vcmp.eq.f32.partialorder %v180, %v3151
    %vm3154 = vcmp.eq.f32.partialorder %v181, %v3150
    %vm3155 = vcmp.eq.f32.partialorder %v181, %v3151
    %vm3156 = vcmp.eq.f32.partialorder %v300, %v3150
    %vm3157 = vcmp.eq.f32.partialorder %v300, %v3151
    %v3158 = vperm.slane %v3086, 0
    %v3159 = vperm.slane %v3087, 0
    %v3160 = vsel %vm3152, %v3158, 0.0
    %v3161 = vsel %vm3153, %v3159, 0.0
    %v3162 = vsel %vm3154, %v3158, 0.0
    %v3163 = vsel %vm3155, %v3159, 0.0
    %v3164 = vsel %vm3156, %v3158, 0.0
    %v3165 = vsel %vm3157, %v3159, 0.0
    %v3166 = vadd.f32 %v3144, %v3160
    %v3167 = vadd.f32 %v3145, %v3161
    %v3168 = vadd.f32 %v3146, %v3162
    %v3169 = vadd.f32 %v3147, %v3163
    %v3170 = vadd.f32 %v3148, %v3164
    %v3171 = vadd.f32 %v3149, %v3165
    %v3172 = vld [vmem:[%s1] sm:$0xff]
    %v3173 = vld [vmem:[%s1 + $0x8] sm:$0xff]
    %v3174 = vld [vmem:[%s1 + $0x10] sm:$0xff]
    %v3175 = vld [vmem:[%s1 + $0x18] sm:$0xff]
    %v3176 = vld [vmem:[%s1 + $0x20] sm:$0xff]
    %v3177 = vld [vmem:[%s1 + $0x28] sm:$0xff]
    %v3178 = vld [vmem:[%s1 + $0x30] sm:$0xff]
    %v3179 = vld [vmem:[%s1 + $0x38] sm:$0xff]
    %v3180 = vld [vmem:[%s1 + $0x40] sm:$0xff]
    %v3181 = vld [vmem:[%s1 + $0x48] sm:$0xff]
    %v3182 = vld [vmem:[%s1 + $0x50] sm:$0xff]
    %v3183 = vld [vmem:[%s1 + $0x58] sm:$0xff]
    %v3185 = vsel %vm441, %v3172, 0
    %v3188 = vsel %vm441, %v3173, 0
    %v3191 = vsel %vm441, %v3174, 0
    %v3194 = vsel %vm441, %v3175, 0
    %v3197 = vsel %vm441, %v3176, 0
    %v3200 = vsel %vm441, %v3177, 0
    %v3203 = vsel %vm441, %v3178, 0
    %v3206 = vsel %vm441, %v3179, 0
    %v3209 = vsel %vm441, %v3180, 0
    %v3212 = vsel %vm441, %v3181, 0
    %v3215 = vsel %vm441, %v3182, 0
    %v3218 = vsel %vm441, %v3183, 0
    %3220 = vmatpush.msra.mxu0 0.0
    %3221 = vmatpush.msra.mxu0 0.0
    %3222 = vmatpush.msra.mxu0 0.0
    %3223 = vmatpush.msra.mxu0 0.0
    %3224 = vmatpush.msra.mxu0 0.0
    %3225 = vmatpush.msra.mxu0 0.0
    %3226 = vmatpush.msra.mxu0 0.0
    %3227 = vmatpush.msra.mxu0 0.0
    %3228 = vmatpush.msra.mxu0 0.0
    %3229 = vmatpush.msra.mxu0 0.0
    %3230 = vmatpush.msra.mxu0 0.0
    %3231 = vmatpush.msra.mxu0 0.0
    %3232 = vmatpush.msra.mxu0 0.0
    %3233 = vmatpush.msra.mxu0 %v3132
    %3234 = vmatpush.msra.mxu0 %v3130
    %3235 = vmatpush.msra.mxu0 %v3128
    %3236 = vmatmul.f32.gmra.mxu0 %v3185
    %v3237 = vpop.f32.mrf.mxu0
    %v3238 = vadd.f32 0.0, %v3237
    %3239 = vmatmul.f32.gmra.mxu0 %v3188
    %v3240 = vpop.f32.mrf.mxu0
    %v3241 = vadd.f32 0.0, %v3240
    %3242 = vmatmul.f32.gmra.mxu0 %v3191
    %v3243 = vpop.f32.mrf.mxu0
    %v3244 = vadd.f32 0.0, %v3243
    %3245 = vmatmul.f32.gmra.mxu0 %v3194
    %v3246 = vpop.f32.mrf.mxu0
    %v3247 = vadd.f32 0.0, %v3246
    %3248 = vmatmul.f32.gmra.mxu0 %v3197
    %v3249 = vpop.f32.mrf.mxu0
    %v3250 = vadd.f32 0.0, %v3249
    %3251 = vmatmul.f32.gmra.mxu0 %v3200
    %v3252 = vpop.f32.mrf.mxu0
    %v3253 = vadd.f32 0.0, %v3252
    %3254 = vmatmul.f32.gmra.mxu0 %v3203
    %v3255 = vpop.f32.mrf.mxu0
    %v3256 = vadd.f32 0.0, %v3255
    %3257 = vmatmul.f32.gmra.mxu0 %v3206
    %v3258 = vpop.f32.mrf.mxu0
    %v3259 = vadd.f32 0.0, %v3258
    %3260 = vmatmul.f32.gmra.mxu0 %v3209
    %v3261 = vpop.f32.mrf.mxu0
    %v3262 = vadd.f32 0.0, %v3261
    %3263 = vmatmul.f32.gmra.mxu0 %v3212
    %v3264 = vpop.f32.mrf.mxu0
    %v3265 = vadd.f32 0.0, %v3264
    %3266 = vmatmul.f32.gmra.mxu0 %v3215
    %v3267 = vpop.f32.mrf.mxu0
    %v3268 = vadd.f32 0.0, %v3267
    %3269 = vmatmul.f32.gmra.mxu0 %v3218
    %v3270 = vpop.f32.mrf.mxu0
    %v3271 = vadd.f32 0.0, %v3270
    %3272 = vdwg.mxu0
    %3273 = vmatpush.msra.mxu0 0.0
    %3274 = vmatpush.msra.mxu0 0.0
    %3275 = vmatpush.msra.mxu0 0.0
    %3276 = vmatpush.msra.mxu0 0.0
    %3277 = vmatpush.msra.mxu0 0.0
    %3278 = vmatpush.msra.mxu0 0.0
    %3279 = vmatpush.msra.mxu0 0.0
    %3280 = vmatpush.msra.mxu0 0.0
    %3281 = vmatpush.msra.mxu0 0.0
    %3282 = vmatpush.msra.mxu0 0.0
    %3283 = vmatpush.msra.mxu0 0.0
    %3284 = vmatpush.msra.mxu0 0.0
    %3285 = vmatpush.msra.mxu0 0.0
    %3286 = vmatpush.msra.mxu0 %v3133
    %3287 = vmatpush.msra.mxu0 %v3131
    %3288 = vmatpush.msra.mxu0 %v3129
    %3289 = vmatmul.f32.gmra.mxu0 %v3185
    %v3290 = vpop.f32.mrf.mxu0
    %v3291 = vadd.f32 0.0, %v3290
    %3292 = vmatmul.f32.gmra.mxu0 %v3188
    %v3293 = vpop.f32.mrf.mxu0
    %v3294 = vadd.f32 0.0, %v3293
    %3295 = vmatmul.f32.gmra.mxu0 %v3191
    %v3296 = vpop.f32.mrf.mxu0
    %v3297 = vadd.f32 0.0, %v3296
    %3298 = vmatmul.f32.gmra.mxu0 %v3194
    %v3299 = vpop.f32.mrf.mxu0
    %v3300 = vadd.f32 0.0, %v3299
    %3301 = vmatmul.f32.gmra.mxu0 %v3197
    %v3302 = vpop.f32.mrf.mxu0
    %v3303 = vadd.f32 0.0, %v3302
    %3304 = vmatmul.f32.gmra.mxu0 %v3200
    %v3305 = vpop.f32.mrf.mxu0
    %v3306 = vadd.f32 0.0, %v3305
    %3307 = vmatmul.f32.gmra.mxu0 %v3203
    %v3308 = vpop.f32.mrf.mxu0
    %v3309 = vadd.f32 0.0, %v3308
    %3310 = vmatmul.f32.gmra.mxu0 %v3206
    %v3311 = vpop.f32.mrf.mxu0
    %v3312 = vadd.f32 0.0, %v3311
    %3313 = vmatmul.f32.gmra.mxu0 %v3209
    %v3314 = vpop.f32.mrf.mxu0
    %v3315 = vadd.f32 0.0, %v3314
    %3316 = vmatmul.f32.gmra.mxu0 %v3212
    %v3317 = vpop.f32.mrf.mxu0
    %v3318 = vadd.f32 0.0, %v3317
    %3319 = vmatmul.f32.gmra.mxu0 %v3215
    %v3320 = vpop.f32.mrf.mxu0
    %v3321 = vadd.f32 0.0, %v3320
    %3322 = vmatmul.f32.gmra.mxu0 %v3218
    %v3323 = vpop.f32.mrf.mxu0
    %v3324 = vadd.f32 0.0, %v3323
    %3325 = vdwg.mxu0
    %v3326 = vmul.f32 %v3238, %v3166
    %v3327 = vmul.f32 %v3291, %v3167
    %v3328 = vmul.f32 %v3241, %v3168
    %v3329 = vmul.f32 %v3294, %v3169
    %v3330 = vmul.f32 %v3244, %v3170
    %v3331 = vmul.f32 %v3297, %v3171
    %v3332 = vmul.f32 %v3247, %v3166
    %v3333 = vmul.f32 %v3300, %v3167
    %v3334 = vmul.f32 %v3250, %v3168
    %v3335 = vmul.f32 %v3303, %v3169
    %v3336 = vmul.f32 %v3253, %v3170
    %v3337 = vmul.f32 %v3306, %v3171
    %v3338 = vmul.f32 %v3256, %v3166
    %v3339 = vmul.f32 %v3309, %v3167
    %v3340 = vmul.f32 %v3259, %v3168
    %v3341 = vmul.f32 %v3312, %v3169
    %v3342 = vmul.f32 %v3262, %v3170
    %v3343 = vmul.f32 %v3315, %v3171
    %v3344 = vmul.f32 %v3265, %v3166
    %v3345 = vmul.f32 %v3318, %v3167
    %v3346 = vmul.f32 %v3268, %v3168
    %v3347 = vmul.f32 %v3321, %v3169
    %v3348 = vmul.f32 %v3271, %v3170
    %v3349 = vmul.f32 %v3324, %v3171
    %v3350 = vadd.f32 %v3326, %v3328
    %v3351 = vadd.f32 %v3350, %v3330
    %v3352 = vrot.slane %v3351, 4
    %v3353 = vadd.f32 %v3351, %v3352
    %v3354 = vrot.slane %v3353, 2
    %v3355 = vadd.f32 %v3353, %v3354
    %v3356 = vrot.slane %v3355, 1
    %v3357 = vadd.f32 %v3355, %v3356
    %v3358 = vadd.f32 %v3327, %v3329
    %v3359 = vadd.f32 %v3358, %v3331
    %v3360 = vrot.slane %v3359, 4
    %v3361 = vadd.f32 %v3359, %v3360
    %v3362 = vrot.slane %v3361, 2
    %v3363 = vadd.f32 %v3361, %v3362
    %v3364 = vrot.slane %v3363, 1
    %v3365 = vadd.f32 %v3363, %v3364
    %v3366 = vadd.f32 %v3332, %v3334
    %v3367 = vadd.f32 %v3366, %v3336
    %v3368 = vrot.slane %v3367, 4
    %v3369 = vadd.f32 %v3367, %v3368
    %v3370 = vrot.slane %v3369, 2
    %v3371 = vadd.f32 %v3369, %v3370
    %v3372 = vrot.slane %v3371, 1
    %v3373 = vadd.f32 %v3371, %v3372
    %v3374 = vadd.f32 %v3333, %v3335
    %v3375 = vadd.f32 %v3374, %v3337
    %v3376 = vrot.slane %v3375, 4
    %v3377 = vadd.f32 %v3375, %v3376
    %v3378 = vrot.slane %v3377, 2
    %v3379 = vadd.f32 %v3377, %v3378
    %v3380 = vrot.slane %v3379, 1
    %v3381 = vadd.f32 %v3379, %v3380
    %v3382 = vadd.f32 %v3338, %v3340
    %v3383 = vadd.f32 %v3382, %v3342
    %v3384 = vrot.slane %v3383, 4
    %v3385 = vadd.f32 %v3383, %v3384
    %v3386 = vrot.slane %v3385, 2
    %v3387 = vadd.f32 %v3385, %v3386
    %v3388 = vrot.slane %v3387, 1
    %v3389 = vadd.f32 %v3387, %v3388
    %v3390 = vadd.f32 %v3339, %v3341
    %v3391 = vadd.f32 %v3390, %v3343
    %v3392 = vrot.slane %v3391, 4
    %v3393 = vadd.f32 %v3391, %v3392
    %v3394 = vrot.slane %v3393, 2
    %v3395 = vadd.f32 %v3393, %v3394
    %v3396 = vrot.slane %v3395, 1
    %v3397 = vadd.f32 %v3395, %v3396
    %v3398 = vadd.f32 %v3344, %v3346
    %v3399 = vadd.f32 %v3398, %v3348
    %v3400 = vrot.slane %v3399, 4
    %v3401 = vadd.f32 %v3399, %v3400
    %v3402 = vrot.slane %v3401, 2
    %v3403 = vadd.f32 %v3401, %v3402
    %v3404 = vrot.slane %v3403, 1
    %v3405 = vadd.f32 %v3403, %v3404
    %v3406 = vadd.f32 %v3345, %v3347
    %v3407 = vadd.f32 %v3406, %v3349
    %v3408 = vrot.slane %v3407, 4
    %v3409 = vadd.f32 %v3407, %v3408
    %v3410 = vrot.slane %v3409, 2
    %v3411 = vadd.f32 %v3409, %v3410
    %v3412 = vrot.slane %v3411, 1
    %v3413 = vadd.f32 %v3411, %v3412
    %v3422 = vsel %vm680, %v3373, %v3357
    %v3423 = vsel %vm682, %v3389, %v3422
    %v3424 = vsel %vm684, %v3405, %v3423
    %v3425 = vsel %vm680, %v3381, %v3365
    %v3426 = vsel %vm682, %v3397, %v3425
    %v3427 = vsel %vm684, %v3413, %v3426
    %3430 = vst [vmem:[#allocation2 + $0x80] sm:$0xf] %v3424
    %3431 = vst [vmem:[#allocation2 + $0x88] sm:$0xf] %v3427
    %v3432 = vfloor.f32 %v244
    %v3433 = vfloor.f32 %v245
    %v3434 = vfloor.f32 %v293
    %v3435 = vfloor.f32 %v294
    %v3436 = vmax.f32 %v3432, 0.0
    %v3437 = vmax.f32 %v3433, 0.0
    %v3438 = vmin.f32 %v3436, 17.0
    %v3439 = vmin.f32 %v3437, 17.0
    %v3440 = vadd.f32 %v3432, 1.0
    %v3441 = vadd.f32 %v3433, 1.0
    %v3442 = vmax.f32 %v3440, 0.0
    %v3443 = vmax.f32 %v3441, 0.0
    %v3444 = vmin.f32 %v3442, 17.0
    %v3445 = vmin.f32 %v3443, 17.0
    %v3446 = vmax.f32 %v3434, 0.0
    %v3447 = vmax.f32 %v3435, 0.0
    %v3448 = vmin.f32 %v3446, 17.0
    %v3449 = vmin.f32 %v3447, 17.0
    %v3450 = vadd.f32 %v3434, 1.0
    %v3451 = vadd.f32 %v3435, 1.0
    %v3452 = vmax.f32 %v3450, 0.0
    %v3453 = vmax.f32 %v3451, 0.0
    %v3454 = vmin.f32 %v3452, 17.0
    %v3455 = vmin.f32 %v3453, 17.0
    %v3456 = vmax.f32 %v244, 0.0
    %v3457 = vmax.f32 %v245, 0.0
    %v3458 = vmin.f32 %v3456, 17.0
    %v3459 = vmin.f32 %v3457, 17.0
    %v3460 = vmax.f32 %v293, 0.0
    %v3461 = vmax.f32 %v294, 0.0
    %v3462 = vmin.f32 %v3460, 17.0
    %v3463 = vmin.f32 %v3461, 17.0
    %v3464 = vadd.f32 %v3438, 1.0
    %v3465 = vadd.f32 %v3439, 1.0
    %v3466 = vsub.f32 %v3464, %v3458
    %v3467 = vsub.f32 %v3465, %v3459
    %v3468 = vsub.f32 1.0, %v3444
    %v3469 = vsub.f32 1.0, %v3445
    %v3470 = vadd.f32 %v3468, %v3458
    %v3471 = vadd.f32 %v3469, %v3459
    %v3472 = vadd.f32 %v3448, 1.0
    %v3473 = vadd.f32 %v3449, 1.0
    %v3474 = vsub.f32 %v3472, %v3462
    %v3475 = vsub.f32 %v3473, %v3463
    %v3476 = vsub.f32 1.0, %v3454
    %v3477 = vsub.f32 1.0, %v3455
    %v3478 = vadd.f32 %v3476, %v3462
    %v3479 = vadd.f32 %v3477, %v3463
    %v3480 = vperm.slane %v3448, 0
    %v3481 = vperm.slane %v3449, 0
    %vm3482 = vcmp.eq.f32.partialorder %v180, %v3480
    %vm3483 = vcmp.eq.f32.partialorder %v180, %v3481
    %vm3484 = vcmp.eq.f32.partialorder %v181, %v3480
    %vm3485 = vcmp.eq.f32.partialorder %v181, %v3481
    %vm3486 = vcmp.eq.f32.partialorder %v300, %v3480
    %vm3487 = vcmp.eq.f32.partialorder %v300, %v3481
    %v3488 = vperm.slane %v3474, 0
    %v3489 = vperm.slane %v3475, 0
    %v3490 = vsel %vm3482, %v3488, 0.0
    %v3491 = vsel %vm3483, %v3489, 0.0
    %v3492 = vsel %vm3484, %v3488, 0.0
    %v3493 = vsel %vm3485, %v3489, 0.0
    %v3494 = vsel %vm3486, %v3488, 0.0
    %v3495 = vsel %vm3487, %v3489, 0.0
    %v3496 = vperm.slane %v3454, 0
    %v3497 = vperm.slane %v3455, 0
    %vm3498 = vcmp.eq.f32.partialorder %v180, %v3496
    %vm3499 = vcmp.eq.f32.partialorder %v180, %v3497
    %vm3500 = vcmp.eq.f32.partialorder %v181, %v3496
    %vm3501 = vcmp.eq.f32.partialorder %v181, %v3497
    %vm3502 = vcmp.eq.f32.partialorder %v300, %v3496
    %vm3503 = vcmp.eq.f32.partialorder %v300, %v3497
    %v3504 = vperm.slane %v3478, 0
    %v3505 = vperm.slane %v3479, 0
    %v3506 = vsel %vm3498, %v3504, 0.0
    %v3507 = vsel %vm3499, %v3505, 0.0
    %v3508 = vsel %vm3500, %v3504, 0.0
    %v3509 = vsel %vm3501, %v3505, 0.0
    %v3510 = vsel %vm3502, %v3504, 0.0
    %v3511 = vsel %vm3503, %v3505, 0.0
    %v3512 = vadd.f32 %v3490, %v3506
    %v3513 = vadd.f32 %v3491, %v3507
    %v3514 = vadd.f32 %v3492, %v3508
    %v3515 = vadd.f32 %v3493, %v3509
    %v3516 = vadd.f32 %v3494, %v3510
    %v3517 = vadd.f32 %v3495, %v3511
    %v3518 = vperm.slane %v3438, 0
    %v3519 = vperm.slane %v3439, 0
    %vm3520 = vcmp.eq.f32.partialorder %v180, %v3518
    %vm3521 = vcmp.eq.f32.partialorder %v180, %v3519
    %vm3522 = vcmp.eq.f32.partialorder %v181, %v3518
    %vm3523 = vcmp.eq.f32.partialorder %v181, %v3519
    %vm3524 = vcmp.eq.f32.partialorder %v300, %v3518
    %vm3525 = vcmp.eq.f32.partialorder %v300, %v3519
    %v3526 = vperm.slane %v3466, 0
    %v3527 = vperm.slane %v3467, 0
    %v3528 = vsel %vm3520, %v3526, 0.0
    %v3529 = vsel %vm3521, %v3527, 0.0
    %v3530 = vsel %vm3522, %v3526, 0.0
    %v3531 = vsel %vm3523, %v3527, 0.0
    %v3532 = vsel %vm3524, %v3526, 0.0
    %v3533 = vsel %vm3525, %v3527, 0.0
    %v3534 = vperm.slane %v3444, 0
    %v3535 = vperm.slane %v3445, 0
    %vm3536 = vcmp.eq.f32.partialorder %v180, %v3534
    %vm3537 = vcmp.eq.f32.partialorder %v180, %v3535
    %vm3538 = vcmp.eq.f32.partialorder %v181, %v3534
    %vm3539 = vcmp.eq.f32.partialorder %v181, %v3535
    %vm3540 = vcmp.eq.f32.partialorder %v300, %v3534
    %vm3541 = vcmp.eq.f32.partialorder %v300, %v3535
    %v3542 = vperm.slane %v3470, 0
    %v3543 = vperm.slane %v3471, 0
    %v3544 = vsel %vm3536, %v3542, 0.0
    %v3545 = vsel %vm3537, %v3543, 0.0
    %v3546 = vsel %vm3538, %v3542, 0.0
    %v3547 = vsel %vm3539, %v3543, 0.0
    %v3548 = vsel %vm3540, %v3542, 0.0
    %v3549 = vsel %vm3541, %v3543, 0.0
    %v3550 = vadd.f32 %v3528, %v3544
    %v3551 = vadd.f32 %v3529, %v3545
    %v3552 = vadd.f32 %v3530, %v3546
    %v3553 = vadd.f32 %v3531, %v3547
    %v3554 = vadd.f32 %v3532, %v3548
    %v3555 = vadd.f32 %v3533, %v3549
    %s3556 = scalar_lea.vmem %s1, 96
    %v3557 = vld [vmem:[%s3556] sm:$0xff]
    %v3558 = vld [vmem:[%s3556 + $0x8] sm:$0xff]
    %v3559 = vld [vmem:[%s3556 + $0x10] sm:$0xff]
    %v3560 = vld [vmem:[%s3556 + $0x18] sm:$0xff]
    %v3561 = vld [vmem:[%s3556 + $0x20] sm:$0xff]
    %v3562 = vld [vmem:[%s3556 + $0x28] sm:$0xff]
    %v3563 = vld [vmem:[%s3556 + $0x30] sm:$0xff]
    %v3564 = vld [vmem:[%s3556 + $0x38] sm:$0xff]
    %v3565 = vld [vmem:[%s3556 + $0x40] sm:$0xff]
    %v3566 = vld [vmem:[%s3556 + $0x48] sm:$0xff]
    %v3567 = vld [vmem:[%s3556 + $0x50] sm:$0xff]
    %v3568 = vld [vmem:[%s3556 + $0x58] sm:$0xff]
    %v3570 = vsel %vm441, %v3557, 0
    %v3573 = vsel %vm441, %v3558, 0
    %v3576 = vsel %vm441, %v3559, 0
    %v3579 = vsel %vm441, %v3560, 0
    %v3582 = vsel %vm441, %v3561, 0
    %v3585 = vsel %vm441, %v3562, 0
    %v3588 = vsel %vm441, %v3563, 0
    %v3591 = vsel %vm441, %v3564, 0
    %v3594 = vsel %vm441, %v3565, 0
    %v3597 = vsel %vm441, %v3566, 0
    %v3600 = vsel %vm441, %v3567, 0
    %v3603 = vsel %vm441, %v3568, 0
    %3605 = vmatpush.msra.mxu0 0.0
    %3606 = vmatpush.msra.mxu0 0.0
    %3607 = vmatpush.msra.mxu0 0.0
    %3608 = vmatpush.msra.mxu0 0.0
    %3609 = vmatpush.msra.mxu0 0.0
    %3610 = vmatpush.msra.mxu0 0.0
    %3611 = vmatpush.msra.mxu0 0.0
    %3612 = vmatpush.msra.mxu0 0.0
    %3613 = vmatpush.msra.mxu0 0.0
    %3614 = vmatpush.msra.mxu0 0.0
    %3615 = vmatpush.msra.mxu0 0.0
    %3616 = vmatpush.msra.mxu0 0.0
    %3617 = vmatpush.msra.mxu0 0.0
    %3618 = vmatpush.msra.mxu0 %v3516
    %3619 = vmatpush.msra.mxu0 %v3514
    %3620 = vmatpush.msra.mxu0 %v3512
    %3621 = vmatmul.f32.gmra.mxu0 %v3570
    %v3622 = vpop.f32.mrf.mxu0
    %v3623 = vadd.f32 0.0, %v3622
    %3624 = vmatmul.f32.gmra.mxu0 %v3573
    %v3625 = vpop.f32.mrf.mxu0
    %v3626 = vadd.f32 0.0, %v3625
    %3627 = vmatmul.f32.gmra.mxu0 %v3576
    %v3628 = vpop.f32.mrf.mxu0
    %v3629 = vadd.f32 0.0, %v3628
    %3630 = vmatmul.f32.gmra.mxu0 %v3579
    %v3631 = vpop.f32.mrf.mxu0
    %v3632 = vadd.f32 0.0, %v3631
    %3633 = vmatmul.f32.gmra.mxu0 %v3582
    %v3634 = vpop.f32.mrf.mxu0
    %v3635 = vadd.f32 0.0, %v3634
    %3636 = vmatmul.f32.gmra.mxu0 %v3585
    %v3637 = vpop.f32.mrf.mxu0
    %v3638 = vadd.f32 0.0, %v3637
    %3639 = vmatmul.f32.gmra.mxu0 %v3588
    %v3640 = vpop.f32.mrf.mxu0
    %v3641 = vadd.f32 0.0, %v3640
    %3642 = vmatmul.f32.gmra.mxu0 %v3591
    %v3643 = vpop.f32.mrf.mxu0
    %v3644 = vadd.f32 0.0, %v3643
    %3645 = vmatmul.f32.gmra.mxu0 %v3594
    %v3646 = vpop.f32.mrf.mxu0
    %v3647 = vadd.f32 0.0, %v3646
    %3648 = vmatmul.f32.gmra.mxu0 %v3597
    %v3649 = vpop.f32.mrf.mxu0
    %v3650 = vadd.f32 0.0, %v3649
    %3651 = vmatmul.f32.gmra.mxu0 %v3600
    %v3652 = vpop.f32.mrf.mxu0
    %v3653 = vadd.f32 0.0, %v3652
    %3654 = vmatmul.f32.gmra.mxu0 %v3603
    %v3655 = vpop.f32.mrf.mxu0
    %v3656 = vadd.f32 0.0, %v3655
    %3657 = vdwg.mxu0
    %3658 = vmatpush.msra.mxu0 0.0
    %3659 = vmatpush.msra.mxu0 0.0
    %3660 = vmatpush.msra.mxu0 0.0
    %3661 = vmatpush.msra.mxu0 0.0
    %3662 = vmatpush.msra.mxu0 0.0
    %3663 = vmatpush.msra.mxu0 0.0
    %3664 = vmatpush.msra.mxu0 0.0
    %3665 = vmatpush.msra.mxu0 0.0
    %3666 = vmatpush.msra.mxu0 0.0
    %3667 = vmatpush.msra.mxu0 0.0
    %3668 = vmatpush.msra.mxu0 0.0
    %3669 = vmatpush.msra.mxu0 0.0
    %3670 = vmatpush.msra.mxu0 0.0
    %3671 = vmatpush.msra.mxu0 %v3517
    %3672 = vmatpush.msra.mxu0 %v3515
    %3673 = vmatpush.msra.mxu0 %v3513
    %3674 = vmatmul.f32.gmra.mxu0 %v3570
    %v3675 = vpop.f32.mrf.mxu0
    %v3676 = vadd.f32 0.0, %v3675
    %3677 = vmatmul.f32.gmra.mxu0 %v3573
    %v3678 = vpop.f32.mrf.mxu0
    %v3679 = vadd.f32 0.0, %v3678
    %3680 = vmatmul.f32.gmra.mxu0 %v3576
    %v3681 = vpop.f32.mrf.mxu0
    %v3682 = vadd.f32 0.0, %v3681
    %3683 = vmatmul.f32.gmra.mxu0 %v3579
    %v3684 = vpop.f32.mrf.mxu0
    %v3685 = vadd.f32 0.0, %v3684
    %3686 = vmatmul.f32.gmra.mxu0 %v3582
    %v3687 = vpop.f32.mrf.mxu0
    %v3688 = vadd.f32 0.0, %v3687
    %3689 = vmatmul.f32.gmra.mxu0 %v3585
    %v3690 = vpop.f32.mrf.mxu0
    %v3691 = vadd.f32 0.0, %v3690
    %3692 = vmatmul.f32.gmra.mxu0 %v3588
    %v3693 = vpop.f32.mrf.mxu0
    %v3694 = vadd.f32 0.0, %v3693
    %3695 = vmatmul.f32.gmra.mxu0 %v3591
    %v3696 = vpop.f32.mrf.mxu0
    %v3697 = vadd.f32 0.0, %v3696
    %3698 = vmatmul.f32.gmra.mxu0 %v3594
    %v3699 = vpop.f32.mrf.mxu0
    %v3700 = vadd.f32 0.0, %v3699
    %3701 = vmatmul.f32.gmra.mxu0 %v3597
    %v3702 = vpop.f32.mrf.mxu0
    %v3703 = vadd.f32 0.0, %v3702
    %3704 = vmatmul.f32.gmra.mxu0 %v3600
    %v3705 = vpop.f32.mrf.mxu0
    %v3706 = vadd.f32 0.0, %v3705
    %3707 = vmatmul.f32.gmra.mxu0 %v3603
    %v3708 = vpop.f32.mrf.mxu0
    %v3709 = vadd.f32 0.0, %v3708
    %3710 = vdwg.mxu0
    %v3711 = vmul.f32 %v3623, %v3550
    %v3712 = vmul.f32 %v3676, %v3551
    %v3713 = vmul.f32 %v3626, %v3552
    %v3714 = vmul.f32 %v3679, %v3553
    %v3715 = vmul.f32 %v3629, %v3554
    %v3716 = vmul.f32 %v3682, %v3555
    %v3717 = vmul.f32 %v3632, %v3550
    %v3718 = vmul.f32 %v3685, %v3551
    %v3719 = vmul.f32 %v3635, %v3552
    %v3720 = vmul.f32 %v3688, %v3553
    %v3721 = vmul.f32 %v3638, %v3554
    %v3722 = vmul.f32 %v3691, %v3555
    %v3723 = vmul.f32 %v3641, %v3550
    %v3724 = vmul.f32 %v3694, %v3551
    %v3725 = vmul.f32 %v3644, %v3552
    %v3726 = vmul.f32 %v3697, %v3553
    %v3727 = vmul.f32 %v3647, %v3554
    %v3728 = vmul.f32 %v3700, %v3555
    %v3729 = vmul.f32 %v3650, %v3550
    %v3730 = vmul.f32 %v3703, %v3551
    %v3731 = vmul.f32 %v3653, %v3552
    %v3732 = vmul.f32 %v3706, %v3553
    %v3733 = vmul.f32 %v3656, %v3554
    %v3734 = vmul.f32 %v3709, %v3555
    %v3735 = vadd.f32 %v3711, %v3713
    %v3736 = vadd.f32 %v3735, %v3715
    %v3737 = vrot.slane %v3736, 4
    %v3738 = vadd.f32 %v3736, %v3737
    %v3739 = vrot.slane %v3738, 2
    %v3740 = vadd.f32 %v3738, %v3739
    %v3741 = vrot.slane %v3740, 1
    %v3742 = vadd.f32 %v3740, %v3741
    %v3743 = vadd.f32 %v3712, %v3714
    %v3744 = vadd.f32 %v3743, %v3716
    %v3745 = vrot.slane %v3744, 4
    %v3746 = vadd.f32 %v3744, %v3745
    %v3747 = vrot.slane %v3746, 2
    %v3748 = vadd.f32 %v3746, %v3747
    %v3749 = vrot.slane %v3748, 1
    %v3750 = vadd.f32 %v3748, %v3749
    %v3751 = vadd.f32 %v3717, %v3719
    %v3752 = vadd.f32 %v3751, %v3721
    %v3753 = vrot.slane %v3752, 4
    %v3754 = vadd.f32 %v3752, %v3753
    %v3755 = vrot.slane %v3754, 2
    %v3756 = vadd.f32 %v3754, %v3755
    %v3757 = vrot.slane %v3756, 1
    %v3758 = vadd.f32 %v3756, %v3757
    %v3759 = vadd.f32 %v3718, %v3720
    %v3760 = vadd.f32 %v3759, %v3722
    %v3761 = vrot.slane %v3760, 4
    %v3762 = vadd.f32 %v3760, %v3761
    %v3763 = vrot.slane %v3762, 2
    %v3764 = vadd.f32 %v3762, %v3763
    %v3765 = vrot.slane %v3764, 1
    %v3766 = vadd.f32 %v3764, %v3765
    %v3767 = vadd.f32 %v3723, %v3725
    %v3768 = vadd.f32 %v3767, %v3727
    %v3769 = vrot.slane %v3768, 4
    %v3770 = vadd.f32 %v3768, %v3769
    %v3771 = vrot.slane %v3770, 2
    %v3772 = vadd.f32 %v3770, %v3771
    %v3773 = vrot.slane %v3772, 1
    %v3774 = vadd.f32 %v3772, %v3773
    %v3775 = vadd.f32 %v3724, %v3726
    %v3776 = vadd.f32 %v3775, %v3728
    %v3777 = vrot.slane %v3776, 4
    %v3778 = vadd.f32 %v3776, %v3777
    %v3779 = vrot.slane %v3778, 2
    %v3780 = vadd.f32 %v3778, %v3779
    %v3781 = vrot.slane %v3780, 1
    %v3782 = vadd.f32 %v3780, %v3781
    %v3783 = vadd.f32 %v3729, %v3731
    %v3784 = vadd.f32 %v3783, %v3733
    %v3785 = vrot.slane %v3784, 4
    %v3786 = vadd.f32 %v3784, %v3785
    %v3787 = vrot.slane %v3786, 2
    %v3788 = vadd.f32 %v3786, %v3787
    %v3789 = vrot.slane %v3788, 1
    %v3790 = vadd.f32 %v3788, %v3789
    %v3791 = vadd.f32 %v3730, %v3732
    %v3792 = vadd.f32 %v3791, %v3734
    %v3793 = vrot.slane %v3792, 4
    %v3794 = vadd.f32 %v3792, %v3793
    %v3795 = vrot.slane %v3794, 2
    %v3796 = vadd.f32 %v3794, %v3795
    %v3797 = vrot.slane %v3796, 1
    %v3798 = vadd.f32 %v3796, %v3797
    %v3807 = vsel %vm680, %v3758, %v3742
    %v3808 = vsel %vm682, %v3774, %v3807
    %v3809 = vsel %vm684, %v3790, %v3808
    %v3810 = vsel %vm680, %v3766, %v3750
    %v3811 = vsel %vm682, %v3782, %v3810
    %v3812 = vsel %vm684, %v3798, %v3811
    %3815 = vst [vmem:[#allocation2 + $0x10] sm:$0xf] %v3809
    %3816 = vst [vmem:[#allocation2 + $0x18] sm:$0xf] %v3812
    %v3817 = vperm.slane %v3448, 1
    %v3818 = vperm.slane %v3449, 1
    %vm3819 = vcmp.eq.f32.partialorder %v180, %v3817
    %vm3820 = vcmp.eq.f32.partialorder %v180, %v3818
    %vm3821 = vcmp.eq.f32.partialorder %v181, %v3817
    %vm3822 = vcmp.eq.f32.partialorder %v181, %v3818
    %vm3823 = vcmp.eq.f32.partialorder %v300, %v3817
    %vm3824 = vcmp.eq.f32.partialorder %v300, %v3818
    %v3825 = vperm.slane %v3474, 1
    %v3826 = vperm.slane %v3475, 1
    %v3827 = vsel %vm3819, %v3825, 0.0
    %v3828 = vsel %vm3820, %v3826, 0.0
    %v3829 = vsel %vm3821, %v3825, 0.0
    %v3830 = vsel %vm3822, %v3826, 0.0
    %v3831 = vsel %vm3823, %v3825, 0.0
    %v3832 = vsel %vm3824, %v3826, 0.0
    %v3833 = vperm.slane %v3454, 1
    %v3834 = vperm.slane %v3455, 1
    %vm3835 = vcmp.eq.f32.partialorder %v180, %v3833
    %vm3836 = vcmp.eq.f32.partialorder %v180, %v3834
    %vm3837 = vcmp.eq.f32.partialorder %v181, %v3833
    %vm3838 = vcmp.eq.f32.partialorder %v181, %v3834
    %vm3839 = vcmp.eq.f32.partialorder %v300, %v3833
    %vm3840 = vcmp.eq.f32.partialorder %v300, %v3834
    %v3841 = vperm.slane %v3478, 1
    %v3842 = vperm.slane %v3479, 1
    %v3843 = vsel %vm3835, %v3841, 0.0
    %v3844 = vsel %vm3836, %v3842, 0.0
    %v3845 = vsel %vm3837, %v3841, 0.0
    %v3846 = vsel %vm3838, %v3842, 0.0
    %v3847 = vsel %vm3839, %v3841, 0.0
    %v3848 = vsel %vm3840, %v3842, 0.0
    %v3849 = vadd.f32 %v3827, %v3843
    %v3850 = vadd.f32 %v3828, %v3844
    %v3851 = vadd.f32 %v3829, %v3845
    %v3852 = vadd.f32 %v3830, %v3846
    %v3853 = vadd.f32 %v3831, %v3847
    %v3854 = vadd.f32 %v3832, %v3848
    %v3855 = vperm.slane %v3438, 1
    %v3856 = vperm.slane %v3439, 1
    %vm3857 = vcmp.eq.f32.partialorder %v180, %v3855
    %vm3858 = vcmp.eq.f32.partialorder %v180, %v3856
    %vm3859 = vcmp.eq.f32.partialorder %v181, %v3855
    %vm3860 = vcmp.eq.f32.partialorder %v181, %v3856
    %vm3861 = vcmp.eq.f32.partialorder %v300, %v3855
    %vm3862 = vcmp.eq.f32.partialorder %v300, %v3856
    %v3863 = vperm.slane %v3466, 1
    %v3864 = vperm.slane %v3467, 1
    %v3865 = vsel %vm3857, %v3863, 0.0
    %v3866 = vsel %vm3858, %v3864, 0.0
    %v3867 = vsel %vm3859, %v3863, 0.0
    %v3868 = vsel %vm3860, %v3864, 0.0
    %v3869 = vsel %vm3861, %v3863, 0.0
    %v3870 = vsel %vm3862, %v3864, 0.0
    %v3871 = vperm.slane %v3444, 1
    %v3872 = vperm.slane %v3445, 1
    %vm3873 = vcmp.eq.f32.partialorder %v180, %v3871
    %vm3874 = vcmp.eq.f32.partialorder %v180, %v3872
    %vm3875 = vcmp.eq.f32.partialorder %v181, %v3871
    %vm3876 = vcmp.eq.f32.partialorder %v181, %v3872
    %vm3877 = vcmp.eq.f32.partialorder %v300, %v3871
    %vm3878 = vcmp.eq.f32.partialorder %v300, %v3872
    %v3879 = vperm.slane %v3470, 1
    %v3880 = vperm.slane %v3471, 1
    %v3881 = vsel %vm3873, %v3879, 0.0
    %v3882 = vsel %vm3874, %v3880, 0.0
    %v3883 = vsel %vm3875, %v3879, 0.0
    %v3884 = vsel %vm3876, %v3880, 0.0
    %v3885 = vsel %vm3877, %v3879, 0.0
    %v3886 = vsel %vm3878, %v3880, 0.0
    %v3887 = vadd.f32 %v3865, %v3881
    %v3888 = vadd.f32 %v3866, %v3882
    %v3889 = vadd.f32 %v3867, %v3883
    %v3890 = vadd.f32 %v3868, %v3884
    %v3891 = vadd.f32 %v3869, %v3885
    %v3892 = vadd.f32 %v3870, %v3886
    %v3893 = vld [vmem:[%s3556] sm:$0xff]
    %v3894 = vld [vmem:[%s3556 + $0x8] sm:$0xff]
    %v3895 = vld [vmem:[%s3556 + $0x10] sm:$0xff]
    %v3896 = vld [vmem:[%s3556 + $0x18] sm:$0xff]
    %v3897 = vld [vmem:[%s3556 + $0x20] sm:$0xff]
    %v3898 = vld [vmem:[%s3556 + $0x28] sm:$0xff]
    %v3899 = vld [vmem:[%s3556 + $0x30] sm:$0xff]
    %v3900 = vld [vmem:[%s3556 + $0x38] sm:$0xff]
    %v3901 = vld [vmem:[%s3556 + $0x40] sm:$0xff]
    %v3902 = vld [vmem:[%s3556 + $0x48] sm:$0xff]
    %v3903 = vld [vmem:[%s3556 + $0x50] sm:$0xff]
    %v3904 = vld [vmem:[%s3556 + $0x58] sm:$0xff]
    %v3906 = vsel %vm441, %v3893, 0
    %v3909 = vsel %vm441, %v3894, 0
    %v3912 = vsel %vm441, %v3895, 0
    %v3915 = vsel %vm441, %v3896, 0
    %v3918 = vsel %vm441, %v3897, 0
    %v3921 = vsel %vm441, %v3898, 0
    %v3924 = vsel %vm441, %v3899, 0
    %v3927 = vsel %vm441, %v3900, 0
    %v3930 = vsel %vm441, %v3901, 0
    %v3933 = vsel %vm441, %v3902, 0
    %v3936 = vsel %vm441, %v3903, 0
    %v3939 = vsel %vm441, %v3904, 0
    %3941 = vmatpush.msra.mxu0 0.0
    %3942 = vmatpush.msra.mxu0 0.0
    %3943 = vmatpush.msra.mxu0 0.0
    %3944 = vmatpush.msra.mxu0 0.0
    %3945 = vmatpush.msra.mxu0 0.0
    %3946 = vmatpush.msra.mxu0 0.0
    %3947 = vmatpush.msra.mxu0 0.0
    %3948 = vmatpush.msra.mxu0 0.0
    %3949 = vmatpush.msra.mxu0 0.0
    %3950 = vmatpush.msra.mxu0 0.0
    %3951 = vmatpush.msra.mxu0 0.0
    %3952 = vmatpush.msra.mxu0 0.0
    %3953 = vmatpush.msra.mxu0 0.0
    %3954 = vmatpush.msra.mxu0 %v3853
    %3955 = vmatpush.msra.mxu0 %v3851
    %3956 = vmatpush.msra.mxu0 %v3849
    %3957 = vmatmul.f32.gmra.mxu0 %v3906
    %v3958 = vpop.f32.mrf.mxu0
    %v3959 = vadd.f32 0.0, %v3958
    %3960 = vmatmul.f32.gmra.mxu0 %v3909
    %v3961 = vpop.f32.mrf.mxu0
    %v3962 = vadd.f32 0.0, %v3961
    %3963 = vmatmul.f32.gmra.mxu0 %v3912
    %v3964 = vpop.f32.mrf.mxu0
    %v3965 = vadd.f32 0.0, %v3964
    %3966 = vmatmul.f32.gmra.mxu0 %v3915
    %v3967 = vpop.f32.mrf.mxu0
    %v3968 = vadd.f32 0.0, %v3967
    %3969 = vmatmul.f32.gmra.mxu0 %v3918
    %v3970 = vpop.f32.mrf.mxu0
    %v3971 = vadd.f32 0.0, %v3970
    %3972 = vmatmul.f32.gmra.mxu0 %v3921
    %v3973 = vpop.f32.mrf.mxu0
    %v3974 = vadd.f32 0.0, %v3973
    %3975 = vmatmul.f32.gmra.mxu0 %v3924
    %v3976 = vpop.f32.mrf.mxu0
    %v3977 = vadd.f32 0.0, %v3976
    %3978 = vmatmul.f32.gmra.mxu0 %v3927
    %v3979 = vpop.f32.mrf.mxu0
    %v3980 = vadd.f32 0.0, %v3979
    %3981 = vmatmul.f32.gmra.mxu0 %v3930
    %v3982 = vpop.f32.mrf.mxu0
    %v3983 = vadd.f32 0.0, %v3982
    %3984 = vmatmul.f32.gmra.mxu0 %v3933
    %v3985 = vpop.f32.mrf.mxu0
    %v3986 = vadd.f32 0.0, %v3985
    %3987 = vmatmul.f32.gmra.mxu0 %v3936
    %v3988 = vpop.f32.mrf.mxu0
    %v3989 = vadd.f32 0.0, %v3988
    %3990 = vmatmul.f32.gmra.mxu0 %v3939
    %v3991 = vpop.f32.mrf.mxu0
    %v3992 = vadd.f32 0.0, %v3991
    %3993 = vdwg.mxu0
    %3994 = vmatpush.msra.mxu0 0.0
    %3995 = vmatpush.msra.mxu0 0.0
    %3996 = vmatpush.msra.mxu0 0.0
    %3997 = vmatpush.msra.mxu0 0.0
    %3998 = vmatpush.msra.mxu0 0.0
    %3999 = vmatpush.msra.mxu0 0.0
    %4000 = vmatpush.msra.mxu0 0.0
    %4001 = vmatpush.msra.mxu0 0.0
    %4002 = vmatpush.msra.mxu0 0.0
    %4003 = vmatpush.msra.mxu0 0.0
    %4004 = vmatpush.msra.mxu0 0.0
    %4005 = vmatpush.msra.mxu0 0.0
    %4006 = vmatpush.msra.mxu0 0.0
    %4007 = vmatpush.msra.mxu0 %v3854
    %4008 = vmatpush.msra.mxu0 %v3852
    %4009 = vmatpush.msra.mxu0 %v3850
    %4010 = vmatmul.f32.gmra.mxu0 %v3906
    %v4011 = vpop.f32.mrf.mxu0
    %v4012 = vadd.f32 0.0, %v4011
    %4013 = vmatmul.f32.gmra.mxu0 %v3909
    %v4014 = vpop.f32.mrf.mxu0
    %v4015 = vadd.f32 0.0, %v4014
    %4016 = vmatmul.f32.gmra.mxu0 %v3912
    %v4017 = vpop.f32.mrf.mxu0
    %v4018 = vadd.f32 0.0, %v4017
    %4019 = vmatmul.f32.gmra.mxu0 %v3915
    %v4020 = vpop.f32.mrf.mxu0
    %v4021 = vadd.f32 0.0, %v4020
    %4022 = vmatmul.f32.gmra.mxu0 %v3918
    %v4023 = vpop.f32.mrf.mxu0
    %v4024 = vadd.f32 0.0, %v4023
    %4025 = vmatmul.f32.gmra.mxu0 %v3921
    %v4026 = vpop.f32.mrf.mxu0
    %v4027 = vadd.f32 0.0, %v4026
    %4028 = vmatmul.f32.gmra.mxu0 %v3924
    %v4029 = vpop.f32.mrf.mxu0
    %v4030 = vadd.f32 0.0, %v4029
    %4031 = vmatmul.f32.gmra.mxu0 %v3927
    %v4032 = vpop.f32.mrf.mxu0
    %v4033 = vadd.f32 0.0, %v4032
    %4034 = vmatmul.f32.gmra.mxu0 %v3930
    %v4035 = vpop.f32.mrf.mxu0
    %v4036 = vadd.f32 0.0, %v4035
    %4037 = vmatmul.f32.gmra.mxu0 %v3933
    %v4038 = vpop.f32.mrf.mxu0
    %v4039 = vadd.f32 0.0, %v4038
    %4040 = vmatmul.f32.gmra.mxu0 %v3936
    %v4041 = vpop.f32.mrf.mxu0
    %v4042 = vadd.f32 0.0, %v4041
    %4043 = vmatmul.f32.gmra.mxu0 %v3939
    %v4044 = vpop.f32.mrf.mxu0
    %v4045 = vadd.f32 0.0, %v4044
    %4046 = vdwg.mxu0
    %v4047 = vmul.f32 %v3959, %v3887
    %v4048 = vmul.f32 %v4012, %v3888
    %v4049 = vmul.f32 %v3962, %v3889
    %v4050 = vmul.f32 %v4015, %v3890
    %v4051 = vmul.f32 %v3965, %v3891
    %v4052 = vmul.f32 %v4018, %v3892
    %v4053 = vmul.f32 %v3968, %v3887
    %v4054 = vmul.f32 %v4021, %v3888
    %v4055 = vmul.f32 %v3971, %v3889
    %v4056 = vmul.f32 %v4024, %v3890
    %v4057 = vmul.f32 %v3974, %v3891
    %v4058 = vmul.f32 %v4027, %v3892
    %v4059 = vmul.f32 %v3977, %v3887
    %v4060 = vmul.f32 %v4030, %v3888
    %v4061 = vmul.f32 %v3980, %v3889
    %v4062 = vmul.f32 %v4033, %v3890
    %v4063 = vmul.f32 %v3983, %v3891
    %v4064 = vmul.f32 %v4036, %v3892
    %v4065 = vmul.f32 %v3986, %v3887
    %v4066 = vmul.f32 %v4039, %v3888
    %v4067 = vmul.f32 %v3989, %v3889
    %v4068 = vmul.f32 %v4042, %v3890
    %v4069 = vmul.f32 %v3992, %v3891
    %v4070 = vmul.f32 %v4045, %v3892
    %v4071 = vadd.f32 %v4047, %v4049
    %v4072 = vadd.f32 %v4071, %v4051
    %v4073 = vrot.slane %v4072, 4
    %v4074 = vadd.f32 %v4072, %v4073
    %v4075 = vrot.slane %v4074, 2
    %v4076 = vadd.f32 %v4074, %v4075
    %v4077 = vrot.slane %v4076, 1
    %v4078 = vadd.f32 %v4076, %v4077
    %v4079 = vadd.f32 %v4048, %v4050
    %v4080 = vadd.f32 %v4079, %v4052
    %v4081 = vrot.slane %v4080, 4
    %v4082 = vadd.f32 %v4080, %v4081
    %v4083 = vrot.slane %v4082, 2
    %v4084 = vadd.f32 %v4082, %v4083
    %v4085 = vrot.slane %v4084, 1
    %v4086 = vadd.f32 %v4084, %v4085
    %v4087 = vadd.f32 %v4053, %v4055
    %v4088 = vadd.f32 %v4087, %v4057
    %v4089 = vrot.slane %v4088, 4
    %v4090 = vadd.f32 %v4088, %v4089
    %v4091 = vrot.slane %v4090, 2
    %v4092 = vadd.f32 %v4090, %v4091
    %v4093 = vrot.slane %v4092, 1
    %v4094 = vadd.f32 %v4092, %v4093
    %v4095 = vadd.f32 %v4054, %v4056
    %v4096 = vadd.f32 %v4095, %v4058
    %v4097 = vrot.slane %v4096, 4
    %v4098 = vadd.f32 %v4096, %v4097
    %v4099 = vrot.slane %v4098, 2
    %v4100 = vadd.f32 %v4098, %v4099
    %v4101 = vrot.slane %v4100, 1
    %v4102 = vadd.f32 %v4100, %v4101
    %v4103 = vadd.f32 %v4059, %v4061
    %v4104 = vadd.f32 %v4103, %v4063
    %v4105 = vrot.slane %v4104, 4
    %v4106 = vadd.f32 %v4104, %v4105
    %v4107 = vrot.slane %v4106, 2
    %v4108 = vadd.f32 %v4106, %v4107
    %v4109 = vrot.slane %v4108, 1
    %v4110 = vadd.f32 %v4108, %v4109
    %v4111 = vadd.f32 %v4060, %v4062
    %v4112 = vadd.f32 %v4111, %v4064
    %v4113 = vrot.slane %v4112, 4
    %v4114 = vadd.f32 %v4112, %v4113
    %v4115 = vrot.slane %v4114, 2
    %v4116 = vadd.f32 %v4114, %v4115
    %v4117 = vrot.slane %v4116, 1
    %v4118 = vadd.f32 %v4116, %v4117
    %v4119 = vadd.f32 %v4065, %v4067
    %v4120 = vadd.f32 %v4119, %v4069
    %v4121 = vrot.slane %v4120, 4
    %v4122 = vadd.f32 %v4120, %v4121
    %v4123 = vrot.slane %v4122, 2
    %v4124 = vadd.f32 %v4122, %v4123
    %v4125 = vrot.slane %v4124, 1
    %v4126 = vadd.f32 %v4124, %v4125
    %v4127 = vadd.f32 %v4066, %v4068
    %v4128 = vadd.f32 %v4127, %v4070
    %v4129 = vrot.slane %v4128, 4
    %v4130 = vadd.f32 %v4128, %v4129
    %v4131 = vrot.slane %v4130, 2
    %v4132 = vadd.f32 %v4130, %v4131
    %v4133 = vrot.slane %v4132, 1
    %v4134 = vadd.f32 %v4132, %v4133
    %v4143 = vsel %vm1019, %v4094, %v4078
    %v4144 = vsel %vm1021, %v4110, %v4143
    %v4145 = vsel %vm1023, %v4126, %v4144
    %v4146 = vsel %vm1019, %v4102, %v4086
    %v4147 = vsel %vm1021, %v4118, %v4146
    %v4148 = vsel %vm1023, %v4134, %v4147
    %4151 = vst [vmem:[#allocation2 + $0x10] sm:$0xf0] %v4145
    %4152 = vst [vmem:[#allocation2 + $0x18] sm:$0xf0] %v4148
    %v4153 = vperm.slane %v3448, 2
    %v4154 = vperm.slane %v3449, 2
    %vm4155 = vcmp.eq.f32.partialorder %v180, %v4153
    %vm4156 = vcmp.eq.f32.partialorder %v180, %v4154
    %vm4157 = vcmp.eq.f32.partialorder %v181, %v4153
    %vm4158 = vcmp.eq.f32.partialorder %v181, %v4154
    %vm4159 = vcmp.eq.f32.partialorder %v300, %v4153
    %vm4160 = vcmp.eq.f32.partialorder %v300, %v4154
    %v4161 = vperm.slane %v3474, 2
    %v4162 = vperm.slane %v3475, 2
    %v4163 = vsel %vm4155, %v4161, 0.0
    %v4164 = vsel %vm4156, %v4162, 0.0
    %v4165 = vsel %vm4157, %v4161, 0.0
    %v4166 = vsel %vm4158, %v4162, 0.0
    %v4167 = vsel %vm4159, %v4161, 0.0
    %v4168 = vsel %vm4160, %v4162, 0.0
    %v4169 = vperm.slane %v3454, 2
    %v4170 = vperm.slane %v3455, 2
    %vm4171 = vcmp.eq.f32.partialorder %v180, %v4169
    %vm4172 = vcmp.eq.f32.partialorder %v180, %v4170
    %vm4173 = vcmp.eq.f32.partialorder %v181, %v4169
    %vm4174 = vcmp.eq.f32.partialorder %v181, %v4170
    %vm4175 = vcmp.eq.f32.partialorder %v300, %v4169
    %vm4176 = vcmp.eq.f32.partialorder %v300, %v4170
    %v4177 = vperm.slane %v3478, 2
    %v4178 = vperm.slane %v3479, 2
    %v4179 = vsel %vm4171, %v4177, 0.0
    %v4180 = vsel %vm4172, %v4178, 0.0
    %v4181 = vsel %vm4173, %v4177, 0.0
    %v4182 = vsel %vm4174, %v4178, 0.0
    %v4183 = vsel %vm4175, %v4177, 0.0
    %v4184 = vsel %vm4176, %v4178, 0.0
    %v4185 = vadd.f32 %v4163, %v4179
    %v4186 = vadd.f32 %v4164, %v4180
    %v4187 = vadd.f32 %v4165, %v4181
    %v4188 = vadd.f32 %v4166, %v4182
    %v4189 = vadd.f32 %v4167, %v4183
    %v4190 = vadd.f32 %v4168, %v4184
    %v4191 = vperm.slane %v3438, 2
    %v4192 = vperm.slane %v3439, 2
    %vm4193 = vcmp.eq.f32.partialorder %v180, %v4191
    %vm4194 = vcmp.eq.f32.partialorder %v180, %v4192
    %vm4195 = vcmp.eq.f32.partialorder %v181, %v4191
    %vm4196 = vcmp.eq.f32.partialorder %v181, %v4192
    %vm4197 = vcmp.eq.f32.partialorder %v300, %v4191
    %vm4198 = vcmp.eq.f32.partialorder %v300, %v4192
    %v4199 = vperm.slane %v3466, 2
    %v4200 = vperm.slane %v3467, 2
    %v4201 = vsel %vm4193, %v4199, 0.0
    %v4202 = vsel %vm4194, %v4200, 0.0
    %v4203 = vsel %vm4195, %v4199, 0.0
    %v4204 = vsel %vm4196, %v4200, 0.0
    %v4205 = vsel %vm4197, %v4199, 0.0
    %v4206 = vsel %vm4198, %v4200, 0.0
    %v4207 = vperm.slane %v3444, 2
    %v4208 = vperm.slane %v3445, 2
    %vm4209 = vcmp.eq.f32.partialorder %v180, %v4207
    %vm4210 = vcmp.eq.f32.partialorder %v180, %v4208
    %vm4211 = vcmp.eq.f32.partialorder %v181, %v4207
    %vm4212 = vcmp.eq.f32.partialorder %v181, %v4208
    %vm4213 = vcmp.eq.f32.partialorder %v300, %v4207
    %vm4214 = vcmp.eq.f32.partialorder %v300, %v4208
    %v4215 = vperm.slane %v3470, 2
    %v4216 = vperm.slane %v3471, 2
    %v4217 = vsel %vm4209, %v4215, 0.0
    %v4218 = vsel %vm4210, %v4216, 0.0
    %v4219 = vsel %vm4211, %v4215, 0.0
    %v4220 = vsel %vm4212, %v4216, 0.0
    %v4221 = vsel %vm4213, %v4215, 0.0
    %v4222 = vsel %vm4214, %v4216, 0.0
    %v4223 = vadd.f32 %v4201, %v4217
    %v4224 = vadd.f32 %v4202, %v4218
    %v4225 = vadd.f32 %v4203, %v4219
    %v4226 = vadd.f32 %v4204, %v4220
    %v4227 = vadd.f32 %v4205, %v4221
    %v4228 = vadd.f32 %v4206, %v4222
    %v4229 = vld [vmem:[%s3556] sm:$0xff]
    %v4230 = vld [vmem:[%s3556 + $0x8] sm:$0xff]
    %v4231 = vld [vmem:[%s3556 + $0x10] sm:$0xff]
    %v4232 = vld [vmem:[%s3556 + $0x18] sm:$0xff]
    %v4233 = vld [vmem:[%s3556 + $0x20] sm:$0xff]
    %v4234 = vld [vmem:[%s3556 + $0x28] sm:$0xff]
    %v4235 = vld [vmem:[%s3556 + $0x30] sm:$0xff]
    %v4236 = vld [vmem:[%s3556 + $0x38] sm:$0xff]
    %v4237 = vld [vmem:[%s3556 + $0x40] sm:$0xff]
    %v4238 = vld [vmem:[%s3556 + $0x48] sm:$0xff]
    %v4239 = vld [vmem:[%s3556 + $0x50] sm:$0xff]
    %v4240 = vld [vmem:[%s3556 + $0x58] sm:$0xff]
    %v4242 = vsel %vm441, %v4229, 0
    %v4245 = vsel %vm441, %v4230, 0
    %v4248 = vsel %vm441, %v4231, 0
    %v4251 = vsel %vm441, %v4232, 0
    %v4254 = vsel %vm441, %v4233, 0
    %v4257 = vsel %vm441, %v4234, 0
    %v4260 = vsel %vm441, %v4235, 0
    %v4263 = vsel %vm441, %v4236, 0
    %v4266 = vsel %vm441, %v4237, 0
    %v4269 = vsel %vm441, %v4238, 0
    %v4272 = vsel %vm441, %v4239, 0
    %v4275 = vsel %vm441, %v4240, 0
    %4277 = vmatpush.msra.mxu0 0.0
    %4278 = vmatpush.msra.mxu0 0.0
    %4279 = vmatpush.msra.mxu0 0.0
    %4280 = vmatpush.msra.mxu0 0.0
    %4281 = vmatpush.msra.mxu0 0.0
    %4282 = vmatpush.msra.mxu0 0.0
    %4283 = vmatpush.msra.mxu0 0.0
    %4284 = vmatpush.msra.mxu0 0.0
    %4285 = vmatpush.msra.mxu0 0.0
    %4286 = vmatpush.msra.mxu0 0.0
    %4287 = vmatpush.msra.mxu0 0.0
    %4288 = vmatpush.msra.mxu0 0.0
    %4289 = vmatpush.msra.mxu0 0.0
    %4290 = vmatpush.msra.mxu0 %v4189
    %4291 = vmatpush.msra.mxu0 %v4187
    %4292 = vmatpush.msra.mxu0 %v4185
    %4293 = vmatmul.f32.gmra.mxu0 %v4242
    %v4294 = vpop.f32.mrf.mxu0
    %v4295 = vadd.f32 0.0, %v4294
    %4296 = vmatmul.f32.gmra.mxu0 %v4245
    %v4297 = vpop.f32.mrf.mxu0
    %v4298 = vadd.f32 0.0, %v4297
    %4299 = vmatmul.f32.gmra.mxu0 %v4248
    %v4300 = vpop.f32.mrf.mxu0
    %v4301 = vadd.f32 0.0, %v4300
    %4302 = vmatmul.f32.gmra.mxu0 %v4251
    %v4303 = vpop.f32.mrf.mxu0
    %v4304 = vadd.f32 0.0, %v4303
    %4305 = vmatmul.f32.gmra.mxu0 %v4254
    %v4306 = vpop.f32.mrf.mxu0
    %v4307 = vadd.f32 0.0, %v4306
    %4308 = vmatmul.f32.gmra.mxu0 %v4257
    %v4309 = vpop.f32.mrf.mxu0
    %v4310 = vadd.f32 0.0, %v4309
    %4311 = vmatmul.f32.gmra.mxu0 %v4260
    %v4312 = vpop.f32.mrf.mxu0
    %v4313 = vadd.f32 0.0, %v4312
    %4314 = vmatmul.f32.gmra.mxu0 %v4263
    %v4315 = vpop.f32.mrf.mxu0
    %v4316 = vadd.f32 0.0, %v4315
    %4317 = vmatmul.f32.gmra.mxu0 %v4266
    %v4318 = vpop.f32.mrf.mxu0
    %v4319 = vadd.f32 0.0, %v4318
    %4320 = vmatmul.f32.gmra.mxu0 %v4269
    %v4321 = vpop.f32.mrf.mxu0
    %v4322 = vadd.f32 0.0, %v4321
    %4323 = vmatmul.f32.gmra.mxu0 %v4272
    %v4324 = vpop.f32.mrf.mxu0
    %v4325 = vadd.f32 0.0, %v4324
    %4326 = vmatmul.f32.gmra.mxu0 %v4275
    %v4327 = vpop.f32.mrf.mxu0
    %v4328 = vadd.f32 0.0, %v4327
    %4329 = vdwg.mxu0
    %4330 = vmatpush.msra.mxu0 0.0
    %4331 = vmatpush.msra.mxu0 0.0
    %4332 = vmatpush.msra.mxu0 0.0
    %4333 = vmatpush.msra.mxu0 0.0
    %4334 = vmatpush.msra.mxu0 0.0
    %4335 = vmatpush.msra.mxu0 0.0
    %4336 = vmatpush.msra.mxu0 0.0
    %4337 = vmatpush.msra.mxu0 0.0
    %4338 = vmatpush.msra.mxu0 0.0
    %4339 = vmatpush.msra.mxu0 0.0
    %4340 = vmatpush.msra.mxu0 0.0
    %4341 = vmatpush.msra.mxu0 0.0
    %4342 = vmatpush.msra.mxu0 0.0
    %4343 = vmatpush.msra.mxu0 %v4190
    %4344 = vmatpush.msra.mxu0 %v4188
    %4345 = vmatpush.msra.mxu0 %v4186
    %4346 = vmatmul.f32.gmra.mxu0 %v4242
    %v4347 = vpop.f32.mrf.mxu0
    %v4348 = vadd.f32 0.0, %v4347
    %4349 = vmatmul.f32.gmra.mxu0 %v4245
    %v4350 = vpop.f32.mrf.mxu0
    %v4351 = vadd.f32 0.0, %v4350
    %4352 = vmatmul.f32.gmra.mxu0 %v4248
    %v4353 = vpop.f32.mrf.mxu0
    %v4354 = vadd.f32 0.0, %v4353
    %4355 = vmatmul.f32.gmra.mxu0 %v4251
    %v4356 = vpop.f32.mrf.mxu0
    %v4357 = vadd.f32 0.0, %v4356
    %4358 = vmatmul.f32.gmra.mxu0 %v4254
    %v4359 = vpop.f32.mrf.mxu0
    %v4360 = vadd.f32 0.0, %v4359
    %4361 = vmatmul.f32.gmra.mxu0 %v4257
    %v4362 = vpop.f32.mrf.mxu0
    %v4363 = vadd.f32 0.0, %v4362
    %4364 = vmatmul.f32.gmra.mxu0 %v4260
    %v4365 = vpop.f32.mrf.mxu0
    %v4366 = vadd.f32 0.0, %v4365
    %4367 = vmatmul.f32.gmra.mxu0 %v4263
    %v4368 = vpop.f32.mrf.mxu0
    %v4369 = vadd.f32 0.0, %v4368
    %4370 = vmatmul.f32.gmra.mxu0 %v4266
    %v4371 = vpop.f32.mrf.mxu0
    %v4372 = vadd.f32 0.0, %v4371
    %4373 = vmatmul.f32.gmra.mxu0 %v4269
    %v4374 = vpop.f32.mrf.mxu0
    %v4375 = vadd.f32 0.0, %v4374
    %4376 = vmatmul.f32.gmra.mxu0 %v4272
    %v4377 = vpop.f32.mrf.mxu0
    %v4378 = vadd.f32 0.0, %v4377
    %4379 = vmatmul.f32.gmra.mxu0 %v4275
    %v4380 = vpop.f32.mrf.mxu0
    %v4381 = vadd.f32 0.0, %v4380
    %4382 = vdwg.mxu0
    %v4383 = vmul.f32 %v4295, %v4223
    %v4384 = vmul.f32 %v4348, %v4224
    %v4385 = vmul.f32 %v4298, %v4225
    %v4386 = vmul.f32 %v4351, %v4226
    %v4387 = vmul.f32 %v4301, %v4227
    %v4388 = vmul.f32 %v4354, %v4228
    %v4389 = vmul.f32 %v4304, %v4223
    %v4390 = vmul.f32 %v4357, %v4224
    %v4391 = vmul.f32 %v4307, %v4225
    %v4392 = vmul.f32 %v4360, %v4226
    %v4393 = vmul.f32 %v4310, %v4227
    %v4394 = vmul.f32 %v4363, %v4228
    %v4395 = vmul.f32 %v4313, %v4223
    %v4396 = vmul.f32 %v4366, %v4224
    %v4397 = vmul.f32 %v4316, %v4225
    %v4398 = vmul.f32 %v4369, %v4226
    %v4399 = vmul.f32 %v4319, %v4227
    %v4400 = vmul.f32 %v4372, %v4228
    %v4401 = vmul.f32 %v4322, %v4223
    %v4402 = vmul.f32 %v4375, %v4224
    %v4403 = vmul.f32 %v4325, %v4225
    %v4404 = vmul.f32 %v4378, %v4226
    %v4405 = vmul.f32 %v4328, %v4227
    %v4406 = vmul.f32 %v4381, %v4228
    %v4407 = vadd.f32 %v4383, %v4385
    %v4408 = vadd.f32 %v4407, %v4387
    %v4409 = vrot.slane %v4408, 4
    %v4410 = vadd.f32 %v4408, %v4409
    %v4411 = vrot.slane %v4410, 2
    %v4412 = vadd.f32 %v4410, %v4411
    %v4413 = vrot.slane %v4412, 1
    %v4414 = vadd.f32 %v4412, %v4413
    %v4415 = vadd.f32 %v4384, %v4386
    %v4416 = vadd.f32 %v4415, %v4388
    %v4417 = vrot.slane %v4416, 4
    %v4418 = vadd.f32 %v4416, %v4417
    %v4419 = vrot.slane %v4418, 2
    %v4420 = vadd.f32 %v4418, %v4419
    %v4421 = vrot.slane %v4420, 1
    %v4422 = vadd.f32 %v4420, %v4421
    %v4423 = vadd.f32 %v4389, %v4391
    %v4424 = vadd.f32 %v4423, %v4393
    %v4425 = vrot.slane %v4424, 4
    %v4426 = vadd.f32 %v4424, %v4425
    %v4427 = vrot.slane %v4426, 2
    %v4428 = vadd.f32 %v4426, %v4427
    %v4429 = vrot.slane %v4428, 1
    %v4430 = vadd.f32 %v4428, %v4429
    %v4431 = vadd.f32 %v4390, %v4392
    %v4432 = vadd.f32 %v4431, %v4394
    %v4433 = vrot.slane %v4432, 4
    %v4434 = vadd.f32 %v4432, %v4433
    %v4435 = vrot.slane %v4434, 2
    %v4436 = vadd.f32 %v4434, %v4435
    %v4437 = vrot.slane %v4436, 1
    %v4438 = vadd.f32 %v4436, %v4437
    %v4439 = vadd.f32 %v4395, %v4397
    %v4440 = vadd.f32 %v4439, %v4399
    %v4441 = vrot.slane %v4440, 4
    %v4442 = vadd.f32 %v4440, %v4441
    %v4443 = vrot.slane %v4442, 2
    %v4444 = vadd.f32 %v4442, %v4443
    %v4445 = vrot.slane %v4444, 1
    %v4446 = vadd.f32 %v4444, %v4445
    %v4447 = vadd.f32 %v4396, %v4398
    %v4448 = vadd.f32 %v4447, %v4400
    %v4449 = vrot.slane %v4448, 4
    %v4450 = vadd.f32 %v4448, %v4449
    %v4451 = vrot.slane %v4450, 2
    %v4452 = vadd.f32 %v4450, %v4451
    %v4453 = vrot.slane %v4452, 1
    %v4454 = vadd.f32 %v4452, %v4453
    %v4455 = vadd.f32 %v4401, %v4403
    %v4456 = vadd.f32 %v4455, %v4405
    %v4457 = vrot.slane %v4456, 4
    %v4458 = vadd.f32 %v4456, %v4457
    %v4459 = vrot.slane %v4458, 2
    %v4460 = vadd.f32 %v4458, %v4459
    %v4461 = vrot.slane %v4460, 1
    %v4462 = vadd.f32 %v4460, %v4461
    %v4463 = vadd.f32 %v4402, %v4404
    %v4464 = vadd.f32 %v4463, %v4406
    %v4465 = vrot.slane %v4464, 4
    %v4466 = vadd.f32 %v4464, %v4465
    %v4467 = vrot.slane %v4466, 2
    %v4468 = vadd.f32 %v4466, %v4467
    %v4469 = vrot.slane %v4468, 1
    %v4470 = vadd.f32 %v4468, %v4469
    %v4479 = vsel %vm680, %v4430, %v4414
    %v4480 = vsel %vm682, %v4446, %v4479
    %v4481 = vsel %vm684, %v4462, %v4480
    %v4482 = vsel %vm680, %v4438, %v4422
    %v4483 = vsel %vm682, %v4454, %v4482
    %v4484 = vsel %vm684, %v4470, %v4483
    %4487 = vst [vmem:[#allocation2 + $0x30] sm:$0xf] %v4481
    %4488 = vst [vmem:[#allocation2 + $0x38] sm:$0xf] %v4484
    %v4489 = vperm.slane %v3448, 3
    %v4490 = vperm.slane %v3449, 3
    %vm4491 = vcmp.eq.f32.partialorder %v180, %v4489
    %vm4492 = vcmp.eq.f32.partialorder %v180, %v4490
    %vm4493 = vcmp.eq.f32.partialorder %v181, %v4489
    %vm4494 = vcmp.eq.f32.partialorder %v181, %v4490
    %vm4495 = vcmp.eq.f32.partialorder %v300, %v4489
    %vm4496 = vcmp.eq.f32.partialorder %v300, %v4490
    %v4497 = vperm.slane %v3474, 3
    %v4498 = vperm.slane %v3475, 3
    %v4499 = vsel %vm4491, %v4497, 0.0
    %v4500 = vsel %vm4492, %v4498, 0.0
    %v4501 = vsel %vm4493, %v4497, 0.0
    %v4502 = vsel %vm4494, %v4498, 0.0
    %v4503 = vsel %vm4495, %v4497, 0.0
    %v4504 = vsel %vm4496, %v4498, 0.0
    %v4505 = vperm.slane %v3454, 3
    %v4506 = vperm.slane %v3455, 3
    %vm4507 = vcmp.eq.f32.partialorder %v180, %v4505
    %vm4508 = vcmp.eq.f32.partialorder %v180, %v4506
    %vm4509 = vcmp.eq.f32.partialorder %v181, %v4505
    %vm4510 = vcmp.eq.f32.partialorder %v181, %v4506
    %vm4511 = vcmp.eq.f32.partialorder %v300, %v4505
    %vm4512 = vcmp.eq.f32.partialorder %v300, %v4506
    %v4513 = vperm.slane %v3478, 3
    %v4514 = vperm.slane %v3479, 3
    %v4515 = vsel %vm4507, %v4513, 0.0
    %v4516 = vsel %vm4508, %v4514, 0.0
    %v4517 = vsel %vm4509, %v4513, 0.0
    %v4518 = vsel %vm4510, %v4514, 0.0
    %v4519 = vsel %vm4511, %v4513, 0.0
    %v4520 = vsel %vm4512, %v4514, 0.0
    %v4521 = vadd.f32 %v4499, %v4515
    %v4522 = vadd.f32 %v4500, %v4516
    %v4523 = vadd.f32 %v4501, %v4517
    %v4524 = vadd.f32 %v4502, %v4518
    %v4525 = vadd.f32 %v4503, %v4519
    %v4526 = vadd.f32 %v4504, %v4520
    %v4527 = vperm.slane %v3438, 3
    %v4528 = vperm.slane %v3439, 3
    %vm4529 = vcmp.eq.f32.partialorder %v180, %v4527
    %vm4530 = vcmp.eq.f32.partialorder %v180, %v4528
    %vm4531 = vcmp.eq.f32.partialorder %v181, %v4527
    %vm4532 = vcmp.eq.f32.partialorder %v181, %v4528
    %vm4533 = vcmp.eq.f32.partialorder %v300, %v4527
    %vm4534 = vcmp.eq.f32.partialorder %v300, %v4528
    %v4535 = vperm.slane %v3466, 3
    %v4536 = vperm.slane %v3467, 3
    %v4537 = vsel %vm4529, %v4535, 0.0
    %v4538 = vsel %vm4530, %v4536, 0.0
    %v4539 = vsel %vm4531, %v4535, 0.0
    %v4540 = vsel %vm4532, %v4536, 0.0
    %v4541 = vsel %vm4533, %v4535, 0.0
    %v4542 = vsel %vm4534, %v4536, 0.0
    %v4543 = vperm.slane %v3444, 3
    %v4544 = vperm.slane %v3445, 3
    %vm4545 = vcmp.eq.f32.partialorder %v180, %v4543
    %vm4546 = vcmp.eq.f32.partialorder %v180, %v4544
    %vm4547 = vcmp.eq.f32.partialorder %v181, %v4543
    %vm4548 = vcmp.eq.f32.partialorder %v181, %v4544
    %vm4549 = vcmp.eq.f32.partialorder %v300, %v4543
    %vm4550 = vcmp.eq.f32.partialorder %v300, %v4544
    %v4551 = vperm.slane %v3470, 3
    %v4552 = vperm.slane %v3471, 3
    %v4553 = vsel %vm4545, %v4551, 0.0
    %v4554 = vsel %vm4546, %v4552, 0.0
    %v4555 = vsel %vm4547, %v4551, 0.0
    %v4556 = vsel %vm4548, %v4552, 0.0
    %v4557 = vsel %vm4549, %v4551, 0.0
    %v4558 = vsel %vm4550, %v4552, 0.0
    %v4559 = vadd.f32 %v4537, %v4553
    %v4560 = vadd.f32 %v4538, %v4554
    %v4561 = vadd.f32 %v4539, %v4555
    %v4562 = vadd.f32 %v4540, %v4556
    %v4563 = vadd.f32 %v4541, %v4557
    %v4564 = vadd.f32 %v4542, %v4558
    %v4565 = vld [vmem:[%s3556] sm:$0xff]
    %v4566 = vld [vmem:[%s3556 + $0x8] sm:$0xff]
    %v4567 = vld [vmem:[%s3556 + $0x10] sm:$0xff]
    %v4568 = vld [vmem:[%s3556 + $0x18] sm:$0xff]
    %v4569 = vld [vmem:[%s3556 + $0x20] sm:$0xff]
    %v4570 = vld [vmem:[%s3556 + $0x28] sm:$0xff]
    %v4571 = vld [vmem:[%s3556 + $0x30] sm:$0xff]
    %v4572 = vld [vmem:[%s3556 + $0x38] sm:$0xff]
    %v4573 = vld [vmem:[%s3556 + $0x40] sm:$0xff]
    %v4574 = vld [vmem:[%s3556 + $0x48] sm:$0xff]
    %v4575 = vld [vmem:[%s3556 + $0x50] sm:$0xff]
    %v4576 = vld [vmem:[%s3556 + $0x58] sm:$0xff]
    %v4578 = vsel %vm441, %v4565, 0
    %v4581 = vsel %vm441, %v4566, 0
    %v4584 = vsel %vm441, %v4567, 0
    %v4587 = vsel %vm441, %v4568, 0
    %v4590 = vsel %vm441, %v4569, 0
    %v4593 = vsel %vm441, %v4570, 0
    %v4596 = vsel %vm441, %v4571, 0
    %v4599 = vsel %vm441, %v4572, 0
    %v4602 = vsel %vm441, %v4573, 0
    %v4605 = vsel %vm441, %v4574, 0
    %v4608 = vsel %vm441, %v4575, 0
    %v4611 = vsel %vm441, %v4576, 0
    %4613 = vmatpush.msra.mxu0 0.0
    %4614 = vmatpush.msra.mxu0 0.0
    %4615 = vmatpush.msra.mxu0 0.0
    %4616 = vmatpush.msra.mxu0 0.0
    %4617 = vmatpush.msra.mxu0 0.0
    %4618 = vmatpush.msra.mxu0 0.0
    %4619 = vmatpush.msra.mxu0 0.0
    %4620 = vmatpush.msra.mxu0 0.0
    %4621 = vmatpush.msra.mxu0 0.0
    %4622 = vmatpush.msra.mxu0 0.0
    %4623 = vmatpush.msra.mxu0 0.0
    %4624 = vmatpush.msra.mxu0 0.0
    %4625 = vmatpush.msra.mxu0 0.0
    %4626 = vmatpush.msra.mxu0 %v4525
    %4627 = vmatpush.msra.mxu0 %v4523
    %4628 = vmatpush.msra.mxu0 %v4521
    %4629 = vmatmul.f32.gmra.mxu0 %v4578
    %v4630 = vpop.f32.mrf.mxu0
    %v4631 = vadd.f32 0.0, %v4630
    %4632 = vmatmul.f32.gmra.mxu0 %v4581
    %v4633 = vpop.f32.mrf.mxu0
    %v4634 = vadd.f32 0.0, %v4633
    %4635 = vmatmul.f32.gmra.mxu0 %v4584
    %v4636 = vpop.f32.mrf.mxu0
    %v4637 = vadd.f32 0.0, %v4636
    %4638 = vmatmul.f32.gmra.mxu0 %v4587
    %v4639 = vpop.f32.mrf.mxu0
    %v4640 = vadd.f32 0.0, %v4639
    %4641 = vmatmul.f32.gmra.mxu0 %v4590
    %v4642 = vpop.f32.mrf.mxu0
    %v4643 = vadd.f32 0.0, %v4642
    %4644 = vmatmul.f32.gmra.mxu0 %v4593
    %v4645 = vpop.f32.mrf.mxu0
    %v4646 = vadd.f32 0.0, %v4645
    %4647 = vmatmul.f32.gmra.mxu0 %v4596
    %v4648 = vpop.f32.mrf.mxu0
    %v4649 = vadd.f32 0.0, %v4648
    %4650 = vmatmul.f32.gmra.mxu0 %v4599
    %v4651 = vpop.f32.mrf.mxu0
    %v4652 = vadd.f32 0.0, %v4651
    %4653 = vmatmul.f32.gmra.mxu0 %v4602
    %v4654 = vpop.f32.mrf.mxu0
    %v4655 = vadd.f32 0.0, %v4654
    %4656 = vmatmul.f32.gmra.mxu0 %v4605
    %v4657 = vpop.f32.mrf.mxu0
    %v4658 = vadd.f32 0.0, %v4657
    %4659 = vmatmul.f32.gmra.mxu0 %v4608
    %v4660 = vpop.f32.mrf.mxu0
    %v4661 = vadd.f32 0.0, %v4660
    %4662 = vmatmul.f32.gmra.mxu0 %v4611
    %v4663 = vpop.f32.mrf.mxu0
    %v4664 = vadd.f32 0.0, %v4663
    %4665 = vdwg.mxu0
    %4666 = vmatpush.msra.mxu0 0.0
    %4667 = vmatpush.msra.mxu0 0.0
    %4668 = vmatpush.msra.mxu0 0.0
    %4669 = vmatpush.msra.mxu0 0.0
    %4670 = vmatpush.msra.mxu0 0.0
    %4671 = vmatpush.msra.mxu0 0.0
    %4672 = vmatpush.msra.mxu0 0.0
    %4673 = vmatpush.msra.mxu0 0.0
    %4674 = vmatpush.msra.mxu0 0.0
    %4675 = vmatpush.msra.mxu0 0.0
    %4676 = vmatpush.msra.mxu0 0.0
    %4677 = vmatpush.msra.mxu0 0.0
    %4678 = vmatpush.msra.mxu0 0.0
    %4679 = vmatpush.msra.mxu0 %v4526
    %4680 = vmatpush.msra.mxu0 %v4524
    %4681 = vmatpush.msra.mxu0 %v4522
    %4682 = vmatmul.f32.gmra.mxu0 %v4578
    %v4683 = vpop.f32.mrf.mxu0
    %v4684 = vadd.f32 0.0, %v4683
    %4685 = vmatmul.f32.gmra.mxu0 %v4581
    %v4686 = vpop.f32.mrf.mxu0
    %v4687 = vadd.f32 0.0, %v4686
    %4688 = vmatmul.f32.gmra.mxu0 %v4584
    %v4689 = vpop.f32.mrf.mxu0
    %v4690 = vadd.f32 0.0, %v4689
    %4691 = vmatmul.f32.gmra.mxu0 %v4587
    %v4692 = vpop.f32.mrf.mxu0
    %v4693 = vadd.f32 0.0, %v4692
    %4694 = vmatmul.f32.gmra.mxu0 %v4590
    %v4695 = vpop.f32.mrf.mxu0
    %v4696 = vadd.f32 0.0, %v4695
    %4697 = vmatmul.f32.gmra.mxu0 %v4593
    %v4698 = vpop.f32.mrf.mxu0
    %v4699 = vadd.f32 0.0, %v4698
    %4700 = vmatmul.f32.gmra.mxu0 %v4596
    %v4701 = vpop.f32.mrf.mxu0
    %v4702 = vadd.f32 0.0, %v4701
    %4703 = vmatmul.f32.gmra.mxu0 %v4599
    %v4704 = vpop.f32.mrf.mxu0
    %v4705 = vadd.f32 0.0, %v4704
    %4706 = vmatmul.f32.gmra.mxu0 %v4602
    %v4707 = vpop.f32.mrf.mxu0
    %v4708 = vadd.f32 0.0, %v4707
    %4709 = vmatmul.f32.gmra.mxu0 %v4605
    %v4710 = vpop.f32.mrf.mxu0
    %v4711 = vadd.f32 0.0, %v4710
    %4712 = vmatmul.f32.gmra.mxu0 %v4608
    %v4713 = vpop.f32.mrf.mxu0
    %v4714 = vadd.f32 0.0, %v4713
    %4715 = vmatmul.f32.gmra.mxu0 %v4611
    %v4716 = vpop.f32.mrf.mxu0
    %v4717 = vadd.f32 0.0, %v4716
    %4718 = vdwg.mxu0
    %v4719 = vmul.f32 %v4631, %v4559
    %v4720 = vmul.f32 %v4684, %v4560
    %v4721 = vmul.f32 %v4634, %v4561
    %v4722 = vmul.f32 %v4687, %v4562
    %v4723 = vmul.f32 %v4637, %v4563
    %v4724 = vmul.f32 %v4690, %v4564
    %v4725 = vmul.f32 %v4640, %v4559
    %v4726 = vmul.f32 %v4693, %v4560
    %v4727 = vmul.f32 %v4643, %v4561
    %v4728 = vmul.f32 %v4696, %v4562
    %v4729 = vmul.f32 %v4646, %v4563
    %v4730 = vmul.f32 %v4699, %v4564
    %v4731 = vmul.f32 %v4649, %v4559
    %v4732 = vmul.f32 %v4702, %v4560
    %v4733 = vmul.f32 %v4652, %v4561
    %v4734 = vmul.f32 %v4705, %v4562
    %v4735 = vmul.f32 %v4655, %v4563
    %v4736 = vmul.f32 %v4708, %v4564
    %v4737 = vmul.f32 %v4658, %v4559
    %v4738 = vmul.f32 %v4711, %v4560
    %v4739 = vmul.f32 %v4661, %v4561
    %v4740 = vmul.f32 %v4714, %v4562
    %v4741 = vmul.f32 %v4664, %v4563
    %v4742 = vmul.f32 %v4717, %v4564
    %v4743 = vadd.f32 %v4719, %v4721
    %v4744 = vadd.f32 %v4743, %v4723
    %v4745 = vrot.slane %v4744, 4
    %v4746 = vadd.f32 %v4744, %v4745
    %v4747 = vrot.slane %v4746, 2
    %v4748 = vadd.f32 %v4746, %v4747
    %v4749 = vrot.slane %v4748, 1
    %v4750 = vadd.f32 %v4748, %v4749
    %v4751 = vadd.f32 %v4720, %v4722
    %v4752 = vadd.f32 %v4751, %v4724
    %v4753 = vrot.slane %v4752, 4
    %v4754 = vadd.f32 %v4752, %v4753
    %v4755 = vrot.slane %v4754, 2
    %v4756 = vadd.f32 %v4754, %v4755
    %v4757 = vrot.slane %v4756, 1
    %v4758 = vadd.f32 %v4756, %v4757
    %v4759 = vadd.f32 %v4725, %v4727
    %v4760 = vadd.f32 %v4759, %v4729
    %v4761 = vrot.slane %v4760, 4
    %v4762 = vadd.f32 %v4760, %v4761
    %v4763 = vrot.slane %v4762, 2
    %v4764 = vadd.f32 %v4762, %v4763
    %v4765 = vrot.slane %v4764, 1
    %v4766 = vadd.f32 %v4764, %v4765
    %v4767 = vadd.f32 %v4726, %v4728
    %v4768 = vadd.f32 %v4767, %v4730
    %v4769 = vrot.slane %v4768, 4
    %v4770 = vadd.f32 %v4768, %v4769
    %v4771 = vrot.slane %v4770, 2
    %v4772 = vadd.f32 %v4770, %v4771
    %v4773 = vrot.slane %v4772, 1
    %v4774 = vadd.f32 %v4772, %v4773
    %v4775 = vadd.f32 %v4731, %v4733
    %v4776 = vadd.f32 %v4775, %v4735
    %v4777 = vrot.slane %v4776, 4
    %v4778 = vadd.f32 %v4776, %v4777
    %v4779 = vrot.slane %v4778, 2
    %v4780 = vadd.f32 %v4778, %v4779
    %v4781 = vrot.slane %v4780, 1
    %v4782 = vadd.f32 %v4780, %v4781
    %v4783 = vadd.f32 %v4732, %v4734
    %v4784 = vadd.f32 %v4783, %v4736
    %v4785 = vrot.slane %v4784, 4
    %v4786 = vadd.f32 %v4784, %v4785
    %v4787 = vrot.slane %v4786, 2
    %v4788 = vadd.f32 %v4786, %v4787
    %v4789 = vrot.slane %v4788, 1
    %v4790 = vadd.f32 %v4788, %v4789
    %v4791 = vadd.f32 %v4737, %v4739
    %v4792 = vadd.f32 %v4791, %v4741
    %v4793 = vrot.slane %v4792, 4
    %v4794 = vadd.f32 %v4792, %v4793
    %v4795 = vrot.slane %v4794, 2
    %v4796 = vadd.f32 %v4794, %v4795
    %v4797 = vrot.slane %v4796, 1
    %v4798 = vadd.f32 %v4796, %v4797
    %v4799 = vadd.f32 %v4738, %v4740
    %v4800 = vadd.f32 %v4799, %v4742
    %v4801 = vrot.slane %v4800, 4
    %v4802 = vadd.f32 %v4800, %v4801
    %v4803 = vrot.slane %v4802, 2
    %v4804 = vadd.f32 %v4802, %v4803
    %v4805 = vrot.slane %v4804, 1
    %v4806 = vadd.f32 %v4804, %v4805
    %v4815 = vsel %vm1019, %v4766, %v4750
    %v4816 = vsel %vm1021, %v4782, %v4815
    %v4817 = vsel %vm1023, %v4798, %v4816
    %v4818 = vsel %vm1019, %v4774, %v4758
    %v4819 = vsel %vm1021, %v4790, %v4818
    %v4820 = vsel %vm1023, %v4806, %v4819
    %4823 = vst [vmem:[#allocation2 + $0x30] sm:$0xf0] %v4817
    %4824 = vst [vmem:[#allocation2 + $0x38] sm:$0xf0] %v4820
    %v4825 = vperm.slane %v3448, 4
    %v4826 = vperm.slane %v3449, 4
    %vm4827 = vcmp.eq.f32.partialorder %v180, %v4825
    %vm4828 = vcmp.eq.f32.partialorder %v180, %v4826
    %vm4829 = vcmp.eq.f32.partialorder %v181, %v4825
    %vm4830 = vcmp.eq.f32.partialorder %v181, %v4826
    %vm4831 = vcmp.eq.f32.partialorder %v300, %v4825
    %vm4832 = vcmp.eq.f32.partialorder %v300, %v4826
    %v4833 = vperm.slane %v3474, 4
    %v4834 = vperm.slane %v3475, 4
    %v4835 = vsel %vm4827, %v4833, 0.0
    %v4836 = vsel %vm4828, %v4834, 0.0
    %v4837 = vsel %vm4829, %v4833, 0.0
    %v4838 = vsel %vm4830, %v4834, 0.0
    %v4839 = vsel %vm4831, %v4833, 0.0
    %v4840 = vsel %vm4832, %v4834, 0.0
    %v4841 = vperm.slane %v3454, 4
    %v4842 = vperm.slane %v3455, 4
    %vm4843 = vcmp.eq.f32.partialorder %v180, %v4841
    %vm4844 = vcmp.eq.f32.partialorder %v180, %v4842
    %vm4845 = vcmp.eq.f32.partialorder %v181, %v4841
    %vm4846 = vcmp.eq.f32.partialorder %v181, %v4842
    %vm4847 = vcmp.eq.f32.partialorder %v300, %v4841
    %vm4848 = vcmp.eq.f32.partialorder %v300, %v4842
    %v4849 = vperm.slane %v3478, 4
    %v4850 = vperm.slane %v3479, 4
    %v4851 = vsel %vm4843, %v4849, 0.0
    %v4852 = vsel %vm4844, %v4850, 0.0
    %v4853 = vsel %vm4845, %v4849, 0.0
    %v4854 = vsel %vm4846, %v4850, 0.0
    %v4855 = vsel %vm4847, %v4849, 0.0
    %v4856 = vsel %vm4848, %v4850, 0.0
    %v4857 = vadd.f32 %v4835, %v4851
    %v4858 = vadd.f32 %v4836, %v4852
    %v4859 = vadd.f32 %v4837, %v4853
    %v4860 = vadd.f32 %v4838, %v4854
    %v4861 = vadd.f32 %v4839, %v4855
    %v4862 = vadd.f32 %v4840, %v4856
    %v4863 = vperm.slane %v3438, 4
    %v4864 = vperm.slane %v3439, 4
    %vm4865 = vcmp.eq.f32.partialorder %v180, %v4863
    %vm4866 = vcmp.eq.f32.partialorder %v180, %v4864
    %vm4867 = vcmp.eq.f32.partialorder %v181, %v4863
    %vm4868 = vcmp.eq.f32.partialorder %v181, %v4864
    %vm4869 = vcmp.eq.f32.partialorder %v300, %v4863
    %vm4870 = vcmp.eq.f32.partialorder %v300, %v4864
    %v4871 = vperm.slane %v3466, 4
    %v4872 = vperm.slane %v3467, 4
    %v4873 = vsel %vm4865, %v4871, 0.0
    %v4874 = vsel %vm4866, %v4872, 0.0
    %v4875 = vsel %vm4867, %v4871, 0.0
    %v4876 = vsel %vm4868, %v4872, 0.0
    %v4877 = vsel %vm4869, %v4871, 0.0
    %v4878 = vsel %vm4870, %v4872, 0.0
    %v4879 = vperm.slane %v3444, 4
    %v4880 = vperm.slane %v3445, 4
    %vm4881 = vcmp.eq.f32.partialorder %v180, %v4879
    %vm4882 = vcmp.eq.f32.partialorder %v180, %v4880
    %vm4883 = vcmp.eq.f32.partialorder %v181, %v4879
    %vm4884 = vcmp.eq.f32.partialorder %v181, %v4880
    %vm4885 = vcmp.eq.f32.partialorder %v300, %v4879
    %vm4886 = vcmp.eq.f32.partialorder %v300, %v4880
    %v4887 = vperm.slane %v3470, 4
    %v4888 = vperm.slane %v3471, 4
    %v4889 = vsel %vm4881, %v4887, 0.0
    %v4890 = vsel %vm4882, %v4888, 0.0
    %v4891 = vsel %vm4883, %v4887, 0.0
    %v4892 = vsel %vm4884, %v4888, 0.0
    %v4893 = vsel %vm4885, %v4887, 0.0
    %v4894 = vsel %vm4886, %v4888, 0.0
    %v4895 = vadd.f32 %v4873, %v4889
    %v4896 = vadd.f32 %v4874, %v4890
    %v4897 = vadd.f32 %v4875, %v4891
    %v4898 = vadd.f32 %v4876, %v4892
    %v4899 = vadd.f32 %v4877, %v4893
    %v4900 = vadd.f32 %v4878, %v4894
    %v4901 = vld [vmem:[%s3556] sm:$0xff]
    %v4902 = vld [vmem:[%s3556 + $0x8] sm:$0xff]
    %v4903 = vld [vmem:[%s3556 + $0x10] sm:$0xff]
    %v4904 = vld [vmem:[%s3556 + $0x18] sm:$0xff]
    %v4905 = vld [vmem:[%s3556 + $0x20] sm:$0xff]
    %v4906 = vld [vmem:[%s3556 + $0x28] sm:$0xff]
    %v4907 = vld [vmem:[%s3556 + $0x30] sm:$0xff]
    %v4908 = vld [vmem:[%s3556 + $0x38] sm:$0xff]
    %v4909 = vld [vmem:[%s3556 + $0x40] sm:$0xff]
    %v4910 = vld [vmem:[%s3556 + $0x48] sm:$0xff]
    %v4911 = vld [vmem:[%s3556 + $0x50] sm:$0xff]
    %v4912 = vld [vmem:[%s3556 + $0x58] sm:$0xff]
    %v4914 = vsel %vm441, %v4901, 0
    %v4917 = vsel %vm441, %v4902, 0
    %v4920 = vsel %vm441, %v4903, 0
    %v4923 = vsel %vm441, %v4904, 0
    %v4926 = vsel %vm441, %v4905, 0
    %v4929 = vsel %vm441, %v4906, 0
    %v4932 = vsel %vm441, %v4907, 0
    %v4935 = vsel %vm441, %v4908, 0
    %v4938 = vsel %vm441, %v4909, 0
    %v4941 = vsel %vm441, %v4910, 0
    %v4944 = vsel %vm441, %v4911, 0
    %v4947 = vsel %vm441, %v4912, 0
    %4949 = vmatpush.msra.mxu0 0.0
    %4950 = vmatpush.msra.mxu0 0.0
    %4951 = vmatpush.msra.mxu0 0.0
    %4952 = vmatpush.msra.mxu0 0.0
    %4953 = vmatpush.msra.mxu0 0.0
    %4954 = vmatpush.msra.mxu0 0.0
    %4955 = vmatpush.msra.mxu0 0.0
    %4956 = vmatpush.msra.mxu0 0.0
    %4957 = vmatpush.msra.mxu0 0.0
    %4958 = vmatpush.msra.mxu0 0.0
    %4959 = vmatpush.msra.mxu0 0.0
    %4960 = vmatpush.msra.mxu0 0.0
    %4961 = vmatpush.msra.mxu0 0.0
    %4962 = vmatpush.msra.mxu0 %v4861
    %4963 = vmatpush.msra.mxu0 %v4859
    %4964 = vmatpush.msra.mxu0 %v4857
    %4965 = vmatmul.f32.gmra.mxu0 %v4914
    %v4966 = vpop.f32.mrf.mxu0
    %v4967 = vadd.f32 0.0, %v4966
    %4968 = vmatmul.f32.gmra.mxu0 %v4917
    %v4969 = vpop.f32.mrf.mxu0
    %v4970 = vadd.f32 0.0, %v4969
    %4971 = vmatmul.f32.gmra.mxu0 %v4920
    %v4972 = vpop.f32.mrf.mxu0
    %v4973 = vadd.f32 0.0, %v4972
    %4974 = vmatmul.f32.gmra.mxu0 %v4923
    %v4975 = vpop.f32.mrf.mxu0
    %v4976 = vadd.f32 0.0, %v4975
    %4977 = vmatmul.f32.gmra.mxu0 %v4926
    %v4978 = vpop.f32.mrf.mxu0
    %v4979 = vadd.f32 0.0, %v4978
    %4980 = vmatmul.f32.gmra.mxu0 %v4929
    %v4981 = vpop.f32.mrf.mxu0
    %v4982 = vadd.f32 0.0, %v4981
    %4983 = vmatmul.f32.gmra.mxu0 %v4932
    %v4984 = vpop.f32.mrf.mxu0
    %v4985 = vadd.f32 0.0, %v4984
    %4986 = vmatmul.f32.gmra.mxu0 %v4935
    %v4987 = vpop.f32.mrf.mxu0
    %v4988 = vadd.f32 0.0, %v4987
    %4989 = vmatmul.f32.gmra.mxu0 %v4938
    %v4990 = vpop.f32.mrf.mxu0
    %v4991 = vadd.f32 0.0, %v4990
    %4992 = vmatmul.f32.gmra.mxu0 %v4941
    %v4993 = vpop.f32.mrf.mxu0
    %v4994 = vadd.f32 0.0, %v4993
    %4995 = vmatmul.f32.gmra.mxu0 %v4944
    %v4996 = vpop.f32.mrf.mxu0
    %v4997 = vadd.f32 0.0, %v4996
    %4998 = vmatmul.f32.gmra.mxu0 %v4947
    %v4999 = vpop.f32.mrf.mxu0
    %v5000 = vadd.f32 0.0, %v4999
    %5001 = vdwg.mxu0
    %5002 = vmatpush.msra.mxu0 0.0
    %5003 = vmatpush.msra.mxu0 0.0
    %5004 = vmatpush.msra.mxu0 0.0
    %5005 = vmatpush.msra.mxu0 0.0
    %5006 = vmatpush.msra.mxu0 0.0
    %5007 = vmatpush.msra.mxu0 0.0
    %5008 = vmatpush.msra.mxu0 0.0
    %5009 = vmatpush.msra.mxu0 0.0
    %5010 = vmatpush.msra.mxu0 0.0
    %5011 = vmatpush.msra.mxu0 0.0
    %5012 = vmatpush.msra.mxu0 0.0
    %5013 = vmatpush.msra.mxu0 0.0
    %5014 = vmatpush.msra.mxu0 0.0
    %5015 = vmatpush.msra.mxu0 %v4862
    %5016 = vmatpush.msra.mxu0 %v4860
    %5017 = vmatpush.msra.mxu0 %v4858
    %5018 = vmatmul.f32.gmra.mxu0 %v4914
    %v5019 = vpop.f32.mrf.mxu0
    %v5020 = vadd.f32 0.0, %v5019
    %5021 = vmatmul.f32.gmra.mxu0 %v4917
    %v5022 = vpop.f32.mrf.mxu0
    %v5023 = vadd.f32 0.0, %v5022
    %5024 = vmatmul.f32.gmra.mxu0 %v4920
    %v5025 = vpop.f32.mrf.mxu0
    %v5026 = vadd.f32 0.0, %v5025
    %5027 = vmatmul.f32.gmra.mxu0 %v4923
    %v5028 = vpop.f32.mrf.mxu0
    %v5029 = vadd.f32 0.0, %v5028
    %5030 = vmatmul.f32.gmra.mxu0 %v4926
    %v5031 = vpop.f32.mrf.mxu0
    %v5032 = vadd.f32 0.0, %v5031
    %5033 = vmatmul.f32.gmra.mxu0 %v4929
    %v5034 = vpop.f32.mrf.mxu0
    %v5035 = vadd.f32 0.0, %v5034
    %5036 = vmatmul.f32.gmra.mxu0 %v4932
    %v5037 = vpop.f32.mrf.mxu0
    %v5038 = vadd.f32 0.0, %v5037
    %5039 = vmatmul.f32.gmra.mxu0 %v4935
    %v5040 = vpop.f32.mrf.mxu0
    %v5041 = vadd.f32 0.0, %v5040
    %5042 = vmatmul.f32.gmra.mxu0 %v4938
    %v5043 = vpop.f32.mrf.mxu0
    %v5044 = vadd.f32 0.0, %v5043
    %5045 = vmatmul.f32.gmra.mxu0 %v4941
    %v5046 = vpop.f32.mrf.mxu0
    %v5047 = vadd.f32 0.0, %v5046
    %5048 = vmatmul.f32.gmra.mxu0 %v4944
    %v5049 = vpop.f32.mrf.mxu0
    %v5050 = vadd.f32 0.0, %v5049
    %5051 = vmatmul.f32.gmra.mxu0 %v4947
    %v5052 = vpop.f32.mrf.mxu0
    %v5053 = vadd.f32 0.0, %v5052
    %5054 = vdwg.mxu0
    %v5055 = vmul.f32 %v4967, %v4895
    %v5056 = vmul.f32 %v5020, %v4896
    %v5057 = vmul.f32 %v4970, %v4897
    %v5058 = vmul.f32 %v5023, %v4898
    %v5059 = vmul.f32 %v4973, %v4899
    %v5060 = vmul.f32 %v5026, %v4900
    %v5061 = vmul.f32 %v4976, %v4895
    %v5062 = vmul.f32 %v5029, %v4896
    %v5063 = vmul.f32 %v4979, %v4897
    %v5064 = vmul.f32 %v5032, %v4898
    %v5065 = vmul.f32 %v4982, %v4899
    %v5066 = vmul.f32 %v5035, %v4900
    %v5067 = vmul.f32 %v4985, %v4895
    %v5068 = vmul.f32 %v5038, %v4896
    %v5069 = vmul.f32 %v4988, %v4897
    %v5070 = vmul.f32 %v5041, %v4898
    %v5071 = vmul.f32 %v4991, %v4899
    %v5072 = vmul.f32 %v5044, %v4900
    %v5073 = vmul.f32 %v4994, %v4895
    %v5074 = vmul.f32 %v5047, %v4896
    %v5075 = vmul.f32 %v4997, %v4897
    %v5076 = vmul.f32 %v5050, %v4898
    %v5077 = vmul.f32 %v5000, %v4899
    %v5078 = vmul.f32 %v5053, %v4900
    %v5079 = vadd.f32 %v5055, %v5057
    %v5080 = vadd.f32 %v5079, %v5059
    %v5081 = vrot.slane %v5080, 4
    %v5082 = vadd.f32 %v5080, %v5081
    %v5083 = vrot.slane %v5082, 2
    %v5084 = vadd.f32 %v5082, %v5083
    %v5085 = vrot.slane %v5084, 1
    %v5086 = vadd.f32 %v5084, %v5085
    %v5087 = vadd.f32 %v5056, %v5058
    %v5088 = vadd.f32 %v5087, %v5060
    %v5089 = vrot.slane %v5088, 4
    %v5090 = vadd.f32 %v5088, %v5089
    %v5091 = vrot.slane %v5090, 2
    %v5092 = vadd.f32 %v5090, %v5091
    %v5093 = vrot.slane %v5092, 1
    %v5094 = vadd.f32 %v5092, %v5093
    %v5095 = vadd.f32 %v5061, %v5063
    %v5096 = vadd.f32 %v5095, %v5065
    %v5097 = vrot.slane %v5096, 4
    %v5098 = vadd.f32 %v5096, %v5097
    %v5099 = vrot.slane %v5098, 2
    %v5100 = vadd.f32 %v5098, %v5099
    %v5101 = vrot.slane %v5100, 1
    %v5102 = vadd.f32 %v5100, %v5101
    %v5103 = vadd.f32 %v5062, %v5064
    %v5104 = vadd.f32 %v5103, %v5066
    %v5105 = vrot.slane %v5104, 4
    %v5106 = vadd.f32 %v5104, %v5105
    %v5107 = vrot.slane %v5106, 2
    %v5108 = vadd.f32 %v5106, %v5107
    %v5109 = vrot.slane %v5108, 1
    %v5110 = vadd.f32 %v5108, %v5109
    %v5111 = vadd.f32 %v5067, %v5069
    %v5112 = vadd.f32 %v5111, %v5071
    %v5113 = vrot.slane %v5112, 4
    %v5114 = vadd.f32 %v5112, %v5113
    %v5115 = vrot.slane %v5114, 2
    %v5116 = vadd.f32 %v5114, %v5115
    %v5117 = vrot.slane %v5116, 1
    %v5118 = vadd.f32 %v5116, %v5117
    %v5119 = vadd.f32 %v5068, %v5070
    %v5120 = vadd.f32 %v5119, %v5072
    %v5121 = vrot.slane %v5120, 4
    %v5122 = vadd.f32 %v5120, %v5121
    %v5123 = vrot.slane %v5122, 2
    %v5124 = vadd.f32 %v5122, %v5123
    %v5125 = vrot.slane %v5124, 1
    %v5126 = vadd.f32 %v5124, %v5125
    %v5127 = vadd.f32 %v5073, %v5075
    %v5128 = vadd.f32 %v5127, %v5077
    %v5129 = vrot.slane %v5128, 4
    %v5130 = vadd.f32 %v5128, %v5129
    %v5131 = vrot.slane %v5130, 2
    %v5132 = vadd.f32 %v5130, %v5131
    %v5133 = vrot.slane %v5132, 1
    %v5134 = vadd.f32 %v5132, %v5133
    %v5135 = vadd.f32 %v5074, %v5076
    %v5136 = vadd.f32 %v5135, %v5078
    %v5137 = vrot.slane %v5136, 4
    %v5138 = vadd.f32 %v5136, %v5137
    %v5139 = vrot.slane %v5138, 2
    %v5140 = vadd.f32 %v5138, %v5139
    %v5141 = vrot.slane %v5140, 1
    %v5142 = vadd.f32 %v5140, %v5141
    %v5151 = vsel %vm680, %v5102, %v5086
    %v5152 = vsel %vm682, %v5118, %v5151
    %v5153 = vsel %vm684, %v5134, %v5152
    %v5154 = vsel %vm680, %v5110, %v5094
    %v5155 = vsel %vm682, %v5126, %v5154
    %v5156 = vsel %vm684, %v5142, %v5155
    %5159 = vst [vmem:[#allocation2 + $0x50] sm:$0xf] %v5153
    %5160 = vst [vmem:[#allocation2 + $0x58] sm:$0xf] %v5156
    %v5161 = vperm.slane %v3448, 5
    %v5162 = vperm.slane %v3449, 5
    %vm5163 = vcmp.eq.f32.partialorder %v180, %v5161
    %vm5164 = vcmp.eq.f32.partialorder %v180, %v5162
    %vm5165 = vcmp.eq.f32.partialorder %v181, %v5161
    %vm5166 = vcmp.eq.f32.partialorder %v181, %v5162
    %vm5167 = vcmp.eq.f32.partialorder %v300, %v5161
    %vm5168 = vcmp.eq.f32.partialorder %v300, %v5162
    %v5169 = vperm.slane %v3474, 5
    %v5170 = vperm.slane %v3475, 5
    %v5171 = vsel %vm5163, %v5169, 0.0
    %v5172 = vsel %vm5164, %v5170, 0.0
    %v5173 = vsel %vm5165, %v5169, 0.0
    %v5174 = vsel %vm5166, %v5170, 0.0
    %v5175 = vsel %vm5167, %v5169, 0.0
    %v5176 = vsel %vm5168, %v5170, 0.0
    %v5177 = vperm.slane %v3454, 5
    %v5178 = vperm.slane %v3455, 5
    %vm5179 = vcmp.eq.f32.partialorder %v180, %v5177
    %vm5180 = vcmp.eq.f32.partialorder %v180, %v5178
    %vm5181 = vcmp.eq.f32.partialorder %v181, %v5177
    %vm5182 = vcmp.eq.f32.partialorder %v181, %v5178
    %vm5183 = vcmp.eq.f32.partialorder %v300, %v5177
    %vm5184 = vcmp.eq.f32.partialorder %v300, %v5178
    %v5185 = vperm.slane %v3478, 5
    %v5186 = vperm.slane %v3479, 5
    %v5187 = vsel %vm5179, %v5185, 0.0
    %v5188 = vsel %vm5180, %v5186, 0.0
    %v5189 = vsel %vm5181, %v5185, 0.0
    %v5190 = vsel %vm5182, %v5186, 0.0
    %v5191 = vsel %vm5183, %v5185, 0.0
    %v5192 = vsel %vm5184, %v5186, 0.0
    %v5193 = vadd.f32 %v5171, %v5187
    %v5194 = vadd.f32 %v5172, %v5188
    %v5195 = vadd.f32 %v5173, %v5189
    %v5196 = vadd.f32 %v5174, %v5190
    %v5197 = vadd.f32 %v5175, %v5191
    %v5198 = vadd.f32 %v5176, %v5192
    %v5199 = vperm.slane %v3438, 5
    %v5200 = vperm.slane %v3439, 5
    %vm5201 = vcmp.eq.f32.partialorder %v180, %v5199
    %vm5202 = vcmp.eq.f32.partialorder %v180, %v5200
    %vm5203 = vcmp.eq.f32.partialorder %v181, %v5199
    %vm5204 = vcmp.eq.f32.partialorder %v181, %v5200
    %vm5205 = vcmp.eq.f32.partialorder %v300, %v5199
    %vm5206 = vcmp.eq.f32.partialorder %v300, %v5200
    %v5207 = vperm.slane %v3466, 5
    %v5208 = vperm.slane %v3467, 5
    %v5209 = vsel %vm5201, %v5207, 0.0
    %v5210 = vsel %vm5202, %v5208, 0.0
    %v5211 = vsel %vm5203, %v5207, 0.0
    %v5212 = vsel %vm5204, %v5208, 0.0
    %v5213 = vsel %vm5205, %v5207, 0.0
    %v5214 = vsel %vm5206, %v5208, 0.0
    %v5215 = vperm.slane %v3444, 5
    %v5216 = vperm.slane %v3445, 5
    %vm5217 = vcmp.eq.f32.partialorder %v180, %v5215
    %vm5218 = vcmp.eq.f32.partialorder %v180, %v5216
    %vm5219 = vcmp.eq.f32.partialorder %v181, %v5215
    %vm5220 = vcmp.eq.f32.partialorder %v181, %v5216
    %vm5221 = vcmp.eq.f32.partialorder %v300, %v5215
    %vm5222 = vcmp.eq.f32.partialorder %v300, %v5216
    %v5223 = vperm.slane %v3470, 5
    %v5224 = vperm.slane %v3471, 5
    %v5225 = vsel %vm5217, %v5223, 0.0
    %v5226 = vsel %vm5218, %v5224, 0.0
    %v5227 = vsel %vm5219, %v5223, 0.0
    %v5228 = vsel %vm5220, %v5224, 0.0
    %v5229 = vsel %vm5221, %v5223, 0.0
    %v5230 = vsel %vm5222, %v5224, 0.0
    %v5231 = vadd.f32 %v5209, %v5225
    %v5232 = vadd.f32 %v5210, %v5226
    %v5233 = vadd.f32 %v5211, %v5227
    %v5234 = vadd.f32 %v5212, %v5228
    %v5235 = vadd.f32 %v5213, %v5229
    %v5236 = vadd.f32 %v5214, %v5230
    %v5237 = vld [vmem:[%s3556] sm:$0xff]
    %v5238 = vld [vmem:[%s3556 + $0x8] sm:$0xff]
    %v5239 = vld [vmem:[%s3556 + $0x10] sm:$0xff]
    %v5240 = vld [vmem:[%s3556 + $0x18] sm:$0xff]
    %v5241 = vld [vmem:[%s3556 + $0x20] sm:$0xff]
    %v5242 = vld [vmem:[%s3556 + $0x28] sm:$0xff]
    %v5243 = vld [vmem:[%s3556 + $0x30] sm:$0xff]
    %v5244 = vld [vmem:[%s3556 + $0x38] sm:$0xff]
    %v5245 = vld [vmem:[%s3556 + $0x40] sm:$0xff]
    %v5246 = vld [vmem:[%s3556 + $0x48] sm:$0xff]
    %v5247 = vld [vmem:[%s3556 + $0x50] sm:$0xff]
    %v5248 = vld [vmem:[%s3556 + $0x58] sm:$0xff]
    %v5250 = vsel %vm441, %v5237, 0
    %v5253 = vsel %vm441, %v5238, 0
    %v5256 = vsel %vm441, %v5239, 0
    %v5259 = vsel %vm441, %v5240, 0
    %v5262 = vsel %vm441, %v5241, 0
    %v5265 = vsel %vm441, %v5242, 0
    %v5268 = vsel %vm441, %v5243, 0
    %v5271 = vsel %vm441, %v5244, 0
    %v5274 = vsel %vm441, %v5245, 0
    %v5277 = vsel %vm441, %v5246, 0
    %v5280 = vsel %vm441, %v5247, 0
    %v5283 = vsel %vm441, %v5248, 0
    %5285 = vmatpush.msra.mxu0 0.0
    %5286 = vmatpush.msra.mxu0 0.0
    %5287 = vmatpush.msra.mxu0 0.0
    %5288 = vmatpush.msra.mxu0 0.0
    %5289 = vmatpush.msra.mxu0 0.0
    %5290 = vmatpush.msra.mxu0 0.0
    %5291 = vmatpush.msra.mxu0 0.0
    %5292 = vmatpush.msra.mxu0 0.0
    %5293 = vmatpush.msra.mxu0 0.0
    %5294 = vmatpush.msra.mxu0 0.0
    %5295 = vmatpush.msra.mxu0 0.0
    %5296 = vmatpush.msra.mxu0 0.0
    %5297 = vmatpush.msra.mxu0 0.0
    %5298 = vmatpush.msra.mxu0 %v5197
    %5299 = vmatpush.msra.mxu0 %v5195
    %5300 = vmatpush.msra.mxu0 %v5193
    %5301 = vmatmul.f32.gmra.mxu0 %v5250
    %v5302 = vpop.f32.mrf.mxu0
    %v5303 = vadd.f32 0.0, %v5302
    %5304 = vmatmul.f32.gmra.mxu0 %v5253
    %v5305 = vpop.f32.mrf.mxu0
    %v5306 = vadd.f32 0.0, %v5305
    %5307 = vmatmul.f32.gmra.mxu0 %v5256
    %v5308 = vpop.f32.mrf.mxu0
    %v5309 = vadd.f32 0.0, %v5308
    %5310 = vmatmul.f32.gmra.mxu0 %v5259
    %v5311 = vpop.f32.mrf.mxu0
    %v5312 = vadd.f32 0.0, %v5311
    %5313 = vmatmul.f32.gmra.mxu0 %v5262
    %v5314 = vpop.f32.mrf.mxu0
    %v5315 = vadd.f32 0.0, %v5314
    %5316 = vmatmul.f32.gmra.mxu0 %v5265
    %v5317 = vpop.f32.mrf.mxu0
    %v5318 = vadd.f32 0.0, %v5317
    %5319 = vmatmul.f32.gmra.mxu0 %v5268
    %v5320 = vpop.f32.mrf.mxu0
    %v5321 = vadd.f32 0.0, %v5320
    %5322 = vmatmul.f32.gmra.mxu0 %v5271
    %v5323 = vpop.f32.mrf.mxu0
    %v5324 = vadd.f32 0.0, %v5323
    %5325 = vmatmul.f32.gmra.mxu0 %v5274
    %v5326 = vpop.f32.mrf.mxu0
    %v5327 = vadd.f32 0.0, %v5326
    %5328 = vmatmul.f32.gmra.mxu0 %v5277
    %v5329 = vpop.f32.mrf.mxu0
    %v5330 = vadd.f32 0.0, %v5329
    %5331 = vmatmul.f32.gmra.mxu0 %v5280
    %v5332 = vpop.f32.mrf.mxu0
    %v5333 = vadd.f32 0.0, %v5332
    %5334 = vmatmul.f32.gmra.mxu0 %v5283
    %v5335 = vpop.f32.mrf.mxu0
    %v5336 = vadd.f32 0.0, %v5335
    %5337 = vdwg.mxu0
    %5338 = vmatpush.msra.mxu0 0.0
    %5339 = vmatpush.msra.mxu0 0.0
    %5340 = vmatpush.msra.mxu0 0.0
    %5341 = vmatpush.msra.mxu0 0.0
    %5342 = vmatpush.msra.mxu0 0.0
    %5343 = vmatpush.msra.mxu0 0.0
    %5344 = vmatpush.msra.mxu0 0.0
    %5345 = vmatpush.msra.mxu0 0.0
    %5346 = vmatpush.msra.mxu0 0.0
    %5347 = vmatpush.msra.mxu0 0.0
    %5348 = vmatpush.msra.mxu0 0.0
    %5349 = vmatpush.msra.mxu0 0.0
    %5350 = vmatpush.msra.mxu0 0.0
    %5351 = vmatpush.msra.mxu0 %v5198
    %5352 = vmatpush.msra.mxu0 %v5196
    %5353 = vmatpush.msra.mxu0 %v5194
    %5354 = vmatmul.f32.gmra.mxu0 %v5250
    %v5355 = vpop.f32.mrf.mxu0
    %v5356 = vadd.f32 0.0, %v5355
    %5357 = vmatmul.f32.gmra.mxu0 %v5253
    %v5358 = vpop.f32.mrf.mxu0
    %v5359 = vadd.f32 0.0, %v5358
    %5360 = vmatmul.f32.gmra.mxu0 %v5256
    %v5361 = vpop.f32.mrf.mxu0
    %v5362 = vadd.f32 0.0, %v5361
    %5363 = vmatmul.f32.gmra.mxu0 %v5259
    %v5364 = vpop.f32.mrf.mxu0
    %v5365 = vadd.f32 0.0, %v5364
    %5366 = vmatmul.f32.gmra.mxu0 %v5262
    %v5367 = vpop.f32.mrf.mxu0
    %v5368 = vadd.f32 0.0, %v5367
    %5369 = vmatmul.f32.gmra.mxu0 %v5265
    %v5370 = vpop.f32.mrf.mxu0
    %v5371 = vadd.f32 0.0, %v5370
    %5372 = vmatmul.f32.gmra.mxu0 %v5268
    %v5373 = vpop.f32.mrf.mxu0
    %v5374 = vadd.f32 0.0, %v5373
    %5375 = vmatmul.f32.gmra.mxu0 %v5271
    %v5376 = vpop.f32.mrf.mxu0
    %v5377 = vadd.f32 0.0, %v5376
    %5378 = vmatmul.f32.gmra.mxu0 %v5274
    %v5379 = vpop.f32.mrf.mxu0
    %v5380 = vadd.f32 0.0, %v5379
    %5381 = vmatmul.f32.gmra.mxu0 %v5277
    %v5382 = vpop.f32.mrf.mxu0
    %v5383 = vadd.f32 0.0, %v5382
    %5384 = vmatmul.f32.gmra.mxu0 %v5280
    %v5385 = vpop.f32.mrf.mxu0
    %v5386 = vadd.f32 0.0, %v5385
    %5387 = vmatmul.f32.gmra.mxu0 %v5283
    %v5388 = vpop.f32.mrf.mxu0
    %v5389 = vadd.f32 0.0, %v5388
    %5390 = vdwg.mxu0
    %v5391 = vmul.f32 %v5303, %v5231
    %v5392 = vmul.f32 %v5356, %v5232
    %v5393 = vmul.f32 %v5306, %v5233
    %v5394 = vmul.f32 %v5359, %v5234
    %v5395 = vmul.f32 %v5309, %v5235
    %v5396 = vmul.f32 %v5362, %v5236
    %v5397 = vmul.f32 %v5312, %v5231
    %v5398 = vmul.f32 %v5365, %v5232
    %v5399 = vmul.f32 %v5315, %v5233
    %v5400 = vmul.f32 %v5368, %v5234
    %v5401 = vmul.f32 %v5318, %v5235
    %v5402 = vmul.f32 %v5371, %v5236
    %v5403 = vmul.f32 %v5321, %v5231
    %v5404 = vmul.f32 %v5374, %v5232
    %v5405 = vmul.f32 %v5324, %v5233
    %v5406 = vmul.f32 %v5377, %v5234
    %v5407 = vmul.f32 %v5327, %v5235
    %v5408 = vmul.f32 %v5380, %v5236
    %v5409 = vmul.f32 %v5330, %v5231
    %v5410 = vmul.f32 %v5383, %v5232
    %v5411 = vmul.f32 %v5333, %v5233
    %v5412 = vmul.f32 %v5386, %v5234
    %v5413 = vmul.f32 %v5336, %v5235
    %v5414 = vmul.f32 %v5389, %v5236
    %v5415 = vadd.f32 %v5391, %v5393
    %v5416 = vadd.f32 %v5415, %v5395
    %v5417 = vrot.slane %v5416, 4
    %v5418 = vadd.f32 %v5416, %v5417
    %v5419 = vrot.slane %v5418, 2
    %v5420 = vadd.f32 %v5418, %v5419
    %v5421 = vrot.slane %v5420, 1
    %v5422 = vadd.f32 %v5420, %v5421
    %v5423 = vadd.f32 %v5392, %v5394
    %v5424 = vadd.f32 %v5423, %v5396
    %v5425 = vrot.slane %v5424, 4
    %v5426 = vadd.f32 %v5424, %v5425
    %v5427 = vrot.slane %v5426, 2
    %v5428 = vadd.f32 %v5426, %v5427
    %v5429 = vrot.slane %v5428, 1
    %v5430 = vadd.f32 %v5428, %v5429
    %v5431 = vadd.f32 %v5397, %v5399
    %v5432 = vadd.f32 %v5431, %v5401
    %v5433 = vrot.slane %v5432, 4
    %v5434 = vadd.f32 %v5432, %v5433
    %v5435 = vrot.slane %v5434, 2
    %v5436 = vadd.f32 %v5434, %v5435
    %v5437 = vrot.slane %v5436, 1
    %v5438 = vadd.f32 %v5436, %v5437
    %v5439 = vadd.f32 %v5398, %v5400
    %v5440 = vadd.f32 %v5439, %v5402
    %v5441 = vrot.slane %v5440, 4
    %v5442 = vadd.f32 %v5440, %v5441
    %v5443 = vrot.slane %v5442, 2
    %v5444 = vadd.f32 %v5442, %v5443
    %v5445 = vrot.slane %v5444, 1
    %v5446 = vadd.f32 %v5444, %v5445
    %v5447 = vadd.f32 %v5403, %v5405
    %v5448 = vadd.f32 %v5447, %v5407
    %v5449 = vrot.slane %v5448, 4
    %v5450 = vadd.f32 %v5448, %v5449
    %v5451 = vrot.slane %v5450, 2
    %v5452 = vadd.f32 %v5450, %v5451
    %v5453 = vrot.slane %v5452, 1
    %v5454 = vadd.f32 %v5452, %v5453
    %v5455 = vadd.f32 %v5404, %v5406
    %v5456 = vadd.f32 %v5455, %v5408
    %v5457 = vrot.slane %v5456, 4
    %v5458 = vadd.f32 %v5456, %v5457
    %v5459 = vrot.slane %v5458, 2
    %v5460 = vadd.f32 %v5458, %v5459
    %v5461 = vrot.slane %v5460, 1
    %v5462 = vadd.f32 %v5460, %v5461
    %v5463 = vadd.f32 %v5409, %v5411
    %v5464 = vadd.f32 %v5463, %v5413
    %v5465 = vrot.slane %v5464, 4
    %v5466 = vadd.f32 %v5464, %v5465
    %v5467 = vrot.slane %v5466, 2
    %v5468 = vadd.f32 %v5466, %v5467
    %v5469 = vrot.slane %v5468, 1
    %v5470 = vadd.f32 %v5468, %v5469
    %v5471 = vadd.f32 %v5410, %v5412
    %v5472 = vadd.f32 %v5471, %v5414
    %v5473 = vrot.slane %v5472, 4
    %v5474 = vadd.f32 %v5472, %v5473
    %v5475 = vrot.slane %v5474, 2
    %v5476 = vadd.f32 %v5474, %v5475
    %v5477 = vrot.slane %v5476, 1
    %v5478 = vadd.f32 %v5476, %v5477
    %v5487 = vsel %vm1019, %v5438, %v5422
    %v5488 = vsel %vm1021, %v5454, %v5487
    %v5489 = vsel %vm1023, %v5470, %v5488
    %v5490 = vsel %vm1019, %v5446, %v5430
    %v5491 = vsel %vm1021, %v5462, %v5490
    %v5492 = vsel %vm1023, %v5478, %v5491
    %5495 = vst [vmem:[#allocation2 + $0x50] sm:$0xf0] %v5489
    %5496 = vst [vmem:[#allocation2 + $0x58] sm:$0xf0] %v5492
    %v5497 = vperm.slane %v3448, 6
    %v5498 = vperm.slane %v3449, 6
    %vm5499 = vcmp.eq.f32.partialorder %v180, %v5497
    %vm5500 = vcmp.eq.f32.partialorder %v180, %v5498
    %vm5501 = vcmp.eq.f32.partialorder %v181, %v5497
    %vm5502 = vcmp.eq.f32.partialorder %v181, %v5498
    %vm5503 = vcmp.eq.f32.partialorder %v300, %v5497
    %vm5504 = vcmp.eq.f32.partialorder %v300, %v5498
    %v5505 = vperm.slane %v3474, 6
    %v5506 = vperm.slane %v3475, 6
    %v5507 = vsel %vm5499, %v5505, 0.0
    %v5508 = vsel %vm5500, %v5506, 0.0
    %v5509 = vsel %vm5501, %v5505, 0.0
    %v5510 = vsel %vm5502, %v5506, 0.0
    %v5511 = vsel %vm5503, %v5505, 0.0
    %v5512 = vsel %vm5504, %v5506, 0.0
    %v5513 = vperm.slane %v3454, 6
    %v5514 = vperm.slane %v3455, 6
    %vm5515 = vcmp.eq.f32.partialorder %v180, %v5513
    %vm5516 = vcmp.eq.f32.partialorder %v180, %v5514
    %vm5517 = vcmp.eq.f32.partialorder %v181, %v5513
    %vm5518 = vcmp.eq.f32.partialorder %v181, %v5514
    %vm5519 = vcmp.eq.f32.partialorder %v300, %v5513
    %vm5520 = vcmp.eq.f32.partialorder %v300, %v5514
    %v5521 = vperm.slane %v3478, 6
    %v5522 = vperm.slane %v3479, 6
    %v5523 = vsel %vm5515, %v5521, 0.0
    %v5524 = vsel %vm5516, %v5522, 0.0
    %v5525 = vsel %vm5517, %v5521, 0.0
    %v5526 = vsel %vm5518, %v5522, 0.0
    %v5527 = vsel %vm5519, %v5521, 0.0
    %v5528 = vsel %vm5520, %v5522, 0.0
    %v5529 = vadd.f32 %v5507, %v5523
    %v5530 = vadd.f32 %v5508, %v5524
    %v5531 = vadd.f32 %v5509, %v5525
    %v5532 = vadd.f32 %v5510, %v5526
    %v5533 = vadd.f32 %v5511, %v5527
    %v5534 = vadd.f32 %v5512, %v5528
    %v5535 = vperm.slane %v3438, 6
    %v5536 = vperm.slane %v3439, 6
    %vm5537 = vcmp.eq.f32.partialorder %v180, %v5535
    %vm5538 = vcmp.eq.f32.partialorder %v180, %v5536
    %vm5539 = vcmp.eq.f32.partialorder %v181, %v5535
    %vm5540 = vcmp.eq.f32.partialorder %v181, %v5536
    %vm5541 = vcmp.eq.f32.partialorder %v300, %v5535
    %vm5542 = vcmp.eq.f32.partialorder %v300, %v5536
    %v5543 = vperm.slane %v3466, 6
    %v5544 = vperm.slane %v3467, 6
    %v5545 = vsel %vm5537, %v5543, 0.0
    %v5546 = vsel %vm5538, %v5544, 0.0
    %v5547 = vsel %vm5539, %v5543, 0.0
    %v5548 = vsel %vm5540, %v5544, 0.0
    %v5549 = vsel %vm5541, %v5543, 0.0
    %v5550 = vsel %vm5542, %v5544, 0.0
    %v5551 = vperm.slane %v3444, 6
    %v5552 = vperm.slane %v3445, 6
    %vm5553 = vcmp.eq.f32.partialorder %v180, %v5551
    %vm5554 = vcmp.eq.f32.partialorder %v180, %v5552
    %vm5555 = vcmp.eq.f32.partialorder %v181, %v5551
    %vm5556 = vcmp.eq.f32.partialorder %v181, %v5552
    %vm5557 = vcmp.eq.f32.partialorder %v300, %v5551
    %vm5558 = vcmp.eq.f32.partialorder %v300, %v5552
    %v5559 = vperm.slane %v3470, 6
    %v5560 = vperm.slane %v3471, 6
    %v5561 = vsel %vm5553, %v5559, 0.0
    %v5562 = vsel %vm5554, %v5560, 0.0
    %v5563 = vsel %vm5555, %v5559, 0.0
    %v5564 = vsel %vm5556, %v5560, 0.0
    %v5565 = vsel %vm5557, %v5559, 0.0
    %v5566 = vsel %vm5558, %v5560, 0.0
    %v5567 = vadd.f32 %v5545, %v5561
    %v5568 = vadd.f32 %v5546, %v5562
    %v5569 = vadd.f32 %v5547, %v5563
    %v5570 = vadd.f32 %v5548, %v5564
    %v5571 = vadd.f32 %v5549, %v5565
    %v5572 = vadd.f32 %v5550, %v5566
    %v5573 = vld [vmem:[%s3556] sm:$0xff]
    %v5574 = vld [vmem:[%s3556 + $0x8] sm:$0xff]
    %v5575 = vld [vmem:[%s3556 + $0x10] sm:$0xff]
    %v5576 = vld [vmem:[%s3556 + $0x18] sm:$0xff]
    %v5577 = vld [vmem:[%s3556 + $0x20] sm:$0xff]
    %v5578 = vld [vmem:[%s3556 + $0x28] sm:$0xff]
    %v5579 = vld [vmem:[%s3556 + $0x30] sm:$0xff]
    %v5580 = vld [vmem:[%s3556 + $0x38] sm:$0xff]
    %v5581 = vld [vmem:[%s3556 + $0x40] sm:$0xff]
    %v5582 = vld [vmem:[%s3556 + $0x48] sm:$0xff]
    %v5583 = vld [vmem:[%s3556 + $0x50] sm:$0xff]
    %v5584 = vld [vmem:[%s3556 + $0x58] sm:$0xff]
    %v5586 = vsel %vm441, %v5573, 0
    %v5589 = vsel %vm441, %v5574, 0
    %v5592 = vsel %vm441, %v5575, 0
    %v5595 = vsel %vm441, %v5576, 0
    %v5598 = vsel %vm441, %v5577, 0
    %v5601 = vsel %vm441, %v5578, 0
    %v5604 = vsel %vm441, %v5579, 0
    %v5607 = vsel %vm441, %v5580, 0
    %v5610 = vsel %vm441, %v5581, 0
    %v5613 = vsel %vm441, %v5582, 0
    %v5616 = vsel %vm441, %v5583, 0
    %v5619 = vsel %vm441, %v5584, 0
    %5621 = vmatpush.msra.mxu0 0.0
    %5622 = vmatpush.msra.mxu0 0.0
    %5623 = vmatpush.msra.mxu0 0.0
    %5624 = vmatpush.msra.mxu0 0.0
    %5625 = vmatpush.msra.mxu0 0.0
    %5626 = vmatpush.msra.mxu0 0.0
    %5627 = vmatpush.msra.mxu0 0.0
    %5628 = vmatpush.msra.mxu0 0.0
    %5629 = vmatpush.msra.mxu0 0.0
    %5630 = vmatpush.msra.mxu0 0.0
    %5631 = vmatpush.msra.mxu0 0.0
    %5632 = vmatpush.msra.mxu0 0.0
    %5633 = vmatpush.msra.mxu0 0.0
    %5634 = vmatpush.msra.mxu0 %v5533
    %5635 = vmatpush.msra.mxu0 %v5531
    %5636 = vmatpush.msra.mxu0 %v5529
    %5637 = vmatmul.f32.gmra.mxu0 %v5586
    %v5638 = vpop.f32.mrf.mxu0
    %v5639 = vadd.f32 0.0, %v5638
    %5640 = vmatmul.f32.gmra.mxu0 %v5589
    %v5641 = vpop.f32.mrf.mxu0
    %v5642 = vadd.f32 0.0, %v5641
    %5643 = vmatmul.f32.gmra.mxu0 %v5592
    %v5644 = vpop.f32.mrf.mxu0
    %v5645 = vadd.f32 0.0, %v5644
    %5646 = vmatmul.f32.gmra.mxu0 %v5595
    %v5647 = vpop.f32.mrf.mxu0
    %v5648 = vadd.f32 0.0, %v5647
    %5649 = vmatmul.f32.gmra.mxu0 %v5598
    %v5650 = vpop.f32.mrf.mxu0
    %v5651 = vadd.f32 0.0, %v5650
    %5652 = vmatmul.f32.gmra.mxu0 %v5601
    %v5653 = vpop.f32.mrf.mxu0
    %v5654 = vadd.f32 0.0, %v5653
    %5655 = vmatmul.f32.gmra.mxu0 %v5604
    %v5656 = vpop.f32.mrf.mxu0
    %v5657 = vadd.f32 0.0, %v5656
    %5658 = vmatmul.f32.gmra.mxu0 %v5607
    %v5659 = vpop.f32.mrf.mxu0
    %v5660 = vadd.f32 0.0, %v5659
    %5661 = vmatmul.f32.gmra.mxu0 %v5610
    %v5662 = vpop.f32.mrf.mxu0
    %v5663 = vadd.f32 0.0, %v5662
    %5664 = vmatmul.f32.gmra.mxu0 %v5613
    %v5665 = vpop.f32.mrf.mxu0
    %v5666 = vadd.f32 0.0, %v5665
    %5667 = vmatmul.f32.gmra.mxu0 %v5616
    %v5668 = vpop.f32.mrf.mxu0
    %v5669 = vadd.f32 0.0, %v5668
    %5670 = vmatmul.f32.gmra.mxu0 %v5619
    %v5671 = vpop.f32.mrf.mxu0
    %v5672 = vadd.f32 0.0, %v5671
    %5673 = vdwg.mxu0
    %5674 = vmatpush.msra.mxu0 0.0
    %5675 = vmatpush.msra.mxu0 0.0
    %5676 = vmatpush.msra.mxu0 0.0
    %5677 = vmatpush.msra.mxu0 0.0
    %5678 = vmatpush.msra.mxu0 0.0
    %5679 = vmatpush.msra.mxu0 0.0
    %5680 = vmatpush.msra.mxu0 0.0
    %5681 = vmatpush.msra.mxu0 0.0
    %5682 = vmatpush.msra.mxu0 0.0
    %5683 = vmatpush.msra.mxu0 0.0
    %5684 = vmatpush.msra.mxu0 0.0
    %5685 = vmatpush.msra.mxu0 0.0
    %5686 = vmatpush.msra.mxu0 0.0
    %5687 = vmatpush.msra.mxu0 %v5534
    %5688 = vmatpush.msra.mxu0 %v5532
    %5689 = vmatpush.msra.mxu0 %v5530
    %5690 = vmatmul.f32.gmra.mxu0 %v5586
    %v5691 = vpop.f32.mrf.mxu0
    %v5692 = vadd.f32 0.0, %v5691
    %5693 = vmatmul.f32.gmra.mxu0 %v5589
    %v5694 = vpop.f32.mrf.mxu0
    %v5695 = vadd.f32 0.0, %v5694
    %5696 = vmatmul.f32.gmra.mxu0 %v5592
    %v5697 = vpop.f32.mrf.mxu0
    %v5698 = vadd.f32 0.0, %v5697
    %5699 = vmatmul.f32.gmra.mxu0 %v5595
    %v5700 = vpop.f32.mrf.mxu0
    %v5701 = vadd.f32 0.0, %v5700
    %5702 = vmatmul.f32.gmra.mxu0 %v5598
    %v5703 = vpop.f32.mrf.mxu0
    %v5704 = vadd.f32 0.0, %v5703
    %5705 = vmatmul.f32.gmra.mxu0 %v5601
    %v5706 = vpop.f32.mrf.mxu0
    %v5707 = vadd.f32 0.0, %v5706
    %5708 = vmatmul.f32.gmra.mxu0 %v5604
    %v5709 = vpop.f32.mrf.mxu0
    %v5710 = vadd.f32 0.0, %v5709
    %5711 = vmatmul.f32.gmra.mxu0 %v5607
    %v5712 = vpop.f32.mrf.mxu0
    %v5713 = vadd.f32 0.0, %v5712
    %5714 = vmatmul.f32.gmra.mxu0 %v5610
    %v5715 = vpop.f32.mrf.mxu0
    %v5716 = vadd.f32 0.0, %v5715
    %5717 = vmatmul.f32.gmra.mxu0 %v5613
    %v5718 = vpop.f32.mrf.mxu0
    %v5719 = vadd.f32 0.0, %v5718
    %5720 = vmatmul.f32.gmra.mxu0 %v5616
    %v5721 = vpop.f32.mrf.mxu0
    %v5722 = vadd.f32 0.0, %v5721
    %5723 = vmatmul.f32.gmra.mxu0 %v5619
    %v5724 = vpop.f32.mrf.mxu0
    %v5725 = vadd.f32 0.0, %v5724
    %5726 = vdwg.mxu0
    %v5727 = vmul.f32 %v5639, %v5567
    %v5728 = vmul.f32 %v5692, %v5568
    %v5729 = vmul.f32 %v5642, %v5569
    %v5730 = vmul.f32 %v5695, %v5570
    %v5731 = vmul.f32 %v5645, %v5571
    %v5732 = vmul.f32 %v5698, %v5572
    %v5733 = vmul.f32 %v5648, %v5567
    %v5734 = vmul.f32 %v5701, %v5568
    %v5735 = vmul.f32 %v5651, %v5569
    %v5736 = vmul.f32 %v5704, %v5570
    %v5737 = vmul.f32 %v5654, %v5571
    %v5738 = vmul.f32 %v5707, %v5572
    %v5739 = vmul.f32 %v5657, %v5567
    %v5740 = vmul.f32 %v5710, %v5568
    %v5741 = vmul.f32 %v5660, %v5569
    %v5742 = vmul.f32 %v5713, %v5570
    %v5743 = vmul.f32 %v5663, %v5571
    %v5744 = vmul.f32 %v5716, %v5572
    %v5745 = vmul.f32 %v5666, %v5567
    %v5746 = vmul.f32 %v5719, %v5568
    %v5747 = vmul.f32 %v5669, %v5569
    %v5748 = vmul.f32 %v5722, %v5570
    %v5749 = vmul.f32 %v5672, %v5571
    %v5750 = vmul.f32 %v5725, %v5572
    %v5751 = vadd.f32 %v5727, %v5729
    %v5752 = vadd.f32 %v5751, %v5731
    %v5753 = vrot.slane %v5752, 4
    %v5754 = vadd.f32 %v5752, %v5753
    %v5755 = vrot.slane %v5754, 2
    %v5756 = vadd.f32 %v5754, %v5755
    %v5757 = vrot.slane %v5756, 1
    %v5758 = vadd.f32 %v5756, %v5757
    %v5759 = vadd.f32 %v5728, %v5730
    %v5760 = vadd.f32 %v5759, %v5732
    %v5761 = vrot.slane %v5760, 4
    %v5762 = vadd.f32 %v5760, %v5761
    %v5763 = vrot.slane %v5762, 2
    %v5764 = vadd.f32 %v5762, %v5763
    %v5765 = vrot.slane %v5764, 1
    %v5766 = vadd.f32 %v5764, %v5765
    %v5767 = vadd.f32 %v5733, %v5735
    %v5768 = vadd.f32 %v5767, %v5737
    %v5769 = vrot.slane %v5768, 4
    %v5770 = vadd.f32 %v5768, %v5769
    %v5771 = vrot.slane %v5770, 2
    %v5772 = vadd.f32 %v5770, %v5771
    %v5773 = vrot.slane %v5772, 1
    %v5774 = vadd.f32 %v5772, %v5773
    %v5775 = vadd.f32 %v5734, %v5736
    %v5776 = vadd.f32 %v5775, %v5738
    %v5777 = vrot.slane %v5776, 4
    %v5778 = vadd.f32 %v5776, %v5777
    %v5779 = vrot.slane %v5778, 2
    %v5780 = vadd.f32 %v5778, %v5779
    %v5781 = vrot.slane %v5780, 1
    %v5782 = vadd.f32 %v5780, %v5781
    %v5783 = vadd.f32 %v5739, %v5741
    %v5784 = vadd.f32 %v5783, %v5743
    %v5785 = vrot.slane %v5784, 4
    %v5786 = vadd.f32 %v5784, %v5785
    %v5787 = vrot.slane %v5786, 2
    %v5788 = vadd.f32 %v5786, %v5787
    %v5789 = vrot.slane %v5788, 1
    %v5790 = vadd.f32 %v5788, %v5789
    %v5791 = vadd.f32 %v5740, %v5742
    %v5792 = vadd.f32 %v5791, %v5744
    %v5793 = vrot.slane %v5792, 4
    %v5794 = vadd.f32 %v5792, %v5793
    %v5795 = vrot.slane %v5794, 2
    %v5796 = vadd.f32 %v5794, %v5795
    %v5797 = vrot.slane %v5796, 1
    %v5798 = vadd.f32 %v5796, %v5797
    %v5799 = vadd.f32 %v5745, %v5747
    %v5800 = vadd.f32 %v5799, %v5749
    %v5801 = vrot.slane %v5800, 4
    %v5802 = vadd.f32 %v5800, %v5801
    %v5803 = vrot.slane %v5802, 2
    %v5804 = vadd.f32 %v5802, %v5803
    %v5805 = vrot.slane %v5804, 1
    %v5806 = vadd.f32 %v5804, %v5805
    %v5807 = vadd.f32 %v5746, %v5748
    %v5808 = vadd.f32 %v5807, %v5750
    %v5809 = vrot.slane %v5808, 4
    %v5810 = vadd.f32 %v5808, %v5809
    %v5811 = vrot.slane %v5810, 2
    %v5812 = vadd.f32 %v5810, %v5811
    %v5813 = vrot.slane %v5812, 1
    %v5814 = vadd.f32 %v5812, %v5813
    %v5823 = vsel %vm680, %v5774, %v5758
    %v5824 = vsel %vm682, %v5790, %v5823
    %v5825 = vsel %vm684, %v5806, %v5824
    %v5826 = vsel %vm680, %v5782, %v5766
    %v5827 = vsel %vm682, %v5798, %v5826
    %v5828 = vsel %vm684, %v5814, %v5827
    %5831 = vst [vmem:[#allocation2 + $0x70] sm:$0xf] %v5825
    %5832 = vst [vmem:[#allocation2 + $0x78] sm:$0xf] %v5828
    %v5833 = vperm.slane %v3448, 7
    %v5834 = vperm.slane %v3449, 7
    %vm5835 = vcmp.eq.f32.partialorder %v180, %v5833
    %vm5836 = vcmp.eq.f32.partialorder %v180, %v5834
    %vm5837 = vcmp.eq.f32.partialorder %v181, %v5833
    %vm5838 = vcmp.eq.f32.partialorder %v181, %v5834
    %vm5839 = vcmp.eq.f32.partialorder %v300, %v5833
    %vm5840 = vcmp.eq.f32.partialorder %v300, %v5834
    %v5841 = vperm.slane %v3474, 7
    %v5842 = vperm.slane %v3475, 7
    %v5843 = vsel %vm5835, %v5841, 0.0
    %v5844 = vsel %vm5836, %v5842, 0.0
    %v5845 = vsel %vm5837, %v5841, 0.0
    %v5846 = vsel %vm5838, %v5842, 0.0
    %v5847 = vsel %vm5839, %v5841, 0.0
    %v5848 = vsel %vm5840, %v5842, 0.0
    %v5849 = vperm.slane %v3454, 7
    %v5850 = vperm.slane %v3455, 7
    %vm5851 = vcmp.eq.f32.partialorder %v180, %v5849
    %vm5852 = vcmp.eq.f32.partialorder %v180, %v5850
    %vm5853 = vcmp.eq.f32.partialorder %v181, %v5849
    %vm5854 = vcmp.eq.f32.partialorder %v181, %v5850
    %vm5855 = vcmp.eq.f32.partialorder %v300, %v5849
    %vm5856 = vcmp.eq.f32.partialorder %v300, %v5850
    %v5857 = vperm.slane %v3478, 7
    %v5858 = vperm.slane %v3479, 7
    %v5859 = vsel %vm5851, %v5857, 0.0
    %v5860 = vsel %vm5852, %v5858, 0.0
    %v5861 = vsel %vm5853, %v5857, 0.0
    %v5862 = vsel %vm5854, %v5858, 0.0
    %v5863 = vsel %vm5855, %v5857, 0.0
    %v5864 = vsel %vm5856, %v5858, 0.0
    %v5865 = vadd.f32 %v5843, %v5859
    %v5866 = vadd.f32 %v5844, %v5860
    %v5867 = vadd.f32 %v5845, %v5861
    %v5868 = vadd.f32 %v5846, %v5862
    %v5869 = vadd.f32 %v5847, %v5863
    %v5870 = vadd.f32 %v5848, %v5864
    %v5871 = vperm.slane %v3438, 7
    %v5872 = vperm.slane %v3439, 7
    %vm5873 = vcmp.eq.f32.partialorder %v180, %v5871
    %vm5874 = vcmp.eq.f32.partialorder %v180, %v5872
    %vm5875 = vcmp.eq.f32.partialorder %v181, %v5871
    %vm5876 = vcmp.eq.f32.partialorder %v181, %v5872
    %vm5877 = vcmp.eq.f32.partialorder %v300, %v5871
    %vm5878 = vcmp.eq.f32.partialorder %v300, %v5872
    %v5879 = vperm.slane %v3466, 7
    %v5880 = vperm.slane %v3467, 7
    %v5881 = vsel %vm5873, %v5879, 0.0
    %v5882 = vsel %vm5874, %v5880, 0.0
    %v5883 = vsel %vm5875, %v5879, 0.0
    %v5884 = vsel %vm5876, %v5880, 0.0
    %v5885 = vsel %vm5877, %v5879, 0.0
    %v5886 = vsel %vm5878, %v5880, 0.0
    %v5887 = vperm.slane %v3444, 7
    %v5888 = vperm.slane %v3445, 7
    %vm5889 = vcmp.eq.f32.partialorder %v180, %v5887
    %vm5890 = vcmp.eq.f32.partialorder %v180, %v5888
    %vm5891 = vcmp.eq.f32.partialorder %v181, %v5887
    %vm5892 = vcmp.eq.f32.partialorder %v181, %v5888
    %vm5893 = vcmp.eq.f32.partialorder %v300, %v5887
    %vm5894 = vcmp.eq.f32.partialorder %v300, %v5888
    %v5895 = vperm.slane %v3470, 7
    %v5896 = vperm.slane %v3471, 7
    %v5897 = vsel %vm5889, %v5895, 0.0
    %v5898 = vsel %vm5890, %v5896, 0.0
    %v5899 = vsel %vm5891, %v5895, 0.0
    %v5900 = vsel %vm5892, %v5896, 0.0
    %v5901 = vsel %vm5893, %v5895, 0.0
    %v5902 = vsel %vm5894, %v5896, 0.0
    %v5903 = vadd.f32 %v5881, %v5897
    %v5904 = vadd.f32 %v5882, %v5898
    %v5905 = vadd.f32 %v5883, %v5899
    %v5906 = vadd.f32 %v5884, %v5900
    %v5907 = vadd.f32 %v5885, %v5901
    %v5908 = vadd.f32 %v5886, %v5902
    %v5909 = vld [vmem:[%s3556] sm:$0xff]
    %v5910 = vld [vmem:[%s3556 + $0x8] sm:$0xff]
    %v5911 = vld [vmem:[%s3556 + $0x10] sm:$0xff]
    %v5912 = vld [vmem:[%s3556 + $0x18] sm:$0xff]
    %v5913 = vld [vmem:[%s3556 + $0x20] sm:$0xff]
    %v5914 = vld [vmem:[%s3556 + $0x28] sm:$0xff]
    %v5915 = vld [vmem:[%s3556 + $0x30] sm:$0xff]
    %v5916 = vld [vmem:[%s3556 + $0x38] sm:$0xff]
    %v5917 = vld [vmem:[%s3556 + $0x40] sm:$0xff]
    %v5918 = vld [vmem:[%s3556 + $0x48] sm:$0xff]
    %v5919 = vld [vmem:[%s3556 + $0x50] sm:$0xff]
    %v5920 = vld [vmem:[%s3556 + $0x58] sm:$0xff]
    %v5922 = vsel %vm441, %v5909, 0
    %v5925 = vsel %vm441, %v5910, 0
    %v5928 = vsel %vm441, %v5911, 0
    %v5931 = vsel %vm441, %v5912, 0
    %v5934 = vsel %vm441, %v5913, 0
    %v5937 = vsel %vm441, %v5914, 0
    %v5940 = vsel %vm441, %v5915, 0
    %v5943 = vsel %vm441, %v5916, 0
    %v5946 = vsel %vm441, %v5917, 0
    %v5949 = vsel %vm441, %v5918, 0
    %v5952 = vsel %vm441, %v5919, 0
    %v5955 = vsel %vm441, %v5920, 0
    %5957 = vmatpush.msra.mxu0 0.0
    %5958 = vmatpush.msra.mxu0 0.0
    %5959 = vmatpush.msra.mxu0 0.0
    %5960 = vmatpush.msra.mxu0 0.0
    %5961 = vmatpush.msra.mxu0 0.0
    %5962 = vmatpush.msra.mxu0 0.0
    %5963 = vmatpush.msra.mxu0 0.0
    %5964 = vmatpush.msra.mxu0 0.0
    %5965 = vmatpush.msra.mxu0 0.0
    %5966 = vmatpush.msra.mxu0 0.0
    %5967 = vmatpush.msra.mxu0 0.0
    %5968 = vmatpush.msra.mxu0 0.0
    %5969 = vmatpush.msra.mxu0 0.0
    %5970 = vmatpush.msra.mxu0 %v5869
    %5971 = vmatpush.msra.mxu0 %v5867
    %5972 = vmatpush.msra.mxu0 %v5865
    %5973 = vmatmul.f32.gmra.mxu0 %v5922
    %v5974 = vpop.f32.mrf.mxu0
    %v5975 = vadd.f32 0.0, %v5974
    %5976 = vmatmul.f32.gmra.mxu0 %v5925
    %v5977 = vpop.f32.mrf.mxu0
    %v5978 = vadd.f32 0.0, %v5977
    %5979 = vmatmul.f32.gmra.mxu0 %v5928
    %v5980 = vpop.f32.mrf.mxu0
    %v5981 = vadd.f32 0.0, %v5980
    %5982 = vmatmul.f32.gmra.mxu0 %v5931
    %v5983 = vpop.f32.mrf.mxu0
    %v5984 = vadd.f32 0.0, %v5983
    %5985 = vmatmul.f32.gmra.mxu0 %v5934
    %v5986 = vpop.f32.mrf.mxu0
    %v5987 = vadd.f32 0.0, %v5986
    %5988 = vmatmul.f32.gmra.mxu0 %v5937
    %v5989 = vpop.f32.mrf.mxu0
    %v5990 = vadd.f32 0.0, %v5989
    %5991 = vmatmul.f32.gmra.mxu0 %v5940
    %v5992 = vpop.f32.mrf.mxu0
    %v5993 = vadd.f32 0.0, %v5992
    %5994 = vmatmul.f32.gmra.mxu0 %v5943
    %v5995 = vpop.f32.mrf.mxu0
    %v5996 = vadd.f32 0.0, %v5995
    %5997 = vmatmul.f32.gmra.mxu0 %v5946
    %v5998 = vpop.f32.mrf.mxu0
    %v5999 = vadd.f32 0.0, %v5998
    %6000 = vmatmul.f32.gmra.mxu0 %v5949
    %v6001 = vpop.f32.mrf.mxu0
    %v6002 = vadd.f32 0.0, %v6001
    %6003 = vmatmul.f32.gmra.mxu0 %v5952
    %v6004 = vpop.f32.mrf.mxu0
    %v6005 = vadd.f32 0.0, %v6004
    %6006 = vmatmul.f32.gmra.mxu0 %v5955
    %v6007 = vpop.f32.mrf.mxu0
    %v6008 = vadd.f32 0.0, %v6007
    %6009 = vdwg.mxu0
    %6010 = vmatpush.msra.mxu0 0.0
    %6011 = vmatpush.msra.mxu0 0.0
    %6012 = vmatpush.msra.mxu0 0.0
    %6013 = vmatpush.msra.mxu0 0.0
    %6014 = vmatpush.msra.mxu0 0.0
    %6015 = vmatpush.msra.mxu0 0.0
    %6016 = vmatpush.msra.mxu0 0.0
    %6017 = vmatpush.msra.mxu0 0.0
    %6018 = vmatpush.msra.mxu0 0.0
    %6019 = vmatpush.msra.mxu0 0.0
    %6020 = vmatpush.msra.mxu0 0.0
    %6021 = vmatpush.msra.mxu0 0.0
    %6022 = vmatpush.msra.mxu0 0.0
    %6023 = vmatpush.msra.mxu0 %v5870
    %6024 = vmatpush.msra.mxu0 %v5868
    %6025 = vmatpush.msra.mxu0 %v5866
    %6026 = vmatmul.f32.gmra.mxu0 %v5922
    %v6027 = vpop.f32.mrf.mxu0
    %v6028 = vadd.f32 0.0, %v6027
    %6029 = vmatmul.f32.gmra.mxu0 %v5925
    %v6030 = vpop.f32.mrf.mxu0
    %v6031 = vadd.f32 0.0, %v6030
    %6032 = vmatmul.f32.gmra.mxu0 %v5928
    %v6033 = vpop.f32.mrf.mxu0
    %v6034 = vadd.f32 0.0, %v6033
    %6035 = vmatmul.f32.gmra.mxu0 %v5931
    %v6036 = vpop.f32.mrf.mxu0
    %v6037 = vadd.f32 0.0, %v6036
    %6038 = vmatmul.f32.gmra.mxu0 %v5934
    %v6039 = vpop.f32.mrf.mxu0
    %v6040 = vadd.f32 0.0, %v6039
    %6041 = vmatmul.f32.gmra.mxu0 %v5937
    %v6042 = vpop.f32.mrf.mxu0
    %v6043 = vadd.f32 0.0, %v6042
    %6044 = vmatmul.f32.gmra.mxu0 %v5940
    %v6045 = vpop.f32.mrf.mxu0
    %v6046 = vadd.f32 0.0, %v6045
    %6047 = vmatmul.f32.gmra.mxu0 %v5943
    %v6048 = vpop.f32.mrf.mxu0
    %v6049 = vadd.f32 0.0, %v6048
    %6050 = vmatmul.f32.gmra.mxu0 %v5946
    %v6051 = vpop.f32.mrf.mxu0
    %v6052 = vadd.f32 0.0, %v6051
    %6053 = vmatmul.f32.gmra.mxu0 %v5949
    %v6054 = vpop.f32.mrf.mxu0
    %v6055 = vadd.f32 0.0, %v6054
    %6056 = vmatmul.f32.gmra.mxu0 %v5952
    %v6057 = vpop.f32.mrf.mxu0
    %v6058 = vadd.f32 0.0, %v6057
    %6059 = vmatmul.f32.gmra.mxu0 %v5955
    %v6060 = vpop.f32.mrf.mxu0
    %v6061 = vadd.f32 0.0, %v6060
    %6062 = vdwg.mxu0
    %v6063 = vmul.f32 %v5975, %v5903
    %v6064 = vmul.f32 %v6028, %v5904
    %v6065 = vmul.f32 %v5978, %v5905
    %v6066 = vmul.f32 %v6031, %v5906
    %v6067 = vmul.f32 %v5981, %v5907
    %v6068 = vmul.f32 %v6034, %v5908
    %v6069 = vmul.f32 %v5984, %v5903
    %v6070 = vmul.f32 %v6037, %v5904
    %v6071 = vmul.f32 %v5987, %v5905
    %v6072 = vmul.f32 %v6040, %v5906
    %v6073 = vmul.f32 %v5990, %v5907
    %v6074 = vmul.f32 %v6043, %v5908
    %v6075 = vmul.f32 %v5993, %v5903
    %v6076 = vmul.f32 %v6046, %v5904
    %v6077 = vmul.f32 %v5996, %v5905
    %v6078 = vmul.f32 %v6049, %v5906
    %v6079 = vmul.f32 %v5999, %v5907
    %v6080 = vmul.f32 %v6052, %v5908
    %v6081 = vmul.f32 %v6002, %v5903
    %v6082 = vmul.f32 %v6055, %v5904
    %v6083 = vmul.f32 %v6005, %v5905
    %v6084 = vmul.f32 %v6058, %v5906
    %v6085 = vmul.f32 %v6008, %v5907
    %v6086 = vmul.f32 %v6061, %v5908
    %v6087 = vadd.f32 %v6063, %v6065
    %v6088 = vadd.f32 %v6087, %v6067
    %v6089 = vrot.slane %v6088, 4
    %v6090 = vadd.f32 %v6088, %v6089
    %v6091 = vrot.slane %v6090, 2
    %v6092 = vadd.f32 %v6090, %v6091
    %v6093 = vrot.slane %v6092, 1
    %v6094 = vadd.f32 %v6092, %v6093
    %v6095 = vadd.f32 %v6064, %v6066
    %v6096 = vadd.f32 %v6095, %v6068
    %v6097 = vrot.slane %v6096, 4
    %v6098 = vadd.f32 %v6096, %v6097
    %v6099 = vrot.slane %v6098, 2
    %v6100 = vadd.f32 %v6098, %v6099
    %v6101 = vrot.slane %v6100, 1
    %v6102 = vadd.f32 %v6100, %v6101
    %v6103 = vadd.f32 %v6069, %v6071
    %v6104 = vadd.f32 %v6103, %v6073
    %v6105 = vrot.slane %v6104, 4
    %v6106 = vadd.f32 %v6104, %v6105
    %v6107 = vrot.slane %v6106, 2
    %v6108 = vadd.f32 %v6106, %v6107
    %v6109 = vrot.slane %v6108, 1
    %v6110 = vadd.f32 %v6108, %v6109
    %v6111 = vadd.f32 %v6070, %v6072
    %v6112 = vadd.f32 %v6111, %v6074
    %v6113 = vrot.slane %v6112, 4
    %v6114 = vadd.f32 %v6112, %v6113
    %v6115 = vrot.slane %v6114, 2
    %v6116 = vadd.f32 %v6114, %v6115
    %v6117 = vrot.slane %v6116, 1
    %v6118 = vadd.f32 %v6116, %v6117
    %v6119 = vadd.f32 %v6075, %v6077
    %v6120 = vadd.f32 %v6119, %v6079
    %v6121 = vrot.slane %v6120, 4
    %v6122 = vadd.f32 %v6120, %v6121
    %v6123 = vrot.slane %v6122, 2
    %v6124 = vadd.f32 %v6122, %v6123
    %v6125 = vrot.slane %v6124, 1
    %v6126 = vadd.f32 %v6124, %v6125
    %v6127 = vadd.f32 %v6076, %v6078
    %v6128 = vadd.f32 %v6127, %v6080
    %v6129 = vrot.slane %v6128, 4
    %v6130 = vadd.f32 %v6128, %v6129
    %v6131 = vrot.slane %v6130, 2
    %v6132 = vadd.f32 %v6130, %v6131
    %v6133 = vrot.slane %v6132, 1
    %v6134 = vadd.f32 %v6132, %v6133
    %v6135 = vadd.f32 %v6081, %v6083
    %v6136 = vadd.f32 %v6135, %v6085
    %v6137 = vrot.slane %v6136, 4
    %v6138 = vadd.f32 %v6136, %v6137
    %v6139 = vrot.slane %v6138, 2
    %v6140 = vadd.f32 %v6138, %v6139
    %v6141 = vrot.slane %v6140, 1
    %v6142 = vadd.f32 %v6140, %v6141
    %v6143 = vadd.f32 %v6082, %v6084
    %v6144 = vadd.f32 %v6143, %v6086
    %v6145 = vrot.slane %v6144, 4
    %v6146 = vadd.f32 %v6144, %v6145
    %v6147 = vrot.slane %v6146, 2
    %v6148 = vadd.f32 %v6146, %v6147
    %v6149 = vrot.slane %v6148, 1
    %v6150 = vadd.f32 %v6148, %v6149
    %v6159 = vsel %vm1019, %v6110, %v6094
    %v6160 = vsel %vm1021, %v6126, %v6159
    %v6161 = vsel %vm1023, %v6142, %v6160
    %v6162 = vsel %vm1019, %v6118, %v6102
    %v6163 = vsel %vm1021, %v6134, %v6162
    %v6164 = vsel %vm1023, %v6150, %v6163
    %6167 = vst [vmem:[#allocation2 + $0x70] sm:$0xf0] %v6161
    %6168 = vst [vmem:[#allocation2 + $0x78] sm:$0xf0] %v6164
    %v6169 = vfloor.f32 %v248
    %v6170 = vfloor.f32 %v249
    %v6171 = vfloor.f32 %v297
    %v6172 = vfloor.f32 %v298
    %v6173 = vmax.f32 %v6169, 0.0
    %v6174 = vmax.f32 %v6170, 0.0
    %v6175 = vmin.f32 %v6173, 17.0
    %v6176 = vmin.f32 %v6174, 17.0
    %v6177 = vadd.f32 %v6169, 1.0
    %v6178 = vadd.f32 %v6170, 1.0
    %v6179 = vmax.f32 %v6177, 0.0
    %v6180 = vmax.f32 %v6178, 0.0
    %v6181 = vmin.f32 %v6179, 17.0
    %v6182 = vmin.f32 %v6180, 17.0
    %v6183 = vmax.f32 %v6171, 0.0
    %v6184 = vmax.f32 %v6172, 0.0
    %v6185 = vmin.f32 %v6183, 17.0
    %v6186 = vmin.f32 %v6184, 17.0
    %v6187 = vadd.f32 %v6171, 1.0
    %v6188 = vadd.f32 %v6172, 1.0
    %v6189 = vmax.f32 %v6187, 0.0
    %v6190 = vmax.f32 %v6188, 0.0
    %v6191 = vmin.f32 %v6189, 17.0
    %v6192 = vmin.f32 %v6190, 17.0
    %v6193 = vmax.f32 %v248, 0.0
    %v6194 = vmax.f32 %v249, 0.0
    %v6195 = vmin.f32 %v6193, 17.0
    %v6196 = vmin.f32 %v6194, 17.0
    %v6197 = vmax.f32 %v297, 0.0
    %v6198 = vmax.f32 %v298, 0.0
    %v6199 = vmin.f32 %v6197, 17.0
    %v6200 = vmin.f32 %v6198, 17.0
    %v6201 = vadd.f32 %v6175, 1.0
    %v6202 = vadd.f32 %v6176, 1.0
    %v6203 = vsub.f32 %v6201, %v6195
    %v6204 = vsub.f32 %v6202, %v6196
    %v6205 = vsub.f32 1.0, %v6181
    %v6206 = vsub.f32 1.0, %v6182
    %v6207 = vadd.f32 %v6205, %v6195
    %v6208 = vadd.f32 %v6206, %v6196
    %v6209 = vadd.f32 %v6185, 1.0
    %v6210 = vadd.f32 %v6186, 1.0
    %v6211 = vsub.f32 %v6209, %v6199
    %v6212 = vsub.f32 %v6210, %v6200
    %v6213 = vsub.f32 1.0, %v6191
    %v6214 = vsub.f32 1.0, %v6192
    %v6215 = vadd.f32 %v6213, %v6199
    %v6216 = vadd.f32 %v6214, %v6200
    %v6217 = vperm.slane %v6185, 0
    %v6218 = vperm.slane %v6186, 0
    %vm6219 = vcmp.eq.f32.partialorder %v180, %v6217
    %vm6220 = vcmp.eq.f32.partialorder %v180, %v6218
    %vm6221 = vcmp.eq.f32.partialorder %v181, %v6217
    %vm6222 = vcmp.eq.f32.partialorder %v181, %v6218
    %vm6223 = vcmp.eq.f32.partialorder %v300, %v6217
    %vm6224 = vcmp.eq.f32.partialorder %v300, %v6218
    %v6225 = vperm.slane %v6211, 0
    %v6226 = vperm.slane %v6212, 0
    %v6227 = vsel %vm6219, %v6225, 0.0
    %v6228 = vsel %vm6220, %v6226, 0.0
    %v6229 = vsel %vm6221, %v6225, 0.0
    %v6230 = vsel %vm6222, %v6226, 0.0
    %v6231 = vsel %vm6223, %v6225, 0.0
    %v6232 = vsel %vm6224, %v6226, 0.0
    %v6233 = vperm.slane %v6191, 0
    %v6234 = vperm.slane %v6192, 0
    %vm6235 = vcmp.eq.f32.partialorder %v180, %v6233
    %vm6236 = vcmp.eq.f32.partialorder %v180, %v6234
    %vm6237 = vcmp.eq.f32.partialorder %v181, %v6233
    %vm6238 = vcmp.eq.f32.partialorder %v181, %v6234
    %vm6239 = vcmp.eq.f32.partialorder %v300, %v6233
    %vm6240 = vcmp.eq.f32.partialorder %v300, %v6234
    %v6241 = vperm.slane %v6215, 0
    %v6242 = vperm.slane %v6216, 0
    %v6243 = vsel %vm6235, %v6241, 0.0
    %v6244 = vsel %vm6236, %v6242, 0.0
    %v6245 = vsel %vm6237, %v6241, 0.0
    %v6246 = vsel %vm6238, %v6242, 0.0
    %v6247 = vsel %vm6239, %v6241, 0.0
    %v6248 = vsel %vm6240, %v6242, 0.0
    %v6249 = vadd.f32 %v6227, %v6243
    %v6250 = vadd.f32 %v6228, %v6244
    %v6251 = vadd.f32 %v6229, %v6245
    %v6252 = vadd.f32 %v6230, %v6246
    %v6253 = vadd.f32 %v6231, %v6247
    %v6254 = vadd.f32 %v6232, %v6248
    %v6255 = vperm.slane %v6175, 0
    %v6256 = vperm.slane %v6176, 0
    %vm6257 = vcmp.eq.f32.partialorder %v180, %v6255
    %vm6258 = vcmp.eq.f32.partialorder %v180, %v6256
    %vm6259 = vcmp.eq.f32.partialorder %v181, %v6255
    %vm6260 = vcmp.eq.f32.partialorder %v181, %v6256
    %vm6261 = vcmp.eq.f32.partialorder %v300, %v6255
    %vm6262 = vcmp.eq.f32.partialorder %v300, %v6256
    %v6263 = vperm.slane %v6203, 0
    %v6264 = vperm.slane %v6204, 0
    %v6265 = vsel %vm6257, %v6263, 0.0
    %v6266 = vsel %vm6258, %v6264, 0.0
    %v6267 = vsel %vm6259, %v6263, 0.0
    %v6268 = vsel %vm6260, %v6264, 0.0
    %v6269 = vsel %vm6261, %v6263, 0.0
    %v6270 = vsel %vm6262, %v6264, 0.0
    %v6271 = vperm.slane %v6181, 0
    %v6272 = vperm.slane %v6182, 0
    %vm6273 = vcmp.eq.f32.partialorder %v180, %v6271
    %vm6274 = vcmp.eq.f32.partialorder %v180, %v6272
    %vm6275 = vcmp.eq.f32.partialorder %v181, %v6271
    %vm6276 = vcmp.eq.f32.partialorder %v181, %v6272
    %vm6277 = vcmp.eq.f32.partialorder %v300, %v6271
    %vm6278 = vcmp.eq.f32.partialorder %v300, %v6272
    %v6279 = vperm.slane %v6207, 0
    %v6280 = vperm.slane %v6208, 0
    %v6281 = vsel %vm6273, %v6279, 0.0
    %v6282 = vsel %vm6274, %v6280, 0.0
    %v6283 = vsel %vm6275, %v6279, 0.0
    %v6284 = vsel %vm6276, %v6280, 0.0
    %v6285 = vsel %vm6277, %v6279, 0.0
    %v6286 = vsel %vm6278, %v6280, 0.0
    %v6287 = vadd.f32 %v6265, %v6281
    %v6288 = vadd.f32 %v6266, %v6282
    %v6289 = vadd.f32 %v6267, %v6283
    %v6290 = vadd.f32 %v6268, %v6284
    %v6291 = vadd.f32 %v6269, %v6285
    %v6292 = vadd.f32 %v6270, %v6286
    %v6293 = vld [vmem:[%s3556] sm:$0xff]
    %v6294 = vld [vmem:[%s3556 + $0x8] sm:$0xff]
    %v6295 = vld [vmem:[%s3556 + $0x10] sm:$0xff]
    %v6296 = vld [vmem:[%s3556 + $0x18] sm:$0xff]
    %v6297 = vld [vmem:[%s3556 + $0x20] sm:$0xff]
    %v6298 = vld [vmem:[%s3556 + $0x28] sm:$0xff]
    %v6299 = vld [vmem:[%s3556 + $0x30] sm:$0xff]
    %v6300 = vld [vmem:[%s3556 + $0x38] sm:$0xff]
    %v6301 = vld [vmem:[%s3556 + $0x40] sm:$0xff]
    %v6302 = vld [vmem:[%s3556 + $0x48] sm:$0xff]
    %v6303 = vld [vmem:[%s3556 + $0x50] sm:$0xff]
    %v6304 = vld [vmem:[%s3556 + $0x58] sm:$0xff]
    %v6306 = vsel %vm441, %v6293, 0
    %v6309 = vsel %vm441, %v6294, 0
    %v6312 = vsel %vm441, %v6295, 0
    %v6315 = vsel %vm441, %v6296, 0
    %v6318 = vsel %vm441, %v6297, 0
    %v6321 = vsel %vm441, %v6298, 0
    %v6324 = vsel %vm441, %v6299, 0
    %v6327 = vsel %vm441, %v6300, 0
    %v6330 = vsel %vm441, %v6301, 0
    %v6333 = vsel %vm441, %v6302, 0
    %v6336 = vsel %vm441, %v6303, 0
    %v6339 = vsel %vm441, %v6304, 0
    %6341 = vmatpush.msra.mxu0 0.0
    %6342 = vmatpush.msra.mxu0 0.0
    %6343 = vmatpush.msra.mxu0 0.0
    %6344 = vmatpush.msra.mxu0 0.0
    %6345 = vmatpush.msra.mxu0 0.0
    %6346 = vmatpush.msra.mxu0 0.0
    %6347 = vmatpush.msra.mxu0 0.0
    %6348 = vmatpush.msra.mxu0 0.0
    %6349 = vmatpush.msra.mxu0 0.0
    %6350 = vmatpush.msra.mxu0 0.0
    %6351 = vmatpush.msra.mxu0 0.0
    %6352 = vmatpush.msra.mxu0 0.0
    %6353 = vmatpush.msra.mxu0 0.0
    %6354 = vmatpush.msra.mxu0 %v6253
    %6355 = vmatpush.msra.mxu0 %v6251
    %6356 = vmatpush.msra.mxu0 %v6249
    %6357 = vmatmul.f32.gmra.mxu0 %v6306
    %v6358 = vpop.f32.mrf.mxu0
    %v6359 = vadd.f32 0.0, %v6358
    %6360 = vmatmul.f32.gmra.mxu0 %v6309
    %v6361 = vpop.f32.mrf.mxu0
    %v6362 = vadd.f32 0.0, %v6361
    %6363 = vmatmul.f32.gmra.mxu0 %v6312
    %v6364 = vpop.f32.mrf.mxu0
    %v6365 = vadd.f32 0.0, %v6364
    %6366 = vmatmul.f32.gmra.mxu0 %v6315
    %v6367 = vpop.f32.mrf.mxu0
    %v6368 = vadd.f32 0.0, %v6367
    %6369 = vmatmul.f32.gmra.mxu0 %v6318
    %v6370 = vpop.f32.mrf.mxu0
    %v6371 = vadd.f32 0.0, %v6370
    %6372 = vmatmul.f32.gmra.mxu0 %v6321
    %v6373 = vpop.f32.mrf.mxu0
    %v6374 = vadd.f32 0.0, %v6373
    %6375 = vmatmul.f32.gmra.mxu0 %v6324
    %v6376 = vpop.f32.mrf.mxu0
    %v6377 = vadd.f32 0.0, %v6376
    %6378 = vmatmul.f32.gmra.mxu0 %v6327
    %v6379 = vpop.f32.mrf.mxu0
    %v6380 = vadd.f32 0.0, %v6379
    %6381 = vmatmul.f32.gmra.mxu0 %v6330
    %v6382 = vpop.f32.mrf.mxu0
    %v6383 = vadd.f32 0.0, %v6382
    %6384 = vmatmul.f32.gmra.mxu0 %v6333
    %v6385 = vpop.f32.mrf.mxu0
    %v6386 = vadd.f32 0.0, %v6385
    %6387 = vmatmul.f32.gmra.mxu0 %v6336
    %v6388 = vpop.f32.mrf.mxu0
    %v6389 = vadd.f32 0.0, %v6388
    %6390 = vmatmul.f32.gmra.mxu0 %v6339
    %v6391 = vpop.f32.mrf.mxu0
    %v6392 = vadd.f32 0.0, %v6391
    %6393 = vdwg.mxu0
    %6394 = vmatpush.msra.mxu0 0.0
    %6395 = vmatpush.msra.mxu0 0.0
    %6396 = vmatpush.msra.mxu0 0.0
    %6397 = vmatpush.msra.mxu0 0.0
    %6398 = vmatpush.msra.mxu0 0.0
    %6399 = vmatpush.msra.mxu0 0.0
    %6400 = vmatpush.msra.mxu0 0.0
    %6401 = vmatpush.msra.mxu0 0.0
    %6402 = vmatpush.msra.mxu0 0.0
    %6403 = vmatpush.msra.mxu0 0.0
    %6404 = vmatpush.msra.mxu0 0.0
    %6405 = vmatpush.msra.mxu0 0.0
    %6406 = vmatpush.msra.mxu0 0.0
    %6407 = vmatpush.msra.mxu0 %v6254
    %6408 = vmatpush.msra.mxu0 %v6252
    %6409 = vmatpush.msra.mxu0 %v6250
    %6410 = vmatmul.f32.gmra.mxu0 %v6306
    %v6411 = vpop.f32.mrf.mxu0
    %v6412 = vadd.f32 0.0, %v6411
    %6413 = vmatmul.f32.gmra.mxu0 %v6309
    %v6414 = vpop.f32.mrf.mxu0
    %v6415 = vadd.f32 0.0, %v6414
    %6416 = vmatmul.f32.gmra.mxu0 %v6312
    %v6417 = vpop.f32.mrf.mxu0
    %v6418 = vadd.f32 0.0, %v6417
    %6419 = vmatmul.f32.gmra.mxu0 %v6315
    %v6420 = vpop.f32.mrf.mxu0
    %v6421 = vadd.f32 0.0, %v6420
    %6422 = vmatmul.f32.gmra.mxu0 %v6318
    %v6423 = vpop.f32.mrf.mxu0
    %v6424 = vadd.f32 0.0, %v6423
    %6425 = vmatmul.f32.gmra.mxu0 %v6321
    %v6426 = vpop.f32.mrf.mxu0
    %v6427 = vadd.f32 0.0, %v6426
    %6428 = vmatmul.f32.gmra.mxu0 %v6324
    %v6429 = vpop.f32.mrf.mxu0
    %v6430 = vadd.f32 0.0, %v6429
    %6431 = vmatmul.f32.gmra.mxu0 %v6327
    %v6432 = vpop.f32.mrf.mxu0
    %v6433 = vadd.f32 0.0, %v6432
    %6434 = vmatmul.f32.gmra.mxu0 %v6330
    %v6435 = vpop.f32.mrf.mxu0
    %v6436 = vadd.f32 0.0, %v6435
    %6437 = vmatmul.f32.gmra.mxu0 %v6333
    %v6438 = vpop.f32.mrf.mxu0
    %v6439 = vadd.f32 0.0, %v6438
    %6440 = vmatmul.f32.gmra.mxu0 %v6336
    %v6441 = vpop.f32.mrf.mxu0
    %v6442 = vadd.f32 0.0, %v6441
    %6443 = vmatmul.f32.gmra.mxu0 %v6339
    %v6444 = vpop.f32.mrf.mxu0
    %v6445 = vadd.f32 0.0, %v6444
    %6446 = vdwg.mxu0
    %v6447 = vmul.f32 %v6359, %v6287
    %v6448 = vmul.f32 %v6412, %v6288
    %v6449 = vmul.f32 %v6362, %v6289
    %v6450 = vmul.f32 %v6415, %v6290
    %v6451 = vmul.f32 %v6365, %v6291
    %v6452 = vmul.f32 %v6418, %v6292
    %v6453 = vmul.f32 %v6368, %v6287
    %v6454 = vmul.f32 %v6421, %v6288
    %v6455 = vmul.f32 %v6371, %v6289
    %v6456 = vmul.f32 %v6424, %v6290
    %v6457 = vmul.f32 %v6374, %v6291
    %v6458 = vmul.f32 %v6427, %v6292
    %v6459 = vmul.f32 %v6377, %v6287
    %v6460 = vmul.f32 %v6430, %v6288
    %v6461 = vmul.f32 %v6380, %v6289
    %v6462 = vmul.f32 %v6433, %v6290
    %v6463 = vmul.f32 %v6383, %v6291
    %v6464 = vmul.f32 %v6436, %v6292
    %v6465 = vmul.f32 %v6386, %v6287
    %v6466 = vmul.f32 %v6439, %v6288
    %v6467 = vmul.f32 %v6389, %v6289
    %v6468 = vmul.f32 %v6442, %v6290
    %v6469 = vmul.f32 %v6392, %v6291
    %v6470 = vmul.f32 %v6445, %v6292
    %v6471 = vadd.f32 %v6447, %v6449
    %v6472 = vadd.f32 %v6471, %v6451
    %v6473 = vrot.slane %v6472, 4
    %v6474 = vadd.f32 %v6472, %v6473
    %v6475 = vrot.slane %v6474, 2
    %v6476 = vadd.f32 %v6474, %v6475
    %v6477 = vrot.slane %v6476, 1
    %v6478 = vadd.f32 %v6476, %v6477
    %v6479 = vadd.f32 %v6448, %v6450
    %v6480 = vadd.f32 %v6479, %v6452
    %v6481 = vrot.slane %v6480, 4
    %v6482 = vadd.f32 %v6480, %v6481
    %v6483 = vrot.slane %v6482, 2
    %v6484 = vadd.f32 %v6482, %v6483
    %v6485 = vrot.slane %v6484, 1
    %v6486 = vadd.f32 %v6484, %v6485
    %v6487 = vadd.f32 %v6453, %v6455
    %v6488 = vadd.f32 %v6487, %v6457
    %v6489 = vrot.slane %v6488, 4
    %v6490 = vadd.f32 %v6488, %v6489
    %v6491 = vrot.slane %v6490, 2
    %v6492 = vadd.f32 %v6490, %v6491
    %v6493 = vrot.slane %v6492, 1
    %v6494 = vadd.f32 %v6492, %v6493
    %v6495 = vadd.f32 %v6454, %v6456
    %v6496 = vadd.f32 %v6495, %v6458
    %v6497 = vrot.slane %v6496, 4
    %v6498 = vadd.f32 %v6496, %v6497
    %v6499 = vrot.slane %v6498, 2
    %v6500 = vadd.f32 %v6498, %v6499
    %v6501 = vrot.slane %v6500, 1
    %v6502 = vadd.f32 %v6500, %v6501
    %v6503 = vadd.f32 %v6459, %v6461
    %v6504 = vadd.f32 %v6503, %v6463
    %v6505 = vrot.slane %v6504, 4
    %v6506 = vadd.f32 %v6504, %v6505
    %v6507 = vrot.slane %v6506, 2
    %v6508 = vadd.f32 %v6506, %v6507
    %v6509 = vrot.slane %v6508, 1
    %v6510 = vadd.f32 %v6508, %v6509
    %v6511 = vadd.f32 %v6460, %v6462
    %v6512 = vadd.f32 %v6511, %v6464
    %v6513 = vrot.slane %v6512, 4
    %v6514 = vadd.f32 %v6512, %v6513
    %v6515 = vrot.slane %v6514, 2
    %v6516 = vadd.f32 %v6514, %v6515
    %v6517 = vrot.slane %v6516, 1
    %v6518 = vadd.f32 %v6516, %v6517
    %v6519 = vadd.f32 %v6465, %v6467
    %v6520 = vadd.f32 %v6519, %v6469
    %v6521 = vrot.slane %v6520, 4
    %v6522 = vadd.f32 %v6520, %v6521
    %v6523 = vrot.slane %v6522, 2
    %v6524 = vadd.f32 %v6522, %v6523
    %v6525 = vrot.slane %v6524, 1
    %v6526 = vadd.f32 %v6524, %v6525
    %v6527 = vadd.f32 %v6466, %v6468
    %v6528 = vadd.f32 %v6527, %v6470
    %v6529 = vrot.slane %v6528, 4
    %v6530 = vadd.f32 %v6528, %v6529
    %v6531 = vrot.slane %v6530, 2
    %v6532 = vadd.f32 %v6530, %v6531
    %v6533 = vrot.slane %v6532, 1
    %v6534 = vadd.f32 %v6532, %v6533
    %v6543 = vsel %vm680, %v6494, %v6478
    %v6544 = vsel %vm682, %v6510, %v6543
    %v6545 = vsel %vm684, %v6526, %v6544
    %v6546 = vsel %vm680, %v6502, %v6486
    %v6547 = vsel %vm682, %v6518, %v6546
    %v6548 = vsel %vm684, %v6534, %v6547
    %6551 = vst [vmem:[#allocation2 + $0x90] sm:$0xf] %v6545
    %6552 = vst [vmem:[#allocation2 + $0x98] sm:$0xf] %v6548
    %v6553 = vld [vmem:[%s3] sm:$0xff]
    %v6554 = vld [vmem:[#allocation2] sm:$0xff]
    %v6555 = vld [vmem:[#allocation2 + $0x8] sm:$0xff]
    %v6556 = vld [vmem:[#allocation2 + $0x10] sm:$0xff]
    %v6557 = vld [vmem:[#allocation2 + $0x18] sm:$0xff]
    %v6558 = vld [vmem:[#allocation2 + $0x20] sm:$0xff]
    %v6559 = vld [vmem:[#allocation2 + $0x28] sm:$0xff]
    %v6560 = vld [vmem:[#allocation2 + $0x30] sm:$0xff]
    %v6561 = vld [vmem:[#allocation2 + $0x38] sm:$0xff]
    %v6562 = vld [vmem:[#allocation2 + $0x40] sm:$0xff]
    %v6563 = vld [vmem:[#allocation2 + $0x48] sm:$0xff]
    %v6564 = vld [vmem:[#allocation2 + $0x50] sm:$0xff]
    %v6565 = vld [vmem:[#allocation2 + $0x58] sm:$0xff]
    %v6566 = vld [vmem:[#allocation2 + $0x60] sm:$0xff]
    %v6567 = vld [vmem:[#allocation2 + $0x68] sm:$0xff]
    %v6568 = vld [vmem:[#allocation2 + $0x70] sm:$0xff]
    %v6569 = vld [vmem:[#allocation2 + $0x78] sm:$0xff]
    %v6570 = vld [vmem:[#allocation2 + $0x80] sm:$0xff]
    %v6571 = vld [vmem:[#allocation2 + $0x88] sm:$0xff]
    %v6572 = vld [vmem:[#allocation2 + $0x90] sm:$0xff]
    %v6573 = vld [vmem:[#allocation2 + $0x98] sm:$0xff]
    %vm6574 = vcmask 326656
    %v6576 = vsel %vm6574, %v6553, 0
    %6578 = vmatpush.msra.mxu0 0.0
    %6579 = vmatpush.msra.mxu0 0.0
    %6580 = vmatpush.msra.mxu0 0.0
    %6581 = vmatpush.msra.mxu0 0.0
    %6582 = vmatpush.msra.mxu0 0.0
    %6583 = vmatpush.msra.mxu0 0.0
    %6584 = vmatpush.msra.mxu0 0.0
    %6585 = vmatpush.msra.mxu0 0.0
    %6586 = vmatpush.msra.mxu0 0.0
    %6587 = vmatpush.msra.mxu0 0.0
    %6588 = vmatpush.msra.mxu0 0.0
    %6589 = vmatpush.msra.mxu0 %v6570
    %6590 = vmatpush.msra.mxu0 %v6566
    %6591 = vmatpush.msra.mxu0 %v6562
    %6592 = vmatpush.msra.mxu0 %v6558
    %6593 = vmatpush.msra.mxu0 %v6554
    %6594 = vmatmul.f32.gmra.mxu0 %v6576
    %v6595 = vpop.f32.mrf.mxu0
    %v6596 = vadd.f32 0.0, %v6595
    %6597 = vdwg.mxu0
    %6598 = vmatpush.msra.mxu0 0.0
    %6599 = vmatpush.msra.mxu0 0.0
    %6600 = vmatpush.msra.mxu0 0.0
    %6601 = vmatpush.msra.mxu0 0.0
    %6602 = vmatpush.msra.mxu0 0.0
    %6603 = vmatpush.msra.mxu0 0.0
    %6604 = vmatpush.msra.mxu0 0.0
    %6605 = vmatpush.msra.mxu0 0.0
    %6606 = vmatpush.msra.mxu0 0.0
    %6607 = vmatpush.msra.mxu0 0.0
    %6608 = vmatpush.msra.mxu0 0.0
    %6609 = vmatpush.msra.mxu0 %v6571
    %6610 = vmatpush.msra.mxu0 %v6567
    %6611 = vmatpush.msra.mxu0 %v6563
    %6612 = vmatpush.msra.mxu0 %v6559
    %6613 = vmatpush.msra.mxu0 %v6555
    %6614 = vmatmul.f32.gmra.mxu0 %v6576
    %v6615 = vpop.f32.mrf.mxu0
    %v6616 = vadd.f32 0.0, %v6615
    %6617 = vdwg.mxu0
    %6618 = vmatpush.msra.mxu0 0.0
    %6619 = vmatpush.msra.mxu0 0.0
    %6620 = vmatpush.msra.mxu0 0.0
    %6621 = vmatpush.msra.mxu0 0.0
    %6622 = vmatpush.msra.mxu0 0.0
    %6623 = vmatpush.msra.mxu0 0.0
    %6624 = vmatpush.msra.mxu0 0.0
    %6625 = vmatpush.msra.mxu0 0.0
    %6626 = vmatpush.msra.mxu0 0.0
    %6627 = vmatpush.msra.mxu0 0.0
    %6628 = vmatpush.msra.mxu0 0.0
    %6629 = vmatpush.msra.mxu0 %v6572
    %6630 = vmatpush.msra.mxu0 %v6568
    %6631 = vmatpush.msra.mxu0 %v6564
    %6632 = vmatpush.msra.mxu0 %v6560
    %6633 = vmatpush.msra.mxu0 %v6556
    %6634 = vmatmul.f32.gmra.mxu0 %v6576
    %v6635 = vpop.f32.mrf.mxu0
    %v6636 = vadd.f32 0.0, %v6635
    %6637 = vdwg.mxu0
    %6638 = vmatpush.msra.mxu0 0.0
    %6639 = vmatpush.msra.mxu0 0.0
    %6640 = vmatpush.msra.mxu0 0.0
    %6641 = vmatpush.msra.mxu0 0.0
    %6642 = vmatpush.msra.mxu0 0.0
    %6643 = vmatpush.msra.mxu0 0.0
    %6644 = vmatpush.msra.mxu0 0.0
    %6645 = vmatpush.msra.mxu0 0.0
    %6646 = vmatpush.msra.mxu0 0.0
    %6647 = vmatpush.msra.mxu0 0.0
    %6648 = vmatpush.msra.mxu0 0.0
    %6649 = vmatpush.msra.mxu0 %v6573
    %6650 = vmatpush.msra.mxu0 %v6569
    %6651 = vmatpush.msra.mxu0 %v6565
    %6652 = vmatpush.msra.mxu0 %v6561
    %6653 = vmatpush.msra.mxu0 %v6557
    %6654 = vmatmul.f32.gmra.mxu0 %v6576
    %v6655 = vpop.f32.mrf.mxu0
    %v6656 = vadd.f32 0.0, %v6655
    %6657 = vdwg.mxu0
    %6658 = vst [vmem:[#allocation3] sm:$0xff] %v6596
    %6659 = vst [vmem:[#allocation3 + $0x8] sm:$0xff] %v6616
    %s6660 = scalar_lea.vmem [#allocation3], 16
    %6661 = vst [vmem:[%s6660] sm:$0xff] %v6636
    %6662 = vst [vmem:[%s6660 + $0x8] sm:$0xff] %v6656
    // Predicated region
    $region18: #{tpu_custom_call.1} parent=1 // pred_check
      _
    $region19: #{tpu_custom_call.1} parent=1 // pred_check_branch
      %6664 = sbr.rel (0) target = $region21
    $region20: #{tpu_custom_call.1} parent=1 // pred_region
      %6666 = vsyncadd [#allocation4], 0
      %s6667 = sshll.u32 [#allocation3], 4
      %s6668 = int_to_ptr.vmem [resolvable:$true] %s6667
      %s6669 = sshll.u32 %s4, 4
      %s6670 = int_to_ptr.hbm [resolvable:$true] %s6669
      %6675 = dma.vmem_to_hbm [thread:$0]  %s6668, 512, %s6670, [#allocation4], 256, 256, 16
    $region21: #{tpu_custom_call.1} parent=1 // pred_fallthru
      _
    // Predicated region
    $region22: #{tpu_custom_call.1} parent=1 // pred_check
      _
    $region23: #{tpu_custom_call.1} parent=1 // pred_check_branch
      %6677 = sbr.rel (0) target = $region25
    $region24: #{tpu_custom_call.1} parent=1 // pred_region
      %6679 = dma.done [#allocation4], 512
    $region25: #{tpu_custom_call.1} parent=1 // pred_fallthru
      _
    %6680 = vsyncpa [#allocation4], 1

</llo_original>
